<compile_context>
chip_gen: v6e
topology: v6e:2x2x1
jax: 0.10.0
libtpu: 0.0.40
codegen_flags: <defaults>
</compile_context>

<pallas_src>
import functools

import jax
import jax.numpy as jnp
from jax.experimental import pallas as pl
from jax.experimental.pallas import tpu as pltpu


# ----------------------------------------------------------------------------- #
# Pallas kernels
# ----------------------------------------------------------------------------- #
def _mm_stats_kernel(a_ref, b_ref, o_ref, stats_ref):
    """bf16 x bf16 -> f32 matmul; epilogue emits per-column sum (row 0) and
    sum-of-squares (row 1) of this M-block into an (1, 8, N) stats block."""
    acc = jnp.dot(a_ref[...], b_ref[...], preferred_element_type=jnp.float32)
    o_ref[...] = acc
    n = acc.shape[1]
    colsum = jnp.sum(acc, axis=0, keepdims=True)            # (1, N)
    colssq = jnp.sum(acc * acc, axis=0, keepdims=True)      # (1, N)
    row = jax.lax.broadcasted_iota(jnp.int32, (8, n), 0)
    packed = jnp.where(row == 0, colsum, 0.0) + jnp.where(row == 1, colssq, 0.0)
    stats_ref[...] = packed[None]                           # (1, 8, N)


def _mm_bias_tanh_kernel(a_ref, b_ref, bias_ref, o_ref):
    """Final conv: matmul + bias + tanh fused in the epilogue (no BatchNorm)."""
    acc = jnp.dot(a_ref[...], b_ref[...], preferred_element_type=jnp.float32)
    o_ref[...] = jnp.tanh(acc + bias_ref[...])


def _affine_act_kernel(x_ref, s_ref, t_ref, o_ref, *, act):
    y = x_ref[...] * s_ref[...] + t_ref[...]
    if act == "relu":
        y = jnp.maximum(y, 0.0)
    elif act == "tanh":
        y = jnp.tanh(y)
    o_ref[...] = y.astype(o_ref.dtype)


def _affine_res_kernel(x_ref, s_ref, t_ref, r_ref, o_ref):
    y = x_ref[...] * s_ref[...] + t_ref[...] + r_ref[...].astype(jnp.float32)
    o_ref[...] = y.astype(o_ref.dtype)


# ----------------------------------------------------------------------------- #
# Pallas wrappers
# ----------------------------------------------------------------------------- #
def _pick_tm(M):
    """Full-extent M block, split into >=2 blocks (v7x megacore) when the split
    stays sublane-aligned; capped so larger inputs keep blocks VMEM-friendly."""
    if M % 16 != 0:
        return M
    tm = M // 2
    while tm > 512 and tm % 16 == 0:
        tm //= 2
    return tm


def matmul_stats(a, b):
    """a: (M, K), b: (K, N). Returns f32 z=(M,N) and stats=(grid_m, 8, N) where
    stats[:,0]=per-block column sums, stats[:,1]=per-block column sums of squares."""
    M, K = a.shape
    K2, N = b.shape
    assert K == K2
    tm = _pick_tm(M)
    gm = M // tm
    z, stats = pl.pallas_call(
        _mm_stats_kernel,
        out_shape=(jax.ShapeDtypeStruct((M, N), jnp.float32),
                   jax.ShapeDtypeStruct((gm, 8, N), jnp.float32)),
        grid_spec=pltpu.PrefetchScalarGridSpec(
            num_scalar_prefetch=0,
            grid=(gm,),
            in_specs=[pl.BlockSpec((tm, K), lambda i: (i, 0)),
                      pl.BlockSpec((K, N), lambda i: (0, 0))],
            out_specs=[pl.BlockSpec((tm, N), lambda i: (i, 0)),
                       pl.BlockSpec((1, 8, N), lambda i: (i, 0, 0))]),
        compiler_params=pltpu.CompilerParams(
            dimension_semantics=("parallel",)),
    )(a.astype(jnp.bfloat16), b.astype(jnp.bfloat16))
    return z, stats


def matmul_bias_tanh(a, b, bias):
    M, K = a.shape
    K2, N = b.shape
    assert K == K2
    tm = _pick_tm(M)
    gm = M // tm
    return pl.pallas_call(
        _mm_bias_tanh_kernel,
        out_shape=jax.ShapeDtypeStruct((M, N), jnp.float32),
        grid_spec=pltpu.PrefetchScalarGridSpec(
            num_scalar_prefetch=0,
            grid=(gm,),
            in_specs=[pl.BlockSpec((tm, K), lambda i: (i, 0)),
                      pl.BlockSpec((K, N), lambda i: (0, 0)),
                      pl.BlockSpec((1, N), lambda i: (0, 0))],
            out_specs=pl.BlockSpec((tm, N), lambda i: (i, 0))),
        compiler_params=pltpu.CompilerParams(
            dimension_semantics=("parallel",)),
    )(a.astype(jnp.bfloat16), b.astype(jnp.bfloat16),
      bias.reshape(1, N).astype(jnp.float32))


def affine_act(z, scale, shift, act="none", res=None, out_dtype=jnp.bfloat16):
    """y = act(z * scale + shift) (+ res).  z: (M, C) f32; scale/shift: (C,).
    Reshaped to a lane-dense (R, 128) view when possible so the store is an
    unmasked full-lane vst; output dtype bf16 feeds the next layer's im2col."""
    M, C = z.shape
    lane_dense = (M * C) % 128 == 0 and 128 % C == 0
    if lane_dense:
        R, rep = (M * C) // 128, 128 // C
        x = z.reshape(R, 128)
        s = jnp.tile(scale.astype(jnp.float32), rep).reshape(1, 128)
        t = jnp.tile(shift.astype(jnp.float32), rep).reshape(1, 128)
        r = None if res is None else res.reshape(R, 128)
    else:
        x = z
        s = scale.astype(jnp.float32).reshape(1, C)
        t = shift.astype(jnp.float32).reshape(1, C)
        r = res
    out_shape = jax.ShapeDtypeStruct(x.shape, out_dtype)
    if r is None:
        y = pl.pallas_call(functools.partial(_affine_act_kernel, act=act),
                           out_shape=out_shape)(x, s, t)
    else:
        r = r.astype(out_dtype)
        y = pl.pallas_call(_affine_res_kernel, out_shape=out_shape,
                           input_output_aliases={3: 0})(x, s, t, r)
    return y.reshape(M, C)


# ----------------------------------------------------------------------------- #
# Convolution glue (padding, im2col, BN folding, weight prep) -- plain JAX
# ----------------------------------------------------------------------------- #
def reflect_pad(x, p):                                   # x: (N, H, W, C)
    return jnp.pad(x, ((0, 0), (p, p), (p, p), (0, 0)), mode="reflect")


def zero_pad(x, p):
    return jnp.pad(x, ((0, 0), (p, p), (p, p), (0, 0)))


def im2col(x, kh, kw, stride):
    N, H, W, C = x.shape
    Ho = (H - kh) // stride + 1
    Wo = (W - kw) // stride + 1
    cols = []
    for i in range(kh):
        for j in range(kw):
            cols.append(x[:, i:i + stride * Ho:stride, j:j + stride * Wo:stride, :])
    patches = jnp.stack(cols, axis=3)                     # (N, Ho, Wo, kh*kw, C)
    return patches.reshape(N * Ho * Wo, kh * kw * C), (N, Ho, Wo)


def bn_from_stats(psum, pssq, count, gamma, beta, eps=1e-5):
    """BatchNorm2d (training-mode, biased variance) folded into scale/shift,
    computed from the matmul-epilogue partial sums (no re-read of z)."""
    s = jnp.sum(psum, axis=0)
    ss = jnp.sum(pssq, axis=0)
    mean = s / count
    var = jnp.maximum(ss / count - mean * mean, 0.0)
    scale = gamma / jnp.sqrt(var + eps)
    shift = beta - mean * scale
    return scale, shift


def _conv_weight_mat(w):
    """PyTorch Conv2d weight (Cout, Cin, kh, kw) -> (kh*kw*Cin, Cout) bf16."""
    Cout = w.shape[0]
    return jnp.transpose(w, (2, 3, 1, 0)).reshape(-1, Cout).astype(jnp.bfloat16)


def _subpixel_weight_mat(w):
    """ConvTranspose2d weight (Cin, Cout, 3, 3) with stride=2, padding=1,
    output_padding=1 rewritten as a 2x2 'pixel-shuffle' conv weight matrix
    of shape (4*Cin [dy,dx,ci], 4*Cout [a,b,co])  (exact equivalence)."""
    Cin, Cout, kh, kw = w.shape
    assert (kh, kw) == (3, 3)
    m = jnp.zeros((2, 2, Cin, 2, 2, Cout), jnp.float32)
    tap = {(0, 0): 1, (1, 0): 2, (1, 1): 0}   # (output phase, window offset) -> kernel idx
    for a in (0, 1):
        for dy in (0, 1):
            ky = tap.get((a, dy))
            if ky is None:
                continue
            for b in (0, 1):
                for dx in (0, 1):
                    kx = tap.get((b, dx))
                    if kx is None:
                        continue
                    m = m.at[dy, dx, :, a, b, :].set(w[:, :, ky, kx])
    return m.reshape(4 * Cin, 4 * Cout).astype(jnp.bfloat16)


def prepare_params(p, n_res=3):
    """Hoist all weight repacking / bf16 casts out of the per-call forward."""
    q = {"c0_wmat": _conv_weight_mat(p["c0_w"]), "c0_g": p["c0_g"], "c0_beta": p["c0_beta"]}
    for idx in (1, 2):
        q[f"d{idx}_wmat"] = _conv_weight_mat(p[f"d{idx}_w"])
        q[f"d{idx}_g"], q[f"d{idx}_beta"] = p[f"d{idx}_g"], p[f"d{idx}_beta"]
    for i in range(n_res):
        for half in ("a", "b"):
            q[f"r{i}{half}_wmat"] = _conv_weight_mat(p[f"r{i}{half}_w"])
            q[f"r{i}{half}_g"] = p[f"r{i}{half}_g"]
            q[f"r{i}{half}_beta"] = p[f"r{i}{half}_beta"]
    for idx in (1, 2):
        q[f"u{idx}_wmat"] = _subpixel_weight_mat(p[f"u{idx}_w"])
        q[f"u{idx}_g"], q[f"u{idx}_beta"] = p[f"u{idx}_g"], p[f"u{idx}_beta"]
    q["cf_wmat"] = _conv_weight_mat(p["cf_w"])
    q["cf_b"] = p["cf_b"]
    return q
    # Note: conv biases that feed straight into BatchNorm cancel analytically -> dropped.


# ----------------------------------------------------------------------------- #
# Layer helpers
# ----------------------------------------------------------------------------- #
def _conv_bn(h, w_mat, k, stride, pad_mode, pad, gamma, beta, act="relu", res=None):
    hp = reflect_pad(h, pad) if pad_mode == "reflect" else zero_pad(h, pad)
    patches, (N, Ho, Wo) = im2col(hp, k, k, stride)
    Cout = w_mat.shape[1]
    z, stats = matmul_stats(patches, w_mat)
    scale, shift = bn_from_stats(stats[:, 0, :], stats[:, 1, :], z.shape[0], gamma, beta)
    y = affine_act(z, scale, shift, act=act, res=res, out_dtype=jnp.bfloat16)
    return y.reshape(N, Ho, Wo, Cout)


def _convT_bn_relu(h, w_ps, gamma, beta):
    """ConvTranspose2d(k=3,s=2,p=1,op=1) + BN + ReLU via pixel-shuffle matmul."""
    N, H, W, Cin = h.shape
    Cout = w_ps.shape[1] // 4
    hp = jnp.pad(h, ((0, 0), (0, 1), (0, 1), (0, 0)))      # bottom/right zero pad
    patches, _ = im2col(hp, 2, 2, 1)                        # (N*H*W, 4*Cin)
    z, stats = matmul_stats(patches, w_ps)                  # (M, 4*Cout)
    # per-channel BN stats aggregated across the 4 output phases
    scale, shift = bn_from_stats(stats[:, 0, :].reshape(-1, Cout),
                                 stats[:, 1, :].reshape(-1, Cout),
                                 4 * z.shape[0], gamma, beta)
    y = affine_act(z, jnp.tile(scale, 4), jnp.tile(shift, 4),
                   act="relu", out_dtype=jnp.bfloat16)      # (M, 4*Cout)
    y = y.reshape(N, H, W, 2, 2, Cout)
    y = jnp.transpose(y, (0, 1, 3, 2, 4, 5)).reshape(N, 2 * H, 2 * W, Cout)
    return y


# ----------------------------------------------------------------------------- #
# Parameters and forward pass
# ----------------------------------------------------------------------------- #
def init_params(key, cin, cout, n_res=3):
    p = {}
    keys = iter(jax.random.split(key, 256))

    def w(shape, scale=0.1):
        return scale * jax.random.normal(next(keys), shape, jnp.float32)

    f = 16
    p["c0_w"] = w((f, cin, 7, 7)); p["c0_b"] = w((f,))
    p["c0_g"] = 1.0 + w((f,));     p["c0_beta"] = w((f,))
    for idx in (1, 2):
        p[f"d{idx}_w"] = w((f * 2, f, 3, 3)); p[f"d{idx}_b"] = w((f * 2,))
        p[f"d{idx}_g"] = 1.0 + w((f * 2,));   p[f"d{idx}_beta"] = w((f * 2,))
        f *= 2
    for i in range(n_res):
        for half in ("a", "b"):
            p[f"r{i}{half}_w"] = w((f, f, 3, 3)); p[f"r{i}{half}_b"] = w((f,))
            p[f"r{i}{half}_g"] = 1.0 + w((f,));   p[f"r{i}{half}_beta"] = w((f,))
    for idx in (1, 2):
        p[f"u{idx}_w"] = w((f, f // 2, 3, 3))          # ConvTranspose2d: (Cin, Cout, kh, kw)
        p[f"u{idx}_b"] = w((f // 2,))
        p[f"u{idx}_g"] = 1.0 + w((f // 2,)); p[f"u{idx}_beta"] = w((f // 2,))
        f //= 2
    p["cf_w"] = w((cout, f, 7, 7)); p["cf_b"] = w((cout,))
    return p


def cycle_generator_forward(x_nchw, q, n_res=3):
    x = jnp.transpose(x_nchw, (0, 2, 3, 1)).astype(jnp.bfloat16)   # NCHW -> NHWC, bf16

    # Initial: ReflectionPad(3) -> Conv 7x7 -> BN -> ReLU
    h = _conv_bn(x, q["c0_wmat"], 7, 1, "reflect", 3, q["c0_g"], q["c0_beta"], act="relu")

    # Two stride-2 downsampling convs (zero pad=1) -> BN -> ReLU
    for idx in (1, 2):
        h = _conv_bn(h, q[f"d{idx}_wmat"], 3, 2, "zero", 1,
                     q[f"d{idx}_g"], q[f"d{idx}_beta"], act="relu")

    # Residual blocks
    for i in range(n_res):
        res = h.reshape(-1, h.shape[-1])
        u = _conv_bn(h, q[f"r{i}a_wmat"], 3, 1, "reflect", 1,
                     q[f"r{i}a_g"], q[f"r{i}a_beta"], act="relu")
        h = _conv_bn(u, q[f"r{i}b_wmat"], 3, 1, "reflect", 1,
                     q[f"r{i}b_g"], q[f"r{i}b_beta"], act="none", res=res)

    # Two stride-2 transposed convs -> BN -> ReLU
    for idx in (1, 2):
        h = _convT_bn_relu(h, q[f"u{idx}_wmat"], q[f"u{idx}_g"], q[f"u{idx}_beta"])

    # Final: ReflectionPad(3) -> Conv 7x7 (+bias) -> Tanh  (fused in matmul epilogue)
    patches, (N, Ho, Wo) = im2col(reflect_pad(h, 3), 7, 7, 1)
    cout = q["cf_wmat"].shape[1]
    out = matmul_bias_tanh(patches, q["cf_wmat"], q["cf_b"]).reshape(N, Ho, Wo, cout)
    return jnp.transpose(out, (0, 3, 1, 2))                # NHWC -> NCHW, f32


# ----------------------------------------------------------------------------- #
if __name__ == "__main__":
    key = jax.random.PRNGKey(0)
    pkey, xkey = jax.random.split(key)

    IN_C, OUT_C = 4, 4
    raw_params = init_params(pkey, IN_C, OUT_C, n_res=3)
    params = prepare_params(raw_params, n_res=3)           # weight repacking hoisted
    x = jax.random.normal(xkey, (2, IN_C, 16, 16), jnp.float32)

    fwd = jax.jit(cycle_generator_forward)
    y = fwd(x, params)
    y = jax.block_until_ready(y)

    assert y.shape == (2, OUT_C, 16, 16), y.shape
    assert bool(jnp.all(jnp.isfinite(y)))
    assert bool(jnp.all(jnp.abs(y) <= 1.0))                # tanh output range
    print("KERNEL_OK")
</pallas_src>

<mosaic_0001>
module attributes {stable_mosaic.version = 11 : i64} {
  func.func @_mm_stats_kernel(%arg0: i32, %arg1: memref<256x196xbf16, #tpu.memory_space<vmem>>, %arg2: memref<196x16xbf16, #tpu.memory_space<vmem>>, %arg3: memref<256x16xf32, #tpu.memory_space<vmem>>, %arg4: memref<1x8x16xf32, #tpu.memory_space<vmem>>) attributes {dimension_semantics = [#tpu.dimension_semantics<parallel>], iteration_bounds = array<i64: 2>, scalar_prefetch = 0 : i64, scratch_operands = 0 : i64, tpu.core_type = #tpu.core_type<tc>, window_params = [{transform_indices = @transform_0, window_bounds = array<i64: 256, 196>}, {pipeline_mode = #tpu.pipeline_mode<synchronous>, transform_indices = @transform_1, window_bounds = array<i64: 196, 16>}, {transform_indices = @transform_2, window_bounds = array<i64: 256, 16>}, {transform_indices = @transform_3, window_bounds = array<i64: 1, 8, 16>}]} {
    %c0 = arith.constant 0 : index
    %c0_0 = arith.constant 0 : index
    %0 = vector.load %arg1[%c0, %c0_0] : memref<256x196xbf16, #tpu.memory_space<vmem>>, vector<256x196xbf16>
    %c0_1 = arith.constant 0 : index
    %c0_2 = arith.constant 0 : index
    %1 = vector.load %arg2[%c0_1, %c0_2] : memref<196x16xbf16, #tpu.memory_space<vmem>>, vector<196x16xbf16>
    %cst = arith.constant dense<0.000000e+00> : vector<256x16xf32>
    %2 = tpu.matmul %0, %1, %cst {dimension_numbers = #tpu.dot_dimension_numbers<[1], [0], [0], [1], [0, 0, 1, 1], [], []>} : vector<256x196xbf16>, vector<196x16xbf16>, vector<256x16xf32> -> vector<256x16xf32>
    %c0_3 = arith.constant 0 : index
    %c0_4 = arith.constant 0 : index
    %3 = vector.load %arg3[%c0_3, %c0_4] : memref<256x16xf32, #tpu.memory_space<vmem>>, vector<256x16xf32>
    tpu.vector_store %arg3[%c0_3, %c0_4], %2 {strides = array<i32>} : memref<256x16xf32, #tpu.memory_space<vmem>>, vector<256x16xf32>,
    %cst_5 = arith.constant dense<0.000000e+00> : vector<16xf32>
    %4 = vector.multi_reduction <add>, %2, %cst_5 [0] : vector<256x16xf32> to vector<16xf32>
    %5 = vector.shape_cast %4 : vector<16xf32> to vector<1x16xf32>
    %6 = arith.mulf %2, %2 : vector<256x16xf32>
    %cst_6 = arith.constant dense<0.000000e+00> : vector<16xf32>
    %7 = vector.multi_reduction <add>, %6, %cst_6 [0] : vector<256x16xf32> to vector<16xf32>
    %8 = vector.shape_cast %7 : vector<16xf32> to vector<1x16xf32>
    %9 = tpu.iota {dimensions = array<i32: 0>} : vector<8x16xi32>
    %c0_i32 = arith.constant 0 : i32
    %10 = vector.broadcast %c0_i32 : i32 to vector<8x16xi32>
    %11 = arith.cmpi eq, %9, %10 : vector<8x16xi32>
    %cst_7 = arith.constant 0.000000e+00 : f32
    %12 = vector.shape_cast %5 : vector<1x16xf32> to vector<1x16xf32>
    %13 = vector.broadcast %12 : vector<1x16xf32> to vector<8x16xf32>
    %14 = vector.broadcast %cst_7 : f32 to vector<8x16xf32>
    %15 = arith.select %11, %13, %14 : vector<8x16xi1>, vector<8x16xf32>
    %c1_i32 = arith.constant 1 : i32
    %16 = vector.broadcast %c1_i32 : i32 to vector<8x16xi32>
    %17 = arith.cmpi eq, %9, %16 : vector<8x16xi32>
    %cst_8 = arith.constant 0.000000e+00 : f32
    %18 = vector.shape_cast %8 : vector<1x16xf32> to vector<1x16xf32>
    %19 = vector.broadcast %18 : vector<1x16xf32> to vector<8x16xf32>
    %20 = vector.broadcast %cst_8 : f32 to vector<8x16xf32>
    %21 = arith.select %17, %19, %20 : vector<8x16xi1>, vector<8x16xf32>
    %22 = arith.addf %15, %21 : vector<8x16xf32>
    %23 = vector.shape_cast %22 : vector<8x16xf32> to vector<1x8x16xf32>
    %c0_9 = arith.constant 0 : index
    %c0_10 = arith.constant 0 : index
    %c0_11 = arith.constant 0 : index
    %24 = vector.load %arg4[%c0_9, %c0_10, %c0_11] : memref<1x8x16xf32, #tpu.memory_space<vmem>>, vector<1x8x16xf32>
    tpu.vector_store %arg4[%c0_9, %c0_10, %c0_11], %23 {strides = array<i32>} : memref<1x8x16xf32, #tpu.memory_space<vmem>>, vector<1x8x16xf32>,
    return
  }
  func.func @transform_0(%arg0: i32) -> (i32, i32) {
    %c0_i32 = arith.constant 0 : i32
    %c0_i32_0 = arith.constant 0 : i32
    return %arg0, %c0_i32 : i32, i32
  }
  func.func @transform_1(%arg0: i32) -> (i32, i32) {
    %c0_i32 = arith.constant 0 : i32
    %c0_i32_0 = arith.constant 0 : i32
    %c0_i32_1 = arith.constant 0 : i32
    return %c0_i32, %c0_i32_0 : i32, i32
  }
  func.func @transform_2(%arg0: i32) -> (i32, i32) {
    %c0_i32 = arith.constant 0 : i32
    %c0_i32_0 = arith.constant 0 : i32
    return %arg0, %c0_i32 : i32, i32
  }
  func.func @transform_3(%arg0: i32) -> (i32, i32, i32) {
    %c0_i32 = arith.constant 0 : i32
    %c0_i32_0 = arith.constant 0 : i32
    %c0_i32_1 = arith.constant 0 : i32
    return %arg0, %c0_i32, %c0_i32_0 : i32, i32, i32
  }
}

module attributes {stable_mosaic.version = 11 : i64} {
  func.func @_affine_act_kernel(%arg0: memref<64x128xf32, #tpu.memory_space<vmem>>, %arg1: memref<1x128xf32, #tpu.memory_space<vmem>>, %arg2: memref<1x128xf32, #tpu.memory_space<vmem>>, %arg3: memref<64x128xbf16, #tpu.memory_space<vmem>>) attributes {dimension_semantics = [], scalar_prefetch = 0 : i64, scratch_operands = 0 : i64, tpu.core_type = #tpu.core_type<tc>} {
    %c0 = arith.constant 0 : index
    %c0_0 = arith.constant 0 : index
    %0 = vector.load %arg0[%c0, %c0_0] : memref<64x128xf32, #tpu.memory_space<vmem>>, vector<64x128xf32>
    %c0_1 = arith.constant 0 : index
    %c0_2 = arith.constant 0 : index
    %1 = vector.load %arg1[%c0_1, %c0_2] : memref<1x128xf32, #tpu.memory_space<vmem>>, vector<1x128xf32>
    %2 = vector.broadcast %1 : vector<1x128xf32> to vector<64x128xf32>
    %3 = arith.mulf %0, %2 : vector<64x128xf32>
    %c0_3 = arith.constant 0 : index
    %c0_4 = arith.constant 0 : index
    %4 = vector.load %arg2[%c0_3, %c0_4] : memref<1x128xf32, #tpu.memory_space<vmem>>, vector<1x128xf32>
    %5 = vector.broadcast %4 : vector<1x128xf32> to vector<64x128xf32>
    %6 = arith.addf %3, %5 : vector<64x128xf32>
    %cst = arith.constant 0.000000e+00 : f32
    %7 = vector.broadcast %cst : f32 to vector<64x128xf32>
    %8 = arith.maximumf %6, %7 : vector<64x128xf32>
    %9 = arith.truncf %8 : vector<64x128xf32> to vector<64x128xbf16>
    %c0_5 = arith.constant 0 : index
    %c0_6 = arith.constant 0 : index
    %10 = vector.load %arg3[%c0_5, %c0_6] : memref<64x128xbf16, #tpu.memory_space<vmem>>, vector<64x128xbf16>
    tpu.vector_store %arg3[%c0_5, %c0_6], %9 {strides = array<i32>} : memref<64x128xbf16, #tpu.memory_space<vmem>>, vector<64x128xbf16>,
    return
  }
}

module attributes {stable_mosaic.version = 11 : i64} {
  func.func @_mm_stats_kernel(%arg0: i32, %arg1: memref<64x144xbf16, #tpu.memory_space<vmem>>, %arg2: memref<144x32xbf16, #tpu.memory_space<vmem>>, %arg3: memref<64x32xf32, #tpu.memory_space<vmem>>, %arg4: memref<1x8x32xf32, #tpu.memory_space<vmem>>) attributes {dimension_semantics = [#tpu.dimension_semantics<parallel>], iteration_bounds = array<i64: 2>, scalar_prefetch = 0 : i64, scratch_operands = 0 : i64, tpu.core_type = #tpu.core_type<tc>, window_params = [{transform_indices = @transform_0, window_bounds = array<i64: 64, 144>}, {pipeline_mode = #tpu.pipeline_mode<synchronous>, transform_indices = @transform_1, window_bounds = array<i64: 144, 32>}, {transform_indices = @transform_2, window_bounds = array<i64: 64, 32>}, {transform_indices = @transform_3, window_bounds = array<i64: 1, 8, 32>}]} {
    %c0 = arith.constant 0 : index
    %c0_0 = arith.constant 0 : index
    %0 = vector.load %arg1[%c0, %c0_0] : memref<64x144xbf16, #tpu.memory_space<vmem>>, vector<64x144xbf16>
    %c0_1 = arith.constant 0 : index
    %c0_2 = arith.constant 0 : index
    %1 = vector.load %arg2[%c0_1, %c0_2] : memref<144x32xbf16, #tpu.memory_space<vmem>>, vector<144x32xbf16>
    %cst = arith.constant dense<0.000000e+00> : vector<64x32xf32>
    %2 = tpu.matmul %0, %1, %cst {dimension_numbers = #tpu.dot_dimension_numbers<[1], [0], [0], [1], [0, 0, 1, 1], [], []>} : vector<64x144xbf16>, vector<144x32xbf16>, vector<64x32xf32> -> vector<64x32xf32>
    %c0_3 = arith.constant 0 : index
    %c0_4 = arith.constant 0 : index
    %3 = vector.load %arg3[%c0_3, %c0_4] : memref<64x32xf32, #tpu.memory_space<vmem>>, vector<64x32xf32>
    tpu.vector_store %arg3[%c0_3, %c0_4], %2 {strides = array<i32>} : memref<64x32xf32, #tpu.memory_space<vmem>>, vector<64x32xf32>,
    %cst_5 = arith.constant dense<0.000000e+00> : vector<32xf32>
    %4 = vector.multi_reduction <add>, %2, %cst_5 [0] : vector<64x32xf32> to vector<32xf32>
    %5 = vector.shape_cast %4 : vector<32xf32> to vector<1x32xf32>
    %6 = arith.mulf %2, %2 : vector<64x32xf32>
    %cst_6 = arith.constant dense<0.000000e+00> : vector<32xf32>
    %7 = vector.multi_reduction <add>, %6, %cst_6 [0] : vector<64x32xf32> to vector<32xf32>
    %8 = vector.shape_cast %7 : vector<32xf32> to vector<1x32xf32>
    %9 = tpu.iota {dimensions = array<i32: 0>} : vector<8x32xi32>
    %c0_i32 = arith.constant 0 : i32
    %10 = vector.broadcast %c0_i32 : i32 to vector<8x32xi32>
    %11 = arith.cmpi eq, %9, %10 : vector<8x32xi32>
    %cst_7 = arith.constant 0.000000e+00 : f32
    %12 = vector.shape_cast %5 : vector<1x32xf32> to vector<1x32xf32>
    %13 = vector.broadcast %12 : vector<1x32xf32> to vector<8x32xf32>
    %14 = vector.broadcast %cst_7 : f32 to vector<8x32xf32>
    %15 = arith.select %11, %13, %14 : vector<8x32xi1>, vector<8x32xf32>
    %c1_i32 = arith.constant 1 : i32
    %16 = vector.broadcast %c1_i32 : i32 to vector<8x32xi32>
    %17 = arith.cmpi eq, %9, %16 : vector<8x32xi32>
    %cst_8 = arith.constant 0.000000e+00 : f32
    %18 = vector.shape_cast %8 : vector<1x32xf32> to vector<1x32xf32>
    %19 = vector.broadcast %18 : vector<1x32xf32> to vector<8x32xf32>
    %20 = vector.broadcast %cst_8 : f32 to vector<8x32xf32>
    %21 = arith.select %17, %19, %20 : vector<8x32xi1>, vector<8x32xf32>
    %22 = arith.addf %15, %21 : vector<8x32xf32>
    %23 = vector.shape_cast %22 : vector<8x32xf32> to vector<1x8x32xf32>
    %c0_9 = arith.constant 0 : index
    %c0_10 = arith.constant 0 : index
    %c0_11 = arith.constant 0 : index
    %24 = vector.load %arg4[%c0_9, %c0_10, %c0_11] : memref<1x8x32xf32, #tpu.memory_space<vmem>>, vector<1x8x32xf32>
    tpu.vector_store %arg4[%c0_9, %c0_10, %c0_11], %23 {strides = array<i32>} : memref<1x8x32xf32, #tpu.memory_space<vmem>>, vector<1x8x32xf32>,
    return
  }
  func.func @transform_0(%arg0: i32) -> (i32, i32) {
    %c0_i32 = arith.constant 0 : i32
    %c0_i32_0 = arith.constant 0 : i32
    return %arg0, %c0_i32 : i32, i32
  }
  func.func @transform_1(%arg0: i32) -> (i32, i32) {
    %c0_i32 = arith.constant 0 : i32
    %c0_i32_0 = arith.constant 0 : i32
    %c0_i32_1 = arith.constant 0 : i32
    return %c0_i32, %c0_i32_0 : i32, i32
  }
  func.func @transform_2(%arg0: i32) -> (i32, i32) {
    %c0_i32 = arith.constant 0 : i32
    %c0_i32_0 = arith.constant 0 : i32
    return %arg0, %c0_i32 : i32, i32
  }
  func.func @transform_3(%arg0: i32) -> (i32, i32, i32) {
    %c0_i32 = arith.constant 0 : i32
    %c0_i32_0 = arith.constant 0 : i32
    %c0_i32_1 = arith.constant 0 : i32
    return %arg0, %c0_i32, %c0_i32_0 : i32, i32, i32
  }
}

module attributes {stable_mosaic.version = 11 : i64} {
  func.func @_affine_act_kernel(%arg0: memref<32x128xf32, #tpu.memory_space<vmem>>, %arg1: memref<1x128xf32, #tpu.memory_space<vmem>>, %arg2: memref<1x128xf32, #tpu.memory_space<vmem>>, %arg3: memref<32x128xbf16, #tpu.memory_space<vmem>>) attributes {dimension_semantics = [], scalar_prefetch = 0 : i64, scratch_operands = 0 : i64, tpu.core_type = #tpu.core_type<tc>} {
    %c0 = arith.constant 0 : index
    %c0_0 = arith.constant 0 : index
    %0 = vector.load %arg0[%c0, %c0_0] : memref<32x128xf32, #tpu.memory_space<vmem>>, vector<32x128xf32>
    %c0_1 = arith.constant 0 : index
    %c0_2 = arith.constant 0 : index
    %1 = vector.load %arg1[%c0_1, %c0_2] : memref<1x128xf32, #tpu.memory_space<vmem>>, vector<1x128xf32>
    %2 = vector.broadcast %1 : vector<1x128xf32> to vector<32x128xf32>
    %3 = arith.mulf %0, %2 : vector<32x128xf32>
    %c0_3 = arith.constant 0 : index
    %c0_4 = arith.constant 0 : index
    %4 = vector.load %arg2[%c0_3, %c0_4] : memref<1x128xf32, #tpu.memory_space<vmem>>, vector<1x128xf32>
    %5 = vector.broadcast %4 : vector<1x128xf32> to vector<32x128xf32>
    %6 = arith.addf %3, %5 : vector<32x128xf32>
    %cst = arith.constant 0.000000e+00 : f32
    %7 = vector.broadcast %cst : f32 to vector<32x128xf32>
    %8 = arith.maximumf %6, %7 : vector<32x128xf32>
    %9 = arith.truncf %8 : vector<32x128xf32> to vector<32x128xbf16>
    %c0_5 = arith.constant 0 : index
    %c0_6 = arith.constant 0 : index
    %10 = vector.load %arg3[%c0_5, %c0_6] : memref<32x128xbf16, #tpu.memory_space<vmem>>, vector<32x128xbf16>
    tpu.vector_store %arg3[%c0_5, %c0_6], %9 {strides = array<i32>} : memref<32x128xbf16, #tpu.memory_space<vmem>>, vector<32x128xbf16>,
    return
  }
}

module attributes {stable_mosaic.version = 11 : i64} {
  func.func @_affine_act_kernel(%arg0: memref<16x128xf32, #tpu.memory_space<vmem>>, %arg1: memref<1x128xf32, #tpu.memory_space<vmem>>, %arg2: memref<1x128xf32, #tpu.memory_space<vmem>>, %arg3: memref<16x128xbf16, #tpu.memory_space<vmem>>) attributes {dimension_semantics = [], scalar_prefetch = 0 : i64, scratch_operands = 0 : i64, tpu.core_type = #tpu.core_type<tc>} {
    %c0 = arith.constant 0 : index
    %c0_0 = arith.constant 0 : index
    %0 = vector.load %arg0[%c0, %c0_0] : memref<16x128xf32, #tpu.memory_space<vmem>>, vector<16x128xf32>
    %c0_1 = arith.constant 0 : index
    %c0_2 = arith.constant 0 : index
    %1 = vector.load %arg1[%c0_1, %c0_2] : memref<1x128xf32, #tpu.memory_space<vmem>>, vector<1x128xf32>
    %2 = vector.broadcast %1 : vector<1x128xf32> to vector<16x128xf32>
    %3 = arith.mulf %0, %2 : vector<16x128xf32>
    %c0_3 = arith.constant 0 : index
    %c0_4 = arith.constant 0 : index
    %4 = vector.load %arg2[%c0_3, %c0_4] : memref<1x128xf32, #tpu.memory_space<vmem>>, vector<1x128xf32>
    %5 = vector.broadcast %4 : vector<1x128xf32> to vector<16x128xf32>
    %6 = arith.addf %3, %5 : vector<16x128xf32>
    %cst = arith.constant 0.000000e+00 : f32
    %7 = vector.broadcast %cst : f32 to vector<16x128xf32>
    %8 = arith.maximumf %6, %7 : vector<16x128xf32>
    %9 = arith.truncf %8 : vector<16x128xf32> to vector<16x128xbf16>
    %c0_5 = arith.constant 0 : index
    %c0_6 = arith.constant 0 : index
    %10 = vector.load %arg3[%c0_5, %c0_6] : memref<16x128xbf16, #tpu.memory_space<vmem>>, vector<16x128xbf16>
    tpu.vector_store %arg3[%c0_5, %c0_6], %9 {strides = array<i32>} : memref<16x128xbf16, #tpu.memory_space<vmem>>, vector<16x128xbf16>,
    return
  }
}

module attributes {stable_mosaic.version = 11 : i64} {
  func.func @_mm_stats_kernel(%arg0: i32, %arg1: memref<16x288xbf16, #tpu.memory_space<vmem>>, %arg2: memref<288x64xbf16, #tpu.memory_space<vmem>>, %arg3: memref<16x64xf32, #tpu.memory_space<vmem>>, %arg4: memref<1x8x64xf32, #tpu.memory_space<vmem>>) attributes {dimension_semantics = [#tpu.dimension_semantics<parallel>], iteration_bounds = array<i64: 2>, scalar_prefetch = 0 : i64, scratch_operands = 0 : i64, tpu.core_type = #tpu.core_type<tc>, window_params = [{transform_indices = @transform_0, window_bounds = array<i64: 16, 288>}, {pipeline_mode = #tpu.pipeline_mode<synchronous>, transform_indices = @transform_1, window_bounds = array<i64: 288, 64>}, {transform_indices = @transform_2, window_bounds = array<i64: 16, 64>}, {transform_indices = @transform_3, window_bounds = array<i64: 1, 8, 64>}]} {
    %c0 = arith.constant 0 : index
    %c0_0 = arith.constant 0 : index
    %0 = vector.load %arg1[%c0, %c0_0] : memref<16x288xbf16, #tpu.memory_space<vmem>>, vector<16x288xbf16>
    %c0_1 = arith.constant 0 : index
    %c0_2 = arith.constant 0 : index
    %1 = vector.load %arg2[%c0_1, %c0_2] : memref<288x64xbf16, #tpu.memory_space<vmem>>, vector<288x64xbf16>
    %cst = arith.constant dense<0.000000e+00> : vector<16x64xf32>
    %2 = tpu.matmul %0, %1, %cst {dimension_numbers = #tpu.dot_dimension_numbers<[1], [0], [0], [1], [0, 0, 1, 1], [], []>} : vector<16x288xbf16>, vector<288x64xbf16>, vector<16x64xf32> -> vector<16x64xf32>
    %c0_3 = arith.constant 0 : index
    %c0_4 = arith.constant 0 : index
    %3 = vector.load %arg3[%c0_3, %c0_4] : memref<16x64xf32, #tpu.memory_space<vmem>>, vector<16x64xf32>
    tpu.vector_store %arg3[%c0_3, %c0_4], %2 {strides = array<i32>} : memref<16x64xf32, #tpu.memory_space<vmem>>, vector<16x64xf32>,
    %cst_5 = arith.constant dense<0.000000e+00> : vector<64xf32>
    %4 = vector.multi_reduction <add>, %2, %cst_5 [0] : vector<16x64xf32> to vector<64xf32>
    %5 = vector.shape_cast %4 : vector<64xf32> to vector<1x64xf32>
    %6 = arith.mulf %2, %2 : vector<16x64xf32>
    %cst_6 = arith.constant dense<0.000000e+00> : vector<64xf32>
    %7 = vector.multi_reduction <add>, %6, %cst_6 [0] : vector<16x64xf32> to vector<64xf32>
    %8 = vector.shape_cast %7 : vector<64xf32> to vector<1x64xf32>
    %9 = tpu.iota {dimensions = array<i32: 0>} : vector<8x64xi32>
    %c0_i32 = arith.constant 0 : i32
    %10 = vector.broadcast %c0_i32 : i32 to vector<8x64xi32>
    %11 = arith.cmpi eq, %9, %10 : vector<8x64xi32>
    %cst_7 = arith.constant 0.000000e+00 : f32
    %12 = vector.shape_cast %5 : vector<1x64xf32> to vector<1x64xf32>
    %13 = vector.broadcast %12 : vector<1x64xf32> to vector<8x64xf32>
    %14 = vector.broadcast %cst_7 : f32 to vector<8x64xf32>
    %15 = arith.select %11, %13, %14 : vector<8x64xi1>, vector<8x64xf32>
    %c1_i32 = arith.constant 1 : i32
    %16 = vector.broadcast %c1_i32 : i32 to vector<8x64xi32>
    %17 = arith.cmpi eq, %9, %16 : vector<8x64xi32>
    %cst_8 = arith.constant 0.000000e+00 : f32
    %18 = vector.shape_cast %8 : vector<1x64xf32> to vector<1x64xf32>
    %19 = vector.broadcast %18 : vector<1x64xf32> to vector<8x64xf32>
    %20 = vector.broadcast %cst_8 : f32 to vector<8x64xf32>
    %21 = arith.select %17, %19, %20 : vector<8x64xi1>, vector<8x64xf32>
    %22 = arith.addf %15, %21 : vector<8x64xf32>
    %23 = vector.shape_cast %22 : vector<8x64xf32> to vector<1x8x64xf32>
    %c0_9 = arith.constant 0 : index
    %c0_10 = arith.constant 0 : index
    %c0_11 = arith.constant 0 : index
    %24 = vector.load %arg4[%c0_9, %c0_10, %c0_11] : memref<1x8x64xf32, #tpu.memory_space<vmem>>, vector<1x8x64xf32>
    tpu.vector_store %arg4[%c0_9, %c0_10, %c0_11], %23 {strides = array<i32>} : memref<1x8x64xf32, #tpu.memory_space<vmem>>, vector<1x8x64xf32>,
    return
  }
  func.func @transform_0(%arg0: i32) -> (i32, i32) {
    %c0_i32 = arith.constant 0 : i32
    %c0_i32_0 = arith.constant 0 : i32
    return %arg0, %c0_i32 : i32, i32
  }
  func.func @transform_1(%arg0: i32) -> (i32, i32) {
    %c0_i32 = arith.constant 0 : i32
    %c0_i32_0 = arith.constant 0 : i32
    %c0_i32_1 = arith.constant 0 : i32
    return %c0_i32, %c0_i32_0 : i32, i32
  }
  func.func @transform_2(%arg0: i32) -> (i32, i32) {
    %c0_i32 = arith.constant 0 : i32
    %c0_i32_0 = arith.constant 0 : i32
    return %arg0, %c0_i32 : i32, i32
  }
  func.func @transform_3(%arg0: i32) -> (i32, i32, i32) {
    %c0_i32 = arith.constant 0 : i32
    %c0_i32_0 = arith.constant 0 : i32
    %c0_i32_1 = arith.constant 0 : i32
    return %arg0, %c0_i32, %c0_i32_0 : i32, i32, i32
  }
}

module attributes {stable_mosaic.version = 11 : i64} {
  func.func @_affine_res_kernel(%arg0: memref<16x128xf32, #tpu.memory_space<vmem>>, %arg1: memref<1x128xf32, #tpu.memory_space<vmem>>, %arg2: memref<1x128xf32, #tpu.memory_space<vmem>>, %arg3: memref<16x128xbf16, #tpu.memory_space<vmem>>, %arg4: memref<16x128xbf16, #tpu.memory_space<vmem>>) attributes {dimension_semantics = [], scalar_prefetch = 0 : i64, scratch_operands = 0 : i64, tpu.core_type = #tpu.core_type<tc>} {
    %c0 = arith.constant 0 : index
    %c0_0 = arith.constant 0 : index
    %0 = vector.load %arg0[%c0, %c0_0] : memref<16x128xf32, #tpu.memory_space<vmem>>, vector<16x128xf32>
    %c0_1 = arith.constant 0 : index
    %c0_2 = arith.constant 0 : index
    %1 = vector.load %arg1[%c0_1, %c0_2] : memref<1x128xf32, #tpu.memory_space<vmem>>, vector<1x128xf32>
    %2 = vector.broadcast %1 : vector<1x128xf32> to vector<16x128xf32>
    %3 = arith.mulf %0, %2 : vector<16x128xf32>
    %c0_3 = arith.constant 0 : index
    %c0_4 = arith.constant 0 : index
    %4 = vector.load %arg2[%c0_3, %c0_4] : memref<1x128xf32, #tpu.memory_space<vmem>>, vector<1x128xf32>
    %5 = vector.broadcast %4 : vector<1x128xf32> to vector<16x128xf32>
    %6 = arith.addf %3, %5 : vector<16x128xf32>
    %c0_5 = arith.constant 0 : index
    %c0_6 = arith.constant 0 : index
    %7 = vector.load %arg3[%c0_5, %c0_6] : memref<16x128xbf16, #tpu.memory_space<vmem>>, vector<16x128xbf16>
    %8 = arith.extf %7 : vector<16x128xbf16> to vector<16x128xf32>
    %9 = arith.addf %6, %8 : vector<16x128xf32>
    %10 = arith.truncf %9 : vector<16x128xf32> to vector<16x128xbf16>
    %c0_7 = arith.constant 0 : index
    %c0_8 = arith.constant 0 : index
    %11 = vector.load %arg4[%c0_7, %c0_8] : memref<16x128xbf16, #tpu.memory_space<vmem>>, vector<16x128xbf16>
    tpu.vector_store %arg4[%c0_7, %c0_8], %10 {strides = array<i32>} : memref<16x128xbf16, #tpu.memory_space<vmem>>, vector<16x128xbf16>,
    return
  }
}

module attributes {stable_mosaic.version = 11 : i64} {
  func.func @_mm_stats_kernel(%arg0: i32, %arg1: memref<16x576xbf16, #tpu.memory_space<vmem>>, %arg2: memref<576x64xbf16, #tpu.memory_space<vmem>>, %arg3: memref<16x64xf32, #tpu.memory_space<vmem>>, %arg4: memref<1x8x64xf32, #tpu.memory_space<vmem>>) attributes {dimension_semantics = [#tpu.dimension_semantics<parallel>], iteration_bounds = array<i64: 2>, scalar_prefetch = 0 : i64, scratch_operands = 0 : i64, tpu.core_type = #tpu.core_type<tc>, window_params = [{transform_indices = @transform_0, window_bounds = array<i64: 16, 576>}, {pipeline_mode = #tpu.pipeline_mode<synchronous>, transform_indices = @transform_1, window_bounds = array<i64: 576, 64>}, {transform_indices = @transform_2, window_bounds = array<i64: 16, 64>}, {transform_indices = @transform_3, window_bounds = array<i64: 1, 8, 64>}]} {
    %c0 = arith.constant 0 : index
    %c0_0 = arith.constant 0 : index
    %0 = vector.load %arg1[%c0, %c0_0] : memref<16x576xbf16, #tpu.memory_space<vmem>>, vector<16x576xbf16>
    %c0_1 = arith.constant 0 : index
    %c0_2 = arith.constant 0 : index
    %1 = vector.load %arg2[%c0_1, %c0_2] : memref<576x64xbf16, #tpu.memory_space<vmem>>, vector<576x64xbf16>
    %cst = arith.constant dense<0.000000e+00> : vector<16x64xf32>
    %2 = tpu.matmul %0, %1, %cst {dimension_numbers = #tpu.dot_dimension_numbers<[1], [0], [0], [1], [0, 0, 1, 1], [], []>} : vector<16x576xbf16>, vector<576x64xbf16>, vector<16x64xf32> -> vector<16x64xf32>
    %c0_3 = arith.constant 0 : index
    %c0_4 = arith.constant 0 : index
    %3 = vector.load %arg3[%c0_3, %c0_4] : memref<16x64xf32, #tpu.memory_space<vmem>>, vector<16x64xf32>
    tpu.vector_store %arg3[%c0_3, %c0_4], %2 {strides = array<i32>} : memref<16x64xf32, #tpu.memory_space<vmem>>, vector<16x64xf32>,
    %cst_5 = arith.constant dense<0.000000e+00> : vector<64xf32>
    %4 = vector.multi_reduction <add>, %2, %cst_5 [0] : vector<16x64xf32> to vector<64xf32>
    %5 = vector.shape_cast %4 : vector<64xf32> to vector<1x64xf32>
    %6 = arith.mulf %2, %2 : vector<16x64xf32>
    %cst_6 = arith.constant dense<0.000000e+00> : vector<64xf32>
    %7 = vector.multi_reduction <add>, %6, %cst_6 [0] : vector<16x64xf32> to vector<64xf32>
    %8 = vector.shape_cast %7 : vector<64xf32> to vector<1x64xf32>
    %9 = tpu.iota {dimensions = array<i32: 0>} : vector<8x64xi32>
    %c0_i32 = arith.constant 0 : i32
    %10 = vector.broadcast %c0_i32 : i32 to vector<8x64xi32>
    %11 = arith.cmpi eq, %9, %10 : vector<8x64xi32>
    %cst_7 = arith.constant 0.000000e+00 : f32
    %12 = vector.shape_cast %5 : vector<1x64xf32> to vector<1x64xf32>
    %13 = vector.broadcast %12 : vector<1x64xf32> to vector<8x64xf32>
    %14 = vector.broadcast %cst_7 : f32 to vector<8x64xf32>
    %15 = arith.select %11, %13, %14 : vector<8x64xi1>, vector<8x64xf32>
    %c1_i32 = arith.constant 1 : i32
    %16 = vector.broadcast %c1_i32 : i32 to vector<8x64xi32>
    %17 = arith.cmpi eq, %9, %16 : vector<8x64xi32>
    %cst_8 = arith.constant 0.000000e+00 : f32
    %18 = vector.shape_cast %8 : vector<1x64xf32> to vector<1x64xf32>
    %19 = vector.broadcast %18 : vector<1x64xf32> to vector<8x64xf32>
    %20 = vector.broadcast %cst_8 : f32 to vector<8x64xf32>
    %21 = arith.select %17, %19, %20 : vector<8x64xi1>, vector<8x64xf32>
    %22 = arith.addf %15, %21 : vector<8x64xf32>
    %23 = vector.shape_cast %22 : vector<8x64xf32> to vector<1x8x64xf32>
    %c0_9 = arith.constant 0 : index
    %c0_10 = arith.constant 0 : index
    %c0_11 = arith.constant 0 : index
    %24 = vector.load %arg4[%c0_9, %c0_10, %c0_11] : memref<1x8x64xf32, #tpu.memory_space<vmem>>, vector<1x8x64xf32>
    tpu.vector_store %arg4[%c0_9, %c0_10, %c0_11], %23 {strides = array<i32>} : memref<1x8x64xf32, #tpu.memory_space<vmem>>, vector<1x8x64xf32>,
    return
  }
  func.func @transform_0(%arg0: i32) -> (i32, i32) {
    %c0_i32 = arith.constant 0 : i32
    %c0_i32_0 = arith.constant 0 : i32
    return %arg0, %c0_i32 : i32, i32
  }
  func.func @transform_1(%arg0: i32) -> (i32, i32) {
    %c0_i32 = arith.constant 0 : i32
    %c0_i32_0 = arith.constant 0 : i32
    %c0_i32_1 = arith.constant 0 : i32
    return %c0_i32, %c0_i32_0 : i32, i32
  }
  func.func @transform_2(%arg0: i32) -> (i32, i32) {
    %c0_i32 = arith.constant 0 : i32
    %c0_i32_0 = arith.constant 0 : i32
    return %arg0, %c0_i32 : i32, i32
  }
  func.func @transform_3(%arg0: i32) -> (i32, i32, i32) {
    %c0_i32 = arith.constant 0 : i32
    %c0_i32_0 = arith.constant 0 : i32
    %c0_i32_1 = arith.constant 0 : i32
    return %arg0, %c0_i32, %c0_i32_0 : i32, i32, i32
  }
}

module attributes {stable_mosaic.version = 11 : i64} {
  func.func @_mm_stats_kernel(%arg0: i32, %arg1: memref<16x256xbf16, #tpu.memory_space<vmem>>, %arg2: memref<256x128xbf16, #tpu.memory_space<vmem>>, %arg3: memref<16x128xf32, #tpu.memory_space<vmem>>, %arg4: memref<1x8x128xf32, #tpu.memory_space<vmem>>) attributes {dimension_semantics = [#tpu.dimension_semantics<parallel>], iteration_bounds = array<i64: 2>, scalar_prefetch = 0 : i64, scratch_operands = 0 : i64, tpu.core_type = #tpu.core_type<tc>, window_params = [{transform_indices = @transform_0, window_bounds = array<i64: 16, 256>}, {pipeline_mode = #tpu.pipeline_mode<synchronous>, transform_indices = @transform_1, window_bounds = array<i64: 256, 128>}, {transform_indices = @transform_2, window_bounds = array<i64: 16, 128>}, {transform_indices = @transform_3, window_bounds = array<i64: 1, 8, 128>}]} {
    %c0 = arith.constant 0 : index
    %c0_0 = arith.constant 0 : index
    %0 = vector.load %arg1[%c0, %c0_0] : memref<16x256xbf16, #tpu.memory_space<vmem>>, vector<16x256xbf16>
    %c0_1 = arith.constant 0 : index
    %c0_2 = arith.constant 0 : index
    %1 = vector.load %arg2[%c0_1, %c0_2] : memref<256x128xbf16, #tpu.memory_space<vmem>>, vector<256x128xbf16>
    %cst = arith.constant dense<0.000000e+00> : vector<16x128xf32>
    %2 = tpu.matmul %0, %1, %cst {dimension_numbers = #tpu.dot_dimension_numbers<[1], [0], [0], [1], [0, 0, 1, 1], [], []>} : vector<16x256xbf16>, vector<256x128xbf16>, vector<16x128xf32> -> vector<16x128xf32>
    %c0_3 = arith.constant 0 : index
    %c0_4 = arith.constant 0 : index
    %3 = vector.load %arg3[%c0_3, %c0_4] : memref<16x128xf32, #tpu.memory_space<vmem>>, vector<16x128xf32>
    tpu.vector_store %arg3[%c0_3, %c0_4], %2 {strides = array<i32>} : memref<16x128xf32, #tpu.memory_space<vmem>>, vector<16x128xf32>,
    %cst_5 = arith.constant dense<0.000000e+00> : vector<128xf32>
    %4 = vector.multi_reduction <add>, %2, %cst_5 [0] : vector<16x128xf32> to vector<128xf32>
    %5 = vector.shape_cast %4 : vector<128xf32> to vector<1x128xf32>
    %6 = arith.mulf %2, %2 : vector<16x128xf32>
    %cst_6 = arith.constant dense<0.000000e+00> : vector<128xf32>
    %7 = vector.multi_reduction <add>, %6, %cst_6 [0] : vector<16x128xf32> to vector<128xf32>
    %8 = vector.shape_cast %7 : vector<128xf32> to vector<1x128xf32>
    %9 = tpu.iota {dimensions = array<i32: 0>} : vector<8x128xi32>
    %c0_i32 = arith.constant 0 : i32
    %10 = vector.broadcast %c0_i32 : i32 to vector<8x128xi32>
    %11 = arith.cmpi eq, %9, %10 : vector<8x128xi32>
    %cst_7 = arith.constant 0.000000e+00 : f32
    %12 = vector.shape_cast %5 : vector<1x128xf32> to vector<1x128xf32>
    %13 = vector.broadcast %12 : vector<1x128xf32> to vector<8x128xf32>
    %14 = vector.broadcast %cst_7 : f32 to vector<8x128xf32>
    %15 = arith.select %11, %13, %14 : vector<8x128xi1>, vector<8x128xf32>
    %c1_i32 = arith.constant 1 : i32
    %16 = vector.broadcast %c1_i32 : i32 to vector<8x128xi32>
    %17 = arith.cmpi eq, %9, %16 : vector<8x128xi32>
    %cst_8 = arith.constant 0.000000e+00 : f32
    %18 = vector.shape_cast %8 : vector<1x128xf32> to vector<1x128xf32>
    %19 = vector.broadcast %18 : vector<1x128xf32> to vector<8x128xf32>
    %20 = vector.broadcast %cst_8 : f32 to vector<8x128xf32>
    %21 = arith.select %17, %19, %20 : vector<8x128xi1>, vector<8x128xf32>
    %22 = arith.addf %15, %21 : vector<8x128xf32>
    %23 = vector.shape_cast %22 : vector<8x128xf32> to vector<1x8x128xf32>
    %c0_9 = arith.constant 0 : index
    %c0_10 = arith.constant 0 : index
    %c0_11 = arith.constant 0 : index
    %24 = vector.load %arg4[%c0_9, %c0_10, %c0_11] : memref<1x8x128xf32, #tpu.memory_space<vmem>>, vector<1x8x128xf32>
    tpu.vector_store %arg4[%c0_9, %c0_10, %c0_11], %23 {strides = array<i32>} : memref<1x8x128xf32, #tpu.memory_space<vmem>>, vector<1x8x128xf32>,
    return
  }
  func.func @transform_0(%arg0: i32) -> (i32, i32) {
    %c0_i32 = arith.constant 0 : i32
    %c0_i32_0 = arith.constant 0 : i32
    return %arg0, %c0_i32 : i32, i32
  }
  func.func @transform_1(%arg0: i32) -> (i32, i32) {
    %c0_i32 = arith.constant 0 : i32
    %c0_i32_0 = arith.constant 0 : i32
    %c0_i32_1 = arith.constant 0 : i32
    return %c0_i32, %c0_i32_0 : i32, i32
  }
  func.func @transform_2(%arg0: i32) -> (i32, i32) {
    %c0_i32 = arith.constant 0 : i32
    %c0_i32_0 = arith.constant 0 : i32
    return %arg0, %c0_i32 : i32, i32
  }
  func.func @transform_3(%arg0: i32) -> (i32, i32, i32) {
    %c0_i32 = arith.constant 0 : i32
    %c0_i32_0 = arith.constant 0 : i32
    %c0_i32_1 = arith.constant 0 : i32
    return %arg0, %c0_i32, %c0_i32_0 : i32, i32, i32
  }
}

module attributes {stable_mosaic.version = 11 : i64} {
  func.func @_mm_stats_kernel(%arg0: i32, %arg1: memref<64x128xbf16, #tpu.memory_space<vmem>>, %arg2: memref<128x64xbf16, #tpu.memory_space<vmem>>, %arg3: memref<64x64xf32, #tpu.memory_space<vmem>>, %arg4: memref<1x8x64xf32, #tpu.memory_space<vmem>>) attributes {dimension_semantics = [#tpu.dimension_semantics<parallel>], iteration_bounds = array<i64: 2>, scalar_prefetch = 0 : i64, scratch_operands = 0 : i64, tpu.core_type = #tpu.core_type<tc>, window_params = [{transform_indices = @transform_0, window_bounds = array<i64: 64, 128>}, {pipeline_mode = #tpu.pipeline_mode<synchronous>, transform_indices = @transform_1, window_bounds = array<i64: 128, 64>}, {transform_indices = @transform_2, window_bounds = array<i64: 64, 64>}, {transform_indices = @transform_3, window_bounds = array<i64: 1, 8, 64>}]} {
    %c0 = arith.constant 0 : index
    %c0_0 = arith.constant 0 : index
    %0 = vector.load %arg1[%c0, %c0_0] : memref<64x128xbf16, #tpu.memory_space<vmem>>, vector<64x128xbf16>
    %c0_1 = arith.constant 0 : index
    %c0_2 = arith.constant 0 : index
    %1 = vector.load %arg2[%c0_1, %c0_2] : memref<128x64xbf16, #tpu.memory_space<vmem>>, vector<128x64xbf16>
    %cst = arith.constant dense<0.000000e+00> : vector<64x64xf32>
    %2 = tpu.matmul %0, %1, %cst {dimension_numbers = #tpu.dot_dimension_numbers<[1], [0], [0], [1], [0, 0, 1, 1], [], []>} : vector<64x128xbf16>, vector<128x64xbf16>, vector<64x64xf32> -> vector<64x64xf32>
    %c0_3 = arith.constant 0 : index
    %c0_4 = arith.constant 0 : index
    %3 = vector.load %arg3[%c0_3, %c0_4] : memref<64x64xf32, #tpu.memory_space<vmem>>, vector<64x64xf32>
    tpu.vector_store %arg3[%c0_3, %c0_4], %2 {strides = array<i32>} : memref<64x64xf32, #tpu.memory_space<vmem>>, vector<64x64xf32>,
    %cst_5 = arith.constant dense<0.000000e+00> : vector<64xf32>
    %4 = vector.multi_reduction <add>, %2, %cst_5 [0] : vector<64x64xf32> to vector<64xf32>
    %5 = vector.shape_cast %4 : vector<64xf32> to vector<1x64xf32>
    %6 = arith.mulf %2, %2 : vector<64x64xf32>
    %cst_6 = arith.constant dense<0.000000e+00> : vector<64xf32>
    %7 = vector.multi_reduction <add>, %6, %cst_6 [0] : vector<64x64xf32> to vector<64xf32>
    %8 = vector.shape_cast %7 : vector<64xf32> to vector<1x64xf32>
    %9 = tpu.iota {dimensions = array<i32: 0>} : vector<8x64xi32>
    %c0_i32 = arith.constant 0 : i32
    %10 = vector.broadcast %c0_i32 : i32 to vector<8x64xi32>
    %11 = arith.cmpi eq, %9, %10 : vector<8x64xi32>
    %cst_7 = arith.constant 0.000000e+00 : f32
    %12 = vector.shape_cast %5 : vector<1x64xf32> to vector<1x64xf32>
    %13 = vector.broadcast %12 : vector<1x64xf32> to vector<8x64xf32>
    %14 = vector.broadcast %cst_7 : f32 to vector<8x64xf32>
    %15 = arith.select %11, %13, %14 : vector<8x64xi1>, vector<8x64xf32>
    %c1_i32 = arith.constant 1 : i32
    %16 = vector.broadcast %c1_i32 : i32 to vector<8x64xi32>
    %17 = arith.cmpi eq, %9, %16 : vector<8x64xi32>
    %cst_8 = arith.constant 0.000000e+00 : f32
    %18 = vector.shape_cast %8 : vector<1x64xf32> to vector<1x64xf32>
    %19 = vector.broadcast %18 : vector<1x64xf32> to vector<8x64xf32>
    %20 = vector.broadcast %cst_8 : f32 to vector<8x64xf32>
    %21 = arith.select %17, %19, %20 : vector<8x64xi1>, vector<8x64xf32>
    %22 = arith.addf %15, %21 : vector<8x64xf32>
    %23 = vector.shape_cast %22 : vector<8x64xf32> to vector<1x8x64xf32>
    %c0_9 = arith.constant 0 : index
    %c0_10 = arith.constant 0 : index
    %c0_11 = arith.constant 0 : index
    %24 = vector.load %arg4[%c0_9, %c0_10, %c0_11] : memref<1x8x64xf32, #tpu.memory_space<vmem>>, vector<1x8x64xf32>
    tpu.vector_store %arg4[%c0_9, %c0_10, %c0_11], %23 {strides = array<i32>} : memref<1x8x64xf32, #tpu.memory_space<vmem>>, vector<1x8x64xf32>,
    return
  }
  func.func @transform_0(%arg0: i32) -> (i32, i32) {
    %c0_i32 = arith.constant 0 : i32
    %c0_i32_0 = arith.constant 0 : i32
    return %arg0, %c0_i32 : i32, i32
  }
  func.func @transform_1(%arg0: i32) -> (i32, i32) {
    %c0_i32 = arith.constant 0 : i32
    %c0_i32_0 = arith.constant 0 : i32
    %c0_i32_1 = arith.constant 0 : i32
    return %c0_i32, %c0_i32_0 : i32, i32
  }
  func.func @transform_2(%arg0: i32) -> (i32, i32) {
    %c0_i32 = arith.constant 0 : i32
    %c0_i32_0 = arith.constant 0 : i32
    return %arg0, %c0_i32 : i32, i32
  }
  func.func @transform_3(%arg0: i32) -> (i32, i32, i32) {
    %c0_i32 = arith.constant 0 : i32
    %c0_i32_0 = arith.constant 0 : i32
    %c0_i32_1 = arith.constant 0 : i32
    return %arg0, %c0_i32, %c0_i32_0 : i32, i32, i32
  }
}

module attributes {stable_mosaic.version = 11 : i64} {
  func.func @_mm_bias_tanh_kernel(%arg0: i32, %arg1: memref<256x784xbf16, #tpu.memory_space<vmem>>, %arg2: memref<784x4xbf16, #tpu.memory_space<vmem>>, %arg3: memref<1x4xf32, #tpu.memory_space<vmem>>, %arg4: memref<256x4xf32, #tpu.memory_space<vmem>>) attributes {dimension_semantics = [#tpu.dimension_semantics<parallel>], iteration_bounds = array<i64: 2>, scalar_prefetch = 0 : i64, scratch_operands = 0 : i64, tpu.core_type = #tpu.core_type<tc>, window_params = [{transform_indices = @transform_0, window_bounds = array<i64: 256, 784>}, {pipeline_mode = #tpu.pipeline_mode<synchronous>, transform_indices = @transform_1, window_bounds = array<i64: 784, 4>}, {pipeline_mode = #tpu.pipeline_mode<synchronous>, transform_indices = @transform_2, window_bounds = array<i64: 1, 4>}, {transform_indices = @transform_3, window_bounds = array<i64: 256, 4>}]} {
    %c0 = arith.constant 0 : index
    %c0_0 = arith.constant 0 : index
    %0 = vector.load %arg1[%c0, %c0_0] : memref<256x784xbf16, #tpu.memory_space<vmem>>, vector<256x784xbf16>
    %c0_1 = arith.constant 0 : index
    %c0_2 = arith.constant 0 : index
    %1 = vector.load %arg2[%c0_1, %c0_2] : memref<784x4xbf16, #tpu.memory_space<vmem>>, vector<784x4xbf16>
    %cst = arith.constant dense<0.000000e+00> : vector<256x4xf32>
    %2 = tpu.matmul %0, %1, %cst {dimension_numbers = #tpu.dot_dimension_numbers<[1], [0], [0], [1], [0, 0, 1, 1], [], []>} : vector<256x784xbf16>, vector<784x4xbf16>, vector<256x4xf32> -> vector<256x4xf32>
    %c0_3 = arith.constant 0 : index
    %c0_4 = arith.constant 0 : index
    %3 = vector.load %arg3[%c0_3, %c0_4] : memref<1x4xf32, #tpu.memory_space<vmem>>, vector<1x4xf32>
    %4 = vector.broadcast %3 : vector<1x4xf32> to vector<256x4xf32>
    %5 = arith.addf %2, %4 : vector<256x4xf32>
    %6 = math.tanh %5 : vector<256x4xf32>
    %c0_5 = arith.constant 0 : index
    %c0_6 = arith.constant 0 : index
    %7 = vector.load %arg4[%c0_5, %c0_6] : memref<256x4xf32, #tpu.memory_space<vmem>>, vector<256x4xf32>
    tpu.vector_store %arg4[%c0_5, %c0_6], %6 {strides = array<i32>} : memref<256x4xf32, #tpu.memory_space<vmem>>, vector<256x4xf32>,
    return
  }
  func.func @transform_0(%arg0: i32) -> (i32, i32) {
    %c0_i32 = arith.constant 0 : i32
    %c0_i32_0 = arith.constant 0 : i32
    return %arg0, %c0_i32 : i32, i32
  }
  func.func @transform_1(%arg0: i32) -> (i32, i32) {
    %c0_i32 = arith.constant 0 : i32
    %c0_i32_0 = arith.constant 0 : i32
    %c0_i32_1 = arith.constant 0 : i32
    return %c0_i32, %c0_i32_0 : i32, i32
  }
  func.func @transform_2(%arg0: i32) -> (i32, i32) {
    %c0_i32 = arith.constant 0 : i32
    %c0_i32_0 = arith.constant 0 : i32
    %c0_i32_1 = arith.constant 0 : i32
    return %c0_i32, %c0_i32_0 : i32, i32
  }
  func.func @transform_3(%arg0: i32) -> (i32, i32) {
    %c0_i32 = arith.constant 0 : i32
    %c0_i32_0 = arith.constant 0 : i32
    return %arg0, %c0_i32 : i32, i32
  }
}

</mosaic_0001>

<llo_original>
// kernel: tile.121
$region0: #{tile.121}
  #allocation0 [shape = 's32[1]{0}', space=sflag, size = 0x4, scoped, tag = 'scoped memory for tile.121']
  %s0 = inlined_call_operand.vmem [shape: f32[16], index: 0, kind: input, shape index: {}]
  %s1 = inlined_call_operand.vmem [shape: f32[8,16], index: 1, kind: output, shape index: {}]
  // Predicated region
  $region2: #{tile.121} parent=0 // pred_check
    _
  $region3: #{tile.121} parent=0 // pred_check_branch
    %3 = sbr.rel (0) target = $region5
  $region4: #{tile.121} parent=0 // pred_region
    _
  $region5: #{tile.121} parent=0 // pred_fallthru
    _
  %v4 = vld [vmem:[%s0] ss:$0 sm:$0xff]
  %5 = vst [vmem:[%s1] sm:$0xff] %v4

// kernel: tile.122
$region0: #{tile.122}
  %s0 = inlined_call_operand.vmem [shape: f32[8,16], index: 0, kind: input, shape index: {}]
  %s1 = inlined_call_operand.vmem [shape: f32[1,128], index: 1, kind: output, shape index: {}]
  $region1: #{tile.122} parent=0
    #allocation0 [shape = 'u8[4096]{0}', space=vmem, size = 0x1000, scoped, tag = 'scoped mem for output reshape']
    %v2 = vld [vmem:[%s0] sm:$0x1]
    %vm3 = vcmask 130048
    %4 = vst.msk [vmem:[#allocation0] sm:$0x1] %vm3, %v2
    %s5 = scalar_lea.vmem %s0, 7
    %v6 = vld [vmem:[%s5] sm:$0x1]
    %7 = vrot.lane.b32.xlu0 %v6, 112
    %v8 = vpop.permute.xlu0 %7
    %vm9 = vcmask 1048448
    %10 = vst.msk [vmem:[#allocation0] sm:$0x1] %vm9, %v8
    %s11 = scalar_lea.vmem %s0, 6
    %v12 = vld [vmem:[%s11] sm:$0x1]
    %13 = vrot.lane.b32.xlu0 %v12, 96
    %v14 = vpop.permute.xlu0 %13
    %vm15 = vcmask 917248
    %16 = vst.msk [vmem:[#allocation0] sm:$0x1] %vm15, %v14
    %s17 = scalar_lea.vmem %s0, 5
    %v18 = vld [vmem:[%s17] sm:$0x1]
    %19 = vrot.lane.b32.xlu0 %v18, 80
    %v20 = vpop.permute.xlu0 %19
    %vm21 = vcmask 786048
    %22 = vst.msk [vmem:[#allocation0] sm:$0x1] %vm21, %v20
    %s23 = scalar_lea.vmem %s0, 4
    %v24 = vld [vmem:[%s23] sm:$0x1]
    %25 = vrot.lane.b32.xlu0 %v24, 64
    %v26 = vpop.permute.xlu0 %25
    %vm27 = vcmask 654848
    %28 = vst.msk [vmem:[#allocation0] sm:$0x1] %vm27, %v26
    %s29 = scalar_lea.vmem %s0, 3
    %v30 = vld [vmem:[%s29] sm:$0x1]
    %31 = vrot.lane.b32.xlu0 %v30, 48
    %v32 = vpop.permute.xlu0 %31
    %vm33 = vcmask 523648
    %34 = vst.msk [vmem:[#allocation0] sm:$0x1] %vm33, %v32
    %s35 = scalar_lea.vmem %s0, 2
    %v36 = vld [vmem:[%s35] sm:$0x1]
    %37 = vrot.lane.b32.xlu0 %v36, 32
    %v38 = vpop.permute.xlu0 %37
    %vm39 = vcmask 392448
    %40 = vst.msk [vmem:[#allocation0] sm:$0x1] %vm39, %v38
    %s41 = scalar_lea.vmem %s0, 1
    %v42 = vld [vmem:[%s41] sm:$0x1]
    %43 = vrot.lane.b32.xlu0 %v42, 16
    %v44 = vpop.permute.xlu0 %43
    %vm45 = vcmask 261248
    %46 = vst.msk [vmem:[#allocation0] sm:$0x1] %vm45, %v44
    %s48 = sshll.u32 1, 1
    %s49 = ssub.s32 %s48, 1
    %v51 = vld [vmem:[#allocation0] sm:%s49]
    %s52 = sshll.u32 1, 1
    %s53 = ssub.s32 %s52, 1
    %54 = vst [vmem:[%s1] sm:%s53] %v51

// kernel: cycle_generator_forward.23
$region0: #{cycle_generator_forward.23}
  #allocation0 [shape = 'u32[]', space=smem, size = 0x4, offset = 0x4, fixed_abs, tag = 'smem constant byte address 0x4 - core index']
  #allocation1 [shape = 'u32[144,128]{1,0:T(1,128)}', space=vmem, size = 0x12000, scoped, tag = 'internal scratch']
  %s0 = inlined_call_operand.vmem [shape: bf16[512,196], index: 0, kind: input, shape index: {}]
  %s1 = inlined_call_operand.vmem [shape: bf16[196,16], index: 1, kind: input, shape index: {}]
  %s2 = inlined_call_operand.vmem [shape: f32[512,16], index: 2, kind: output, shape index: {0}]
  %s3 = inlined_call_operand.vmem [shape: f32[2,8,16], index: 3, kind: output, shape index: {1}]
  %4 = xla_tuple %s2, %s3
  %s5 = sld [smem:[#allocation0]]
  $region49: #{cycle_generator_forward.23} parent=0
    _
  %s7 = ssub.s32 1, %s5
  %s8 = scalar_select 0, %s7, %s5
  loop: start=0, step=1, limit=4
  $region2: #{cycle_generator_forward.23} parent=0 // loop_pre_header
    _
  $region3: #{cycle_generator_forward.23} parent=0 // loop_header
    %s10 = sphi 0, %s14
    %p11 = scmp.ge.s32.totalorder %s10, 4
    %s20 = sphi 0, %s22
    %s23 = sphi 0, %s20
    %s24 = sphi 0, %s23
    %s40 = sphi 0, %s24
    %s44 = sphi 0, %s44
    %s46 = sphi 0, %s44
    %s47 = sphi 0, %s46
    %s61 = sphi 0, %s47
    %s67 = sphi 0, %s69
    %s70 = sphi 0, %s67
    %s71 = sphi 0, %s70
    %s87 = sphi 0, %s71
    %s93 = sphi 0, %s95
    %s96 = sphi 0, %s93
    %s97 = sphi 0, %s96
    %s113 = sphi 0, %s97
  $region4: #{cycle_generator_forward.23} parent=0 // loop_header_branch
    %13 = sbr.rel (%p11) target = $region8
  $region5: #{cycle_generator_forward.23} parent=0 // loop_body
    %s15 = ssub.s32 %s10, 1
    %s16 = ssub.s32 %s10, 2
    %s17 = sadd.s32 %s10, 1
    %s18 = ssub.s32 %s10, %s17
    %p19 = scmp.eq.s32.totalorder %s18, 0
    %s21 = sadd.s32 %s20, 1
    %s22 = scalar_select %p19, %s20, %s21
    %p25 = pneg %p19
    %p26 = scmp.eq.s32.totalorder %s10, 1
    %p27 = por %p25, %p26
    %p28 = scmp.ne.s32.totalorder %s20, %s23
    %p29 = scmp.eq.s32.totalorder %s10, 0
    %p30 = por %p28, %p29
    %p31 = scmp.ne.s32.totalorder %s20, %s23
    %p32 = scmp.eq.s32.totalorder %s15, 1
    %p33 = por %p31, %p32
    %p34 = scmp.ne.s32.totalorder %s23, %s24
    %p35 = scmp.eq.s32.totalorder %s15, 0
    %p36 = por %p34, %p35
    %p37 = scmp.ne.s32.totalorder %s23, %s24
    %p38 = scmp.eq.s32.totalorder %s16, 1
    %p39 = por %p37, %p38
    %p41 = scmp.ne.s32.totalorder %s24, %s40
    %p42 = scmp.eq.s32.totalorder %s16, 0
    %p43 = por %p41, %p42
    %s45 = sadd.s32 %s44, 1
    %p48 = scmp.eq.s32.totalorder %s10, 1
    %p49 = scmp.ne.s32.totalorder %s44, %s46
    %p50 = scmp.eq.s32.totalorder %s10, 0
    %p51 = por %p49, %p50
    %p52 = scmp.ne.s32.totalorder %s44, %s46
    %p53 = scmp.eq.s32.totalorder %s15, 1
    %p54 = por %p52, %p53
    %p55 = scmp.ne.s32.totalorder %s46, %s47
    %p56 = scmp.eq.s32.totalorder %s15, 0
    %p57 = por %p55, %p56
    %p58 = scmp.ne.s32.totalorder %s46, %s47
    %p59 = scmp.eq.s32.totalorder %s16, 1
    %p60 = por %p58, %p59
    %p62 = scmp.ne.s32.totalorder %s47, %s61
    %p63 = scmp.eq.s32.totalorder %s16, 0
    %p64 = por %p62, %p63
    %s65 = ssub.s32 %s10, %s17
    %p66 = scmp.eq.s32.totalorder %s65, 0
    %s68 = sadd.s32 %s67, 1
    %s69 = scalar_select %p66, %s67, %s68
    %p72 = pneg %p66
    %p73 = scmp.eq.s32.totalorder %s10, 1
    %p74 = por %p72, %p73
    %p75 = scmp.ne.s32.totalorder %s67, %s70
    %p76 = scmp.eq.s32.totalorder %s10, 0
    %p77 = por %p75, %p76
    %p78 = scmp.ne.s32.totalorder %s67, %s70
    %p79 = scmp.eq.s32.totalorder %s15, 1
    %p80 = por %p78, %p79
    %p81 = scmp.ne.s32.totalorder %s70, %s71
    %p82 = scmp.eq.s32.totalorder %s15, 0
    %p83 = por %p81, %p82
    %p84 = scmp.ne.s32.totalorder %s70, %s71
    %p85 = scmp.eq.s32.totalorder %s16, 1
    %p86 = por %p84, %p85
    %p88 = scmp.ne.s32.totalorder %s71, %s87
    %p89 = scmp.eq.s32.totalorder %s16, 0
    %p90 = por %p88, %p89
    %s91 = ssub.s32 %s10, %s17
    %p92 = scmp.eq.s32.totalorder %s91, 0
    %s94 = sadd.s32 %s93, 1
    %s95 = scalar_select %p92, %s93, %s94
    %p98 = pneg %p92
    %p99 = scmp.eq.s32.totalorder %s10, 1
    %p100 = por %p98, %p99
    %p101 = scmp.ne.s32.totalorder %s93, %s96
    %p102 = scmp.eq.s32.totalorder %s10, 0
    %p103 = por %p101, %p102
    %p104 = scmp.ne.s32.totalorder %s93, %s96
    %p105 = scmp.eq.s32.totalorder %s15, 1
    %p106 = por %p104, %p105
    %p107 = scmp.ne.s32.totalorder %s96, %s97
    %p108 = scmp.eq.s32.totalorder %s15, 0
    %p109 = por %p107, %p108
    %p110 = scmp.ne.s32.totalorder %s96, %s97
    %p111 = scmp.eq.s32.totalorder %s16, 1
    %p112 = por %p110, %p111
    %p114 = scmp.ne.s32.totalorder %s97, %s113
    %p115 = scmp.eq.s32.totalorder %s16, 0
    %p116 = por %p114, %p115
    %p117 = scmp.le.s32.totalorder 1, %s10
    %p118 = scmp.lt.s32.totalorder %s10, 3
    %p119 = pnand %p117, %p118
    %p120 = pneg %p119
    // Predicated region
    $region9: #{cycle_generator_forward.23} parent=5 // pred_check
      _
    $region10: #{cycle_generator_forward.23} parent=5 // pred_check_branch
      %122 = sbr.rel (%p119) target = $region12
    $region11: #{cycle_generator_forward.23} parent=5 // pred_region
      %s123 = ssub.s32 %s10, 1
      // Predicated region
      $region13: #{cycle_generator_forward.23} parent=11 // pred_check
        %p124 = pneg %p57
      $region14: #{cycle_generator_forward.23} parent=11 // pred_check_branch
        %126 = sbr.rel (%p124) target = $region16
      $region15: #{cycle_generator_forward.23} parent=11 // pred_region
        _
      $region16: #{cycle_generator_forward.23} parent=11 // pred_fallthru
        _
    $region12: #{cycle_generator_forward.23} parent=5 // pred_fallthru
      _
    %p127 = scmp.lt.s32.totalorder %s10, 2
    // Predicated region
    $region17: #{cycle_generator_forward.23} parent=5 // pred_check
      %p128 = pneg %p127
    $region18: #{cycle_generator_forward.23} parent=5 // pred_check_branch
      %130 = sbr.rel (%p128) target = $region20
    $region19: #{cycle_generator_forward.23} parent=5 // pred_region
      // Predicated region
      $region21: #{cycle_generator_forward.23} parent=19 // pred_check
        %p131 = pneg %p30
      $region22: #{cycle_generator_forward.23} parent=19 // pred_check_branch
        %133 = sbr.rel (%p131) target = $region24
      $region23: #{cycle_generator_forward.23} parent=19 // pred_region
        %s134 = smul.u32 32, %s10
        %p135 = scmp.lt.s32.totalorder %s134, 63
        %s136 = scalar_select %p135, %s134, 63
        %s137 = smul.addr %s136, 2
        %s138 = smul.addr %s137, 4
        %s139 = scalar_lea.vmem %s0, %s138
        %s140 = smul.u32 32, %s10
      $region24: #{cycle_generator_forward.23} parent=19 // pred_fallthru
        _
    $region20: #{cycle_generator_forward.23} parent=5 // pred_fallthru
      _
    %p141 = scmp.le.s32.totalorder 1, %s10
    %p142 = scmp.lt.s32.totalorder %s10, 3
    %p143 = pnand %p141, %p142
    %p144 = pneg %p143
    // Predicated region
    $region25: #{cycle_generator_forward.23} parent=5 // pred_check
      _
    $region26: #{cycle_generator_forward.23} parent=5 // pred_check_branch
      %146 = sbr.rel (%p143) target = $region28
    $region27: #{cycle_generator_forward.23} parent=5 // pred_region
      %s147 = ssub.s32 %s10, 1
      %s148 = smul.u32 32, %s15
      %p149 = scmp.lt.s32.totalorder %s148, 63
      %s150 = scalar_select %p149, %s148, 63
      %s151 = smul.addr %s150, 2
      %s152 = smul.addr %s151, 4
      %s153 = scalar_lea.vmem %s0, %s152
      %p154 = pneg %p36
      %p155 = pneg %p33
      %p156 = pneg %p57
      %p157 = pneg %p54
      %p158 = pneg %p83
      %p159 = pneg %p80
      %s160 = smul.u32 32, %s15
      %p161 = scmp.lt.s32.totalorder %s160, 63
      %s162 = scalar_select %p161, %s160, 63
      %s163 = smul.addr %s162, 8
      %s164 = scalar_lea.vmem %s2, %s163
      %p165 = pneg %p109
      %p166 = pneg %p106
      %p167 = scmp.lt.s32.totalorder %s15, 1
      %s168 = scalar_select %p167, %s15, 1
      %s169 = smul.addr %s168, 8
      %s170 = scalar_lea.vmem %s3, %s169
      %s171 = smul.u32 32, %s15
      %p172 = scmp.lt.s32.totalorder %s171, 63
      %s173 = scalar_select %p172, %s171, 63
      %s174 = smul.addr %s173, 2
      %s175 = smul.addr %s174, 4
      %s176 = scalar_lea.vmem %s0, %s175
      %s177 = smul.u32 32, %s15
      %s178 = smul.u32 32, %s15
      %p179 = scmp.lt.s32.totalorder %s178, 63
      %s180 = scalar_select %p179, %s178, 63
      %s181 = smul.addr %s180, 8
      %s182 = scalar_lea.vmem %s2, %s181
      %s183 = smul.u32 32, %s15
      %p184 = scmp.lt.s32.totalorder %s15, 1
      %s185 = scalar_select %p184, %s15, 1
      %s186 = smul.addr %s185, 8
      %s187 = scalar_lea.vmem %s3, %s186
      %v189 = vld [vmem:[%s176] sm:$0xff]
      %v190 = vld [vmem:[%s176 + $0x8] sm:$0xff]
      %v191 = vld [vmem:[%s176 + $0x10] sm:$0xff]
      %v192 = vld [vmem:[%s176 + $0x18] sm:$0xff]
      %v193 = vld [vmem:[%s176 + $0x20] sm:$0xff]
      %v194 = vld [vmem:[%s176 + $0x28] sm:$0xff]
      %v195 = vld [vmem:[%s176 + $0x30] sm:$0xff]
      %v196 = vld [vmem:[%s176 + $0x38] sm:$0xff]
      %v197 = vld [vmem:[%s176 + $0x40] sm:$0xff]
      %v198 = vld [vmem:[%s176 + $0x48] sm:$0xff]
      %v199 = vld [vmem:[%s176 + $0x50] sm:$0xff]
      %v200 = vld [vmem:[%s176 + $0x58] sm:$0xff]
      %v201 = vld [vmem:[%s176 + $0x60] sm:$0xff]
      %v202 = vld [vmem:[%s176 + $0x68] sm:$0xff]
      %v203 = vld [vmem:[%s176 + $0x70] sm:$0xff]
      %v204 = vld [vmem:[%s176 + $0x78] sm:$0xff]
      %v205 = vld [vmem:[%s176 + $0x80] sm:$0xff]
      %v206 = vld [vmem:[%s176 + $0x88] sm:$0xff]
      %v207 = vld [vmem:[%s176 + $0x90] sm:$0xff]
      %v208 = vld [vmem:[%s176 + $0x98] sm:$0xff]
      %v209 = vld [vmem:[%s176 + $0xa0] sm:$0xff]
      %v210 = vld [vmem:[%s176 + $0xa8] sm:$0xff]
      %v211 = vld [vmem:[%s176 + $0xb0] sm:$0xff]
      %v212 = vld [vmem:[%s176 + $0xb8] sm:$0xff]
      %v213 = vld [vmem:[%s176 + $0xc0] sm:$0xff]
      %v214 = vld [vmem:[%s176 + $0xc8] sm:$0xff]
      %v215 = vld [vmem:[%s176 + $0xd0] sm:$0xff]
      %v216 = vld [vmem:[%s176 + $0xd8] sm:$0xff]
      %v217 = vld [vmem:[%s176 + $0xe0] sm:$0xff]
      %v218 = vld [vmem:[%s176 + $0xe8] sm:$0xff]
      %v219 = vld [vmem:[%s176 + $0xf0] sm:$0xff]
      %v220 = vld [vmem:[%s176 + $0xf8] sm:$0xff]
      %v221 = vld [vmem:[%s1] sm:$0xf]
      %v222 = vld [vmem:[%s1 + $0x4] sm:$0xf]
      %v223 = vld [vmem:[%s1 + $0x8] sm:$0xf]
      %v224 = vld [vmem:[%s1 + $0xc] sm:$0xf]
      %v225 = vld [vmem:[%s1 + $0x10] sm:$0xf]
      %v226 = vld [vmem:[%s1 + $0x14] sm:$0xf]
      %v227 = vld [vmem:[%s1 + $0x18] sm:$0xf]
      %v228 = vld [vmem:[%s1 + $0x1c] sm:$0xf]
      %v229 = vld [vmem:[%s1 + $0x20] sm:$0xf]
      %v230 = vld [vmem:[%s1 + $0x24] sm:$0xf]
      %v231 = vld [vmem:[%s1 + $0x28] sm:$0xf]
      %v232 = vld [vmem:[%s1 + $0x2c] sm:$0xf]
      %v233 = vld [vmem:[%s1 + $0x30] sm:$0xf]
      %v234 = vld [vmem:[%s1 + $0x34] sm:$0xf]
      %v235 = vld [vmem:[%s1 + $0x38] sm:$0xf]
      %v236 = vld [vmem:[%s1 + $0x3c] sm:$0xf]
      %v237 = vld [vmem:[%s1 + $0x40] sm:$0xf]
      %v238 = vld [vmem:[%s1 + $0x44] sm:$0xf]
      %v239 = vld [vmem:[%s1 + $0x48] sm:$0xf]
      %v240 = vld [vmem:[%s1 + $0x4c] sm:$0xf]
      %v241 = vld [vmem:[%s1 + $0x50] sm:$0xf]
      %v242 = vld [vmem:[%s1 + $0x54] sm:$0xf]
      %v243 = vld [vmem:[%s1 + $0x58] sm:$0xf]
      %v244 = vld [vmem:[%s1 + $0x5c] sm:$0xf]
      %v245 = vld [vmem:[%s1 + $0x60] sm:$0x3]
      %v278 = vunpack.c.l.b16 %v189
      %v279 = vunpack.c.h.b16 %v189
      %v280 = vunpack.c.l.b16 %v190
      %v281 = vunpack.c.h.b16 %v190
      %v282 = vunpack.c.l.b16 %v191
      %v283 = vunpack.c.h.b16 %v191
      %v284 = vunpack.c.l.b16 %v192
      %v285 = vunpack.c.h.b16 %v192
      %v286 = vunpack.c.l.b16 %v193
      %v287 = vunpack.c.h.b16 %v193
      %v288 = vunpack.c.l.b16 %v194
      %v289 = vunpack.c.h.b16 %v194
      %v290 = vunpack.c.l.b16 %v195
      %v291 = vunpack.c.h.b16 %v195
      %v292 = vunpack.c.l.b16 %v196
      %v293 = vunpack.c.h.b16 %v196
      %v294 = vunpack.c.l.b16 %v197
      %v295 = vunpack.c.h.b16 %v197
      %v296 = vunpack.c.l.b16 %v198
      %v297 = vunpack.c.h.b16 %v198
      %v298 = vunpack.c.l.b16 %v199
      %v299 = vunpack.c.h.b16 %v199
      %v300 = vunpack.c.l.b16 %v200
      %v301 = vunpack.c.h.b16 %v200
      %v302 = vunpack.c.l.b16 %v201
      %v303 = vunpack.c.h.b16 %v201
      %v304 = vunpack.c.l.b16 %v202
      %v305 = vunpack.c.h.b16 %v202
      %v306 = vunpack.c.l.b16 %v203
      %v307 = vunpack.c.h.b16 %v203
      %v308 = vunpack.c.l.b16 %v204
      %v309 = vunpack.c.h.b16 %v204
      %v310 = vunpack.c.l.b16 %v205
      %v311 = vunpack.c.h.b16 %v205
      %v312 = vunpack.c.l.b16 %v206
      %v313 = vunpack.c.h.b16 %v206
      %v314 = vunpack.c.l.b16 %v207
      %v315 = vunpack.c.h.b16 %v207
      %v316 = vunpack.c.l.b16 %v208
      %v317 = vunpack.c.h.b16 %v208
      %v318 = vunpack.c.l.b16 %v209
      %v319 = vunpack.c.h.b16 %v209
      %v320 = vunpack.c.l.b16 %v210
      %v321 = vunpack.c.h.b16 %v210
      %v322 = vunpack.c.l.b16 %v211
      %v323 = vunpack.c.h.b16 %v211
      %v324 = vunpack.c.l.b16 %v212
      %v325 = vunpack.c.h.b16 %v212
      %v326 = vunpack.c.l.b16 %v213
      %v327 = vunpack.c.h.b16 %v213
      %v328 = vunpack.c.l.b16 %v214
      %v329 = vunpack.c.h.b16 %v214
      %v330 = vunpack.c.l.b16 %v215
      %v331 = vunpack.c.h.b16 %v215
      %v332 = vunpack.c.l.b16 %v216
      %v333 = vunpack.c.h.b16 %v216
      %v334 = vunpack.c.l.b16 %v217
      %v335 = vunpack.c.h.b16 %v217
      %v336 = vunpack.c.l.b16 %v218
      %v337 = vunpack.c.h.b16 %v218
      %v338 = vunpack.c.l.b16 %v219
      %v339 = vunpack.c.h.b16 %v219
      %v340 = vunpack.c.l.b16 %v220
      %v341 = vunpack.c.h.b16 %v220
      %v342 = vpack.c.b16 %v280, %v278
      %v343 = vpack.c.b16 %v281, %v279
      %v344 = vpack.c.b16 %v284, %v282
      %v345 = vpack.c.b16 %v285, %v283
      %v346 = vpack.c.b16 %v288, %v286
      %v347 = vpack.c.b16 %v289, %v287
      %v348 = vpack.c.b16 %v292, %v290
      %v349 = vpack.c.b16 %v293, %v291
      %v350 = vpack.c.b16 %v296, %v294
      %v351 = vpack.c.b16 %v297, %v295
      %v352 = vpack.c.b16 %v300, %v298
      %v353 = vpack.c.b16 %v301, %v299
      %v354 = vpack.c.b16 %v304, %v302
      %v355 = vpack.c.b16 %v305, %v303
      %v356 = vpack.c.b16 %v308, %v306
      %v357 = vpack.c.b16 %v309, %v307
      %v358 = vpack.c.b16 %v312, %v310
      %v359 = vpack.c.b16 %v313, %v311
      %v360 = vpack.c.b16 %v316, %v314
      %v361 = vpack.c.b16 %v317, %v315
      %v362 = vpack.c.b16 %v320, %v318
      %v363 = vpack.c.b16 %v321, %v319
      %v364 = vpack.c.b16 %v324, %v322
      %v365 = vpack.c.b16 %v325, %v323
      %v366 = vpack.c.b16 %v328, %v326
      %v367 = vpack.c.b16 %v329, %v327
      %v368 = vpack.c.b16 %v332, %v330
      %v369 = vpack.c.b16 %v333, %v331
      %v370 = vpack.c.b16 %v336, %v334
      %v371 = vpack.c.b16 %v337, %v335
      %v372 = vpack.c.b16 %v340, %v338
      %v373 = vpack.c.b16 %v341, %v339
      %v415 = vunpack.c.l.b16 %v221
      %v416 = vunpack.c.l.b16 %v222
      %v417 = vunpack.c.l.b16 %v223
      %v418 = vunpack.c.l.b16 %v224
      %v419 = vunpack.c.l.b16 %v225
      %v420 = vunpack.c.l.b16 %v226
      %v421 = vunpack.c.l.b16 %v227
      %v422 = vunpack.c.l.b16 %v228
      %v423 = vunpack.c.l.b16 %v229
      %v424 = vunpack.c.l.b16 %v230
      %v425 = vunpack.c.l.b16 %v231
      %v426 = vunpack.c.l.b16 %v232
      %v427 = vunpack.c.l.b16 %v233
      %v428 = vunpack.c.l.b16 %v234
      %v429 = vunpack.c.l.b16 %v235
      %v430 = vunpack.c.l.b16 %v236
      %v431 = vunpack.c.l.b16 %v237
      %v432 = vunpack.c.l.b16 %v238
      %v433 = vunpack.c.l.b16 %v239
      %v434 = vunpack.c.l.b16 %v240
      %v435 = vunpack.c.l.b16 %v241
      %v436 = vunpack.c.l.b16 %v242
      %v437 = vunpack.c.l.b16 %v243
      %v438 = vunpack.c.l.b16 %v244
      %v439 = vunpack.c.l.b16 %v245
      %v440 = vpack.c.b16 %v416, %v415
      %v441 = vpack.c.b16 %v418, %v417
      %v442 = vpack.c.b16 %v420, %v419
      %v443 = vpack.c.b16 %v422, %v421
      %v444 = vpack.c.b16 %v424, %v423
      %v445 = vpack.c.b16 %v426, %v425
      %v446 = vpack.c.b16 %v428, %v427
      %v447 = vpack.c.b16 %v430, %v429
      %v448 = vpack.c.b16 %v432, %v431
      %v449 = vpack.c.b16 %v434, %v433
      %v450 = vpack.c.b16 %v436, %v435
      %v451 = vpack.c.b16 %v438, %v437
      %v452 = vpack.c.b16 %v439, %v439
      %vm465 = vcmask 556032
      %v467 = vsel %vm465, %v343, 0
      %v470 = vsel %vm465, %v345, 0
      %v473 = vsel %vm465, %v347, 0
      %v476 = vsel %vm465, %v349, 0
      %v479 = vsel %vm465, %v351, 0
      %v482 = vsel %vm465, %v353, 0
      %v485 = vsel %vm465, %v355, 0
      %v488 = vsel %vm465, %v357, 0
      %v491 = vsel %vm465, %v359, 0
      %v494 = vsel %vm465, %v361, 0
      %v497 = vsel %vm465, %v363, 0
      %v500 = vsel %vm465, %v365, 0
      %v503 = vsel %vm465, %v367, 0
      %v506 = vsel %vm465, %v369, 0
      %v509 = vsel %vm465, %v371, 0
      %v512 = vsel %vm465, %v373, 0
      %vm514 = vcmask 1041408
      %v516 = vsel %vm514, %v452, 0
      %518 = vmatprep.subr.bf16.mxu0 0
      %519 = vmatpush1.bf16.msra.mxu0 %v447
      %520 = vmatprep.subr.bf16.mxu0 0
      %521 = vmatpush1.bf16.msra.mxu0 %v446
      %522 = vmatprep.subr.bf16.mxu0 0
      %523 = vmatpush1.bf16.msra.mxu0 %v445
      %524 = vmatprep.subr.bf16.mxu0 0
      %525 = vmatpush1.bf16.msra.mxu0 %v444
      %526 = vmatprep.subr.bf16.mxu0 0
      %527 = vmatpush1.bf16.msra.mxu0 %v443
      %528 = vmatprep.subr.bf16.mxu0 0
      %529 = vmatpush1.bf16.msra.mxu0 %v442
      %530 = vmatprep.subr.bf16.mxu0 0
      %531 = vmatpush1.bf16.msra.mxu0 %v441
      %532 = vmatprep.subr.bf16.mxu0 0
      %533 = vmatpush1.bf16.msra.mxu0 %v440
      %534 = vmatprep.subr.bf16.mxu0 0
      %535 = vmatpush2.bf16.msra.mxu0 0
      %536 = vmatprep.subr.bf16.mxu0 0
      %537 = vmatpush2.bf16.msra.mxu0 0
      %538 = vmatprep.subr.bf16.mxu0 0
      %539 = vmatpush2.bf16.msra.mxu0 0
      %540 = vmatprep.subr.bf16.mxu0 0
      %541 = vmatpush2.bf16.msra.mxu0 %v516
      %542 = vmatprep.subr.bf16.mxu0 0
      %543 = vmatpush2.bf16.msra.mxu0 %v451
      %544 = vmatprep.subr.bf16.mxu0 0
      %545 = vmatpush2.bf16.msra.mxu0 %v450
      %546 = vmatprep.subr.bf16.mxu0 0
      %547 = vmatpush2.bf16.msra.mxu0 %v449
      %548 = vmatprep.subr.bf16.mxu0 0
      %549 = vmatpush2.bf16.msra.mxu0 %v448
      %550 = vmatprep.mubr.bf16.mxu0 %v467
      %551 = vmatmul.mubr.bf16.gmra.mxu0 %v342
      %v552 = vpop.f32.mrf.mxu0
      %v553 = vadd.f32 0.0, %v552
      %v554 = vpop.f32.mrf.mxu0
      %v555 = vpop.f32.mrf.mxu0
      %v556 = vadd.f32 0.0, %v555
      %v557 = vpop.f32.mrf.mxu0
      %558 = vmatprep.mubr.bf16.mxu0 %v470
      %559 = vmatmul.mubr.bf16.gmra.mxu0 %v344
      %v560 = vpop.f32.mrf.mxu0
      %v561 = vadd.f32 0.0, %v560
      %v562 = vpop.f32.mrf.mxu0
      %v563 = vpop.f32.mrf.mxu0
      %v564 = vadd.f32 0.0, %v563
      %v565 = vpop.f32.mrf.mxu0
      %566 = vmatprep.mubr.bf16.mxu0 %v473
      %567 = vmatmul.mubr.bf16.gmra.mxu0 %v346
      %v568 = vpop.f32.mrf.mxu0
      %v569 = vadd.f32 0.0, %v568
      %v570 = vpop.f32.mrf.mxu0
      %v571 = vpop.f32.mrf.mxu0
      %v572 = vadd.f32 0.0, %v571
      %v573 = vpop.f32.mrf.mxu0
      %574 = vmatprep.mubr.bf16.mxu0 %v476
      %575 = vmatmul.mubr.bf16.gmra.mxu0 %v348
      %v576 = vpop.f32.mrf.mxu0
      %v577 = vadd.f32 0.0, %v576
      %v578 = vpop.f32.mrf.mxu0
      %v579 = vpop.f32.mrf.mxu0
      %v580 = vadd.f32 0.0, %v579
      %v581 = vpop.f32.mrf.mxu0
      %582 = vmatprep.mubr.bf16.mxu0 %v479
      %583 = vmatmul.mubr.bf16.gmra.mxu0 %v350
      %v584 = vpop.f32.mrf.mxu0
      %v585 = vadd.f32 0.0, %v584
      %v586 = vpop.f32.mrf.mxu0
      %v587 = vpop.f32.mrf.mxu0
      %v588 = vadd.f32 0.0, %v587
      %v589 = vpop.f32.mrf.mxu0
      %590 = vmatprep.mubr.bf16.mxu0 %v482
      %591 = vmatmul.mubr.bf16.gmra.mxu0 %v352
      %v592 = vpop.f32.mrf.mxu0
      %v593 = vadd.f32 0.0, %v592
      %v594 = vpop.f32.mrf.mxu0
      %v595 = vpop.f32.mrf.mxu0
      %v596 = vadd.f32 0.0, %v595
      %v597 = vpop.f32.mrf.mxu0
      %598 = vmatprep.mubr.bf16.mxu0 %v485
      %599 = vmatmul.mubr.bf16.gmra.mxu0 %v354
      %v600 = vpop.f32.mrf.mxu0
      %v601 = vadd.f32 0.0, %v600
      %v602 = vpop.f32.mrf.mxu0
      %v603 = vpop.f32.mrf.mxu0
      %v604 = vadd.f32 0.0, %v603
      %v605 = vpop.f32.mrf.mxu0
      %606 = vmatprep.mubr.bf16.mxu0 %v488
      %607 = vmatmul.mubr.bf16.gmra.mxu0 %v356
      %v608 = vpop.f32.mrf.mxu0
      %v609 = vadd.f32 0.0, %v608
      %v610 = vpop.f32.mrf.mxu0
      %v611 = vpop.f32.mrf.mxu0
      %v612 = vadd.f32 0.0, %v611
      %v613 = vpop.f32.mrf.mxu0
      %614 = vmatprep.mubr.bf16.mxu0 %v491
      %615 = vmatmul.mubr.bf16.gmra.mxu0 %v358
      %v616 = vpop.f32.mrf.mxu0
      %v617 = vadd.f32 0.0, %v616
      %v618 = vpop.f32.mrf.mxu0
      %v619 = vpop.f32.mrf.mxu0
      %v620 = vadd.f32 0.0, %v619
      %v621 = vpop.f32.mrf.mxu0
      %622 = vmatprep.mubr.bf16.mxu0 %v494
      %623 = vmatmul.mubr.bf16.gmra.mxu0 %v360
      %v624 = vpop.f32.mrf.mxu0
      %v625 = vadd.f32 0.0, %v624
      %v626 = vpop.f32.mrf.mxu0
      %v627 = vpop.f32.mrf.mxu0
      %v628 = vadd.f32 0.0, %v627
      %v629 = vpop.f32.mrf.mxu0
      %630 = vmatprep.mubr.bf16.mxu0 %v497
      %631 = vmatmul.mubr.bf16.gmra.mxu0 %v362
      %v632 = vpop.f32.mrf.mxu0
      %v633 = vadd.f32 0.0, %v632
      %v634 = vpop.f32.mrf.mxu0
      %v635 = vpop.f32.mrf.mxu0
      %v636 = vadd.f32 0.0, %v635
      %v637 = vpop.f32.mrf.mxu0
      %638 = vmatprep.mubr.bf16.mxu0 %v500
      %639 = vmatmul.mubr.bf16.gmra.mxu0 %v364
      %v640 = vpop.f32.mrf.mxu0
      %v641 = vadd.f32 0.0, %v640
      %v642 = vpop.f32.mrf.mxu0
      %v643 = vpop.f32.mrf.mxu0
      %v644 = vadd.f32 0.0, %v643
      %v645 = vpop.f32.mrf.mxu0
      %646 = vmatprep.mubr.bf16.mxu0 %v503
      %647 = vmatmul.mubr.bf16.gmra.mxu0 %v366
      %v648 = vpop.f32.mrf.mxu0
      %v649 = vadd.f32 0.0, %v648
      %v650 = vpop.f32.mrf.mxu0
      %v651 = vpop.f32.mrf.mxu0
      %v652 = vadd.f32 0.0, %v651
      %v653 = vpop.f32.mrf.mxu0
      %654 = vmatprep.mubr.bf16.mxu0 %v506
      %655 = vmatmul.mubr.bf16.gmra.mxu0 %v368
      %v656 = vpop.f32.mrf.mxu0
      %v657 = vadd.f32 0.0, %v656
      %v658 = vpop.f32.mrf.mxu0
      %v659 = vpop.f32.mrf.mxu0
      %v660 = vadd.f32 0.0, %v659
      %v661 = vpop.f32.mrf.mxu0
      %662 = vmatprep.mubr.bf16.mxu0 %v509
      %663 = vmatmul.mubr.bf16.gmra.mxu0 %v370
      %v664 = vpop.f32.mrf.mxu0
      %v665 = vadd.f32 0.0, %v664
      %v666 = vpop.f32.mrf.mxu0
      %v667 = vpop.f32.mrf.mxu0
      %v668 = vadd.f32 0.0, %v667
      %v669 = vpop.f32.mrf.mxu0
      %670 = vmatprep.mubr.bf16.mxu0 %v512
      %671 = vmatmul.mubr.bf16.gmra.mxu0 %v372
      %v672 = vpop.f32.mrf.mxu0
      %v673 = vadd.f32 0.0, %v672
      %v674 = vpop.f32.mrf.mxu0
      %v675 = vpop.f32.mrf.mxu0
      %v676 = vadd.f32 0.0, %v675
      %v677 = vpop.f32.mrf.mxu0
      %678 = vdwg.mxu0
      %vm679 = vcmask 130048
      %680 = vst.msk [vmem:[%s182] sm:$0xff] %vm679, %v553
      %681 = vst.msk [vmem:[%s182 + $0x8] sm:$0xff] %vm679, %v556
      %682 = vst.msk [vmem:[%s182 + $0x10] sm:$0xff] %vm679, %v561
      %683 = vst.msk [vmem:[%s182 + $0x18] sm:$0xff] %vm679, %v564
      %684 = vst.msk [vmem:[%s182 + $0x20] sm:$0xff] %vm679, %v569
      %685 = vst.msk [vmem:[%s182 + $0x28] sm:$0xff] %vm679, %v572
      %686 = vst.msk [vmem:[%s182 + $0x30] sm:$0xff] %vm679, %v577
      %687 = vst.msk [vmem:[%s182 + $0x38] sm:$0xff] %vm679, %v580
      %688 = vst.msk [vmem:[%s182 + $0x40] sm:$0xff] %vm679, %v585
      %689 = vst.msk [vmem:[%s182 + $0x48] sm:$0xff] %vm679, %v588
      %690 = vst.msk [vmem:[%s182 + $0x50] sm:$0xff] %vm679, %v593
      %691 = vst.msk [vmem:[%s182 + $0x58] sm:$0xff] %vm679, %v596
      %692 = vst.msk [vmem:[%s182 + $0x60] sm:$0xff] %vm679, %v601
      %693 = vst.msk [vmem:[%s182 + $0x68] sm:$0xff] %vm679, %v604
      %694 = vst.msk [vmem:[%s182 + $0x70] sm:$0xff] %vm679, %v609
      %695 = vst.msk [vmem:[%s182 + $0x78] sm:$0xff] %vm679, %v612
      %696 = vst.msk [vmem:[%s182 + $0x80] sm:$0xff] %vm679, %v617
      %697 = vst.msk [vmem:[%s182 + $0x88] sm:$0xff] %vm679, %v620
      %698 = vst.msk [vmem:[%s182 + $0x90] sm:$0xff] %vm679, %v625
      %699 = vst.msk [vmem:[%s182 + $0x98] sm:$0xff] %vm679, %v628
      %700 = vst.msk [vmem:[%s182 + $0xa0] sm:$0xff] %vm679, %v633
      %701 = vst.msk [vmem:[%s182 + $0xa8] sm:$0xff] %vm679, %v636
      %702 = vst.msk [vmem:[%s182 + $0xb0] sm:$0xff] %vm679, %v641
      %703 = vst.msk [vmem:[%s182 + $0xb8] sm:$0xff] %vm679, %v644
      %704 = vst.msk [vmem:[%s182 + $0xc0] sm:$0xff] %vm679, %v649
      %705 = vst.msk [vmem:[%s182 + $0xc8] sm:$0xff] %vm679, %v652
      %706 = vst.msk [vmem:[%s182 + $0xd0] sm:$0xff] %vm679, %v657
      %707 = vst.msk [vmem:[%s182 + $0xd8] sm:$0xff] %vm679, %v660
      %708 = vst.msk [vmem:[%s182 + $0xe0] sm:$0xff] %vm679, %v665
      %709 = vst.msk [vmem:[%s182 + $0xe8] sm:$0xff] %vm679, %v668
      %710 = vst.msk [vmem:[%s182 + $0xf0] sm:$0xff] %vm679, %v673
      %711 = vst.msk [vmem:[%s182 + $0xf8] sm:$0xff] %vm679, %v676
      %v712 = vsel %vm679, %v553, 0.0
      %v713 = vsel %vm679, %v556, 0.0
      %v714 = vadd.f32 %v712, %v713
      %v715 = vsel %vm679, %v561, 0.0
      %v716 = vadd.f32 %v714, %v715
      %v717 = vsel %vm679, %v564, 0.0
      %v718 = vadd.f32 %v716, %v717
      %v719 = vsel %vm679, %v569, 0.0
      %v720 = vadd.f32 %v718, %v719
      %v721 = vsel %vm679, %v572, 0.0
      %v722 = vadd.f32 %v720, %v721
      %v723 = vsel %vm679, %v577, 0.0
      %v724 = vadd.f32 %v722, %v723
      %v725 = vsel %vm679, %v580, 0.0
      %v726 = vadd.f32 %v724, %v725
      %v727 = vsel %vm679, %v585, 0.0
      %v728 = vadd.f32 %v726, %v727
      %v729 = vsel %vm679, %v588, 0.0
      %v730 = vadd.f32 %v728, %v729
      %v731 = vsel %vm679, %v593, 0.0
      %v732 = vadd.f32 %v730, %v731
      %v733 = vsel %vm679, %v596, 0.0
      %v734 = vadd.f32 %v732, %v733
      %v735 = vsel %vm679, %v601, 0.0
      %v736 = vadd.f32 %v734, %v735
      %v737 = vsel %vm679, %v604, 0.0
      %v738 = vadd.f32 %v736, %v737
      %v739 = vsel %vm679, %v609, 0.0
      %v740 = vadd.f32 %v738, %v739
      %v741 = vsel %vm679, %v612, 0.0
      %v742 = vadd.f32 %v740, %v741
      %v743 = vsel %vm679, %v617, 0.0
      %v744 = vadd.f32 %v742, %v743
      %v745 = vsel %vm679, %v620, 0.0
      %v746 = vadd.f32 %v744, %v745
      %v747 = vsel %vm679, %v625, 0.0
      %v748 = vadd.f32 %v746, %v747
      %v749 = vsel %vm679, %v628, 0.0
      %v750 = vadd.f32 %v748, %v749
      %v751 = vsel %vm679, %v633, 0.0
      %v752 = vadd.f32 %v750, %v751
      %v753 = vsel %vm679, %v636, 0.0
      %v754 = vadd.f32 %v752, %v753
      %v755 = vsel %vm679, %v641, 0.0
      %v756 = vadd.f32 %v754, %v755
      %v757 = vsel %vm679, %v644, 0.0
      %v758 = vadd.f32 %v756, %v757
      %v759 = vsel %vm679, %v649, 0.0
      %v760 = vadd.f32 %v758, %v759
      %v761 = vsel %vm679, %v652, 0.0
      %v762 = vadd.f32 %v760, %v761
      %v763 = vsel %vm679, %v657, 0.0
      %v764 = vadd.f32 %v762, %v763
      %v765 = vsel %vm679, %v660, 0.0
      %v766 = vadd.f32 %v764, %v765
      %v767 = vsel %vm679, %v665, 0.0
      %v768 = vadd.f32 %v766, %v767
      %v769 = vsel %vm679, %v668, 0.0
      %v770 = vadd.f32 %v768, %v769
      %v771 = vsel %vm679, %v673, 0.0
      %v772 = vadd.f32 %v770, %v771
      %v773 = vsel %vm679, %v676, 0.0
      %v774 = vadd.f32 %v772, %v773
      %v775 = vrot.slane %v774, 4
      %v776 = vadd.f32 %v774, %v775
      %v777 = vrot.slane %v776, 2
      %v778 = vadd.f32 %v776, %v777
      %v779 = vrot.slane %v778, 1
      %v780 = vadd.f32 %v778, %v779
      %v781 = vmul.f32 %v553, %v553
      %v782 = vmul.f32 %v556, %v556
      %v783 = vmul.f32 %v561, %v561
      %v784 = vmul.f32 %v564, %v564
      %v785 = vmul.f32 %v569, %v569
      %v786 = vmul.f32 %v572, %v572
      %v787 = vmul.f32 %v577, %v577
      %v788 = vmul.f32 %v580, %v580
      %v789 = vmul.f32 %v585, %v585
      %v790 = vmul.f32 %v588, %v588
      %v791 = vmul.f32 %v593, %v593
      %v792 = vmul.f32 %v596, %v596
      %v793 = vmul.f32 %v601, %v601
      %v794 = vmul.f32 %v604, %v604
      %v795 = vmul.f32 %v609, %v609
      %v796 = vmul.f32 %v612, %v612
      %v797 = vmul.f32 %v617, %v617
      %v798 = vmul.f32 %v620, %v620
      %v799 = vmul.f32 %v625, %v625
      %v800 = vmul.f32 %v628, %v628
      %v801 = vmul.f32 %v633, %v633
      %v802 = vmul.f32 %v636, %v636
      %v803 = vmul.f32 %v641, %v641
      %v804 = vmul.f32 %v644, %v644
      %v805 = vmul.f32 %v649, %v649
      %v806 = vmul.f32 %v652, %v652
      %v807 = vmul.f32 %v657, %v657
      %v808 = vmul.f32 %v660, %v660
      %v809 = vmul.f32 %v665, %v665
      %v810 = vmul.f32 %v668, %v668
      %v811 = vmul.f32 %v673, %v673
      %v812 = vmul.f32 %v676, %v676
      %v813 = vsel %vm679, %v781, 0.0
      %v814 = vsel %vm679, %v782, 0.0
      %v815 = vadd.f32 %v813, %v814
      %v816 = vsel %vm679, %v783, 0.0
      %v817 = vadd.f32 %v815, %v816
      %v818 = vsel %vm679, %v784, 0.0
      %v819 = vadd.f32 %v817, %v818
      %v820 = vsel %vm679, %v785, 0.0
      %v821 = vadd.f32 %v819, %v820
      %v822 = vsel %vm679, %v786, 0.0
      %v823 = vadd.f32 %v821, %v822
      %v824 = vsel %vm679, %v787, 0.0
      %v825 = vadd.f32 %v823, %v824
      %v826 = vsel %vm679, %v788, 0.0
      %v827 = vadd.f32 %v825, %v826
      %v828 = vsel %vm679, %v789, 0.0
      %v829 = vadd.f32 %v827, %v828
      %v830 = vsel %vm679, %v790, 0.0
      %v831 = vadd.f32 %v829, %v830
      %v832 = vsel %vm679, %v791, 0.0
      %v833 = vadd.f32 %v831, %v832
      %v834 = vsel %vm679, %v792, 0.0
      %v835 = vadd.f32 %v833, %v834
      %v836 = vsel %vm679, %v793, 0.0
      %v837 = vadd.f32 %v835, %v836
      %v838 = vsel %vm679, %v794, 0.0
      %v839 = vadd.f32 %v837, %v838
      %v840 = vsel %vm679, %v795, 0.0
      %v841 = vadd.f32 %v839, %v840
      %v842 = vsel %vm679, %v796, 0.0
      %v843 = vadd.f32 %v841, %v842
      %v844 = vsel %vm679, %v797, 0.0
      %v845 = vadd.f32 %v843, %v844
      %v846 = vsel %vm679, %v798, 0.0
      %v847 = vadd.f32 %v845, %v846
      %v848 = vsel %vm679, %v799, 0.0
      %v849 = vadd.f32 %v847, %v848
      %v850 = vsel %vm679, %v800, 0.0
      %v851 = vadd.f32 %v849, %v850
      %v852 = vsel %vm679, %v801, 0.0
      %v853 = vadd.f32 %v851, %v852
      %v854 = vsel %vm679, %v802, 0.0
      %v855 = vadd.f32 %v853, %v854
      %v856 = vsel %vm679, %v803, 0.0
      %v857 = vadd.f32 %v855, %v856
      %v858 = vsel %vm679, %v804, 0.0
      %v859 = vadd.f32 %v857, %v858
      %v860 = vsel %vm679, %v805, 0.0
      %v861 = vadd.f32 %v859, %v860
      %v862 = vsel %vm679, %v806, 0.0
      %v863 = vadd.f32 %v861, %v862
      %v864 = vsel %vm679, %v807, 0.0
      %v865 = vadd.f32 %v863, %v864
      %v866 = vsel %vm679, %v808, 0.0
      %v867 = vadd.f32 %v865, %v866
      %v868 = vsel %vm679, %v809, 0.0
      %v869 = vadd.f32 %v867, %v868
      %v870 = vsel %vm679, %v810, 0.0
      %v871 = vadd.f32 %v869, %v870
      %v872 = vsel %vm679, %v811, 0.0
      %v873 = vadd.f32 %v871, %v872
      %v874 = vsel %vm679, %v812, 0.0
      %v875 = vadd.f32 %v873, %v874
      %v876 = vrot.slane %v875, 4
      %v877 = vadd.f32 %v875, %v876
      %v878 = vrot.slane %v877, 2
      %v879 = vadd.f32 %v877, %v878
      %v880 = vrot.slane %v879, 1
      %v881 = vadd.f32 %v879, %v880
      %v882 = vlaneseq
      %v883 = vshrl.u32 %v882, 7
      %vm884 = vcmp.eq.s32.totalorder %v883, 0
      %v885 = vsel %vm884, %v780, 0.0
      %vm886 = vcmp.eq.s32.totalorder %v883, 1
      %v887 = vsel %vm886, %v881, 0.0
      %v888 = vadd.f32 %v885, %v887
      %889 = vst.msk [vmem:[%s187] sm:$0xff] %vm679, %v888
      %s890 = smul.u32 32, %s15
      %p891 = scmp.lt.s32.totalorder %s890, 63
      %s892 = scalar_select %p891, %s890, 63
      %s893 = smul.addr %s892, 8
      %s894 = scalar_lea.vmem %s2, %s893
      %p895 = scmp.lt.s32.totalorder %s15, 1
      %s896 = scalar_select %p895, %s15, 1
      %s897 = smul.addr %s896, 8
      %s898 = scalar_lea.vmem %s3, %s897
      // Predicated region
      $region29: #{cycle_generator_forward.23} parent=27 // pred_check
        %p899 = pneg %p80
      $region30: #{cycle_generator_forward.23} parent=27 // pred_check_branch
        %901 = sbr.rel (%p899) target = $region32
      $region31: #{cycle_generator_forward.23} parent=27 // pred_region
        %s902 = smul.u32 32, %s15
      $region32: #{cycle_generator_forward.23} parent=27 // pred_fallthru
        _
      // Predicated region
      $region33: #{cycle_generator_forward.23} parent=27 // pred_check
        %p903 = pneg %p106
      $region34: #{cycle_generator_forward.23} parent=27 // pred_check_branch
        %905 = sbr.rel (%p903) target = $region36
      $region35: #{cycle_generator_forward.23} parent=27 // pred_region
        _
      $region36: #{cycle_generator_forward.23} parent=27 // pred_fallthru
        _
    $region28: #{cycle_generator_forward.23} parent=5 // pred_fallthru
      _
    %p906 = scmp.le.s32.totalorder 2, %s10
    // Predicated region
    $region37: #{cycle_generator_forward.23} parent=5 // pred_check
      %p907 = pneg %p906
    $region38: #{cycle_generator_forward.23} parent=5 // pred_check_branch
      %909 = sbr.rel (%p907) target = $region40
    $region39: #{cycle_generator_forward.23} parent=5 // pred_region
      %s910 = ssub.s32 %s10, 2
      // Predicated region
      $region41: #{cycle_generator_forward.23} parent=39 // pred_check
        %p911 = pneg %p86
      $region42: #{cycle_generator_forward.23} parent=39 // pred_check_branch
        %913 = sbr.rel (%p911) target = $region44
      $region43: #{cycle_generator_forward.23} parent=39 // pred_region
        %s914 = smul.u32 32, %s16
        %p915 = scmp.lt.s32.totalorder %s914, 63
        %s916 = scalar_select %p915, %s914, 63
        %s917 = smul.addr %s916, 8
        %s918 = scalar_lea.vmem %s2, %s917
      $region44: #{cycle_generator_forward.23} parent=39 // pred_fallthru
        _
      // Predicated region
      $region45: #{cycle_generator_forward.23} parent=39 // pred_check
        %p919 = pneg %p112
      $region46: #{cycle_generator_forward.23} parent=39 // pred_check_branch
        %921 = sbr.rel (%p919) target = $region48
      $region47: #{cycle_generator_forward.23} parent=39 // pred_region
        %p922 = scmp.lt.s32.totalorder %s16, 1
        %s923 = scalar_select %p922, %s16, 1
        %s924 = smul.addr %s923, 8
        %s925 = scalar_lea.vmem %s3, %s924
      $region48: #{cycle_generator_forward.23} parent=39 // pred_fallthru
        _
    $region40: #{cycle_generator_forward.23} parent=5 // pred_fallthru
      _
  $region6: #{cycle_generator_forward.23} parent=0 // loop_footer
    %s14 = sadd.s32 1, %s10
  $region7: #{cycle_generator_forward.23} parent=0 // loop_footer_branch
    %9 = sbr.rel target = $region3
  $region8: #{cycle_generator_forward.23} parent=0 // loop_exit
    _

// kernel: cycle_generator_forward.24
$region0: #{cycle_generator_forward.24}
  #allocation0 [shape = 'u32[]', space=smem, size = 0x4, offset = 0x4, fixed_abs, tag = 'smem constant byte address 0x4 - core index']
  #allocation1 [shape = 'u32[144,128]{1,0:T(1,128)}', space=vmem, size = 0x12000, scoped, tag = 'internal scratch']
  %s0 = inlined_call_operand.vmem [shape: f32[64,128], index: 0, kind: input, shape index: {}]
  %s1 = inlined_call_operand.vmem [shape: f32[1,128], index: 1, kind: input, shape index: {}]
  %s2 = inlined_call_operand.vmem [shape: f32[1,128], index: 2, kind: input, shape index: {}]
  %s3 = inlined_call_operand.vmem [shape: bf16[64,128], index: 3, kind: output, shape index: {}]
  %s4 = sld [smem:[#allocation0]]
  $region22: #{cycle_generator_forward.24} parent=0
    _
  %s6 = ssub.s32 1, %s4
  %s7 = scalar_select 0, %s6, %s4
  // Predicated region
  $region2: #{cycle_generator_forward.24} parent=0 // pred_check
    _
  $region3: #{cycle_generator_forward.24} parent=0 // pred_check_branch
    %9 = sbr.rel (0) target = $region5
  $region4: #{cycle_generator_forward.24} parent=0 // pred_region
    _
  $region5: #{cycle_generator_forward.24} parent=0 // pred_fallthru
    _
  // Predicated region
  $region6: #{cycle_generator_forward.24} parent=0 // pred_check
    _
  $region7: #{cycle_generator_forward.24} parent=0 // pred_check_branch
    %11 = sbr.rel (0) target = $region9
  $region8: #{cycle_generator_forward.24} parent=0 // pred_region
    _
  $region9: #{cycle_generator_forward.24} parent=0 // pred_fallthru
    _
  // Predicated region
  $region10: #{cycle_generator_forward.24} parent=0 // pred_check
    _
  $region11: #{cycle_generator_forward.24} parent=0 // pred_check_branch
    %13 = sbr.rel (0) target = $region13
  $region12: #{cycle_generator_forward.24} parent=0 // pred_region
    _
  $region13: #{cycle_generator_forward.24} parent=0 // pred_fallthru
    _
  %v14 = vld [vmem:[%s0] sm:$0xff]
  %v15 = vld [vmem:[%s0 + $0x8] sm:$0xff]
  %v16 = vld [vmem:[%s0 + $0x10] sm:$0xff]
  %v17 = vld [vmem:[%s0 + $0x18] sm:$0xff]
  %v18 = vld [vmem:[%s0 + $0x20] sm:$0xff]
  %v19 = vld [vmem:[%s0 + $0x28] sm:$0xff]
  %v20 = vld [vmem:[%s0 + $0x30] sm:$0xff]
  %v21 = vld [vmem:[%s0 + $0x38] sm:$0xff]
  %v22 = vld [vmem:[%s1] sm:$0x1]
  %v24 = vlaneseq
  %v25 = vshrl.u32 %v24, 7
  %v26 = vsub.s32 0, %v25
  %v27 = vrot.slane %v22, %v26
  %v29 = vmul.f32 %v14, %v27
  %v30 = vmul.f32 %v15, %v27
  %v31 = vmul.f32 %v16, %v27
  %v32 = vmul.f32 %v17, %v27
  %v33 = vmul.f32 %v18, %v27
  %v34 = vmul.f32 %v19, %v27
  %v35 = vmul.f32 %v20, %v27
  %v36 = vmul.f32 %v21, %v27
  %v37 = vld [vmem:[%s2] sm:$0x1]
  %v39 = vlaneseq
  %v40 = vshrl.u32 %v39, 7
  %v41 = vsub.s32 0, %v40
  %v42 = vrot.slane %v37, %v41
  %v44 = vadd.f32 %v29, %v42
  %v45 = vadd.f32 %v30, %v42
  %v46 = vadd.f32 %v31, %v42
  %v47 = vadd.f32 %v32, %v42
  %v48 = vadd.f32 %v33, %v42
  %v49 = vadd.f32 %v34, %v42
  %v50 = vadd.f32 %v35, %v42
  %v51 = vadd.f32 %v36, %v42
  %v52 = vmax.f32 %v44, 0.0
  %v53 = vmax.f32 %v45, 0.0
  %v54 = vmax.f32 %v46, 0.0
  %v55 = vmax.f32 %v47, 0.0
  %v56 = vmax.f32 %v48, 0.0
  %v57 = vmax.f32 %v49, 0.0
  %v58 = vmax.f32 %v50, 0.0
  %v59 = vmax.f32 %v51, 0.0
  %v60 = vpack.c.bf16 %v53, %v52
  %v61 = vpack.c.bf16 %v55, %v54
  %v62 = vpack.c.bf16 %v57, %v56
  %v63 = vpack.c.bf16 %v59, %v58
  %v68 = vunpack.c.l.b16 %v60
  %v69 = vunpack.c.h.b16 %v60
  %v70 = vunpack.c.l.b16 %v61
  %v71 = vunpack.c.h.b16 %v61
  %v72 = vunpack.c.l.b16 %v62
  %v73 = vunpack.c.h.b16 %v62
  %v74 = vunpack.c.l.b16 %v63
  %v75 = vunpack.c.h.b16 %v63
  %v76 = vpack.c.b16 %v68, %v68
  %v77 = vpack.c.b16 %v69, %v69
  %v78 = vpack.c.b16 %v70, %v70
  %v79 = vpack.c.b16 %v71, %v71
  %v80 = vpack.c.b16 %v72, %v72
  %v81 = vpack.c.b16 %v73, %v73
  %v82 = vpack.c.b16 %v74, %v74
  %v83 = vpack.c.b16 %v75, %v75
  %92 = vst [vmem:[%s3] sm:$0xf] %v76
  %93 = vst [vmem:[%s3 + $0x4] sm:$0xf] %v77
  %94 = vst [vmem:[%s3 + $0x8] sm:$0xf] %v78
  %95 = vst [vmem:[%s3 + $0xc] sm:$0xf] %v79
  %96 = vst [vmem:[%s3 + $0x10] sm:$0xf] %v80
  %97 = vst [vmem:[%s3 + $0x14] sm:$0xf] %v81
  %98 = vst [vmem:[%s3 + $0x18] sm:$0xf] %v82
  %99 = vst [vmem:[%s3 + $0x1c] sm:$0xf] %v83
  // Predicated region
  $region14: #{cycle_generator_forward.24} parent=0 // pred_check
    _
  $region15: #{cycle_generator_forward.24} parent=0 // pred_check_branch
    %101 = sbr.rel (0) target = $region17
  $region16: #{cycle_generator_forward.24} parent=0 // pred_region
    _
  $region17: #{cycle_generator_forward.24} parent=0 // pred_fallthru
    _
  // Predicated region
  $region18: #{cycle_generator_forward.24} parent=0 // pred_check
    _
  $region19: #{cycle_generator_forward.24} parent=0 // pred_check_branch
    %103 = sbr.rel (0) target = $region21
  $region20: #{cycle_generator_forward.24} parent=0 // pred_region
    _
  $region21: #{cycle_generator_forward.24} parent=0 // pred_fallthru
    _

// kernel: cycle_generator_forward.25
$region0: #{cycle_generator_forward.25}
  #allocation0 [shape = 'u32[]', space=smem, size = 0x4, offset = 0x4, fixed_abs, tag = 'smem constant byte address 0x4 - core index']
  #allocation1 [shape = 'u32[144,128]{1,0:T(1,128)}', space=vmem, size = 0x12000, scoped, tag = 'internal scratch']
  %s0 = inlined_call_operand.vmem [shape: bf16[128,144], index: 0, kind: input, shape index: {}]
  %s1 = inlined_call_operand.vmem [shape: bf16[144,32], index: 1, kind: input, shape index: {}]
  %s2 = inlined_call_operand.vmem [shape: f32[128,32], index: 2, kind: output, shape index: {0}]
  %s3 = inlined_call_operand.vmem [shape: f32[2,8,32], index: 3, kind: output, shape index: {1}]
  %4 = xla_tuple %s2, %s3
  %s5 = sld [smem:[#allocation0]]
  $region49: #{cycle_generator_forward.25} parent=0
    _
  %s7 = ssub.s32 1, %s5
  %s8 = scalar_select 0, %s7, %s5
  loop: start=0, step=1, limit=4
  $region2: #{cycle_generator_forward.25} parent=0 // loop_pre_header
    _
  $region3: #{cycle_generator_forward.25} parent=0 // loop_header
    %s10 = sphi 0, %s14
    %p11 = scmp.ge.s32.totalorder %s10, 4
    %s20 = sphi 0, %s22
    %s23 = sphi 0, %s20
    %s24 = sphi 0, %s23
    %s40 = sphi 0, %s24
    %s44 = sphi 0, %s44
    %s46 = sphi 0, %s44
    %s47 = sphi 0, %s46
    %s61 = sphi 0, %s47
    %s67 = sphi 0, %s69
    %s70 = sphi 0, %s67
    %s71 = sphi 0, %s70
    %s87 = sphi 0, %s71
    %s93 = sphi 0, %s95
    %s96 = sphi 0, %s93
    %s97 = sphi 0, %s96
    %s113 = sphi 0, %s97
  $region4: #{cycle_generator_forward.25} parent=0 // loop_header_branch
    %13 = sbr.rel (%p11) target = $region8
  $region5: #{cycle_generator_forward.25} parent=0 // loop_body
    %s15 = ssub.s32 %s10, 1
    %s16 = ssub.s32 %s10, 2
    %s17 = sadd.s32 %s10, 1
    %s18 = ssub.s32 %s10, %s17
    %p19 = scmp.eq.s32.totalorder %s18, 0
    %s21 = sadd.s32 %s20, 1
    %s22 = scalar_select %p19, %s20, %s21
    %p25 = pneg %p19
    %p26 = scmp.eq.s32.totalorder %s10, 1
    %p27 = por %p25, %p26
    %p28 = scmp.ne.s32.totalorder %s20, %s23
    %p29 = scmp.eq.s32.totalorder %s10, 0
    %p30 = por %p28, %p29
    %p31 = scmp.ne.s32.totalorder %s20, %s23
    %p32 = scmp.eq.s32.totalorder %s15, 1
    %p33 = por %p31, %p32
    %p34 = scmp.ne.s32.totalorder %s23, %s24
    %p35 = scmp.eq.s32.totalorder %s15, 0
    %p36 = por %p34, %p35
    %p37 = scmp.ne.s32.totalorder %s23, %s24
    %p38 = scmp.eq.s32.totalorder %s16, 1
    %p39 = por %p37, %p38
    %p41 = scmp.ne.s32.totalorder %s24, %s40
    %p42 = scmp.eq.s32.totalorder %s16, 0
    %p43 = por %p41, %p42
    %s45 = sadd.s32 %s44, 1
    %p48 = scmp.eq.s32.totalorder %s10, 1
    %p49 = scmp.ne.s32.totalorder %s44, %s46
    %p50 = scmp.eq.s32.totalorder %s10, 0
    %p51 = por %p49, %p50
    %p52 = scmp.ne.s32.totalorder %s44, %s46
    %p53 = scmp.eq.s32.totalorder %s15, 1
    %p54 = por %p52, %p53
    %p55 = scmp.ne.s32.totalorder %s46, %s47
    %p56 = scmp.eq.s32.totalorder %s15, 0
    %p57 = por %p55, %p56
    %p58 = scmp.ne.s32.totalorder %s46, %s47
    %p59 = scmp.eq.s32.totalorder %s16, 1
    %p60 = por %p58, %p59
    %p62 = scmp.ne.s32.totalorder %s47, %s61
    %p63 = scmp.eq.s32.totalorder %s16, 0
    %p64 = por %p62, %p63
    %s65 = ssub.s32 %s10, %s17
    %p66 = scmp.eq.s32.totalorder %s65, 0
    %s68 = sadd.s32 %s67, 1
    %s69 = scalar_select %p66, %s67, %s68
    %p72 = pneg %p66
    %p73 = scmp.eq.s32.totalorder %s10, 1
    %p74 = por %p72, %p73
    %p75 = scmp.ne.s32.totalorder %s67, %s70
    %p76 = scmp.eq.s32.totalorder %s10, 0
    %p77 = por %p75, %p76
    %p78 = scmp.ne.s32.totalorder %s67, %s70
    %p79 = scmp.eq.s32.totalorder %s15, 1
    %p80 = por %p78, %p79
    %p81 = scmp.ne.s32.totalorder %s70, %s71
    %p82 = scmp.eq.s32.totalorder %s15, 0
    %p83 = por %p81, %p82
    %p84 = scmp.ne.s32.totalorder %s70, %s71
    %p85 = scmp.eq.s32.totalorder %s16, 1
    %p86 = por %p84, %p85
    %p88 = scmp.ne.s32.totalorder %s71, %s87
    %p89 = scmp.eq.s32.totalorder %s16, 0
    %p90 = por %p88, %p89
    %s91 = ssub.s32 %s10, %s17
    %p92 = scmp.eq.s32.totalorder %s91, 0
    %s94 = sadd.s32 %s93, 1
    %s95 = scalar_select %p92, %s93, %s94
    %p98 = pneg %p92
    %p99 = scmp.eq.s32.totalorder %s10, 1
    %p100 = por %p98, %p99
    %p101 = scmp.ne.s32.totalorder %s93, %s96
    %p102 = scmp.eq.s32.totalorder %s10, 0
    %p103 = por %p101, %p102
    %p104 = scmp.ne.s32.totalorder %s93, %s96
    %p105 = scmp.eq.s32.totalorder %s15, 1
    %p106 = por %p104, %p105
    %p107 = scmp.ne.s32.totalorder %s96, %s97
    %p108 = scmp.eq.s32.totalorder %s15, 0
    %p109 = por %p107, %p108
    %p110 = scmp.ne.s32.totalorder %s96, %s97
    %p111 = scmp.eq.s32.totalorder %s16, 1
    %p112 = por %p110, %p111
    %p114 = scmp.ne.s32.totalorder %s97, %s113
    %p115 = scmp.eq.s32.totalorder %s16, 0
    %p116 = por %p114, %p115
    %p117 = scmp.le.s32.totalorder 1, %s10
    %p118 = scmp.lt.s32.totalorder %s10, 3
    %p119 = pnand %p117, %p118
    %p120 = pneg %p119
    // Predicated region
    $region9: #{cycle_generator_forward.25} parent=5 // pred_check
      _
    $region10: #{cycle_generator_forward.25} parent=5 // pred_check_branch
      %122 = sbr.rel (%p119) target = $region12
    $region11: #{cycle_generator_forward.25} parent=5 // pred_region
      %s123 = ssub.s32 %s10, 1
      // Predicated region
      $region13: #{cycle_generator_forward.25} parent=11 // pred_check
        %p124 = pneg %p57
      $region14: #{cycle_generator_forward.25} parent=11 // pred_check_branch
        %126 = sbr.rel (%p124) target = $region16
      $region15: #{cycle_generator_forward.25} parent=11 // pred_region
        _
      $region16: #{cycle_generator_forward.25} parent=11 // pred_fallthru
        _
    $region12: #{cycle_generator_forward.25} parent=5 // pred_fallthru
      _
    %p127 = scmp.lt.s32.totalorder %s10, 2
    // Predicated region
    $region17: #{cycle_generator_forward.25} parent=5 // pred_check
      %p128 = pneg %p127
    $region18: #{cycle_generator_forward.25} parent=5 // pred_check_branch
      %130 = sbr.rel (%p128) target = $region20
    $region19: #{cycle_generator_forward.25} parent=5 // pred_region
      // Predicated region
      $region21: #{cycle_generator_forward.25} parent=19 // pred_check
        %p131 = pneg %p30
      $region22: #{cycle_generator_forward.25} parent=19 // pred_check_branch
        %133 = sbr.rel (%p131) target = $region24
      $region23: #{cycle_generator_forward.25} parent=19 // pred_region
        %s134 = smul.u32 8, %s10
        %p135 = scmp.lt.s32.totalorder %s134, 15
        %s136 = scalar_select %p135, %s134, 15
        %s137 = smul.addr %s136, 2
        %s138 = smul.addr %s137, 4
        %s139 = scalar_lea.vmem %s0, %s138
        %s140 = smul.u32 8, %s10
      $region24: #{cycle_generator_forward.25} parent=19 // pred_fallthru
        _
    $region20: #{cycle_generator_forward.25} parent=5 // pred_fallthru
      _
    %p141 = scmp.le.s32.totalorder 1, %s10
    %p142 = scmp.lt.s32.totalorder %s10, 3
    %p143 = pnand %p141, %p142
    %p144 = pneg %p143
    // Predicated region
    $region25: #{cycle_generator_forward.25} parent=5 // pred_check
      _
    $region26: #{cycle_generator_forward.25} parent=5 // pred_check_branch
      %146 = sbr.rel (%p143) target = $region28
    $region27: #{cycle_generator_forward.25} parent=5 // pred_region
      %s147 = ssub.s32 %s10, 1
      %s148 = smul.u32 8, %s15
      %p149 = scmp.lt.s32.totalorder %s148, 15
      %s150 = scalar_select %p149, %s148, 15
      %s151 = smul.addr %s150, 2
      %s152 = smul.addr %s151, 4
      %s153 = scalar_lea.vmem %s0, %s152
      %p154 = pneg %p36
      %p155 = pneg %p33
      %p156 = pneg %p57
      %p157 = pneg %p54
      %p158 = pneg %p83
      %p159 = pneg %p80
      %s160 = smul.u32 8, %s15
      %p161 = scmp.lt.s32.totalorder %s160, 15
      %s162 = scalar_select %p161, %s160, 15
      %s163 = smul.addr %s162, 8
      %s164 = scalar_lea.vmem %s2, %s163
      %p165 = pneg %p109
      %p166 = pneg %p106
      %p167 = scmp.lt.s32.totalorder %s15, 1
      %s168 = scalar_select %p167, %s15, 1
      %s169 = smul.addr %s168, 8
      %s170 = scalar_lea.vmem %s3, %s169
      %s171 = smul.u32 8, %s15
      %p172 = scmp.lt.s32.totalorder %s171, 15
      %s173 = scalar_select %p172, %s171, 15
      %s174 = smul.addr %s173, 2
      %s175 = smul.addr %s174, 4
      %s176 = scalar_lea.vmem %s0, %s175
      %s177 = smul.u32 8, %s15
      %s178 = smul.u32 8, %s15
      %p179 = scmp.lt.s32.totalorder %s178, 15
      %s180 = scalar_select %p179, %s178, 15
      %s181 = smul.addr %s180, 8
      %s182 = scalar_lea.vmem %s2, %s181
      %s183 = smul.u32 8, %s15
      %p184 = scmp.lt.s32.totalorder %s15, 1
      %s185 = scalar_select %p184, %s15, 1
      %s186 = smul.addr %s185, 8
      %s187 = scalar_lea.vmem %s3, %s186
      %v189 = vld [vmem:[%s176] sm:$0xff]
      %v190 = vld [vmem:[%s176 + $0x8] sm:$0xff]
      %v191 = vld [vmem:[%s176 + $0x10] sm:$0xff]
      %v192 = vld [vmem:[%s176 + $0x18] sm:$0xff]
      %v193 = vld [vmem:[%s176 + $0x20] sm:$0xff]
      %v194 = vld [vmem:[%s176 + $0x28] sm:$0xff]
      %v195 = vld [vmem:[%s176 + $0x30] sm:$0xff]
      %v196 = vld [vmem:[%s176 + $0x38] sm:$0xff]
      %v197 = vld [vmem:[%s1] sm:$0xf]
      %v198 = vld [vmem:[%s1 + $0x4] sm:$0xf]
      %v199 = vld [vmem:[%s1 + $0x8] sm:$0xf]
      %v200 = vld [vmem:[%s1 + $0xc] sm:$0xf]
      %v201 = vld [vmem:[%s1 + $0x10] sm:$0xf]
      %v202 = vld [vmem:[%s1 + $0x14] sm:$0xf]
      %v203 = vld [vmem:[%s1 + $0x18] sm:$0xf]
      %v204 = vld [vmem:[%s1 + $0x1c] sm:$0xf]
      %v205 = vld [vmem:[%s1 + $0x20] sm:$0xf]
      %v206 = vld [vmem:[%s1 + $0x24] sm:$0xf]
      %v207 = vld [vmem:[%s1 + $0x28] sm:$0xf]
      %v208 = vld [vmem:[%s1 + $0x2c] sm:$0xf]
      %v209 = vld [vmem:[%s1 + $0x30] sm:$0xf]
      %v210 = vld [vmem:[%s1 + $0x34] sm:$0xf]
      %v211 = vld [vmem:[%s1 + $0x38] sm:$0xf]
      %v212 = vld [vmem:[%s1 + $0x3c] sm:$0xf]
      %v213 = vld [vmem:[%s1 + $0x40] sm:$0xf]
      %v214 = vld [vmem:[%s1 + $0x44] sm:$0xf]
      %v223 = vunpack.c.l.b16 %v189
      %v224 = vunpack.c.h.b16 %v189
      %v225 = vunpack.c.l.b16 %v190
      %v226 = vunpack.c.h.b16 %v190
      %v227 = vunpack.c.l.b16 %v191
      %v228 = vunpack.c.h.b16 %v191
      %v229 = vunpack.c.l.b16 %v192
      %v230 = vunpack.c.h.b16 %v192
      %v231 = vunpack.c.l.b16 %v193
      %v232 = vunpack.c.h.b16 %v193
      %v233 = vunpack.c.l.b16 %v194
      %v234 = vunpack.c.h.b16 %v194
      %v235 = vunpack.c.l.b16 %v195
      %v236 = vunpack.c.h.b16 %v195
      %v237 = vunpack.c.l.b16 %v196
      %v238 = vunpack.c.h.b16 %v196
      %v239 = vpack.c.b16 %v225, %v223
      %v240 = vpack.c.b16 %v226, %v224
      %v241 = vpack.c.b16 %v229, %v227
      %v242 = vpack.c.b16 %v230, %v228
      %v243 = vpack.c.b16 %v233, %v231
      %v244 = vpack.c.b16 %v234, %v232
      %v245 = vpack.c.b16 %v237, %v235
      %v246 = vpack.c.b16 %v238, %v236
      %v269 = vunpack.c.l.b16 %v197
      %v270 = vunpack.c.l.b16 %v198
      %v271 = vunpack.c.l.b16 %v199
      %v272 = vunpack.c.l.b16 %v200
      %v273 = vunpack.c.l.b16 %v201
      %v274 = vunpack.c.l.b16 %v202
      %v275 = vunpack.c.l.b16 %v203
      %v276 = vunpack.c.l.b16 %v204
      %v277 = vunpack.c.l.b16 %v205
      %v278 = vunpack.c.l.b16 %v206
      %v279 = vunpack.c.l.b16 %v207
      %v280 = vunpack.c.l.b16 %v208
      %v281 = vunpack.c.l.b16 %v209
      %v282 = vunpack.c.l.b16 %v210
      %v283 = vunpack.c.l.b16 %v211
      %v284 = vunpack.c.l.b16 %v212
      %v285 = vunpack.c.l.b16 %v213
      %v286 = vunpack.c.l.b16 %v214
      %v287 = vpack.c.b16 %v270, %v269
      %v288 = vpack.c.b16 %v272, %v271
      %v289 = vpack.c.b16 %v274, %v273
      %v290 = vpack.c.b16 %v276, %v275
      %v291 = vpack.c.b16 %v278, %v277
      %v292 = vpack.c.b16 %v280, %v279
      %v293 = vpack.c.b16 %v282, %v281
      %v294 = vpack.c.b16 %v284, %v283
      %v295 = vpack.c.b16 %v286, %v285
      %vm305 = vcmask 130048
      %v307 = vsel %vm305, %v240, 0
      %v310 = vsel %vm305, %v242, 0
      %v313 = vsel %vm305, %v244, 0
      %v316 = vsel %vm305, %v246, 0
      %318 = vmatprep.subr.bf16.mxu0 0
      %319 = vmatpush1.bf16.msra.mxu0 %v294
      %320 = vmatprep.subr.bf16.mxu0 0
      %321 = vmatpush1.bf16.msra.mxu0 %v293
      %322 = vmatprep.subr.bf16.mxu0 0
      %323 = vmatpush1.bf16.msra.mxu0 %v292
      %324 = vmatprep.subr.bf16.mxu0 0
      %325 = vmatpush1.bf16.msra.mxu0 %v291
      %326 = vmatprep.subr.bf16.mxu0 0
      %327 = vmatpush1.bf16.msra.mxu0 %v290
      %328 = vmatprep.subr.bf16.mxu0 0
      %329 = vmatpush1.bf16.msra.mxu0 %v289
      %330 = vmatprep.subr.bf16.mxu0 0
      %331 = vmatpush1.bf16.msra.mxu0 %v288
      %332 = vmatprep.subr.bf16.mxu0 0
      %333 = vmatpush1.bf16.msra.mxu0 %v287
      %334 = vmatprep.subr.bf16.mxu0 0
      %335 = vmatpush2.bf16.msra.mxu0 0
      %336 = vmatprep.subr.bf16.mxu0 0
      %337 = vmatpush2.bf16.msra.mxu0 0
      %338 = vmatprep.subr.bf16.mxu0 0
      %339 = vmatpush2.bf16.msra.mxu0 0
      %340 = vmatprep.subr.bf16.mxu0 0
      %341 = vmatpush2.bf16.msra.mxu0 0
      %342 = vmatprep.subr.bf16.mxu0 0
      %343 = vmatpush2.bf16.msra.mxu0 0
      %344 = vmatprep.subr.bf16.mxu0 0
      %345 = vmatpush2.bf16.msra.mxu0 0
      %346 = vmatprep.subr.bf16.mxu0 0
      %347 = vmatpush2.bf16.msra.mxu0 0
      %348 = vmatprep.subr.bf16.mxu0 0
      %349 = vmatpush2.bf16.msra.mxu0 %v295
      %350 = vmatprep.mubr.bf16.mxu0 %v307
      %351 = vmatmul.mubr.bf16.gmra.mxu0 %v239
      %v352 = vpop.f32.mrf.mxu0
      %v353 = vadd.f32 0.0, %v352
      %v354 = vpop.f32.mrf.mxu0
      %v355 = vpop.f32.mrf.mxu0
      %v356 = vadd.f32 0.0, %v355
      %v357 = vpop.f32.mrf.mxu0
      %358 = vmatprep.mubr.bf16.mxu0 %v310
      %359 = vmatmul.mubr.bf16.gmra.mxu0 %v241
      %v360 = vpop.f32.mrf.mxu0
      %v361 = vadd.f32 0.0, %v360
      %v362 = vpop.f32.mrf.mxu0
      %v363 = vpop.f32.mrf.mxu0
      %v364 = vadd.f32 0.0, %v363
      %v365 = vpop.f32.mrf.mxu0
      %366 = vmatprep.mubr.bf16.mxu0 %v313
      %367 = vmatmul.mubr.bf16.gmra.mxu0 %v243
      %v368 = vpop.f32.mrf.mxu0
      %v369 = vadd.f32 0.0, %v368
      %v370 = vpop.f32.mrf.mxu0
      %v371 = vpop.f32.mrf.mxu0
      %v372 = vadd.f32 0.0, %v371
      %v373 = vpop.f32.mrf.mxu0
      %374 = vmatprep.mubr.bf16.mxu0 %v316
      %375 = vmatmul.mubr.bf16.gmra.mxu0 %v245
      %v376 = vpop.f32.mrf.mxu0
      %v377 = vadd.f32 0.0, %v376
      %v378 = vpop.f32.mrf.mxu0
      %v379 = vpop.f32.mrf.mxu0
      %v380 = vadd.f32 0.0, %v379
      %v381 = vpop.f32.mrf.mxu0
      %382 = vdwg.mxu0
      %vm383 = vcmask 261120
      %384 = vst.msk [vmem:[%s182] sm:$0xff] %vm383, %v353
      %385 = vst.msk [vmem:[%s182 + $0x8] sm:$0xff] %vm383, %v356
      %386 = vst.msk [vmem:[%s182 + $0x10] sm:$0xff] %vm383, %v361
      %387 = vst.msk [vmem:[%s182 + $0x18] sm:$0xff] %vm383, %v364
      %388 = vst.msk [vmem:[%s182 + $0x20] sm:$0xff] %vm383, %v369
      %389 = vst.msk [vmem:[%s182 + $0x28] sm:$0xff] %vm383, %v372
      %390 = vst.msk [vmem:[%s182 + $0x30] sm:$0xff] %vm383, %v377
      %391 = vst.msk [vmem:[%s182 + $0x38] sm:$0xff] %vm383, %v380
      %v392 = vsel %vm383, %v353, 0.0
      %v393 = vsel %vm383, %v356, 0.0
      %v394 = vadd.f32 %v392, %v393
      %v395 = vsel %vm383, %v361, 0.0
      %v396 = vadd.f32 %v394, %v395
      %v397 = vsel %vm383, %v364, 0.0
      %v398 = vadd.f32 %v396, %v397
      %v399 = vsel %vm383, %v369, 0.0
      %v400 = vadd.f32 %v398, %v399
      %v401 = vsel %vm383, %v372, 0.0
      %v402 = vadd.f32 %v400, %v401
      %v403 = vsel %vm383, %v377, 0.0
      %v404 = vadd.f32 %v402, %v403
      %v405 = vsel %vm383, %v380, 0.0
      %v406 = vadd.f32 %v404, %v405
      %v407 = vrot.slane %v406, 4
      %v408 = vadd.f32 %v406, %v407
      %v409 = vrot.slane %v408, 2
      %v410 = vadd.f32 %v408, %v409
      %v411 = vrot.slane %v410, 1
      %v412 = vadd.f32 %v410, %v411
      %v413 = vmul.f32 %v353, %v353
      %v414 = vmul.f32 %v356, %v356
      %v415 = vmul.f32 %v361, %v361
      %v416 = vmul.f32 %v364, %v364
      %v417 = vmul.f32 %v369, %v369
      %v418 = vmul.f32 %v372, %v372
      %v419 = vmul.f32 %v377, %v377
      %v420 = vmul.f32 %v380, %v380
      %v421 = vsel %vm383, %v413, 0.0
      %v422 = vsel %vm383, %v414, 0.0
      %v423 = vadd.f32 %v421, %v422
      %v424 = vsel %vm383, %v415, 0.0
      %v425 = vadd.f32 %v423, %v424
      %v426 = vsel %vm383, %v416, 0.0
      %v427 = vadd.f32 %v425, %v426
      %v428 = vsel %vm383, %v417, 0.0
      %v429 = vadd.f32 %v427, %v428
      %v430 = vsel %vm383, %v418, 0.0
      %v431 = vadd.f32 %v429, %v430
      %v432 = vsel %vm383, %v419, 0.0
      %v433 = vadd.f32 %v431, %v432
      %v434 = vsel %vm383, %v420, 0.0
      %v435 = vadd.f32 %v433, %v434
      %v436 = vrot.slane %v435, 4
      %v437 = vadd.f32 %v435, %v436
      %v438 = vrot.slane %v437, 2
      %v439 = vadd.f32 %v437, %v438
      %v440 = vrot.slane %v439, 1
      %v441 = vadd.f32 %v439, %v440
      %v442 = vlaneseq
      %v443 = vshrl.u32 %v442, 7
      %vm444 = vcmp.eq.s32.totalorder %v443, 0
      %v445 = vsel %vm444, %v412, 0.0
      %vm446 = vcmp.eq.s32.totalorder %v443, 1
      %v447 = vsel %vm446, %v441, 0.0
      %v448 = vadd.f32 %v445, %v447
      %449 = vst.msk [vmem:[%s187] sm:$0xff] %vm383, %v448
      %s450 = smul.u32 8, %s15
      %p451 = scmp.lt.s32.totalorder %s450, 15
      %s452 = scalar_select %p451, %s450, 15
      %s453 = smul.addr %s452, 8
      %s454 = scalar_lea.vmem %s2, %s453
      %p455 = scmp.lt.s32.totalorder %s15, 1
      %s456 = scalar_select %p455, %s15, 1
      %s457 = smul.addr %s456, 8
      %s458 = scalar_lea.vmem %s3, %s457
      // Predicated region
      $region29: #{cycle_generator_forward.25} parent=27 // pred_check
        %p459 = pneg %p80
      $region30: #{cycle_generator_forward.25} parent=27 // pred_check_branch
        %461 = sbr.rel (%p459) target = $region32
      $region31: #{cycle_generator_forward.25} parent=27 // pred_region
        %s462 = smul.u32 8, %s15
      $region32: #{cycle_generator_forward.25} parent=27 // pred_fallthru
        _
      // Predicated region
      $region33: #{cycle_generator_forward.25} parent=27 // pred_check
        %p463 = pneg %p106
      $region34: #{cycle_generator_forward.25} parent=27 // pred_check_branch
        %465 = sbr.rel (%p463) target = $region36
      $region35: #{cycle_generator_forward.25} parent=27 // pred_region
        _
      $region36: #{cycle_generator_forward.25} parent=27 // pred_fallthru
        _
    $region28: #{cycle_generator_forward.25} parent=5 // pred_fallthru
      _
    %p466 = scmp.le.s32.totalorder 2, %s10
    // Predicated region
    $region37: #{cycle_generator_forward.25} parent=5 // pred_check
      %p467 = pneg %p466
    $region38: #{cycle_generator_forward.25} parent=5 // pred_check_branch
      %469 = sbr.rel (%p467) target = $region40
    $region39: #{cycle_generator_forward.25} parent=5 // pred_region
      %s470 = ssub.s32 %s10, 2
      // Predicated region
      $region41: #{cycle_generator_forward.25} parent=39 // pred_check
        %p471 = pneg %p86
      $region42: #{cycle_generator_forward.25} parent=39 // pred_check_branch
        %473 = sbr.rel (%p471) target = $region44
      $region43: #{cycle_generator_forward.25} parent=39 // pred_region
        %s474 = smul.u32 8, %s16
        %p475 = scmp.lt.s32.totalorder %s474, 15
        %s476 = scalar_select %p475, %s474, 15
        %s477 = smul.addr %s476, 8
        %s478 = scalar_lea.vmem %s2, %s477
      $region44: #{cycle_generator_forward.25} parent=39 // pred_fallthru
        _
      // Predicated region
      $region45: #{cycle_generator_forward.25} parent=39 // pred_check
        %p479 = pneg %p112
      $region46: #{cycle_generator_forward.25} parent=39 // pred_check_branch
        %481 = sbr.rel (%p479) target = $region48
      $region47: #{cycle_generator_forward.25} parent=39 // pred_region
        %p482 = scmp.lt.s32.totalorder %s16, 1
        %s483 = scalar_select %p482, %s16, 1
        %s484 = smul.addr %s483, 8
        %s485 = scalar_lea.vmem %s3, %s484
      $region48: #{cycle_generator_forward.25} parent=39 // pred_fallthru
        _
    $region40: #{cycle_generator_forward.25} parent=5 // pred_fallthru
      _
  $region6: #{cycle_generator_forward.25} parent=0 // loop_footer
    %s14 = sadd.s32 1, %s10
  $region7: #{cycle_generator_forward.25} parent=0 // loop_footer_branch
    %9 = sbr.rel target = $region3
  $region8: #{cycle_generator_forward.25} parent=0 // loop_exit
    _

// kernel: tile.131
$region0: #{tile.131}
  #allocation0 [shape = 's32[1]{0}', space=sflag, size = 0x4, scoped, tag = 'scoped memory for tile.131']
  %s0 = inlined_call_operand.vmem [shape: f32[32], index: 0, kind: input, shape index: {}]
  %s1 = inlined_call_operand.vmem [shape: f32[4,32], index: 1, kind: output, shape index: {}]
  // Predicated region
  $region2: #{tile.131} parent=0 // pred_check
    _
  $region3: #{tile.131} parent=0 // pred_check_branch
    %3 = sbr.rel (0) target = $region5
  $region4: #{tile.131} parent=0 // pred_region
    _
  $region5: #{tile.131} parent=0 // pred_fallthru
    _
  %v4 = vld [vmem:[%s0] ss:$0 sm:$0xff]
  %5 = vst [vmem:[%s1] sm:$0xf] %v4

// kernel: tile.132
$region0: #{tile.132}
  %s0 = inlined_call_operand.vmem [shape: f32[4,32], index: 0, kind: input, shape index: {}]
  %s1 = inlined_call_operand.vmem [shape: f32[1,128], index: 1, kind: output, shape index: {}]
  $region1: #{tile.132} parent=0
    #allocation0 [shape = 'u8[4096]{0}', space=vmem, size = 0x1000, scoped, tag = 'scoped mem for output reshape']
    #allocation1 [shape = 'u8[4096]{0}', space=vmem, size = 0x1000, scoped, tag = 'scoped mem for input reshape']
    %s3 = sshll.u32 1, 4
    %s4 = ssub.s32 %s3, 1
    %v5 = vld [vmem:[%s0] sm:%s4]
    %6 = vst [vmem:[#allocation1] sm:%s4] %v5
    %v7 = vld [vmem:[#allocation1] sm:$0x1]
    %vm8 = vcmask 261120
    %9 = vst.msk [vmem:[#allocation0] sm:$0x1] %vm8, %v7
    %s10 = scalar_lea.vmem [#allocation1], 3
    %v11 = vld [vmem:[%s10] sm:$0x1]
    %12 = vrot.lane.b32.xlu0 %v11, 96
    %v13 = vpop.permute.xlu0 %12
    %vm14 = vcmask 1048320
    %15 = vst.msk [vmem:[#allocation0] sm:$0x1] %vm14, %v13
    %s16 = scalar_lea.vmem [#allocation1], 2
    %v17 = vld [vmem:[%s16] sm:$0x1]
    %18 = vrot.lane.b32.xlu0 %v17, 64
    %v19 = vpop.permute.xlu0 %18
    %vm20 = vcmask 785920
    %21 = vst.msk [vmem:[#allocation0] sm:$0x1] %vm20, %v19
    %s22 = scalar_lea.vmem [#allocation1], 1
    %v23 = vld [vmem:[%s22] sm:$0x1]
    %24 = vrot.lane.b32.xlu0 %v23, 32
    %v25 = vpop.permute.xlu0 %24
    %vm26 = vcmask 523520
    %27 = vst.msk [vmem:[#allocation0] sm:$0x1] %vm26, %v25
    %s29 = sshll.u32 1, 1
    %s30 = ssub.s32 %s29, 1
    %v32 = vld [vmem:[#allocation0] sm:%s30]
    %s33 = sshll.u32 1, 1
    %s34 = ssub.s32 %s33, 1
    %35 = vst [vmem:[%s1] sm:%s34] %v32

// kernel: cycle_generator_forward.26
$region0: #{cycle_generator_forward.26}
  #allocation0 [shape = 'u32[]', space=smem, size = 0x4, offset = 0x4, fixed_abs, tag = 'smem constant byte address 0x4 - core index']
  #allocation1 [shape = 'u32[144,128]{1,0:T(1,128)}', space=vmem, size = 0x12000, scoped, tag = 'internal scratch']
  %s0 = inlined_call_operand.vmem [shape: f32[32,128], index: 0, kind: input, shape index: {}]
  %s1 = inlined_call_operand.vmem [shape: f32[1,128], index: 1, kind: input, shape index: {}]
  %s2 = inlined_call_operand.vmem [shape: f32[1,128], index: 2, kind: input, shape index: {}]
  %s3 = inlined_call_operand.vmem [shape: bf16[32,128], index: 3, kind: output, shape index: {}]
  %s4 = sld [smem:[#allocation0]]
  $region22: #{cycle_generator_forward.26} parent=0
    _
  %s6 = ssub.s32 1, %s4
  %s7 = scalar_select 0, %s6, %s4
  // Predicated region
  $region2: #{cycle_generator_forward.26} parent=0 // pred_check
    _
  $region3: #{cycle_generator_forward.26} parent=0 // pred_check_branch
    %9 = sbr.rel (0) target = $region5
  $region4: #{cycle_generator_forward.26} parent=0 // pred_region
    _
  $region5: #{cycle_generator_forward.26} parent=0 // pred_fallthru
    _
  // Predicated region
  $region6: #{cycle_generator_forward.26} parent=0 // pred_check
    _
  $region7: #{cycle_generator_forward.26} parent=0 // pred_check_branch
    %11 = sbr.rel (0) target = $region9
  $region8: #{cycle_generator_forward.26} parent=0 // pred_region
    _
  $region9: #{cycle_generator_forward.26} parent=0 // pred_fallthru
    _
  // Predicated region
  $region10: #{cycle_generator_forward.26} parent=0 // pred_check
    _
  $region11: #{cycle_generator_forward.26} parent=0 // pred_check_branch
    %13 = sbr.rel (0) target = $region13
  $region12: #{cycle_generator_forward.26} parent=0 // pred_region
    _
  $region13: #{cycle_generator_forward.26} parent=0 // pred_fallthru
    _
  %v14 = vld [vmem:[%s0] sm:$0xff]
  %v15 = vld [vmem:[%s0 + $0x8] sm:$0xff]
  %v16 = vld [vmem:[%s0 + $0x10] sm:$0xff]
  %v17 = vld [vmem:[%s0 + $0x18] sm:$0xff]
  %v18 = vld [vmem:[%s1] sm:$0x1]
  %v20 = vlaneseq
  %v21 = vshrl.u32 %v20, 7
  %v22 = vsub.s32 0, %v21
  %v23 = vrot.slane %v18, %v22
  %v25 = vmul.f32 %v14, %v23
  %v26 = vmul.f32 %v15, %v23
  %v27 = vmul.f32 %v16, %v23
  %v28 = vmul.f32 %v17, %v23
  %v29 = vld [vmem:[%s2] sm:$0x1]
  %v31 = vlaneseq
  %v32 = vshrl.u32 %v31, 7
  %v33 = vsub.s32 0, %v32
  %v34 = vrot.slane %v29, %v33
  %v36 = vadd.f32 %v25, %v34
  %v37 = vadd.f32 %v26, %v34
  %v38 = vadd.f32 %v27, %v34
  %v39 = vadd.f32 %v28, %v34
  %v40 = vmax.f32 %v36, 0.0
  %v41 = vmax.f32 %v37, 0.0
  %v42 = vmax.f32 %v38, 0.0
  %v43 = vmax.f32 %v39, 0.0
  %v44 = vpack.c.bf16 %v41, %v40
  %v45 = vpack.c.bf16 %v43, %v42
  %v48 = vunpack.c.l.b16 %v44
  %v49 = vunpack.c.h.b16 %v44
  %v50 = vunpack.c.l.b16 %v45
  %v51 = vunpack.c.h.b16 %v45
  %v52 = vpack.c.b16 %v48, %v48
  %v53 = vpack.c.b16 %v49, %v49
  %v54 = vpack.c.b16 %v50, %v50
  %v55 = vpack.c.b16 %v51, %v51
  %60 = vst [vmem:[%s3] sm:$0xf] %v52
  %61 = vst [vmem:[%s3 + $0x4] sm:$0xf] %v53
  %62 = vst [vmem:[%s3 + $0x8] sm:$0xf] %v54
  %63 = vst [vmem:[%s3 + $0xc] sm:$0xf] %v55
  // Predicated region
  $region14: #{cycle_generator_forward.26} parent=0 // pred_check
    _
  $region15: #{cycle_generator_forward.26} parent=0 // pred_check_branch
    %65 = sbr.rel (0) target = $region17
  $region16: #{cycle_generator_forward.26} parent=0 // pred_region
    _
  $region17: #{cycle_generator_forward.26} parent=0 // pred_fallthru
    _
  // Predicated region
  $region18: #{cycle_generator_forward.26} parent=0 // pred_check
    _
  $region19: #{cycle_generator_forward.26} parent=0 // pred_check_branch
    %67 = sbr.rel (0) target = $region21
  $region20: #{cycle_generator_forward.26} parent=0 // pred_region
    _
  $region21: #{cycle_generator_forward.26} parent=0 // pred_fallthru
    _

// kernel: tile.142
$region0: #{tile.142}
  %s0 = inlined_call_operand.vmem [shape: f32[2,64], index: 0, kind: input, shape index: {}]
  %s1 = inlined_call_operand.vmem [shape: f32[1,128], index: 1, kind: output, shape index: {}]
  $region1: #{tile.142} parent=0
    #allocation0 [shape = 'u8[4096]{0}', space=vmem, size = 0x1000, scoped, tag = 'scoped mem for output reshape']
    #allocation1 [shape = 'u8[4096]{0}', space=vmem, size = 0x1000, scoped, tag = 'scoped mem for input reshape']
    %s3 = sshll.u32 1, 2
    %s4 = ssub.s32 %s3, 1
    %v5 = vld [vmem:[%s0] sm:%s4]
    %6 = vst [vmem:[#allocation1] sm:%s4] %v5
    %v7 = vld [vmem:[#allocation1] sm:$0x1]
    %vm8 = vcmask 523264
    %9 = vst.msk [vmem:[#allocation0] sm:$0x1] %vm8, %v7
    %s10 = scalar_lea.vmem [#allocation1], 1
    %v11 = vld [vmem:[%s10] sm:$0x1]
    %12 = vrot.lane.b32.xlu0 %v11, 64
    %v13 = vpop.permute.xlu0 %12
    %vm14 = vcmask 1048064
    %15 = vst.msk [vmem:[#allocation0] sm:$0x1] %vm14, %v13
    %s17 = sshll.u32 1, 1
    %s18 = ssub.s32 %s17, 1
    %v20 = vld [vmem:[#allocation0] sm:%s18]
    %s21 = sshll.u32 1, 1
    %s22 = ssub.s32 %s21, 1
    %23 = vst [vmem:[%s1] sm:%s22] %v20

// kernel: tile.141
$region0: #{tile.141}
  #allocation0 [shape = 's32[1]{0}', space=sflag, size = 0x4, scoped, tag = 'scoped memory for tile.141']
  %s0 = inlined_call_operand.vmem [shape: f32[64], index: 0, kind: input, shape index: {}]
  %s1 = inlined_call_operand.vmem [shape: f32[2,64], index: 1, kind: output, shape index: {}]
  // Predicated region
  $region2: #{tile.141} parent=0 // pred_check
    _
  $region3: #{tile.141} parent=0 // pred_check_branch
    %3 = sbr.rel (0) target = $region5
  $region4: #{tile.141} parent=0 // pred_region
    _
  $region5: #{tile.141} parent=0 // pred_fallthru
    _
  %v4 = vld [vmem:[%s0] ss:$0 sm:$0xff]
  %5 = vst [vmem:[%s1] sm:$0x3] %v4

// kernel: cycle_generator_forward.28
$region0: #{cycle_generator_forward.28}
  #allocation0 [shape = 'u32[]', space=smem, size = 0x4, offset = 0x4, fixed_abs, tag = 'smem constant byte address 0x4 - core index']
  #allocation1 [shape = 'u32[144,128]{1,0:T(1,128)}', space=vmem, size = 0x12000, scoped, tag = 'internal scratch']
  %s0 = inlined_call_operand.vmem [shape: f32[16,128], index: 0, kind: input, shape index: {}]
  %s1 = inlined_call_operand.vmem [shape: f32[1,128], index: 1, kind: input, shape index: {}]
  %s2 = inlined_call_operand.vmem [shape: f32[1,128], index: 2, kind: input, shape index: {}]
  %s3 = inlined_call_operand.vmem [shape: bf16[16,128], index: 3, kind: output, shape index: {}]
  %s4 = sld [smem:[#allocation0]]
  $region22: #{cycle_generator_forward.28} parent=0
    _
  %s6 = ssub.s32 1, %s4
  %s7 = scalar_select 0, %s6, %s4
  // Predicated region
  $region2: #{cycle_generator_forward.28} parent=0 // pred_check
    _
  $region3: #{cycle_generator_forward.28} parent=0 // pred_check_branch
    %9 = sbr.rel (0) target = $region5
  $region4: #{cycle_generator_forward.28} parent=0 // pred_region
    _
  $region5: #{cycle_generator_forward.28} parent=0 // pred_fallthru
    _
  // Predicated region
  $region6: #{cycle_generator_forward.28} parent=0 // pred_check
    _
  $region7: #{cycle_generator_forward.28} parent=0 // pred_check_branch
    %11 = sbr.rel (0) target = $region9
  $region8: #{cycle_generator_forward.28} parent=0 // pred_region
    _
  $region9: #{cycle_generator_forward.28} parent=0 // pred_fallthru
    _
  // Predicated region
  $region10: #{cycle_generator_forward.28} parent=0 // pred_check
    _
  $region11: #{cycle_generator_forward.28} parent=0 // pred_check_branch
    %13 = sbr.rel (0) target = $region13
  $region12: #{cycle_generator_forward.28} parent=0 // pred_region
    _
  $region13: #{cycle_generator_forward.28} parent=0 // pred_fallthru
    _
  %v14 = vld [vmem:[%s0] sm:$0xff]
  %v15 = vld [vmem:[%s0 + $0x8] sm:$0xff]
  %v16 = vld [vmem:[%s1] sm:$0x1]
  %v18 = vlaneseq
  %v19 = vshrl.u32 %v18, 7
  %v20 = vsub.s32 0, %v19
  %v21 = vrot.slane %v16, %v20
  %v23 = vmul.f32 %v14, %v21
  %v24 = vmul.f32 %v15, %v21
  %v25 = vld [vmem:[%s2] sm:$0x1]
  %v27 = vlaneseq
  %v28 = vshrl.u32 %v27, 7
  %v29 = vsub.s32 0, %v28
  %v30 = vrot.slane %v25, %v29
  %v32 = vadd.f32 %v23, %v30
  %v33 = vadd.f32 %v24, %v30
  %v34 = vmax.f32 %v32, 0.0
  %v35 = vmax.f32 %v33, 0.0
  %v36 = vpack.c.bf16 %v35, %v34
  %v38 = vunpack.c.l.b16 %v36
  %v39 = vunpack.c.h.b16 %v36
  %v40 = vpack.c.b16 %v38, %v38
  %v41 = vpack.c.b16 %v39, %v39
  %44 = vst [vmem:[%s3] sm:$0xf] %v40
  %45 = vst [vmem:[%s3 + $0x4] sm:$0xf] %v41
  // Predicated region
  $region14: #{cycle_generator_forward.28} parent=0 // pred_check
    _
  $region15: #{cycle_generator_forward.28} parent=0 // pred_check_branch
    %47 = sbr.rel (0) target = $region17
  $region16: #{cycle_generator_forward.28} parent=0 // pred_region
    _
  $region17: #{cycle_generator_forward.28} parent=0 // pred_fallthru
    _
  // Predicated region
  $region18: #{cycle_generator_forward.28} parent=0 // pred_check
    _
  $region19: #{cycle_generator_forward.28} parent=0 // pred_check_branch
    %49 = sbr.rel (0) target = $region21
  $region20: #{cycle_generator_forward.28} parent=0 // pred_region
    _
  $region21: #{cycle_generator_forward.28} parent=0 // pred_fallthru
    _

// kernel: cycle_generator_forward.27
$region0: #{cycle_generator_forward.27}
  #allocation0 [shape = 'u32[]', space=smem, size = 0x4, offset = 0x4, fixed_abs, tag = 'smem constant byte address 0x4 - core index']
  #allocation1 [shape = 'u32[144,128]{1,0:T(1,128)}', space=vmem, size = 0x12000, scoped, tag = 'internal scratch']
  %s0 = inlined_call_operand.vmem [shape: bf16[32,288], index: 0, kind: input, shape index: {}]
  %s1 = inlined_call_operand.vmem [shape: bf16[288,64], index: 1, kind: input, shape index: {}]
  %s2 = inlined_call_operand.vmem [shape: f32[32,64], index: 2, kind: output, shape index: {0}]
  %s3 = inlined_call_operand.vmem [shape: f32[2,8,64], index: 3, kind: output, shape index: {1}]
  %4 = xla_tuple %s2, %s3
  %s5 = sld [smem:[#allocation0]]
  $region49: #{cycle_generator_forward.27} parent=0
    _
  %s7 = ssub.s32 1, %s5
  %s8 = scalar_select 0, %s7, %s5
  loop: start=0, step=1, limit=4
  $region2: #{cycle_generator_forward.27} parent=0 // loop_pre_header
    _
  $region3: #{cycle_generator_forward.27} parent=0 // loop_header
    %s10 = sphi 0, %s14
    %p11 = scmp.ge.s32.totalorder %s10, 4
    %s20 = sphi 0, %s22
    %s23 = sphi 0, %s20
    %s24 = sphi 0, %s23
    %s40 = sphi 0, %s24
    %s44 = sphi 0, %s44
    %s46 = sphi 0, %s44
    %s47 = sphi 0, %s46
    %s61 = sphi 0, %s47
    %s67 = sphi 0, %s69
    %s70 = sphi 0, %s67
    %s71 = sphi 0, %s70
    %s87 = sphi 0, %s71
    %s93 = sphi 0, %s95
    %s96 = sphi 0, %s93
    %s97 = sphi 0, %s96
    %s113 = sphi 0, %s97
  $region4: #{cycle_generator_forward.27} parent=0 // loop_header_branch
    %13 = sbr.rel (%p11) target = $region8
  $region5: #{cycle_generator_forward.27} parent=0 // loop_body
    %s15 = ssub.s32 %s10, 1
    %s16 = ssub.s32 %s10, 2
    %s17 = sadd.s32 %s10, 1
    %s18 = ssub.s32 %s10, %s17
    %p19 = scmp.eq.s32.totalorder %s18, 0
    %s21 = sadd.s32 %s20, 1
    %s22 = scalar_select %p19, %s20, %s21
    %p25 = pneg %p19
    %p26 = scmp.eq.s32.totalorder %s10, 1
    %p27 = por %p25, %p26
    %p28 = scmp.ne.s32.totalorder %s20, %s23
    %p29 = scmp.eq.s32.totalorder %s10, 0
    %p30 = por %p28, %p29
    %p31 = scmp.ne.s32.totalorder %s20, %s23
    %p32 = scmp.eq.s32.totalorder %s15, 1
    %p33 = por %p31, %p32
    %p34 = scmp.ne.s32.totalorder %s23, %s24
    %p35 = scmp.eq.s32.totalorder %s15, 0
    %p36 = por %p34, %p35
    %p37 = scmp.ne.s32.totalorder %s23, %s24
    %p38 = scmp.eq.s32.totalorder %s16, 1
    %p39 = por %p37, %p38
    %p41 = scmp.ne.s32.totalorder %s24, %s40
    %p42 = scmp.eq.s32.totalorder %s16, 0
    %p43 = por %p41, %p42
    %s45 = sadd.s32 %s44, 1
    %p48 = scmp.eq.s32.totalorder %s10, 1
    %p49 = scmp.ne.s32.totalorder %s44, %s46
    %p50 = scmp.eq.s32.totalorder %s10, 0
    %p51 = por %p49, %p50
    %p52 = scmp.ne.s32.totalorder %s44, %s46
    %p53 = scmp.eq.s32.totalorder %s15, 1
    %p54 = por %p52, %p53
    %p55 = scmp.ne.s32.totalorder %s46, %s47
    %p56 = scmp.eq.s32.totalorder %s15, 0
    %p57 = por %p55, %p56
    %p58 = scmp.ne.s32.totalorder %s46, %s47
    %p59 = scmp.eq.s32.totalorder %s16, 1
    %p60 = por %p58, %p59
    %p62 = scmp.ne.s32.totalorder %s47, %s61
    %p63 = scmp.eq.s32.totalorder %s16, 0
    %p64 = por %p62, %p63
    %s65 = ssub.s32 %s10, %s17
    %p66 = scmp.eq.s32.totalorder %s65, 0
    %s68 = sadd.s32 %s67, 1
    %s69 = scalar_select %p66, %s67, %s68
    %p72 = pneg %p66
    %p73 = scmp.eq.s32.totalorder %s10, 1
    %p74 = por %p72, %p73
    %p75 = scmp.ne.s32.totalorder %s67, %s70
    %p76 = scmp.eq.s32.totalorder %s10, 0
    %p77 = por %p75, %p76
    %p78 = scmp.ne.s32.totalorder %s67, %s70
    %p79 = scmp.eq.s32.totalorder %s15, 1
    %p80 = por %p78, %p79
    %p81 = scmp.ne.s32.totalorder %s70, %s71
    %p82 = scmp.eq.s32.totalorder %s15, 0
    %p83 = por %p81, %p82
    %p84 = scmp.ne.s32.totalorder %s70, %s71
    %p85 = scmp.eq.s32.totalorder %s16, 1
    %p86 = por %p84, %p85
    %p88 = scmp.ne.s32.totalorder %s71, %s87
    %p89 = scmp.eq.s32.totalorder %s16, 0
    %p90 = por %p88, %p89
    %s91 = ssub.s32 %s10, %s17
    %p92 = scmp.eq.s32.totalorder %s91, 0
    %s94 = sadd.s32 %s93, 1
    %s95 = scalar_select %p92, %s93, %s94
    %p98 = pneg %p92
    %p99 = scmp.eq.s32.totalorder %s10, 1
    %p100 = por %p98, %p99
    %p101 = scmp.ne.s32.totalorder %s93, %s96
    %p102 = scmp.eq.s32.totalorder %s10, 0
    %p103 = por %p101, %p102
    %p104 = scmp.ne.s32.totalorder %s93, %s96
    %p105 = scmp.eq.s32.totalorder %s15, 1
    %p106 = por %p104, %p105
    %p107 = scmp.ne.s32.totalorder %s96, %s97
    %p108 = scmp.eq.s32.totalorder %s15, 0
    %p109 = por %p107, %p108
    %p110 = scmp.ne.s32.totalorder %s96, %s97
    %p111 = scmp.eq.s32.totalorder %s16, 1
    %p112 = por %p110, %p111
    %p114 = scmp.ne.s32.totalorder %s97, %s113
    %p115 = scmp.eq.s32.totalorder %s16, 0
    %p116 = por %p114, %p115
    %p117 = scmp.le.s32.totalorder 1, %s10
    %p118 = scmp.lt.s32.totalorder %s10, 3
    %p119 = pnand %p117, %p118
    %p120 = pneg %p119
    // Predicated region
    $region9: #{cycle_generator_forward.27} parent=5 // pred_check
      _
    $region10: #{cycle_generator_forward.27} parent=5 // pred_check_branch
      %122 = sbr.rel (%p119) target = $region12
    $region11: #{cycle_generator_forward.27} parent=5 // pred_region
      %s123 = ssub.s32 %s10, 1
      // Predicated region
      $region13: #{cycle_generator_forward.27} parent=11 // pred_check
        %p124 = pneg %p57
      $region14: #{cycle_generator_forward.27} parent=11 // pred_check_branch
        %126 = sbr.rel (%p124) target = $region16
      $region15: #{cycle_generator_forward.27} parent=11 // pred_region
        _
      $region16: #{cycle_generator_forward.27} parent=11 // pred_fallthru
        _
    $region12: #{cycle_generator_forward.27} parent=5 // pred_fallthru
      _
    %p127 = scmp.lt.s32.totalorder %s10, 2
    // Predicated region
    $region17: #{cycle_generator_forward.27} parent=5 // pred_check
      %p128 = pneg %p127
    $region18: #{cycle_generator_forward.27} parent=5 // pred_check_branch
      %130 = sbr.rel (%p128) target = $region20
    $region19: #{cycle_generator_forward.27} parent=5 // pred_region
      // Predicated region
      $region21: #{cycle_generator_forward.27} parent=19 // pred_check
        %p131 = pneg %p30
      $region22: #{cycle_generator_forward.27} parent=19 // pred_check_branch
        %133 = sbr.rel (%p131) target = $region24
      $region23: #{cycle_generator_forward.27} parent=19 // pred_region
        %s134 = smul.u32 2, %s10
        %p135 = scmp.lt.s32.totalorder %s134, 3
        %s136 = scalar_select %p135, %s134, 3
        %s137 = smul.addr %s136, 3
        %s138 = smul.addr %s137, 4
        %s139 = scalar_lea.vmem %s0, %s138
        %s140 = smul.u32 2, %s10
      $region24: #{cycle_generator_forward.27} parent=19 // pred_fallthru
        _
    $region20: #{cycle_generator_forward.27} parent=5 // pred_fallthru
      _
    %p141 = scmp.le.s32.totalorder 1, %s10
    %p142 = scmp.lt.s32.totalorder %s10, 3
    %p143 = pnand %p141, %p142
    %p144 = pneg %p143
    // Predicated region
    $region25: #{cycle_generator_forward.27} parent=5 // pred_check
      _
    $region26: #{cycle_generator_forward.27} parent=5 // pred_check_branch
      %146 = sbr.rel (%p143) target = $region28
    $region27: #{cycle_generator_forward.27} parent=5 // pred_region
      %s147 = ssub.s32 %s10, 1
      %s148 = smul.u32 2, %s15
      %p149 = scmp.lt.s32.totalorder %s148, 3
      %s150 = scalar_select %p149, %s148, 3
      %s151 = smul.addr %s150, 3
      %s152 = smul.addr %s151, 4
      %s153 = scalar_lea.vmem %s0, %s152
      %p154 = pneg %p36
      %p155 = pneg %p33
      %p156 = pneg %p57
      %p157 = pneg %p54
      %p158 = pneg %p83
      %p159 = pneg %p80
      %s160 = smul.u32 2, %s15
      %p161 = scmp.lt.s32.totalorder %s160, 3
      %s162 = scalar_select %p161, %s160, 3
      %s163 = smul.addr %s162, 8
      %s164 = scalar_lea.vmem %s2, %s163
      %p165 = pneg %p109
      %p166 = pneg %p106
      %p167 = scmp.lt.s32.totalorder %s15, 1
      %s168 = scalar_select %p167, %s15, 1
      %s169 = smul.addr %s168, 8
      %s170 = scalar_lea.vmem %s3, %s169
      %s171 = smul.u32 2, %s15
      %p172 = scmp.lt.s32.totalorder %s171, 3
      %s173 = scalar_select %p172, %s171, 3
      %s174 = smul.addr %s173, 3
      %s175 = smul.addr %s174, 4
      %s176 = scalar_lea.vmem %s0, %s175
      %s177 = smul.u32 2, %s15
      %s178 = smul.u32 2, %s15
      %p179 = scmp.lt.s32.totalorder %s178, 3
      %s180 = scalar_select %p179, %s178, 3
      %s181 = smul.addr %s180, 8
      %s182 = scalar_lea.vmem %s2, %s181
      %s183 = smul.u32 2, %s15
      %p184 = scmp.lt.s32.totalorder %s15, 1
      %s185 = scalar_select %p184, %s15, 1
      %s186 = smul.addr %s185, 8
      %s187 = scalar_lea.vmem %s3, %s186
      %v189 = vld [vmem:[%s176] sm:$0xff]
      %v190 = vld [vmem:[%s176 + $0x8] sm:$0xf]
      %v191 = vld [vmem:[%s176 + $0xc] sm:$0xff]
      %v192 = vld [vmem:[%s176 + $0x14] sm:$0xf]
      %v193 = vld [vmem:[%s1] sm:$0xf]
      %v194 = vld [vmem:[%s1 + $0x4] sm:$0xf]
      %v195 = vld [vmem:[%s1 + $0x8] sm:$0xf]
      %v196 = vld [vmem:[%s1 + $0xc] sm:$0xf]
      %v197 = vld [vmem:[%s1 + $0x10] sm:$0xf]
      %v198 = vld [vmem:[%s1 + $0x14] sm:$0xf]
      %v199 = vld [vmem:[%s1 + $0x18] sm:$0xf]
      %v200 = vld [vmem:[%s1 + $0x1c] sm:$0xf]
      %v201 = vld [vmem:[%s1 + $0x20] sm:$0xf]
      %v202 = vld [vmem:[%s1 + $0x24] sm:$0xf]
      %v203 = vld [vmem:[%s1 + $0x28] sm:$0xf]
      %v204 = vld [vmem:[%s1 + $0x2c] sm:$0xf]
      %v205 = vld [vmem:[%s1 + $0x30] sm:$0xf]
      %v206 = vld [vmem:[%s1 + $0x34] sm:$0xf]
      %v207 = vld [vmem:[%s1 + $0x38] sm:$0xf]
      %v208 = vld [vmem:[%s1 + $0x3c] sm:$0xf]
      %v209 = vld [vmem:[%s1 + $0x40] sm:$0xf]
      %v210 = vld [vmem:[%s1 + $0x44] sm:$0xf]
      %v211 = vld [vmem:[%s1 + $0x48] sm:$0xf]
      %v212 = vld [vmem:[%s1 + $0x4c] sm:$0xf]
      %v213 = vld [vmem:[%s1 + $0x50] sm:$0xf]
      %v214 = vld [vmem:[%s1 + $0x54] sm:$0xf]
      %v215 = vld [vmem:[%s1 + $0x58] sm:$0xf]
      %v216 = vld [vmem:[%s1 + $0x5c] sm:$0xf]
      %v217 = vld [vmem:[%s1 + $0x60] sm:$0xf]
      %v218 = vld [vmem:[%s1 + $0x64] sm:$0xf]
      %v219 = vld [vmem:[%s1 + $0x68] sm:$0xf]
      %v220 = vld [vmem:[%s1 + $0x6c] sm:$0xf]
      %v221 = vld [vmem:[%s1 + $0x70] sm:$0xf]
      %v222 = vld [vmem:[%s1 + $0x74] sm:$0xf]
      %v223 = vld [vmem:[%s1 + $0x78] sm:$0xf]
      %v224 = vld [vmem:[%s1 + $0x7c] sm:$0xf]
      %v225 = vld [vmem:[%s1 + $0x80] sm:$0xf]
      %v226 = vld [vmem:[%s1 + $0x84] sm:$0xf]
      %v227 = vld [vmem:[%s1 + $0x88] sm:$0xf]
      %v228 = vld [vmem:[%s1 + $0x8c] sm:$0xf]
      %v233 = vunpack.c.l.b16 %v189
      %v234 = vunpack.c.h.b16 %v189
      %v235 = vunpack.c.l.b16 %v190
      %v236 = vunpack.c.l.b16 %v191
      %v237 = vunpack.c.h.b16 %v191
      %v238 = vunpack.c.l.b16 %v192
      %v239 = vpack.c.b16 %v236, %v233
      %v240 = vpack.c.b16 %v237, %v234
      %v241 = vpack.c.b16 %v238, %v235
      %v280 = vunpack.c.l.b16 %v193
      %v281 = vunpack.c.l.b16 %v194
      %v282 = vunpack.c.l.b16 %v195
      %v283 = vunpack.c.l.b16 %v196
      %v284 = vunpack.c.l.b16 %v197
      %v285 = vunpack.c.l.b16 %v198
      %v286 = vunpack.c.l.b16 %v199
      %v287 = vunpack.c.l.b16 %v200
      %v288 = vunpack.c.l.b16 %v201
      %v289 = vunpack.c.l.b16 %v202
      %v290 = vunpack.c.l.b16 %v203
      %v291 = vunpack.c.l.b16 %v204
      %v292 = vunpack.c.l.b16 %v205
      %v293 = vunpack.c.l.b16 %v206
      %v294 = vunpack.c.l.b16 %v207
      %v295 = vunpack.c.l.b16 %v208
      %v296 = vunpack.c.l.b16 %v209
      %v297 = vunpack.c.l.b16 %v210
      %v298 = vunpack.c.l.b16 %v211
      %v299 = vunpack.c.l.b16 %v212
      %v300 = vunpack.c.l.b16 %v213
      %v301 = vunpack.c.l.b16 %v214
      %v302 = vunpack.c.l.b16 %v215
      %v303 = vunpack.c.l.b16 %v216
      %v304 = vunpack.c.l.b16 %v217
      %v305 = vunpack.c.l.b16 %v218
      %v306 = vunpack.c.l.b16 %v219
      %v307 = vunpack.c.l.b16 %v220
      %v308 = vunpack.c.l.b16 %v221
      %v309 = vunpack.c.l.b16 %v222
      %v310 = vunpack.c.l.b16 %v223
      %v311 = vunpack.c.l.b16 %v224
      %v312 = vunpack.c.l.b16 %v225
      %v313 = vunpack.c.l.b16 %v226
      %v314 = vunpack.c.l.b16 %v227
      %v315 = vunpack.c.l.b16 %v228
      %v316 = vpack.c.b16 %v281, %v280
      %v317 = vpack.c.b16 %v283, %v282
      %v318 = vpack.c.b16 %v285, %v284
      %v319 = vpack.c.b16 %v287, %v286
      %v320 = vpack.c.b16 %v289, %v288
      %v321 = vpack.c.b16 %v291, %v290
      %v322 = vpack.c.b16 %v293, %v292
      %v323 = vpack.c.b16 %v295, %v294
      %v324 = vpack.c.b16 %v297, %v296
      %v325 = vpack.c.b16 %v299, %v298
      %v326 = vpack.c.b16 %v301, %v300
      %v327 = vpack.c.b16 %v303, %v302
      %v328 = vpack.c.b16 %v305, %v304
      %v329 = vpack.c.b16 %v307, %v306
      %v330 = vpack.c.b16 %v309, %v308
      %v331 = vpack.c.b16 %v311, %v310
      %v332 = vpack.c.b16 %v313, %v312
      %v333 = vpack.c.b16 %v315, %v314
      %vm352 = vcmask 261120
      %v354 = vsel %vm352, %v241, 0
      %356 = vmatprep.subr.bf16.mxu0 0
      %357 = vmatpush1.bf16.msra.mxu0 %v323
      %358 = vmatprep.subr.bf16.mxu0 0
      %359 = vmatpush1.bf16.msra.mxu0 %v322
      %360 = vmatprep.subr.bf16.mxu0 0
      %361 = vmatpush1.bf16.msra.mxu0 %v321
      %362 = vmatprep.subr.bf16.mxu0 0
      %363 = vmatpush1.bf16.msra.mxu0 %v320
      %364 = vmatprep.subr.bf16.mxu0 0
      %365 = vmatpush1.bf16.msra.mxu0 %v319
      %366 = vmatprep.subr.bf16.mxu0 0
      %367 = vmatpush1.bf16.msra.mxu0 %v318
      %368 = vmatprep.subr.bf16.mxu0 0
      %369 = vmatpush1.bf16.msra.mxu0 %v317
      %370 = vmatprep.subr.bf16.mxu0 0
      %371 = vmatpush1.bf16.msra.mxu0 %v316
      %372 = vmatprep.subr.bf16.mxu0 0
      %373 = vmatpush2.bf16.msra.mxu0 %v331
      %374 = vmatprep.subr.bf16.mxu0 0
      %375 = vmatpush2.bf16.msra.mxu0 %v330
      %376 = vmatprep.subr.bf16.mxu0 0
      %377 = vmatpush2.bf16.msra.mxu0 %v329
      %378 = vmatprep.subr.bf16.mxu0 0
      %379 = vmatpush2.bf16.msra.mxu0 %v328
      %380 = vmatprep.subr.bf16.mxu0 0
      %381 = vmatpush2.bf16.msra.mxu0 %v327
      %382 = vmatprep.subr.bf16.mxu0 0
      %383 = vmatpush2.bf16.msra.mxu0 %v326
      %384 = vmatprep.subr.bf16.mxu0 0
      %385 = vmatpush2.bf16.msra.mxu0 %v325
      %386 = vmatprep.subr.bf16.mxu0 0
      %387 = vmatpush2.bf16.msra.mxu0 %v324
      %388 = vmatprep.mubr.bf16.mxu0 %v240
      %389 = vmatmul.mubr.bf16.gmra.mxu0 %v239
      %v390 = vpop.f32.mrf.mxu0
      %v391 = vadd.f32 0.0, %v390
      %v392 = vpop.f32.mrf.mxu0
      %v393 = vpop.f32.mrf.mxu0
      %v394 = vadd.f32 0.0, %v393
      %v395 = vpop.f32.mrf.mxu0
      %396 = vdwg.mxu0
      %397 = vmatprep.subr.bf16.mxu0 0
      %398 = vmatpush1.bf16.msra.mxu0 0
      %399 = vmatprep.subr.bf16.mxu0 0
      %400 = vmatpush1.bf16.msra.mxu0 0
      %401 = vmatprep.subr.bf16.mxu0 0
      %402 = vmatpush1.bf16.msra.mxu0 0
      %403 = vmatprep.subr.bf16.mxu0 0
      %404 = vmatpush1.bf16.msra.mxu0 0
      %405 = vmatprep.subr.bf16.mxu0 0
      %406 = vmatpush1.bf16.msra.mxu0 0
      %407 = vmatprep.subr.bf16.mxu0 0
      %408 = vmatpush1.bf16.msra.mxu0 0
      %409 = vmatprep.subr.bf16.mxu0 0
      %410 = vmatpush1.bf16.msra.mxu0 %v333
      %411 = vmatprep.subr.bf16.mxu0 0
      %412 = vmatpush1.bf16.msra.mxu0 %v332
      %413 = vmatprep.subr.bf16.mxu0 0
      %414 = vmatpush2.bf16.msra.mxu0 0
      %415 = vmatprep.subr.bf16.mxu0 0
      %416 = vmatpush2.bf16.msra.mxu0 0
      %417 = vmatprep.subr.bf16.mxu0 0
      %418 = vmatpush2.bf16.msra.mxu0 0
      %419 = vmatprep.subr.bf16.mxu0 0
      %420 = vmatpush2.bf16.msra.mxu0 0
      %421 = vmatprep.subr.bf16.mxu0 0
      %422 = vmatpush2.bf16.msra.mxu0 0
      %423 = vmatprep.subr.bf16.mxu0 0
      %424 = vmatpush2.bf16.msra.mxu0 0
      %425 = vmatprep.subr.bf16.mxu0 0
      %426 = vmatpush2.bf16.msra.mxu0 0
      %427 = vmatprep.subr.bf16.mxu0 0
      %428 = vmatpush2.bf16.msra.mxu0 0
      %429 = vmatprep.mubr.bf16.mxu0 0
      %430 = vmatmul.mubr.bf16.gmra.mxu0 %v354
      %v431 = vpop.f32.mrf.mxu0
      %v432 = vadd.f32 %v391, %v431
      %v433 = vpop.f32.mrf.mxu0
      %v434 = vpop.f32.mrf.mxu0
      %v435 = vadd.f32 %v394, %v434
      %v436 = vpop.f32.mrf.mxu0
      %437 = vdwg.mxu0
      %vm438 = vcmask 523264
      %439 = vst.msk [vmem:[%s182] sm:$0xff] %vm438, %v432
      %440 = vst.msk [vmem:[%s182 + $0x8] sm:$0xff] %vm438, %v435
      %v441 = vsel %vm438, %v432, 0.0
      %v442 = vsel %vm438, %v435, 0.0
      %v443 = vadd.f32 %v441, %v442
      %v444 = vrot.slane %v443, 4
      %v445 = vadd.f32 %v443, %v444
      %v446 = vrot.slane %v445, 2
      %v447 = vadd.f32 %v445, %v446
      %v448 = vrot.slane %v447, 1
      %v449 = vadd.f32 %v447, %v448
      %v450 = vmul.f32 %v432, %v432
      %v451 = vmul.f32 %v435, %v435
      %v452 = vsel %vm438, %v450, 0.0
      %v453 = vsel %vm438, %v451, 0.0
      %v454 = vadd.f32 %v452, %v453
      %v455 = vrot.slane %v454, 4
      %v456 = vadd.f32 %v454, %v455
      %v457 = vrot.slane %v456, 2
      %v458 = vadd.f32 %v456, %v457
      %v459 = vrot.slane %v458, 1
      %v460 = vadd.f32 %v458, %v459
      %v461 = vlaneseq
      %v462 = vshrl.u32 %v461, 7
      %vm463 = vcmp.eq.s32.totalorder %v462, 0
      %v464 = vsel %vm463, %v449, 0.0
      %vm465 = vcmp.eq.s32.totalorder %v462, 1
      %v466 = vsel %vm465, %v460, 0.0
      %v467 = vadd.f32 %v464, %v466
      %468 = vst.msk [vmem:[%s187] sm:$0xff] %vm438, %v467
      %s469 = smul.u32 2, %s15
      %p470 = scmp.lt.s32.totalorder %s469, 3
      %s471 = scalar_select %p470, %s469, 3
      %s472 = smul.addr %s471, 8
      %s473 = scalar_lea.vmem %s2, %s472
      %p474 = scmp.lt.s32.totalorder %s15, 1
      %s475 = scalar_select %p474, %s15, 1
      %s476 = smul.addr %s475, 8
      %s477 = scalar_lea.vmem %s3, %s476
      // Predicated region
      $region29: #{cycle_generator_forward.27} parent=27 // pred_check
        %p478 = pneg %p80
      $region30: #{cycle_generator_forward.27} parent=27 // pred_check_branch
        %480 = sbr.rel (%p478) target = $region32
      $region31: #{cycle_generator_forward.27} parent=27 // pred_region
        %s481 = smul.u32 2, %s15
      $region32: #{cycle_generator_forward.27} parent=27 // pred_fallthru
        _
      // Predicated region
      $region33: #{cycle_generator_forward.27} parent=27 // pred_check
        %p482 = pneg %p106
      $region34: #{cycle_generator_forward.27} parent=27 // pred_check_branch
        %484 = sbr.rel (%p482) target = $region36
      $region35: #{cycle_generator_forward.27} parent=27 // pred_region
        _
      $region36: #{cycle_generator_forward.27} parent=27 // pred_fallthru
        _
    $region28: #{cycle_generator_forward.27} parent=5 // pred_fallthru
      _
    %p485 = scmp.le.s32.totalorder 2, %s10
    // Predicated region
    $region37: #{cycle_generator_forward.27} parent=5 // pred_check
      %p486 = pneg %p485
    $region38: #{cycle_generator_forward.27} parent=5 // pred_check_branch
      %488 = sbr.rel (%p486) target = $region40
    $region39: #{cycle_generator_forward.27} parent=5 // pred_region
      %s489 = ssub.s32 %s10, 2
      // Predicated region
      $region41: #{cycle_generator_forward.27} parent=39 // pred_check
        %p490 = pneg %p86
      $region42: #{cycle_generator_forward.27} parent=39 // pred_check_branch
        %492 = sbr.rel (%p490) target = $region44
      $region43: #{cycle_generator_forward.27} parent=39 // pred_region
        %s493 = smul.u32 2, %s16
        %p494 = scmp.lt.s32.totalorder %s493, 3
        %s495 = scalar_select %p494, %s493, 3
        %s496 = smul.addr %s495, 8
        %s497 = scalar_lea.vmem %s2, %s496
      $region44: #{cycle_generator_forward.27} parent=39 // pred_fallthru
        _
      // Predicated region
      $region45: #{cycle_generator_forward.27} parent=39 // pred_check
        %p498 = pneg %p112
      $region46: #{cycle_generator_forward.27} parent=39 // pred_check_branch
        %500 = sbr.rel (%p498) target = $region48
      $region47: #{cycle_generator_forward.27} parent=39 // pred_region
        %p501 = scmp.lt.s32.totalorder %s16, 1
        %s502 = scalar_select %p501, %s16, 1
        %s503 = smul.addr %s502, 8
        %s504 = scalar_lea.vmem %s3, %s503
      $region48: #{cycle_generator_forward.27} parent=39 // pred_fallthru
        _
    $region40: #{cycle_generator_forward.27} parent=5 // pred_fallthru
      _
  $region6: #{cycle_generator_forward.27} parent=0 // loop_footer
    %s14 = sadd.s32 1, %s10
  $region7: #{cycle_generator_forward.27} parent=0 // loop_footer_branch
    %9 = sbr.rel target = $region3
  $region8: #{cycle_generator_forward.27} parent=0 // loop_exit
    _

// kernel: cycle_generator_forward.32
$region0: #{cycle_generator_forward.32}
  #allocation0 [shape = 'u32[]', space=smem, size = 0x4, offset = 0x4, fixed_abs, tag = 'smem constant byte address 0x4 - core index']
  #allocation1 [shape = 'u32[144,128]{1,0:T(1,128)}', space=vmem, size = 0x12000, scoped, tag = 'internal scratch']
  %s0 = inlined_call_operand.vmem [shape: f32[16,128], index: 0, kind: input, shape index: {}]
  %s1 = inlined_call_operand.vmem [shape: f32[1,128], index: 1, kind: input, shape index: {}]
  %s2 = inlined_call_operand.vmem [shape: f32[1,128], index: 2, kind: input, shape index: {}]
  %s3 = inlined_call_operand.vmem [shape: bf16[16,128], index: 3, kind: input, shape index: {}, may-alias: {3,4}]
  %s4 = inlined_call_operand.vmem [shape: bf16[16,128], index: 4, kind: output, shape index: {}, may-alias: {3,4}]
  %s5 = sld [smem:[#allocation0]]
  $region26: #{cycle_generator_forward.32} parent=0
    _
  %s7 = ssub.s32 1, %s5
  %s8 = scalar_select 0, %s7, %s5
  // Predicated region
  $region2: #{cycle_generator_forward.32} parent=0 // pred_check
    _
  $region3: #{cycle_generator_forward.32} parent=0 // pred_check_branch
    %10 = sbr.rel (0) target = $region5
  $region4: #{cycle_generator_forward.32} parent=0 // pred_region
    _
  $region5: #{cycle_generator_forward.32} parent=0 // pred_fallthru
    _
  // Predicated region
  $region6: #{cycle_generator_forward.32} parent=0 // pred_check
    _
  $region7: #{cycle_generator_forward.32} parent=0 // pred_check_branch
    %12 = sbr.rel (0) target = $region9
  $region8: #{cycle_generator_forward.32} parent=0 // pred_region
    _
  $region9: #{cycle_generator_forward.32} parent=0 // pred_fallthru
    _
  // Predicated region
  $region10: #{cycle_generator_forward.32} parent=0 // pred_check
    _
  $region11: #{cycle_generator_forward.32} parent=0 // pred_check_branch
    %14 = sbr.rel (0) target = $region13
  $region12: #{cycle_generator_forward.32} parent=0 // pred_region
    _
  $region13: #{cycle_generator_forward.32} parent=0 // pred_fallthru
    _
  // Predicated region
  $region14: #{cycle_generator_forward.32} parent=0 // pred_check
    _
  $region15: #{cycle_generator_forward.32} parent=0 // pred_check_branch
    %16 = sbr.rel (0) target = $region17
  $region16: #{cycle_generator_forward.32} parent=0 // pred_region
    _
  $region17: #{cycle_generator_forward.32} parent=0 // pred_fallthru
    _
  %v17 = vld [vmem:[%s0] sm:$0xff]
  %v18 = vld [vmem:[%s0 + $0x8] sm:$0xff]
  %v19 = vld [vmem:[%s1] sm:$0x1]
  %v21 = vlaneseq
  %v22 = vshrl.u32 %v21, 7
  %v23 = vsub.s32 0, %v22
  %v24 = vrot.slane %v19, %v23
  %v26 = vmul.f32 %v17, %v24
  %v27 = vmul.f32 %v18, %v24
  %v28 = vld [vmem:[%s2] sm:$0x1]
  %v30 = vlaneseq
  %v31 = vshrl.u32 %v30, 7
  %v32 = vsub.s32 0, %v31
  %v33 = vrot.slane %v28, %v32
  %v35 = vadd.f32 %v26, %v33
  %v36 = vadd.f32 %v27, %v33
  %v37 = vld [vmem:[%s3] sm:$0xf]
  %v38 = vld [vmem:[%s3 + $0x4] sm:$0xf]
  %v39 = vunpack.c.l.bf16 %v37
  %v40 = vunpack.c.l.bf16 %v38
  %v41 = vadd.f32 %v35, %v39
  %v42 = vadd.f32 %v36, %v40
  %v43 = vpack.c.bf16 %v42, %v41
  %v45 = vunpack.c.l.b16 %v43
  %v46 = vunpack.c.h.b16 %v43
  %v47 = vpack.c.b16 %v45, %v45
  %v48 = vpack.c.b16 %v46, %v46
  %51 = vst [vmem:[%s4] sm:$0xf] %v47
  %52 = vst [vmem:[%s4 + $0x4] sm:$0xf] %v48
  // Predicated region
  $region18: #{cycle_generator_forward.32} parent=0 // pred_check
    _
  $region19: #{cycle_generator_forward.32} parent=0 // pred_check_branch
    %54 = sbr.rel (0) target = $region21
  $region20: #{cycle_generator_forward.32} parent=0 // pred_region
    _
  $region21: #{cycle_generator_forward.32} parent=0 // pred_fallthru
    _
  // Predicated region
  $region22: #{cycle_generator_forward.32} parent=0 // pred_check
    _
  $region23: #{cycle_generator_forward.32} parent=0 // pred_check_branch
    %56 = sbr.rel (0) target = $region25
  $region24: #{cycle_generator_forward.32} parent=0 // pred_region
    _
  $region25: #{cycle_generator_forward.32} parent=0 // pred_fallthru
    _

// kernel: squeeze.40
$region0: #{squeeze.40}
  %s0 = inlined_call_operand.vmem [shape: f32[2,128], index: 0, kind: input, shape index: {}]
  %s1 = inlined_call_operand.vmem [shape: f32[8,32], index: 1, kind: output, shape index: {}]
  $region1: #{squeeze.40} parent=0
    #allocation0 [shape = 'u8[4096]{0}', space=vmem, size = 0x1000, scoped, tag = 'scoped mem for input reshape']
    %s3 = sshll.u32 1, 2
    %s4 = ssub.s32 %s3, 1
    %v5 = vld [vmem:[%s0] sm:%s4]
    %6 = vst [vmem:[#allocation0] sm:%s4] %v5
    %v7 = vld [vmem:[#allocation0] sm:$0x3]
    %vm8 = vcmask 261120
    %9 = vst.msk [vmem:[%s1] ss:$4 sm:$0x3] %vm8, %v7
    %v10 = vld [vmem:[#allocation0] sm:$0x3]
    %11 = vrot.lane.b32.xlu0 %v10, 96
    %v12 = vpop.permute.xlu0 %11
    %vm13 = vcmask 261120
    %s14 = scalar_lea.vmem %s1, 1
    %15 = vst.msk [vmem:[%s14] ss:$4 sm:$0x3] %vm13, %v12
    %v16 = vld [vmem:[#allocation0] sm:$0x3]
    %17 = vrot.lane.b32.xlu0 %v16, 64
    %v18 = vpop.permute.xlu0 %17
    %vm19 = vcmask 261120
    %s20 = scalar_lea.vmem %s1, 2
    %21 = vst.msk [vmem:[%s20] ss:$4 sm:$0x3] %vm19, %v18
    %v22 = vld [vmem:[#allocation0] sm:$0x3]
    %23 = vrot.lane.b32.xlu0 %v22, 32
    %v24 = vpop.permute.xlu0 %23
    %vm25 = vcmask 261120
    %s26 = scalar_lea.vmem %s1, 3
    %27 = vst.msk [vmem:[%s26] ss:$4 sm:$0x3] %vm25, %v24

// kernel: cycle_generator_forward.29
$region0: #{cycle_generator_forward.29}
  #allocation0 [shape = 'u32[]', space=smem, size = 0x4, offset = 0x4, fixed_abs, tag = 'smem constant byte address 0x4 - core index']
  #allocation1 [shape = 'u32[144,128]{1,0:T(1,128)}', space=vmem, size = 0x12000, scoped, tag = 'internal scratch']
  %s0 = inlined_call_operand.vmem [shape: bf16[32,576], index: 0, kind: input, shape index: {}]
  %s1 = inlined_call_operand.vmem [shape: bf16[576,64], index: 1, kind: input, shape index: {}]
  %s2 = inlined_call_operand.vmem [shape: f32[32,64], index: 2, kind: output, shape index: {0}]
  %s3 = inlined_call_operand.vmem [shape: f32[2,8,64], index: 3, kind: output, shape index: {1}]
  %4 = xla_tuple %s2, %s3
  %s5 = sld [smem:[#allocation0]]
  $region49: #{cycle_generator_forward.29} parent=0
    _
  %s7 = ssub.s32 1, %s5
  %s8 = scalar_select 0, %s7, %s5
  loop: start=0, step=1, limit=4
  $region2: #{cycle_generator_forward.29} parent=0 // loop_pre_header
    _
  $region3: #{cycle_generator_forward.29} parent=0 // loop_header
    %s10 = sphi 0, %s14
    %p11 = scmp.ge.s32.totalorder %s10, 4
    %s20 = sphi 0, %s22
    %s23 = sphi 0, %s20
    %s24 = sphi 0, %s23
    %s40 = sphi 0, %s24
    %s44 = sphi 0, %s44
    %s46 = sphi 0, %s44
    %s47 = sphi 0, %s46
    %s61 = sphi 0, %s47
    %s67 = sphi 0, %s69
    %s70 = sphi 0, %s67
    %s71 = sphi 0, %s70
    %s87 = sphi 0, %s71
    %s93 = sphi 0, %s95
    %s96 = sphi 0, %s93
    %s97 = sphi 0, %s96
    %s113 = sphi 0, %s97
  $region4: #{cycle_generator_forward.29} parent=0 // loop_header_branch
    %13 = sbr.rel (%p11) target = $region8
  $region5: #{cycle_generator_forward.29} parent=0 // loop_body
    %s15 = ssub.s32 %s10, 1
    %s16 = ssub.s32 %s10, 2
    %s17 = sadd.s32 %s10, 1
    %s18 = ssub.s32 %s10, %s17
    %p19 = scmp.eq.s32.totalorder %s18, 0
    %s21 = sadd.s32 %s20, 1
    %s22 = scalar_select %p19, %s20, %s21
    %p25 = pneg %p19
    %p26 = scmp.eq.s32.totalorder %s10, 1
    %p27 = por %p25, %p26
    %p28 = scmp.ne.s32.totalorder %s20, %s23
    %p29 = scmp.eq.s32.totalorder %s10, 0
    %p30 = por %p28, %p29
    %p31 = scmp.ne.s32.totalorder %s20, %s23
    %p32 = scmp.eq.s32.totalorder %s15, 1
    %p33 = por %p31, %p32
    %p34 = scmp.ne.s32.totalorder %s23, %s24
    %p35 = scmp.eq.s32.totalorder %s15, 0
    %p36 = por %p34, %p35
    %p37 = scmp.ne.s32.totalorder %s23, %s24
    %p38 = scmp.eq.s32.totalorder %s16, 1
    %p39 = por %p37, %p38
    %p41 = scmp.ne.s32.totalorder %s24, %s40
    %p42 = scmp.eq.s32.totalorder %s16, 0
    %p43 = por %p41, %p42
    %s45 = sadd.s32 %s44, 1
    %p48 = scmp.eq.s32.totalorder %s10, 1
    %p49 = scmp.ne.s32.totalorder %s44, %s46
    %p50 = scmp.eq.s32.totalorder %s10, 0
    %p51 = por %p49, %p50
    %p52 = scmp.ne.s32.totalorder %s44, %s46
    %p53 = scmp.eq.s32.totalorder %s15, 1
    %p54 = por %p52, %p53
    %p55 = scmp.ne.s32.totalorder %s46, %s47
    %p56 = scmp.eq.s32.totalorder %s15, 0
    %p57 = por %p55, %p56
    %p58 = scmp.ne.s32.totalorder %s46, %s47
    %p59 = scmp.eq.s32.totalorder %s16, 1
    %p60 = por %p58, %p59
    %p62 = scmp.ne.s32.totalorder %s47, %s61
    %p63 = scmp.eq.s32.totalorder %s16, 0
    %p64 = por %p62, %p63
    %s65 = ssub.s32 %s10, %s17
    %p66 = scmp.eq.s32.totalorder %s65, 0
    %s68 = sadd.s32 %s67, 1
    %s69 = scalar_select %p66, %s67, %s68
    %p72 = pneg %p66
    %p73 = scmp.eq.s32.totalorder %s10, 1
    %p74 = por %p72, %p73
    %p75 = scmp.ne.s32.totalorder %s67, %s70
    %p76 = scmp.eq.s32.totalorder %s10, 0
    %p77 = por %p75, %p76
    %p78 = scmp.ne.s32.totalorder %s67, %s70
    %p79 = scmp.eq.s32.totalorder %s15, 1
    %p80 = por %p78, %p79
    %p81 = scmp.ne.s32.totalorder %s70, %s71
    %p82 = scmp.eq.s32.totalorder %s15, 0
    %p83 = por %p81, %p82
    %p84 = scmp.ne.s32.totalorder %s70, %s71
    %p85 = scmp.eq.s32.totalorder %s16, 1
    %p86 = por %p84, %p85
    %p88 = scmp.ne.s32.totalorder %s71, %s87
    %p89 = scmp.eq.s32.totalorder %s16, 0
    %p90 = por %p88, %p89
    %s91 = ssub.s32 %s10, %s17
    %p92 = scmp.eq.s32.totalorder %s91, 0
    %s94 = sadd.s32 %s93, 1
    %s95 = scalar_select %p92, %s93, %s94
    %p98 = pneg %p92
    %p99 = scmp.eq.s32.totalorder %s10, 1
    %p100 = por %p98, %p99
    %p101 = scmp.ne.s32.totalorder %s93, %s96
    %p102 = scmp.eq.s32.totalorder %s10, 0
    %p103 = por %p101, %p102
    %p104 = scmp.ne.s32.totalorder %s93, %s96
    %p105 = scmp.eq.s32.totalorder %s15, 1
    %p106 = por %p104, %p105
    %p107 = scmp.ne.s32.totalorder %s96, %s97
    %p108 = scmp.eq.s32.totalorder %s15, 0
    %p109 = por %p107, %p108
    %p110 = scmp.ne.s32.totalorder %s96, %s97
    %p111 = scmp.eq.s32.totalorder %s16, 1
    %p112 = por %p110, %p111
    %p114 = scmp.ne.s32.totalorder %s97, %s113
    %p115 = scmp.eq.s32.totalorder %s16, 0
    %p116 = por %p114, %p115
    %p117 = scmp.le.s32.totalorder 1, %s10
    %p118 = scmp.lt.s32.totalorder %s10, 3
    %p119 = pnand %p117, %p118
    %p120 = pneg %p119
    // Predicated region
    $region9: #{cycle_generator_forward.29} parent=5 // pred_check
      _
    $region10: #{cycle_generator_forward.29} parent=5 // pred_check_branch
      %122 = sbr.rel (%p119) target = $region12
    $region11: #{cycle_generator_forward.29} parent=5 // pred_region
      %s123 = ssub.s32 %s10, 1
      // Predicated region
      $region13: #{cycle_generator_forward.29} parent=11 // pred_check
        %p124 = pneg %p57
      $region14: #{cycle_generator_forward.29} parent=11 // pred_check_branch
        %126 = sbr.rel (%p124) target = $region16
      $region15: #{cycle_generator_forward.29} parent=11 // pred_region
        _
      $region16: #{cycle_generator_forward.29} parent=11 // pred_fallthru
        _
    $region12: #{cycle_generator_forward.29} parent=5 // pred_fallthru
      _
    %p127 = scmp.lt.s32.totalorder %s10, 2
    // Predicated region
    $region17: #{cycle_generator_forward.29} parent=5 // pred_check
      %p128 = pneg %p127
    $region18: #{cycle_generator_forward.29} parent=5 // pred_check_branch
      %130 = sbr.rel (%p128) target = $region20
    $region19: #{cycle_generator_forward.29} parent=5 // pred_region
      // Predicated region
      $region21: #{cycle_generator_forward.29} parent=19 // pred_check
        %p131 = pneg %p30
      $region22: #{cycle_generator_forward.29} parent=19 // pred_check_branch
        %133 = sbr.rel (%p131) target = $region24
      $region23: #{cycle_generator_forward.29} parent=19 // pred_region
        %s134 = smul.u32 2, %s10
        %p135 = scmp.lt.s32.totalorder %s134, 3
        %s136 = scalar_select %p135, %s134, 3
        %s137 = smul.addr %s136, 5
        %s138 = smul.addr %s137, 4
        %s139 = scalar_lea.vmem %s0, %s138
        %s140 = smul.u32 2, %s10
      $region24: #{cycle_generator_forward.29} parent=19 // pred_fallthru
        _
    $region20: #{cycle_generator_forward.29} parent=5 // pred_fallthru
      _
    %p141 = scmp.le.s32.totalorder 1, %s10
    %p142 = scmp.lt.s32.totalorder %s10, 3
    %p143 = pnand %p141, %p142
    %p144 = pneg %p143
    // Predicated region
    $region25: #{cycle_generator_forward.29} parent=5 // pred_check
      _
    $region26: #{cycle_generator_forward.29} parent=5 // pred_check_branch
      %146 = sbr.rel (%p143) target = $region28
    $region27: #{cycle_generator_forward.29} parent=5 // pred_region
      %s147 = ssub.s32 %s10, 1
      %s148 = smul.u32 2, %s15
      %p149 = scmp.lt.s32.totalorder %s148, 3
      %s150 = scalar_select %p149, %s148, 3
      %s151 = smul.addr %s150, 5
      %s152 = smul.addr %s151, 4
      %s153 = scalar_lea.vmem %s0, %s152
      %p154 = pneg %p36
      %p155 = pneg %p33
      %p156 = pneg %p57
      %p157 = pneg %p54
      %p158 = pneg %p83
      %p159 = pneg %p80
      %s160 = smul.u32 2, %s15
      %p161 = scmp.lt.s32.totalorder %s160, 3
      %s162 = scalar_select %p161, %s160, 3
      %s163 = smul.addr %s162, 8
      %s164 = scalar_lea.vmem %s2, %s163
      %p165 = pneg %p109
      %p166 = pneg %p106
      %p167 = scmp.lt.s32.totalorder %s15, 1
      %s168 = scalar_select %p167, %s15, 1
      %s169 = smul.addr %s168, 8
      %s170 = scalar_lea.vmem %s3, %s169
      %s171 = smul.u32 2, %s15
      %p172 = scmp.lt.s32.totalorder %s171, 3
      %s173 = scalar_select %p172, %s171, 3
      %s174 = smul.addr %s173, 5
      %s175 = smul.addr %s174, 4
      %s176 = scalar_lea.vmem %s0, %s175
      %s177 = smul.u32 2, %s15
      %s178 = smul.u32 2, %s15
      %p179 = scmp.lt.s32.totalorder %s178, 3
      %s180 = scalar_select %p179, %s178, 3
      %s181 = smul.addr %s180, 8
      %s182 = scalar_lea.vmem %s2, %s181
      %s183 = smul.u32 2, %s15
      %p184 = scmp.lt.s32.totalorder %s15, 1
      %s185 = scalar_select %p184, %s15, 1
      %s186 = smul.addr %s185, 8
      %s187 = scalar_lea.vmem %s3, %s186
      %v189 = vld [vmem:[%s176] sm:$0xff]
      %v190 = vld [vmem:[%s176 + $0x8] sm:$0xff]
      %v191 = vld [vmem:[%s176 + $0x10] sm:$0xf]
      %v192 = vld [vmem:[%s176 + $0x14] sm:$0xff]
      %v193 = vld [vmem:[%s176 + $0x1c] sm:$0xff]
      %v194 = vld [vmem:[%s176 + $0x24] sm:$0xf]
      %v195 = vld [vmem:[%s1] sm:$0xf]
      %v196 = vld [vmem:[%s1 + $0x4] sm:$0xf]
      %v197 = vld [vmem:[%s1 + $0x8] sm:$0xf]
      %v198 = vld [vmem:[%s1 + $0xc] sm:$0xf]
      %v199 = vld [vmem:[%s1 + $0x10] sm:$0xf]
      %v200 = vld [vmem:[%s1 + $0x14] sm:$0xf]
      %v201 = vld [vmem:[%s1 + $0x18] sm:$0xf]
      %v202 = vld [vmem:[%s1 + $0x1c] sm:$0xf]
      %v203 = vld [vmem:[%s1 + $0x20] sm:$0xf]
      %v204 = vld [vmem:[%s1 + $0x24] sm:$0xf]
      %v205 = vld [vmem:[%s1 + $0x28] sm:$0xf]
      %v206 = vld [vmem:[%s1 + $0x2c] sm:$0xf]
      %v207 = vld [vmem:[%s1 + $0x30] sm:$0xf]
      %v208 = vld [vmem:[%s1 + $0x34] sm:$0xf]
      %v209 = vld [vmem:[%s1 + $0x38] sm:$0xf]
      %v210 = vld [vmem:[%s1 + $0x3c] sm:$0xf]
      %v211 = vld [vmem:[%s1 + $0x40] sm:$0xf]
      %v212 = vld [vmem:[%s1 + $0x44] sm:$0xf]
      %v213 = vld [vmem:[%s1 + $0x48] sm:$0xf]
      %v214 = vld [vmem:[%s1 + $0x4c] sm:$0xf]
      %v215 = vld [vmem:[%s1 + $0x50] sm:$0xf]
      %v216 = vld [vmem:[%s1 + $0x54] sm:$0xf]
      %v217 = vld [vmem:[%s1 + $0x58] sm:$0xf]
      %v218 = vld [vmem:[%s1 + $0x5c] sm:$0xf]
      %v219 = vld [vmem:[%s1 + $0x60] sm:$0xf]
      %v220 = vld [vmem:[%s1 + $0x64] sm:$0xf]
      %v221 = vld [vmem:[%s1 + $0x68] sm:$0xf]
      %v222 = vld [vmem:[%s1 + $0x6c] sm:$0xf]
      %v223 = vld [vmem:[%s1 + $0x70] sm:$0xf]
      %v224 = vld [vmem:[%s1 + $0x74] sm:$0xf]
      %v225 = vld [vmem:[%s1 + $0x78] sm:$0xf]
      %v226 = vld [vmem:[%s1 + $0x7c] sm:$0xf]
      %v227 = vld [vmem:[%s1 + $0x80] sm:$0xf]
      %v228 = vld [vmem:[%s1 + $0x84] sm:$0xf]
      %v229 = vld [vmem:[%s1 + $0x88] sm:$0xf]
      %v230 = vld [vmem:[%s1 + $0x8c] sm:$0xf]
      %v231 = vld [vmem:[%s1 + $0x90] sm:$0xf]
      %v232 = vld [vmem:[%s1 + $0x94] sm:$0xf]
      %v233 = vld [vmem:[%s1 + $0x98] sm:$0xf]
      %v234 = vld [vmem:[%s1 + $0x9c] sm:$0xf]
      %v235 = vld [vmem:[%s1 + $0xa0] sm:$0xf]
      %v236 = vld [vmem:[%s1 + $0xa4] sm:$0xf]
      %v237 = vld [vmem:[%s1 + $0xa8] sm:$0xf]
      %v238 = vld [vmem:[%s1 + $0xac] sm:$0xf]
      %v239 = vld [vmem:[%s1 + $0xb0] sm:$0xf]
      %v240 = vld [vmem:[%s1 + $0xb4] sm:$0xf]
      %v241 = vld [vmem:[%s1 + $0xb8] sm:$0xf]
      %v242 = vld [vmem:[%s1 + $0xbc] sm:$0xf]
      %v243 = vld [vmem:[%s1 + $0xc0] sm:$0xf]
      %v244 = vld [vmem:[%s1 + $0xc4] sm:$0xf]
      %v245 = vld [vmem:[%s1 + $0xc8] sm:$0xf]
      %v246 = vld [vmem:[%s1 + $0xcc] sm:$0xf]
      %v247 = vld [vmem:[%s1 + $0xd0] sm:$0xf]
      %v248 = vld [vmem:[%s1 + $0xd4] sm:$0xf]
      %v249 = vld [vmem:[%s1 + $0xd8] sm:$0xf]
      %v250 = vld [vmem:[%s1 + $0xdc] sm:$0xf]
      %v251 = vld [vmem:[%s1 + $0xe0] sm:$0xf]
      %v252 = vld [vmem:[%s1 + $0xe4] sm:$0xf]
      %v253 = vld [vmem:[%s1 + $0xe8] sm:$0xf]
      %v254 = vld [vmem:[%s1 + $0xec] sm:$0xf]
      %v255 = vld [vmem:[%s1 + $0xf0] sm:$0xf]
      %v256 = vld [vmem:[%s1 + $0xf4] sm:$0xf]
      %v257 = vld [vmem:[%s1 + $0xf8] sm:$0xf]
      %v258 = vld [vmem:[%s1 + $0xfc] sm:$0xf]
      %v259 = vld [vmem:[%s1 + $0x100] sm:$0xf]
      %v260 = vld [vmem:[%s1 + $0x104] sm:$0xf]
      %v261 = vld [vmem:[%s1 + $0x108] sm:$0xf]
      %v262 = vld [vmem:[%s1 + $0x10c] sm:$0xf]
      %v263 = vld [vmem:[%s1 + $0x110] sm:$0xf]
      %v264 = vld [vmem:[%s1 + $0x114] sm:$0xf]
      %v265 = vld [vmem:[%s1 + $0x118] sm:$0xf]
      %v266 = vld [vmem:[%s1 + $0x11c] sm:$0xf]
      %v273 = vunpack.c.l.b16 %v189
      %v274 = vunpack.c.h.b16 %v189
      %v275 = vunpack.c.l.b16 %v190
      %v276 = vunpack.c.h.b16 %v190
      %v277 = vunpack.c.l.b16 %v191
      %v278 = vunpack.c.l.b16 %v192
      %v279 = vunpack.c.h.b16 %v192
      %v280 = vunpack.c.l.b16 %v193
      %v281 = vunpack.c.h.b16 %v193
      %v282 = vunpack.c.l.b16 %v194
      %v283 = vpack.c.b16 %v278, %v273
      %v284 = vpack.c.b16 %v279, %v274
      %v285 = vpack.c.b16 %v280, %v275
      %v286 = vpack.c.b16 %v281, %v276
      %v287 = vpack.c.b16 %v282, %v277
      %v364 = vunpack.c.l.b16 %v195
      %v365 = vunpack.c.l.b16 %v196
      %v366 = vunpack.c.l.b16 %v197
      %v367 = vunpack.c.l.b16 %v198
      %v368 = vunpack.c.l.b16 %v199
      %v369 = vunpack.c.l.b16 %v200
      %v370 = vunpack.c.l.b16 %v201
      %v371 = vunpack.c.l.b16 %v202
      %v372 = vunpack.c.l.b16 %v203
      %v373 = vunpack.c.l.b16 %v204
      %v374 = vunpack.c.l.b16 %v205
      %v375 = vunpack.c.l.b16 %v206
      %v376 = vunpack.c.l.b16 %v207
      %v377 = vunpack.c.l.b16 %v208
      %v378 = vunpack.c.l.b16 %v209
      %v379 = vunpack.c.l.b16 %v210
      %v380 = vunpack.c.l.b16 %v211
      %v381 = vunpack.c.l.b16 %v212
      %v382 = vunpack.c.l.b16 %v213
      %v383 = vunpack.c.l.b16 %v214
      %v384 = vunpack.c.l.b16 %v215
      %v385 = vunpack.c.l.b16 %v216
      %v386 = vunpack.c.l.b16 %v217
      %v387 = vunpack.c.l.b16 %v218
      %v388 = vunpack.c.l.b16 %v219
      %v389 = vunpack.c.l.b16 %v220
      %v390 = vunpack.c.l.b16 %v221
      %v391 = vunpack.c.l.b16 %v222
      %v392 = vunpack.c.l.b16 %v223
      %v393 = vunpack.c.l.b16 %v224
      %v394 = vunpack.c.l.b16 %v225
      %v395 = vunpack.c.l.b16 %v226
      %v396 = vunpack.c.l.b16 %v227
      %v397 = vunpack.c.l.b16 %v228
      %v398 = vunpack.c.l.b16 %v229
      %v399 = vunpack.c.l.b16 %v230
      %v400 = vunpack.c.l.b16 %v231
      %v401 = vunpack.c.l.b16 %v232
      %v402 = vunpack.c.l.b16 %v233
      %v403 = vunpack.c.l.b16 %v234
      %v404 = vunpack.c.l.b16 %v235
      %v405 = vunpack.c.l.b16 %v236
      %v406 = vunpack.c.l.b16 %v237
      %v407 = vunpack.c.l.b16 %v238
      %v408 = vunpack.c.l.b16 %v239
      %v409 = vunpack.c.l.b16 %v240
      %v410 = vunpack.c.l.b16 %v241
      %v411 = vunpack.c.l.b16 %v242
      %v412 = vunpack.c.l.b16 %v243
      %v413 = vunpack.c.l.b16 %v244
      %v414 = vunpack.c.l.b16 %v245
      %v415 = vunpack.c.l.b16 %v246
      %v416 = vunpack.c.l.b16 %v247
      %v417 = vunpack.c.l.b16 %v248
      %v418 = vunpack.c.l.b16 %v249
      %v419 = vunpack.c.l.b16 %v250
      %v420 = vunpack.c.l.b16 %v251
      %v421 = vunpack.c.l.b16 %v252
      %v422 = vunpack.c.l.b16 %v253
      %v423 = vunpack.c.l.b16 %v254
      %v424 = vunpack.c.l.b16 %v255
      %v425 = vunpack.c.l.b16 %v256
      %v426 = vunpack.c.l.b16 %v257
      %v427 = vunpack.c.l.b16 %v258
      %v428 = vunpack.c.l.b16 %v259
      %v429 = vunpack.c.l.b16 %v260
      %v430 = vunpack.c.l.b16 %v261
      %v431 = vunpack.c.l.b16 %v262
      %v432 = vunpack.c.l.b16 %v263
      %v433 = vunpack.c.l.b16 %v264
      %v434 = vunpack.c.l.b16 %v265
      %v435 = vunpack.c.l.b16 %v266
      %v436 = vpack.c.b16 %v365, %v364
      %v437 = vpack.c.b16 %v367, %v366
      %v438 = vpack.c.b16 %v369, %v368
      %v439 = vpack.c.b16 %v371, %v370
      %v440 = vpack.c.b16 %v373, %v372
      %v441 = vpack.c.b16 %v375, %v374
      %v442 = vpack.c.b16 %v377, %v376
      %v443 = vpack.c.b16 %v379, %v378
      %v444 = vpack.c.b16 %v381, %v380
      %v445 = vpack.c.b16 %v383, %v382
      %v446 = vpack.c.b16 %v385, %v384
      %v447 = vpack.c.b16 %v387, %v386
      %v448 = vpack.c.b16 %v389, %v388
      %v449 = vpack.c.b16 %v391, %v390
      %v450 = vpack.c.b16 %v393, %v392
      %v451 = vpack.c.b16 %v395, %v394
      %v452 = vpack.c.b16 %v397, %v396
      %v453 = vpack.c.b16 %v399, %v398
      %v454 = vpack.c.b16 %v401, %v400
      %v455 = vpack.c.b16 %v403, %v402
      %v456 = vpack.c.b16 %v405, %v404
      %v457 = vpack.c.b16 %v407, %v406
      %v458 = vpack.c.b16 %v409, %v408
      %v459 = vpack.c.b16 %v411, %v410
      %v460 = vpack.c.b16 %v413, %v412
      %v461 = vpack.c.b16 %v415, %v414
      %v462 = vpack.c.b16 %v417, %v416
      %v463 = vpack.c.b16 %v419, %v418
      %v464 = vpack.c.b16 %v421, %v420
      %v465 = vpack.c.b16 %v423, %v422
      %v466 = vpack.c.b16 %v425, %v424
      %v467 = vpack.c.b16 %v427, %v426
      %v468 = vpack.c.b16 %v429, %v428
      %v469 = vpack.c.b16 %v431, %v430
      %v470 = vpack.c.b16 %v433, %v432
      %v471 = vpack.c.b16 %v435, %v434
      %vm508 = vcmask 523264
      %v510 = vsel %vm508, %v287, 0
      %512 = vmatprep.subr.bf16.mxu0 0
      %513 = vmatpush1.bf16.msra.mxu0 %v443
      %514 = vmatprep.subr.bf16.mxu0 0
      %515 = vmatpush1.bf16.msra.mxu0 %v442
      %516 = vmatprep.subr.bf16.mxu0 0
      %517 = vmatpush1.bf16.msra.mxu0 %v441
      %518 = vmatprep.subr.bf16.mxu0 0
      %519 = vmatpush1.bf16.msra.mxu0 %v440
      %520 = vmatprep.subr.bf16.mxu0 0
      %521 = vmatpush1.bf16.msra.mxu0 %v439
      %522 = vmatprep.subr.bf16.mxu0 0
      %523 = vmatpush1.bf16.msra.mxu0 %v438
      %524 = vmatprep.subr.bf16.mxu0 0
      %525 = vmatpush1.bf16.msra.mxu0 %v437
      %526 = vmatprep.subr.bf16.mxu0 0
      %527 = vmatpush1.bf16.msra.mxu0 %v436
      %528 = vmatprep.subr.bf16.mxu0 0
      %529 = vmatpush2.bf16.msra.mxu0 %v451
      %530 = vmatprep.subr.bf16.mxu0 0
      %531 = vmatpush2.bf16.msra.mxu0 %v450
      %532 = vmatprep.subr.bf16.mxu0 0
      %533 = vmatpush2.bf16.msra.mxu0 %v449
      %534 = vmatprep.subr.bf16.mxu0 0
      %535 = vmatpush2.bf16.msra.mxu0 %v448
      %536 = vmatprep.subr.bf16.mxu0 0
      %537 = vmatpush2.bf16.msra.mxu0 %v447
      %538 = vmatprep.subr.bf16.mxu0 0
      %539 = vmatpush2.bf16.msra.mxu0 %v446
      %540 = vmatprep.subr.bf16.mxu0 0
      %541 = vmatpush2.bf16.msra.mxu0 %v445
      %542 = vmatprep.subr.bf16.mxu0 0
      %543 = vmatpush2.bf16.msra.mxu0 %v444
      %544 = vmatprep.mubr.bf16.mxu0 %v284
      %545 = vmatmul.mubr.bf16.gmra.mxu0 %v283
      %v546 = vpop.f32.mrf.mxu0
      %v547 = vadd.f32 0.0, %v546
      %v548 = vpop.f32.mrf.mxu0
      %v549 = vpop.f32.mrf.mxu0
      %v550 = vadd.f32 0.0, %v549
      %v551 = vpop.f32.mrf.mxu0
      %552 = vdwg.mxu0
      %553 = vmatprep.subr.bf16.mxu0 0
      %554 = vmatpush1.bf16.msra.mxu0 %v459
      %555 = vmatprep.subr.bf16.mxu0 0
      %556 = vmatpush1.bf16.msra.mxu0 %v458
      %557 = vmatprep.subr.bf16.mxu0 0
      %558 = vmatpush1.bf16.msra.mxu0 %v457
      %559 = vmatprep.subr.bf16.mxu0 0
      %560 = vmatpush1.bf16.msra.mxu0 %v456
      %561 = vmatprep.subr.bf16.mxu0 0
      %562 = vmatpush1.bf16.msra.mxu0 %v455
      %563 = vmatprep.subr.bf16.mxu0 0
      %564 = vmatpush1.bf16.msra.mxu0 %v454
      %565 = vmatprep.subr.bf16.mxu0 0
      %566 = vmatpush1.bf16.msra.mxu0 %v453
      %567 = vmatprep.subr.bf16.mxu0 0
      %568 = vmatpush1.bf16.msra.mxu0 %v452
      %569 = vmatprep.subr.bf16.mxu0 0
      %570 = vmatpush2.bf16.msra.mxu0 %v467
      %571 = vmatprep.subr.bf16.mxu0 0
      %572 = vmatpush2.bf16.msra.mxu0 %v466
      %573 = vmatprep.subr.bf16.mxu0 0
      %574 = vmatpush2.bf16.msra.mxu0 %v465
      %575 = vmatprep.subr.bf16.mxu0 0
      %576 = vmatpush2.bf16.msra.mxu0 %v464
      %577 = vmatprep.subr.bf16.mxu0 0
      %578 = vmatpush2.bf16.msra.mxu0 %v463
      %579 = vmatprep.subr.bf16.mxu0 0
      %580 = vmatpush2.bf16.msra.mxu0 %v462
      %581 = vmatprep.subr.bf16.mxu0 0
      %582 = vmatpush2.bf16.msra.mxu0 %v461
      %583 = vmatprep.subr.bf16.mxu0 0
      %584 = vmatpush2.bf16.msra.mxu0 %v460
      %585 = vmatprep.mubr.bf16.mxu0 %v286
      %586 = vmatmul.mubr.bf16.gmra.mxu0 %v285
      %v587 = vpop.f32.mrf.mxu0
      %v588 = vadd.f32 %v547, %v587
      %v589 = vpop.f32.mrf.mxu0
      %v590 = vpop.f32.mrf.mxu0
      %v591 = vadd.f32 %v550, %v590
      %v592 = vpop.f32.mrf.mxu0
      %593 = vdwg.mxu0
      %594 = vmatprep.subr.bf16.mxu0 0
      %595 = vmatpush1.bf16.msra.mxu0 0
      %596 = vmatprep.subr.bf16.mxu0 0
      %597 = vmatpush1.bf16.msra.mxu0 0
      %598 = vmatprep.subr.bf16.mxu0 0
      %599 = vmatpush1.bf16.msra.mxu0 0
      %600 = vmatprep.subr.bf16.mxu0 0
      %601 = vmatpush1.bf16.msra.mxu0 0
      %602 = vmatprep.subr.bf16.mxu0 0
      %603 = vmatpush1.bf16.msra.mxu0 %v471
      %604 = vmatprep.subr.bf16.mxu0 0
      %605 = vmatpush1.bf16.msra.mxu0 %v470
      %606 = vmatprep.subr.bf16.mxu0 0
      %607 = vmatpush1.bf16.msra.mxu0 %v469
      %608 = vmatprep.subr.bf16.mxu0 0
      %609 = vmatpush1.bf16.msra.mxu0 %v468
      %610 = vmatprep.subr.bf16.mxu0 0
      %611 = vmatpush2.bf16.msra.mxu0 0
      %612 = vmatprep.subr.bf16.mxu0 0
      %613 = vmatpush2.bf16.msra.mxu0 0
      %614 = vmatprep.subr.bf16.mxu0 0
      %615 = vmatpush2.bf16.msra.mxu0 0
      %616 = vmatprep.subr.bf16.mxu0 0
      %617 = vmatpush2.bf16.msra.mxu0 0
      %618 = vmatprep.subr.bf16.mxu0 0
      %619 = vmatpush2.bf16.msra.mxu0 0
      %620 = vmatprep.subr.bf16.mxu0 0
      %621 = vmatpush2.bf16.msra.mxu0 0
      %622 = vmatprep.subr.bf16.mxu0 0
      %623 = vmatpush2.bf16.msra.mxu0 0
      %624 = vmatprep.subr.bf16.mxu0 0
      %625 = vmatpush2.bf16.msra.mxu0 0
      %626 = vmatprep.mubr.bf16.mxu0 0
      %627 = vmatmul.mubr.bf16.gmra.mxu0 %v510
      %v628 = vpop.f32.mrf.mxu0
      %v629 = vadd.f32 %v588, %v628
      %v630 = vpop.f32.mrf.mxu0
      %v631 = vpop.f32.mrf.mxu0
      %v632 = vadd.f32 %v591, %v631
      %v633 = vpop.f32.mrf.mxu0
      %634 = vdwg.mxu0
      %635 = vst.msk [vmem:[%s182] sm:$0xff] %vm508, %v629
      %636 = vst.msk [vmem:[%s182 + $0x8] sm:$0xff] %vm508, %v632
      %v637 = vsel %vm508, %v629, 0.0
      %v638 = vsel %vm508, %v632, 0.0
      %v639 = vadd.f32 %v637, %v638
      %v640 = vrot.slane %v639, 4
      %v641 = vadd.f32 %v639, %v640
      %v642 = vrot.slane %v641, 2
      %v643 = vadd.f32 %v641, %v642
      %v644 = vrot.slane %v643, 1
      %v645 = vadd.f32 %v643, %v644
      %v646 = vmul.f32 %v629, %v629
      %v647 = vmul.f32 %v632, %v632
      %v648 = vsel %vm508, %v646, 0.0
      %v649 = vsel %vm508, %v647, 0.0
      %v650 = vadd.f32 %v648, %v649
      %v651 = vrot.slane %v650, 4
      %v652 = vadd.f32 %v650, %v651
      %v653 = vrot.slane %v652, 2
      %v654 = vadd.f32 %v652, %v653
      %v655 = vrot.slane %v654, 1
      %v656 = vadd.f32 %v654, %v655
      %v657 = vlaneseq
      %v658 = vshrl.u32 %v657, 7
      %vm659 = vcmp.eq.s32.totalorder %v658, 0
      %v660 = vsel %vm659, %v645, 0.0
      %vm661 = vcmp.eq.s32.totalorder %v658, 1
      %v662 = vsel %vm661, %v656, 0.0
      %v663 = vadd.f32 %v660, %v662
      %664 = vst.msk [vmem:[%s187] sm:$0xff] %vm508, %v663
      %s665 = smul.u32 2, %s15
      %p666 = scmp.lt.s32.totalorder %s665, 3
      %s667 = scalar_select %p666, %s665, 3
      %s668 = smul.addr %s667, 8
      %s669 = scalar_lea.vmem %s2, %s668
      %p670 = scmp.lt.s32.totalorder %s15, 1
      %s671 = scalar_select %p670, %s15, 1
      %s672 = smul.addr %s671, 8
      %s673 = scalar_lea.vmem %s3, %s672
      // Predicated region
      $region29: #{cycle_generator_forward.29} parent=27 // pred_check
        %p674 = pneg %p80
      $region30: #{cycle_generator_forward.29} parent=27 // pred_check_branch
        %676 = sbr.rel (%p674) target = $region32
      $region31: #{cycle_generator_forward.29} parent=27 // pred_region
        %s677 = smul.u32 2, %s15
      $region32: #{cycle_generator_forward.29} parent=27 // pred_fallthru
        _
      // Predicated region
      $region33: #{cycle_generator_forward.29} parent=27 // pred_check
        %p678 = pneg %p106
      $region34: #{cycle_generator_forward.29} parent=27 // pred_check_branch
        %680 = sbr.rel (%p678) target = $region36
      $region35: #{cycle_generator_forward.29} parent=27 // pred_region
        _
      $region36: #{cycle_generator_forward.29} parent=27 // pred_fallthru
        _
    $region28: #{cycle_generator_forward.29} parent=5 // pred_fallthru
      _
    %p681 = scmp.le.s32.totalorder 2, %s10
    // Predicated region
    $region37: #{cycle_generator_forward.29} parent=5 // pred_check
      %p682 = pneg %p681
    $region38: #{cycle_generator_forward.29} parent=5 // pred_check_branch
      %684 = sbr.rel (%p682) target = $region40
    $region39: #{cycle_generator_forward.29} parent=5 // pred_region
      %s685 = ssub.s32 %s10, 2
      // Predicated region
      $region41: #{cycle_generator_forward.29} parent=39 // pred_check
        %p686 = pneg %p86
      $region42: #{cycle_generator_forward.29} parent=39 // pred_check_branch
        %688 = sbr.rel (%p686) target = $region44
      $region43: #{cycle_generator_forward.29} parent=39 // pred_region
        %s689 = smul.u32 2, %s16
        %p690 = scmp.lt.s32.totalorder %s689, 3
        %s691 = scalar_select %p690, %s689, 3
        %s692 = smul.addr %s691, 8
        %s693 = scalar_lea.vmem %s2, %s692
      $region44: #{cycle_generator_forward.29} parent=39 // pred_fallthru
        _
      // Predicated region
      $region45: #{cycle_generator_forward.29} parent=39 // pred_check
        %p694 = pneg %p112
      $region46: #{cycle_generator_forward.29} parent=39 // pred_check_branch
        %696 = sbr.rel (%p694) target = $region48
      $region47: #{cycle_generator_forward.29} parent=39 // pred_region
        %p697 = scmp.lt.s32.totalorder %s16, 1
        %s698 = scalar_select %p697, %s16, 1
        %s699 = smul.addr %s698, 8
        %s700 = scalar_lea.vmem %s3, %s699
      $region48: #{cycle_generator_forward.29} parent=39 // pred_fallthru
        _
    $region40: #{cycle_generator_forward.29} parent=5 // pred_fallthru
      _
  $region6: #{cycle_generator_forward.29} parent=0 // loop_footer
    %s14 = sadd.s32 1, %s10
  $region7: #{cycle_generator_forward.29} parent=0 // loop_footer_branch
    %9 = sbr.rel target = $region3
  $region8: #{cycle_generator_forward.29} parent=0 // loop_exit
    _

// kernel: cycle_generator_forward.41
$region0: #{cycle_generator_forward.41}
  #allocation0 [shape = 'u32[]', space=smem, size = 0x4, offset = 0x4, fixed_abs, tag = 'smem constant byte address 0x4 - core index']
  #allocation1 [shape = 'u32[144,128]{1,0:T(1,128)}', space=vmem, size = 0x12000, scoped, tag = 'internal scratch']
  %s0 = inlined_call_operand.vmem [shape: bf16[32,256], index: 0, kind: input, shape index: {}]
  %s1 = inlined_call_operand.vmem [shape: bf16[256,128], index: 1, kind: input, shape index: {}]
  %s2 = inlined_call_operand.vmem [shape: f32[32,128], index: 2, kind: output, shape index: {0}]
  %s3 = inlined_call_operand.vmem [shape: f32[2,8,128], index: 3, kind: output, shape index: {1}]
  %4 = xla_tuple %s2, %s3
  %s5 = sld [smem:[#allocation0]]
  $region49: #{cycle_generator_forward.41} parent=0
    _
  %s7 = ssub.s32 1, %s5
  %s8 = scalar_select 0, %s7, %s5
  loop: start=0, step=1, limit=4
  $region2: #{cycle_generator_forward.41} parent=0 // loop_pre_header
    _
  $region3: #{cycle_generator_forward.41} parent=0 // loop_header
    %s10 = sphi 0, %s14
    %p11 = scmp.ge.s32.totalorder %s10, 4
    %s20 = sphi 0, %s22
    %s23 = sphi 0, %s20
    %s24 = sphi 0, %s23
    %s40 = sphi 0, %s24
    %s44 = sphi 0, %s44
    %s46 = sphi 0, %s44
    %s47 = sphi 0, %s46
    %s61 = sphi 0, %s47
    %s67 = sphi 0, %s69
    %s70 = sphi 0, %s67
    %s71 = sphi 0, %s70
    %s87 = sphi 0, %s71
    %s93 = sphi 0, %s95
    %s96 = sphi 0, %s93
    %s97 = sphi 0, %s96
    %s113 = sphi 0, %s97
  $region4: #{cycle_generator_forward.41} parent=0 // loop_header_branch
    %13 = sbr.rel (%p11) target = $region8
  $region5: #{cycle_generator_forward.41} parent=0 // loop_body
    %s15 = ssub.s32 %s10, 1
    %s16 = ssub.s32 %s10, 2
    %s17 = sadd.s32 %s10, 1
    %s18 = ssub.s32 %s10, %s17
    %p19 = scmp.eq.s32.totalorder %s18, 0
    %s21 = sadd.s32 %s20, 1
    %s22 = scalar_select %p19, %s20, %s21
    %p25 = pneg %p19
    %p26 = scmp.eq.s32.totalorder %s10, 1
    %p27 = por %p25, %p26
    %p28 = scmp.ne.s32.totalorder %s20, %s23
    %p29 = scmp.eq.s32.totalorder %s10, 0
    %p30 = por %p28, %p29
    %p31 = scmp.ne.s32.totalorder %s20, %s23
    %p32 = scmp.eq.s32.totalorder %s15, 1
    %p33 = por %p31, %p32
    %p34 = scmp.ne.s32.totalorder %s23, %s24
    %p35 = scmp.eq.s32.totalorder %s15, 0
    %p36 = por %p34, %p35
    %p37 = scmp.ne.s32.totalorder %s23, %s24
    %p38 = scmp.eq.s32.totalorder %s16, 1
    %p39 = por %p37, %p38
    %p41 = scmp.ne.s32.totalorder %s24, %s40
    %p42 = scmp.eq.s32.totalorder %s16, 0
    %p43 = por %p41, %p42
    %s45 = sadd.s32 %s44, 1
    %p48 = scmp.eq.s32.totalorder %s10, 1
    %p49 = scmp.ne.s32.totalorder %s44, %s46
    %p50 = scmp.eq.s32.totalorder %s10, 0
    %p51 = por %p49, %p50
    %p52 = scmp.ne.s32.totalorder %s44, %s46
    %p53 = scmp.eq.s32.totalorder %s15, 1
    %p54 = por %p52, %p53
    %p55 = scmp.ne.s32.totalorder %s46, %s47
    %p56 = scmp.eq.s32.totalorder %s15, 0
    %p57 = por %p55, %p56
    %p58 = scmp.ne.s32.totalorder %s46, %s47
    %p59 = scmp.eq.s32.totalorder %s16, 1
    %p60 = por %p58, %p59
    %p62 = scmp.ne.s32.totalorder %s47, %s61
    %p63 = scmp.eq.s32.totalorder %s16, 0
    %p64 = por %p62, %p63
    %s65 = ssub.s32 %s10, %s17
    %p66 = scmp.eq.s32.totalorder %s65, 0
    %s68 = sadd.s32 %s67, 1
    %s69 = scalar_select %p66, %s67, %s68
    %p72 = pneg %p66
    %p73 = scmp.eq.s32.totalorder %s10, 1
    %p74 = por %p72, %p73
    %p75 = scmp.ne.s32.totalorder %s67, %s70
    %p76 = scmp.eq.s32.totalorder %s10, 0
    %p77 = por %p75, %p76
    %p78 = scmp.ne.s32.totalorder %s67, %s70
    %p79 = scmp.eq.s32.totalorder %s15, 1
    %p80 = por %p78, %p79
    %p81 = scmp.ne.s32.totalorder %s70, %s71
    %p82 = scmp.eq.s32.totalorder %s15, 0
    %p83 = por %p81, %p82
    %p84 = scmp.ne.s32.totalorder %s70, %s71
    %p85 = scmp.eq.s32.totalorder %s16, 1
    %p86 = por %p84, %p85
    %p88 = scmp.ne.s32.totalorder %s71, %s87
    %p89 = scmp.eq.s32.totalorder %s16, 0
    %p90 = por %p88, %p89
    %s91 = ssub.s32 %s10, %s17
    %p92 = scmp.eq.s32.totalorder %s91, 0
    %s94 = sadd.s32 %s93, 1
    %s95 = scalar_select %p92, %s93, %s94
    %p98 = pneg %p92
    %p99 = scmp.eq.s32.totalorder %s10, 1
    %p100 = por %p98, %p99
    %p101 = scmp.ne.s32.totalorder %s93, %s96
    %p102 = scmp.eq.s32.totalorder %s10, 0
    %p103 = por %p101, %p102
    %p104 = scmp.ne.s32.totalorder %s93, %s96
    %p105 = scmp.eq.s32.totalorder %s15, 1
    %p106 = por %p104, %p105
    %p107 = scmp.ne.s32.totalorder %s96, %s97
    %p108 = scmp.eq.s32.totalorder %s15, 0
    %p109 = por %p107, %p108
    %p110 = scmp.ne.s32.totalorder %s96, %s97
    %p111 = scmp.eq.s32.totalorder %s16, 1
    %p112 = por %p110, %p111
    %p114 = scmp.ne.s32.totalorder %s97, %s113
    %p115 = scmp.eq.s32.totalorder %s16, 0
    %p116 = por %p114, %p115
    %p117 = scmp.le.s32.totalorder 1, %s10
    %p118 = scmp.lt.s32.totalorder %s10, 3
    %p119 = pnand %p117, %p118
    %p120 = pneg %p119
    // Predicated region
    $region9: #{cycle_generator_forward.41} parent=5 // pred_check
      _
    $region10: #{cycle_generator_forward.41} parent=5 // pred_check_branch
      %122 = sbr.rel (%p119) target = $region12
    $region11: #{cycle_generator_forward.41} parent=5 // pred_region
      %s123 = ssub.s32 %s10, 1
      // Predicated region
      $region13: #{cycle_generator_forward.41} parent=11 // pred_check
        %p124 = pneg %p57
      $region14: #{cycle_generator_forward.41} parent=11 // pred_check_branch
        %126 = sbr.rel (%p124) target = $region16
      $region15: #{cycle_generator_forward.41} parent=11 // pred_region
        _
      $region16: #{cycle_generator_forward.41} parent=11 // pred_fallthru
        _
    $region12: #{cycle_generator_forward.41} parent=5 // pred_fallthru
      _
    %p127 = scmp.lt.s32.totalorder %s10, 2
    // Predicated region
    $region17: #{cycle_generator_forward.41} parent=5 // pred_check
      %p128 = pneg %p127
    $region18: #{cycle_generator_forward.41} parent=5 // pred_check_branch
      %130 = sbr.rel (%p128) target = $region20
    $region19: #{cycle_generator_forward.41} parent=5 // pred_region
      // Predicated region
      $region21: #{cycle_generator_forward.41} parent=19 // pred_check
        %p131 = pneg %p30
      $region22: #{cycle_generator_forward.41} parent=19 // pred_check_branch
        %133 = sbr.rel (%p131) target = $region24
      $region23: #{cycle_generator_forward.41} parent=19 // pred_region
        %s134 = smul.u32 2, %s10
        %p135 = scmp.lt.s32.totalorder %s134, 3
        %s136 = scalar_select %p135, %s134, 3
        %s137 = smul.addr %s136, 2
        %s138 = smul.addr %s137, 4
        %s139 = scalar_lea.vmem %s0, %s138
        %s140 = smul.u32 2, %s10
      $region24: #{cycle_generator_forward.41} parent=19 // pred_fallthru
        _
    $region20: #{cycle_generator_forward.41} parent=5 // pred_fallthru
      _
    %p141 = scmp.le.s32.totalorder 1, %s10
    %p142 = scmp.lt.s32.totalorder %s10, 3
    %p143 = pnand %p141, %p142
    %p144 = pneg %p143
    // Predicated region
    $region25: #{cycle_generator_forward.41} parent=5 // pred_check
      _
    $region26: #{cycle_generator_forward.41} parent=5 // pred_check_branch
      %146 = sbr.rel (%p143) target = $region28
    $region27: #{cycle_generator_forward.41} parent=5 // pred_region
      %s147 = ssub.s32 %s10, 1
      %s148 = smul.u32 2, %s15
      %p149 = scmp.lt.s32.totalorder %s148, 3
      %s150 = scalar_select %p149, %s148, 3
      %s151 = smul.addr %s150, 2
      %s152 = smul.addr %s151, 4
      %s153 = scalar_lea.vmem %s0, %s152
      %p154 = pneg %p36
      %p155 = pneg %p33
      %p156 = pneg %p57
      %p157 = pneg %p54
      %p158 = pneg %p83
      %p159 = pneg %p80
      %s160 = smul.u32 2, %s15
      %p161 = scmp.lt.s32.totalorder %s160, 3
      %s162 = scalar_select %p161, %s160, 3
      %s163 = smul.addr %s162, 8
      %s164 = scalar_lea.vmem %s2, %s163
      %p165 = pneg %p109
      %p166 = pneg %p106
      %p167 = scmp.lt.s32.totalorder %s15, 1
      %s168 = scalar_select %p167, %s15, 1
      %s169 = smul.addr %s168, 8
      %s170 = scalar_lea.vmem %s3, %s169
      %s171 = smul.u32 2, %s15
      %p172 = scmp.lt.s32.totalorder %s171, 3
      %s173 = scalar_select %p172, %s171, 3
      %s174 = smul.addr %s173, 2
      %s175 = smul.addr %s174, 4
      %s176 = scalar_lea.vmem %s0, %s175
      %s177 = smul.u32 2, %s15
      %s178 = smul.u32 2, %s15
      %p179 = scmp.lt.s32.totalorder %s178, 3
      %s180 = scalar_select %p179, %s178, 3
      %s181 = smul.addr %s180, 8
      %s182 = scalar_lea.vmem %s2, %s181
      %s183 = smul.u32 2, %s15
      %p184 = scmp.lt.s32.totalorder %s15, 1
      %s185 = scalar_select %p184, %s15, 1
      %s186 = smul.addr %s185, 8
      %s187 = scalar_lea.vmem %s3, %s186
      %v189 = vld [vmem:[%s176] sm:$0xff]
      %v190 = vld [vmem:[%s176 + $0x8] sm:$0xff]
      %v191 = vld [vmem:[%s1] sm:$0xf]
      %v192 = vld [vmem:[%s1 + $0x4] sm:$0xf]
      %v193 = vld [vmem:[%s1 + $0x8] sm:$0xf]
      %v194 = vld [vmem:[%s1 + $0xc] sm:$0xf]
      %v195 = vld [vmem:[%s1 + $0x10] sm:$0xf]
      %v196 = vld [vmem:[%s1 + $0x14] sm:$0xf]
      %v197 = vld [vmem:[%s1 + $0x18] sm:$0xf]
      %v198 = vld [vmem:[%s1 + $0x1c] sm:$0xf]
      %v199 = vld [vmem:[%s1 + $0x20] sm:$0xf]
      %v200 = vld [vmem:[%s1 + $0x24] sm:$0xf]
      %v201 = vld [vmem:[%s1 + $0x28] sm:$0xf]
      %v202 = vld [vmem:[%s1 + $0x2c] sm:$0xf]
      %v203 = vld [vmem:[%s1 + $0x30] sm:$0xf]
      %v204 = vld [vmem:[%s1 + $0x34] sm:$0xf]
      %v205 = vld [vmem:[%s1 + $0x38] sm:$0xf]
      %v206 = vld [vmem:[%s1 + $0x3c] sm:$0xf]
      %v207 = vld [vmem:[%s1 + $0x40] sm:$0xf]
      %v208 = vld [vmem:[%s1 + $0x44] sm:$0xf]
      %v209 = vld [vmem:[%s1 + $0x48] sm:$0xf]
      %v210 = vld [vmem:[%s1 + $0x4c] sm:$0xf]
      %v211 = vld [vmem:[%s1 + $0x50] sm:$0xf]
      %v212 = vld [vmem:[%s1 + $0x54] sm:$0xf]
      %v213 = vld [vmem:[%s1 + $0x58] sm:$0xf]
      %v214 = vld [vmem:[%s1 + $0x5c] sm:$0xf]
      %v215 = vld [vmem:[%s1 + $0x60] sm:$0xf]
      %v216 = vld [vmem:[%s1 + $0x64] sm:$0xf]
      %v217 = vld [vmem:[%s1 + $0x68] sm:$0xf]
      %v218 = vld [vmem:[%s1 + $0x6c] sm:$0xf]
      %v219 = vld [vmem:[%s1 + $0x70] sm:$0xf]
      %v220 = vld [vmem:[%s1 + $0x74] sm:$0xf]
      %v221 = vld [vmem:[%s1 + $0x78] sm:$0xf]
      %v222 = vld [vmem:[%s1 + $0x7c] sm:$0xf]
      %v225 = vunpack.c.l.b16 %v189
      %v226 = vunpack.c.h.b16 %v189
      %v227 = vunpack.c.l.b16 %v190
      %v228 = vunpack.c.h.b16 %v190
      %v229 = vpack.c.b16 %v227, %v225
      %v230 = vpack.c.b16 %v228, %v226
      %v265 = vunpack.c.l.b16 %v191
      %v266 = vunpack.c.l.b16 %v192
      %v267 = vunpack.c.l.b16 %v193
      %v268 = vunpack.c.l.b16 %v194
      %v269 = vunpack.c.l.b16 %v195
      %v270 = vunpack.c.l.b16 %v196
      %v271 = vunpack.c.l.b16 %v197
      %v272 = vunpack.c.l.b16 %v198
      %v273 = vunpack.c.l.b16 %v199
      %v274 = vunpack.c.l.b16 %v200
      %v275 = vunpack.c.l.b16 %v201
      %v276 = vunpack.c.l.b16 %v202
      %v277 = vunpack.c.l.b16 %v203
      %v278 = vunpack.c.l.b16 %v204
      %v279 = vunpack.c.l.b16 %v205
      %v280 = vunpack.c.l.b16 %v206
      %v281 = vunpack.c.l.b16 %v207
      %v282 = vunpack.c.l.b16 %v208
      %v283 = vunpack.c.l.b16 %v209
      %v284 = vunpack.c.l.b16 %v210
      %v285 = vunpack.c.l.b16 %v211
      %v286 = vunpack.c.l.b16 %v212
      %v287 = vunpack.c.l.b16 %v213
      %v288 = vunpack.c.l.b16 %v214
      %v289 = vunpack.c.l.b16 %v215
      %v290 = vunpack.c.l.b16 %v216
      %v291 = vunpack.c.l.b16 %v217
      %v292 = vunpack.c.l.b16 %v218
      %v293 = vunpack.c.l.b16 %v219
      %v294 = vunpack.c.l.b16 %v220
      %v295 = vunpack.c.l.b16 %v221
      %v296 = vunpack.c.l.b16 %v222
      %v297 = vpack.c.b16 %v266, %v265
      %v298 = vpack.c.b16 %v268, %v267
      %v299 = vpack.c.b16 %v270, %v269
      %v300 = vpack.c.b16 %v272, %v271
      %v301 = vpack.c.b16 %v274, %v273
      %v302 = vpack.c.b16 %v276, %v275
      %v303 = vpack.c.b16 %v278, %v277
      %v304 = vpack.c.b16 %v280, %v279
      %v305 = vpack.c.b16 %v282, %v281
      %v306 = vpack.c.b16 %v284, %v283
      %v307 = vpack.c.b16 %v286, %v285
      %v308 = vpack.c.b16 %v288, %v287
      %v309 = vpack.c.b16 %v290, %v289
      %v310 = vpack.c.b16 %v292, %v291
      %v311 = vpack.c.b16 %v294, %v293
      %v312 = vpack.c.b16 %v296, %v295
      %329 = vmatprep.subr.bf16.mxu0 0
      %330 = vmatpush1.bf16.msra.mxu0 %v304
      %331 = vmatprep.subr.bf16.mxu0 0
      %332 = vmatpush1.bf16.msra.mxu0 %v303
      %333 = vmatprep.subr.bf16.mxu0 0
      %334 = vmatpush1.bf16.msra.mxu0 %v302
      %335 = vmatprep.subr.bf16.mxu0 0
      %336 = vmatpush1.bf16.msra.mxu0 %v301
      %337 = vmatprep.subr.bf16.mxu0 0
      %338 = vmatpush1.bf16.msra.mxu0 %v300
      %339 = vmatprep.subr.bf16.mxu0 0
      %340 = vmatpush1.bf16.msra.mxu0 %v299
      %341 = vmatprep.subr.bf16.mxu0 0
      %342 = vmatpush1.bf16.msra.mxu0 %v298
      %343 = vmatprep.subr.bf16.mxu0 0
      %344 = vmatpush1.bf16.msra.mxu0 %v297
      %345 = vmatprep.subr.bf16.mxu0 0
      %346 = vmatpush2.bf16.msra.mxu0 %v312
      %347 = vmatprep.subr.bf16.mxu0 0
      %348 = vmatpush2.bf16.msra.mxu0 %v311
      %349 = vmatprep.subr.bf16.mxu0 0
      %350 = vmatpush2.bf16.msra.mxu0 %v310
      %351 = vmatprep.subr.bf16.mxu0 0
      %352 = vmatpush2.bf16.msra.mxu0 %v309
      %353 = vmatprep.subr.bf16.mxu0 0
      %354 = vmatpush2.bf16.msra.mxu0 %v308
      %355 = vmatprep.subr.bf16.mxu0 0
      %356 = vmatpush2.bf16.msra.mxu0 %v307
      %357 = vmatprep.subr.bf16.mxu0 0
      %358 = vmatpush2.bf16.msra.mxu0 %v306
      %359 = vmatprep.subr.bf16.mxu0 0
      %360 = vmatpush2.bf16.msra.mxu0 %v305
      %361 = vmatprep.mubr.bf16.mxu0 %v230
      %362 = vmatmul.mubr.bf16.gmra.mxu0 %v229
      %v363 = vpop.f32.mrf.mxu0
      %v364 = vadd.f32 0.0, %v363
      %v365 = vpop.f32.mrf.mxu0
      %v366 = vpop.f32.mrf.mxu0
      %v367 = vadd.f32 0.0, %v366
      %v368 = vpop.f32.mrf.mxu0
      %369 = vdwg.mxu0
      %370 = vst [vmem:[%s182] sm:$0xff] %v364
      %371 = vst [vmem:[%s182 + $0x8] sm:$0xff] %v367
      %v372 = vadd.f32 %v364, %v367
      %v373 = vrot.slane %v372, 4
      %v374 = vadd.f32 %v372, %v373
      %v375 = vrot.slane %v374, 2
      %v376 = vadd.f32 %v374, %v375
      %v377 = vrot.slane %v376, 1
      %v378 = vadd.f32 %v376, %v377
      %v379 = vmul.f32 %v364, %v364
      %v380 = vmul.f32 %v367, %v367
      %v381 = vadd.f32 %v379, %v380
      %v382 = vrot.slane %v381, 4
      %v383 = vadd.f32 %v381, %v382
      %v384 = vrot.slane %v383, 2
      %v385 = vadd.f32 %v383, %v384
      %v386 = vrot.slane %v385, 1
      %v387 = vadd.f32 %v385, %v386
      %v388 = vlaneseq
      %v389 = vshrl.u32 %v388, 7
      %vm390 = vcmp.eq.s32.totalorder %v389, 0
      %v391 = vsel %vm390, %v378, 0.0
      %vm392 = vcmp.eq.s32.totalorder %v389, 1
      %v393 = vsel %vm392, %v387, 0.0
      %v394 = vadd.f32 %v391, %v393
      %395 = vst [vmem:[%s187] sm:$0xff] %v394
      %s396 = smul.u32 2, %s15
      %p397 = scmp.lt.s32.totalorder %s396, 3
      %s398 = scalar_select %p397, %s396, 3
      %s399 = smul.addr %s398, 8
      %s400 = scalar_lea.vmem %s2, %s399
      %p401 = scmp.lt.s32.totalorder %s15, 1
      %s402 = scalar_select %p401, %s15, 1
      %s403 = smul.addr %s402, 8
      %s404 = scalar_lea.vmem %s3, %s403
      // Predicated region
      $region29: #{cycle_generator_forward.41} parent=27 // pred_check
        %p405 = pneg %p80
      $region30: #{cycle_generator_forward.41} parent=27 // pred_check_branch
        %407 = sbr.rel (%p405) target = $region32
      $region31: #{cycle_generator_forward.41} parent=27 // pred_region
        %s408 = smul.u32 2, %s15
      $region32: #{cycle_generator_forward.41} parent=27 // pred_fallthru
        _
      // Predicated region
      $region33: #{cycle_generator_forward.41} parent=27 // pred_check
        %p409 = pneg %p106
      $region34: #{cycle_generator_forward.41} parent=27 // pred_check_branch
        %411 = sbr.rel (%p409) target = $region36
      $region35: #{cycle_generator_forward.41} parent=27 // pred_region
        _
      $region36: #{cycle_generator_forward.41} parent=27 // pred_fallthru
        _
    $region28: #{cycle_generator_forward.41} parent=5 // pred_fallthru
      _
    %p412 = scmp.le.s32.totalorder 2, %s10
    // Predicated region
    $region37: #{cycle_generator_forward.41} parent=5 // pred_check
      %p413 = pneg %p412
    $region38: #{cycle_generator_forward.41} parent=5 // pred_check_branch
      %415 = sbr.rel (%p413) target = $region40
    $region39: #{cycle_generator_forward.41} parent=5 // pred_region
      %s416 = ssub.s32 %s10, 2
      // Predicated region
      $region41: #{cycle_generator_forward.41} parent=39 // pred_check
        %p417 = pneg %p86
      $region42: #{cycle_generator_forward.41} parent=39 // pred_check_branch
        %419 = sbr.rel (%p417) target = $region44
      $region43: #{cycle_generator_forward.41} parent=39 // pred_region
        %s420 = smul.u32 2, %s16
        %p421 = scmp.lt.s32.totalorder %s420, 3
        %s422 = scalar_select %p421, %s420, 3
        %s423 = smul.addr %s422, 8
        %s424 = scalar_lea.vmem %s2, %s423
      $region44: #{cycle_generator_forward.41} parent=39 // pred_fallthru
        _
      // Predicated region
      $region45: #{cycle_generator_forward.41} parent=39 // pred_check
        %p425 = pneg %p112
      $region46: #{cycle_generator_forward.41} parent=39 // pred_check_branch
        %427 = sbr.rel (%p425) target = $region48
      $region47: #{cycle_generator_forward.41} parent=39 // pred_region
        %p428 = scmp.lt.s32.totalorder %s16, 1
        %s429 = scalar_select %p428, %s16, 1
        %s430 = smul.addr %s429, 8
        %s431 = scalar_lea.vmem %s3, %s430
      $region48: #{cycle_generator_forward.41} parent=39 // pred_fallthru
        _
    $region40: #{cycle_generator_forward.41} parent=5 // pred_fallthru
      _
  $region6: #{cycle_generator_forward.41} parent=0 // loop_footer
    %s14 = sadd.s32 1, %s10
  $region7: #{cycle_generator_forward.41} parent=0 // loop_footer_branch
    %9 = sbr.rel target = $region3
  $region8: #{cycle_generator_forward.41} parent=0 // loop_exit
    _

// kernel: squeeze.42
$region0: #{squeeze.42}
  %s0 = inlined_call_operand.vmem [shape: f32[2,64], index: 0, kind: input, shape index: {}]
  %s1 = inlined_call_operand.vmem [shape: f32[8,16], index: 1, kind: output, shape index: {}]
  $region1: #{squeeze.42} parent=0
    #allocation0 [shape = 'u8[4096]{0}', space=vmem, size = 0x1000, scoped, tag = 'scoped mem for input reshape']
    %s3 = sshll.u32 1, 2
    %s4 = ssub.s32 %s3, 1
    %v5 = vld [vmem:[%s0] sm:%s4]
    %6 = vst [vmem:[#allocation0] sm:%s4] %v5
    %v7 = vld [vmem:[#allocation0] sm:$0x3]
    %vm8 = vcmask 130048
    %9 = vst.msk [vmem:[%s1] ss:$4 sm:$0x3] %vm8, %v7
    %v10 = vld [vmem:[#allocation0] sm:$0x3]
    %11 = vrot.lane.b32.xlu0 %v10, 112
    %v12 = vpop.permute.xlu0 %11
    %vm13 = vcmask 130048
    %s14 = scalar_lea.vmem %s1, 1
    %15 = vst.msk [vmem:[%s14] ss:$4 sm:$0x3] %vm13, %v12
    %v16 = vld [vmem:[#allocation0] sm:$0x3]
    %17 = vrot.lane.b32.xlu0 %v16, 96
    %v18 = vpop.permute.xlu0 %17
    %vm19 = vcmask 130048
    %s20 = scalar_lea.vmem %s1, 2
    %21 = vst.msk [vmem:[%s20] ss:$4 sm:$0x3] %vm19, %v18
    %v22 = vld [vmem:[#allocation0] sm:$0x3]
    %23 = vrot.lane.b32.xlu0 %v22, 80
    %v24 = vpop.permute.xlu0 %23
    %vm25 = vcmask 130048
    %s26 = scalar_lea.vmem %s1, 3
    %27 = vst.msk [vmem:[%s26] ss:$4 sm:$0x3] %vm25, %v24

// kernel: tile.221
$region0: #{tile.221}
  #allocation0 [shape = 's32[1]{0}', space=sflag, size = 0x4, scoped, tag = 'scoped memory for tile.221']
  %s0 = inlined_call_operand.vmem [shape: f32[16], index: 0, kind: input, shape index: {}]
  %s1 = inlined_call_operand.vmem [shape: f32[4,16], index: 1, kind: output, shape index: {}]
  // Predicated region
  $region2: #{tile.221} parent=0 // pred_check
    _
  $region3: #{tile.221} parent=0 // pred_check_branch
    %3 = sbr.rel (0) target = $region5
  $region4: #{tile.221} parent=0 // pred_region
    _
  $region5: #{tile.221} parent=0 // pred_fallthru
    _
  %v4 = vld [vmem:[%s0] ss:$0 sm:$0xff]
  %5 = vst [vmem:[%s1] sm:$0xf] %v4

// kernel: tile.228
$region0: #{tile.228}
  %s0 = inlined_call_operand.vmem [shape: f32[4,16], index: 0, kind: input, shape index: {}]
  %s1 = inlined_call_operand.vmem [shape: f32[64], index: 1, kind: output, shape index: {}]
  $region1: #{tile.228} parent=0
    #allocation0 [shape = 'u8[4096]{0}', space=vmem, size = 0x1000, scoped, tag = 'scoped mem for output reshape']
    #allocation1 [shape = 'u8[4096]{0}', space=vmem, size = 0x1000, scoped, tag = 'scoped mem for input reshape']
    %s3 = sshll.u32 1, 4
    %s4 = ssub.s32 %s3, 1
    %v5 = vld [vmem:[%s0] sm:%s4]
    %6 = vst [vmem:[#allocation1] sm:%s4] %v5
    %v7 = vld [vmem:[#allocation1] sm:$0x1]
    %vm8 = vcmask 130048
    %9 = vst.msk [vmem:[#allocation0] sm:$0x1] %vm8, %v7
    %s10 = scalar_lea.vmem [#allocation1], 3
    %v11 = vld [vmem:[%s10] sm:$0x1]
    %12 = vrot.lane.b32.xlu0 %v11, 48
    %v13 = vpop.permute.xlu0 %12
    %vm14 = vcmask 523648
    %15 = vst.msk [vmem:[#allocation0] sm:$0x1] %vm14, %v13
    %s16 = scalar_lea.vmem [#allocation1], 2
    %v17 = vld [vmem:[%s16] sm:$0x1]
    %18 = vrot.lane.b32.xlu0 %v17, 32
    %v19 = vpop.permute.xlu0 %18
    %vm20 = vcmask 392448
    %21 = vst.msk [vmem:[#allocation0] sm:$0x1] %vm20, %v19
    %s22 = scalar_lea.vmem [#allocation1], 1
    %v23 = vld [vmem:[%s22] sm:$0x1]
    %24 = vrot.lane.b32.xlu0 %v23, 16
    %v25 = vpop.permute.xlu0 %24
    %vm26 = vcmask 261248
    %27 = vst.msk [vmem:[#allocation0] sm:$0x1] %vm26, %v25
    %s29 = sshll.u32 1, 1
    %s30 = ssub.s32 %s29, 1
    %v32 = vld [vmem:[#allocation0] sm:%s30]
    %s33 = sshll.u32 1, 1
    %s34 = ssub.s32 %s33, 1
    %35 = vst [vmem:[%s1] sm:%s34] %v32

// kernel: cycle_generator_forward.43
$region0: #{cycle_generator_forward.43}
  #allocation0 [shape = 'u32[]', space=smem, size = 0x4, offset = 0x4, fixed_abs, tag = 'smem constant byte address 0x4 - core index']
  #allocation1 [shape = 'u32[144,128]{1,0:T(1,128)}', space=vmem, size = 0x12000, scoped, tag = 'internal scratch']
  %s0 = inlined_call_operand.vmem [shape: bf16[128,128], index: 0, kind: input, shape index: {}]
  %s1 = inlined_call_operand.vmem [shape: bf16[128,64], index: 1, kind: input, shape index: {}]
  %s2 = inlined_call_operand.vmem [shape: f32[128,64], index: 2, kind: output, shape index: {0}]
  %s3 = inlined_call_operand.vmem [shape: f32[2,8,64], index: 3, kind: output, shape index: {1}]
  %4 = xla_tuple %s2, %s3
  %s5 = sld [smem:[#allocation0]]
  $region49: #{cycle_generator_forward.43} parent=0
    _
  %s7 = ssub.s32 1, %s5
  %s8 = scalar_select 0, %s7, %s5
  loop: start=0, step=1, limit=4
  $region2: #{cycle_generator_forward.43} parent=0 // loop_pre_header
    _
  $region3: #{cycle_generator_forward.43} parent=0 // loop_header
    %s10 = sphi 0, %s14
    %p11 = scmp.ge.s32.totalorder %s10, 4
    %s20 = sphi 0, %s22
    %s23 = sphi 0, %s20
    %s24 = sphi 0, %s23
    %s40 = sphi 0, %s24
    %s44 = sphi 0, %s44
    %s46 = sphi 0, %s44
    %s47 = sphi 0, %s46
    %s61 = sphi 0, %s47
    %s67 = sphi 0, %s69
    %s70 = sphi 0, %s67
    %s71 = sphi 0, %s70
    %s87 = sphi 0, %s71
    %s93 = sphi 0, %s95
    %s96 = sphi 0, %s93
    %s97 = sphi 0, %s96
    %s113 = sphi 0, %s97
  $region4: #{cycle_generator_forward.43} parent=0 // loop_header_branch
    %13 = sbr.rel (%p11) target = $region8
  $region5: #{cycle_generator_forward.43} parent=0 // loop_body
    %s15 = ssub.s32 %s10, 1
    %s16 = ssub.s32 %s10, 2
    %s17 = sadd.s32 %s10, 1
    %s18 = ssub.s32 %s10, %s17
    %p19 = scmp.eq.s32.totalorder %s18, 0
    %s21 = sadd.s32 %s20, 1
    %s22 = scalar_select %p19, %s20, %s21
    %p25 = pneg %p19
    %p26 = scmp.eq.s32.totalorder %s10, 1
    %p27 = por %p25, %p26
    %p28 = scmp.ne.s32.totalorder %s20, %s23
    %p29 = scmp.eq.s32.totalorder %s10, 0
    %p30 = por %p28, %p29
    %p31 = scmp.ne.s32.totalorder %s20, %s23
    %p32 = scmp.eq.s32.totalorder %s15, 1
    %p33 = por %p31, %p32
    %p34 = scmp.ne.s32.totalorder %s23, %s24
    %p35 = scmp.eq.s32.totalorder %s15, 0
    %p36 = por %p34, %p35
    %p37 = scmp.ne.s32.totalorder %s23, %s24
    %p38 = scmp.eq.s32.totalorder %s16, 1
    %p39 = por %p37, %p38
    %p41 = scmp.ne.s32.totalorder %s24, %s40
    %p42 = scmp.eq.s32.totalorder %s16, 0
    %p43 = por %p41, %p42
    %s45 = sadd.s32 %s44, 1
    %p48 = scmp.eq.s32.totalorder %s10, 1
    %p49 = scmp.ne.s32.totalorder %s44, %s46
    %p50 = scmp.eq.s32.totalorder %s10, 0
    %p51 = por %p49, %p50
    %p52 = scmp.ne.s32.totalorder %s44, %s46
    %p53 = scmp.eq.s32.totalorder %s15, 1
    %p54 = por %p52, %p53
    %p55 = scmp.ne.s32.totalorder %s46, %s47
    %p56 = scmp.eq.s32.totalorder %s15, 0
    %p57 = por %p55, %p56
    %p58 = scmp.ne.s32.totalorder %s46, %s47
    %p59 = scmp.eq.s32.totalorder %s16, 1
    %p60 = por %p58, %p59
    %p62 = scmp.ne.s32.totalorder %s47, %s61
    %p63 = scmp.eq.s32.totalorder %s16, 0
    %p64 = por %p62, %p63
    %s65 = ssub.s32 %s10, %s17
    %p66 = scmp.eq.s32.totalorder %s65, 0
    %s68 = sadd.s32 %s67, 1
    %s69 = scalar_select %p66, %s67, %s68
    %p72 = pneg %p66
    %p73 = scmp.eq.s32.totalorder %s10, 1
    %p74 = por %p72, %p73
    %p75 = scmp.ne.s32.totalorder %s67, %s70
    %p76 = scmp.eq.s32.totalorder %s10, 0
    %p77 = por %p75, %p76
    %p78 = scmp.ne.s32.totalorder %s67, %s70
    %p79 = scmp.eq.s32.totalorder %s15, 1
    %p80 = por %p78, %p79
    %p81 = scmp.ne.s32.totalorder %s70, %s71
    %p82 = scmp.eq.s32.totalorder %s15, 0
    %p83 = por %p81, %p82
    %p84 = scmp.ne.s32.totalorder %s70, %s71
    %p85 = scmp.eq.s32.totalorder %s16, 1
    %p86 = por %p84, %p85
    %p88 = scmp.ne.s32.totalorder %s71, %s87
    %p89 = scmp.eq.s32.totalorder %s16, 0
    %p90 = por %p88, %p89
    %s91 = ssub.s32 %s10, %s17
    %p92 = scmp.eq.s32.totalorder %s91, 0
    %s94 = sadd.s32 %s93, 1
    %s95 = scalar_select %p92, %s93, %s94
    %p98 = pneg %p92
    %p99 = scmp.eq.s32.totalorder %s10, 1
    %p100 = por %p98, %p99
    %p101 = scmp.ne.s32.totalorder %s93, %s96
    %p102 = scmp.eq.s32.totalorder %s10, 0
    %p103 = por %p101, %p102
    %p104 = scmp.ne.s32.totalorder %s93, %s96
    %p105 = scmp.eq.s32.totalorder %s15, 1
    %p106 = por %p104, %p105
    %p107 = scmp.ne.s32.totalorder %s96, %s97
    %p108 = scmp.eq.s32.totalorder %s15, 0
    %p109 = por %p107, %p108
    %p110 = scmp.ne.s32.totalorder %s96, %s97
    %p111 = scmp.eq.s32.totalorder %s16, 1
    %p112 = por %p110, %p111
    %p114 = scmp.ne.s32.totalorder %s97, %s113
    %p115 = scmp.eq.s32.totalorder %s16, 0
    %p116 = por %p114, %p115
    %p117 = scmp.le.s32.totalorder 1, %s10
    %p118 = scmp.lt.s32.totalorder %s10, 3
    %p119 = pnand %p117, %p118
    %p120 = pneg %p119
    // Predicated region
    $region9: #{cycle_generator_forward.43} parent=5 // pred_check
      _
    $region10: #{cycle_generator_forward.43} parent=5 // pred_check_branch
      %122 = sbr.rel (%p119) target = $region12
    $region11: #{cycle_generator_forward.43} parent=5 // pred_region
      %s123 = ssub.s32 %s10, 1
      // Predicated region
      $region13: #{cycle_generator_forward.43} parent=11 // pred_check
        %p124 = pneg %p57
      $region14: #{cycle_generator_forward.43} parent=11 // pred_check_branch
        %126 = sbr.rel (%p124) target = $region16
      $region15: #{cycle_generator_forward.43} parent=11 // pred_region
        _
      $region16: #{cycle_generator_forward.43} parent=11 // pred_fallthru
        _
    $region12: #{cycle_generator_forward.43} parent=5 // pred_fallthru
      _
    %p127 = scmp.lt.s32.totalorder %s10, 2
    // Predicated region
    $region17: #{cycle_generator_forward.43} parent=5 // pred_check
      %p128 = pneg %p127
    $region18: #{cycle_generator_forward.43} parent=5 // pred_check_branch
      %130 = sbr.rel (%p128) target = $region20
    $region19: #{cycle_generator_forward.43} parent=5 // pred_region
      // Predicated region
      $region21: #{cycle_generator_forward.43} parent=19 // pred_check
        %p131 = pneg %p30
      $region22: #{cycle_generator_forward.43} parent=19 // pred_check_branch
        %133 = sbr.rel (%p131) target = $region24
      $region23: #{cycle_generator_forward.43} parent=19 // pred_region
        %s134 = smul.u32 8, %s10
        %p135 = scmp.lt.s32.totalorder %s134, 15
        %s136 = scalar_select %p135, %s134, 15
        %s137 = smul.addr %s136, 4
        %s138 = scalar_lea.vmem %s0, %s137
        %s139 = smul.u32 8, %s10
      $region24: #{cycle_generator_forward.43} parent=19 // pred_fallthru
        _
    $region20: #{cycle_generator_forward.43} parent=5 // pred_fallthru
      _
    %p140 = scmp.le.s32.totalorder 1, %s10
    %p141 = scmp.lt.s32.totalorder %s10, 3
    %p142 = pnand %p140, %p141
    %p143 = pneg %p142
    // Predicated region
    $region25: #{cycle_generator_forward.43} parent=5 // pred_check
      _
    $region26: #{cycle_generator_forward.43} parent=5 // pred_check_branch
      %145 = sbr.rel (%p142) target = $region28
    $region27: #{cycle_generator_forward.43} parent=5 // pred_region
      %s146 = ssub.s32 %s10, 1
      %s147 = smul.u32 8, %s15
      %p148 = scmp.lt.s32.totalorder %s147, 15
      %s149 = scalar_select %p148, %s147, 15
      %s150 = smul.addr %s149, 4
      %s151 = scalar_lea.vmem %s0, %s150
      %p152 = pneg %p36
      %p153 = pneg %p33
      %p154 = pneg %p57
      %p155 = pneg %p54
      %p156 = pneg %p83
      %p157 = pneg %p80
      %s158 = smul.u32 8, %s15
      %p159 = scmp.lt.s32.totalorder %s158, 15
      %s160 = scalar_select %p159, %s158, 15
      %s161 = smul.addr %s160, 8
      %s162 = scalar_lea.vmem %s2, %s161
      %p163 = pneg %p109
      %p164 = pneg %p106
      %p165 = scmp.lt.s32.totalorder %s15, 1
      %s166 = scalar_select %p165, %s15, 1
      %s167 = smul.addr %s166, 8
      %s168 = scalar_lea.vmem %s3, %s167
      %s169 = smul.u32 8, %s15
      %p170 = scmp.lt.s32.totalorder %s169, 15
      %s171 = scalar_select %p170, %s169, 15
      %s172 = smul.addr %s171, 4
      %s173 = scalar_lea.vmem %s0, %s172
      %s174 = smul.u32 8, %s15
      %s175 = smul.u32 8, %s15
      %p176 = scmp.lt.s32.totalorder %s175, 15
      %s177 = scalar_select %p176, %s175, 15
      %s178 = smul.addr %s177, 8
      %s179 = scalar_lea.vmem %s2, %s178
      %s180 = smul.u32 8, %s15
      %p181 = scmp.lt.s32.totalorder %s15, 1
      %s182 = scalar_select %p181, %s15, 1
      %s183 = smul.addr %s182, 8
      %s184 = scalar_lea.vmem %s3, %s183
      %v186 = vld [vmem:[%s173] sm:$0xf]
      %v187 = vld [vmem:[%s173 + $0x4] sm:$0xf]
      %v188 = vld [vmem:[%s173 + $0x8] sm:$0xf]
      %v189 = vld [vmem:[%s173 + $0xc] sm:$0xf]
      %v190 = vld [vmem:[%s173 + $0x10] sm:$0xf]
      %v191 = vld [vmem:[%s173 + $0x14] sm:$0xf]
      %v192 = vld [vmem:[%s173 + $0x18] sm:$0xf]
      %v193 = vld [vmem:[%s173 + $0x1c] sm:$0xf]
      %v194 = vld [vmem:[%s1] sm:$0xf]
      %v195 = vld [vmem:[%s1 + $0x4] sm:$0xf]
      %v196 = vld [vmem:[%s1 + $0x8] sm:$0xf]
      %v197 = vld [vmem:[%s1 + $0xc] sm:$0xf]
      %v198 = vld [vmem:[%s1 + $0x10] sm:$0xf]
      %v199 = vld [vmem:[%s1 + $0x14] sm:$0xf]
      %v200 = vld [vmem:[%s1 + $0x18] sm:$0xf]
      %v201 = vld [vmem:[%s1 + $0x1c] sm:$0xf]
      %v202 = vld [vmem:[%s1 + $0x20] sm:$0xf]
      %v203 = vld [vmem:[%s1 + $0x24] sm:$0xf]
      %v204 = vld [vmem:[%s1 + $0x28] sm:$0xf]
      %v205 = vld [vmem:[%s1 + $0x2c] sm:$0xf]
      %v206 = vld [vmem:[%s1 + $0x30] sm:$0xf]
      %v207 = vld [vmem:[%s1 + $0x34] sm:$0xf]
      %v208 = vld [vmem:[%s1 + $0x38] sm:$0xf]
      %v209 = vld [vmem:[%s1 + $0x3c] sm:$0xf]
      %v218 = vunpack.c.l.b16 %v186
      %v219 = vunpack.c.l.b16 %v187
      %v220 = vunpack.c.l.b16 %v188
      %v221 = vunpack.c.l.b16 %v189
      %v222 = vunpack.c.l.b16 %v190
      %v223 = vunpack.c.l.b16 %v191
      %v224 = vunpack.c.l.b16 %v192
      %v225 = vunpack.c.l.b16 %v193
      %v226 = vpack.c.b16 %v219, %v218
      %v227 = vpack.c.b16 %v221, %v220
      %v228 = vpack.c.b16 %v223, %v222
      %v229 = vpack.c.b16 %v225, %v224
      %v250 = vunpack.c.l.b16 %v194
      %v251 = vunpack.c.l.b16 %v195
      %v252 = vunpack.c.l.b16 %v196
      %v253 = vunpack.c.l.b16 %v197
      %v254 = vunpack.c.l.b16 %v198
      %v255 = vunpack.c.l.b16 %v199
      %v256 = vunpack.c.l.b16 %v200
      %v257 = vunpack.c.l.b16 %v201
      %v258 = vunpack.c.l.b16 %v202
      %v259 = vunpack.c.l.b16 %v203
      %v260 = vunpack.c.l.b16 %v204
      %v261 = vunpack.c.l.b16 %v205
      %v262 = vunpack.c.l.b16 %v206
      %v263 = vunpack.c.l.b16 %v207
      %v264 = vunpack.c.l.b16 %v208
      %v265 = vunpack.c.l.b16 %v209
      %v266 = vpack.c.b16 %v251, %v250
      %v267 = vpack.c.b16 %v253, %v252
      %v268 = vpack.c.b16 %v255, %v254
      %v269 = vpack.c.b16 %v257, %v256
      %v270 = vpack.c.b16 %v259, %v258
      %v271 = vpack.c.b16 %v261, %v260
      %v272 = vpack.c.b16 %v263, %v262
      %v273 = vpack.c.b16 %v265, %v264
      %282 = vmatprep.subr.bf16.mxu0 0
      %283 = vmatpush1.bf16.msra.mxu0 %v273
      %284 = vmatprep.subr.bf16.mxu0 0
      %285 = vmatpush1.bf16.msra.mxu0 %v272
      %286 = vmatprep.subr.bf16.mxu0 0
      %287 = vmatpush1.bf16.msra.mxu0 %v271
      %288 = vmatprep.subr.bf16.mxu0 0
      %289 = vmatpush1.bf16.msra.mxu0 %v270
      %290 = vmatprep.subr.bf16.mxu0 0
      %291 = vmatpush1.bf16.msra.mxu0 %v269
      %292 = vmatprep.subr.bf16.mxu0 0
      %293 = vmatpush1.bf16.msra.mxu0 %v268
      %294 = vmatprep.subr.bf16.mxu0 0
      %295 = vmatpush1.bf16.msra.mxu0 %v267
      %296 = vmatprep.subr.bf16.mxu0 0
      %297 = vmatpush1.bf16.msra.mxu0 %v266
      %298 = vmatprep.subr.bf16.mxu0 0
      %299 = vmatpush2.bf16.msra.mxu0 0
      %300 = vmatprep.subr.bf16.mxu0 0
      %301 = vmatpush2.bf16.msra.mxu0 0
      %302 = vmatprep.subr.bf16.mxu0 0
      %303 = vmatpush2.bf16.msra.mxu0 0
      %304 = vmatprep.subr.bf16.mxu0 0
      %305 = vmatpush2.bf16.msra.mxu0 0
      %306 = vmatprep.subr.bf16.mxu0 0
      %307 = vmatpush2.bf16.msra.mxu0 0
      %308 = vmatprep.subr.bf16.mxu0 0
      %309 = vmatpush2.bf16.msra.mxu0 0
      %310 = vmatprep.subr.bf16.mxu0 0
      %311 = vmatpush2.bf16.msra.mxu0 0
      %312 = vmatprep.subr.bf16.mxu0 0
      %313 = vmatpush2.bf16.msra.mxu0 0
      %314 = vmatprep.mubr.bf16.mxu0 0
      %315 = vmatmul.mubr.bf16.gmra.mxu0 %v226
      %v316 = vpop.f32.mrf.mxu0
      %v317 = vadd.f32 0.0, %v316
      %v318 = vpop.f32.mrf.mxu0
      %v319 = vpop.f32.mrf.mxu0
      %v320 = vadd.f32 0.0, %v319
      %v321 = vpop.f32.mrf.mxu0
      %322 = vmatprep.mubr.bf16.mxu0 0
      %323 = vmatmul.mubr.bf16.gmra.mxu0 %v227
      %v324 = vpop.f32.mrf.mxu0
      %v325 = vadd.f32 0.0, %v324
      %v326 = vpop.f32.mrf.mxu0
      %v327 = vpop.f32.mrf.mxu0
      %v328 = vadd.f32 0.0, %v327
      %v329 = vpop.f32.mrf.mxu0
      %330 = vmatprep.mubr.bf16.mxu0 0
      %331 = vmatmul.mubr.bf16.gmra.mxu0 %v228
      %v332 = vpop.f32.mrf.mxu0
      %v333 = vadd.f32 0.0, %v332
      %v334 = vpop.f32.mrf.mxu0
      %v335 = vpop.f32.mrf.mxu0
      %v336 = vadd.f32 0.0, %v335
      %v337 = vpop.f32.mrf.mxu0
      %338 = vmatprep.mubr.bf16.mxu0 0
      %339 = vmatmul.mubr.bf16.gmra.mxu0 %v229
      %v340 = vpop.f32.mrf.mxu0
      %v341 = vadd.f32 0.0, %v340
      %v342 = vpop.f32.mrf.mxu0
      %v343 = vpop.f32.mrf.mxu0
      %v344 = vadd.f32 0.0, %v343
      %v345 = vpop.f32.mrf.mxu0
      %346 = vdwg.mxu0
      %vm347 = vcmask 523264
      %348 = vst.msk [vmem:[%s179] sm:$0xff] %vm347, %v317
      %349 = vst.msk [vmem:[%s179 + $0x8] sm:$0xff] %vm347, %v320
      %350 = vst.msk [vmem:[%s179 + $0x10] sm:$0xff] %vm347, %v325
      %351 = vst.msk [vmem:[%s179 + $0x18] sm:$0xff] %vm347, %v328
      %352 = vst.msk [vmem:[%s179 + $0x20] sm:$0xff] %vm347, %v333
      %353 = vst.msk [vmem:[%s179 + $0x28] sm:$0xff] %vm347, %v336
      %354 = vst.msk [vmem:[%s179 + $0x30] sm:$0xff] %vm347, %v341
      %355 = vst.msk [vmem:[%s179 + $0x38] sm:$0xff] %vm347, %v344
      %v356 = vsel %vm347, %v317, 0.0
      %v357 = vsel %vm347, %v320, 0.0
      %v358 = vadd.f32 %v356, %v357
      %v359 = vsel %vm347, %v325, 0.0
      %v360 = vadd.f32 %v358, %v359
      %v361 = vsel %vm347, %v328, 0.0
      %v362 = vadd.f32 %v360, %v361
      %v363 = vsel %vm347, %v333, 0.0
      %v364 = vadd.f32 %v362, %v363
      %v365 = vsel %vm347, %v336, 0.0
      %v366 = vadd.f32 %v364, %v365
      %v367 = vsel %vm347, %v341, 0.0
      %v368 = vadd.f32 %v366, %v367
      %v369 = vsel %vm347, %v344, 0.0
      %v370 = vadd.f32 %v368, %v369
      %v371 = vrot.slane %v370, 4
      %v372 = vadd.f32 %v370, %v371
      %v373 = vrot.slane %v372, 2
      %v374 = vadd.f32 %v372, %v373
      %v375 = vrot.slane %v374, 1
      %v376 = vadd.f32 %v374, %v375
      %v377 = vmul.f32 %v317, %v317
      %v378 = vmul.f32 %v320, %v320
      %v379 = vmul.f32 %v325, %v325
      %v380 = vmul.f32 %v328, %v328
      %v381 = vmul.f32 %v333, %v333
      %v382 = vmul.f32 %v336, %v336
      %v383 = vmul.f32 %v341, %v341
      %v384 = vmul.f32 %v344, %v344
      %v385 = vsel %vm347, %v377, 0.0
      %v386 = vsel %vm347, %v378, 0.0
      %v387 = vadd.f32 %v385, %v386
      %v388 = vsel %vm347, %v379, 0.0
      %v389 = vadd.f32 %v387, %v388
      %v390 = vsel %vm347, %v380, 0.0
      %v391 = vadd.f32 %v389, %v390
      %v392 = vsel %vm347, %v381, 0.0
      %v393 = vadd.f32 %v391, %v392
      %v394 = vsel %vm347, %v382, 0.0
      %v395 = vadd.f32 %v393, %v394
      %v396 = vsel %vm347, %v383, 0.0
      %v397 = vadd.f32 %v395, %v396
      %v398 = vsel %vm347, %v384, 0.0
      %v399 = vadd.f32 %v397, %v398
      %v400 = vrot.slane %v399, 4
      %v401 = vadd.f32 %v399, %v400
      %v402 = vrot.slane %v401, 2
      %v403 = vadd.f32 %v401, %v402
      %v404 = vrot.slane %v403, 1
      %v405 = vadd.f32 %v403, %v404
      %v406 = vlaneseq
      %v407 = vshrl.u32 %v406, 7
      %vm408 = vcmp.eq.s32.totalorder %v407, 0
      %v409 = vsel %vm408, %v376, 0.0
      %vm410 = vcmp.eq.s32.totalorder %v407, 1
      %v411 = vsel %vm410, %v405, 0.0
      %v412 = vadd.f32 %v409, %v411
      %413 = vst.msk [vmem:[%s184] sm:$0xff] %vm347, %v412
      %s414 = smul.u32 8, %s15
      %p415 = scmp.lt.s32.totalorder %s414, 15
      %s416 = scalar_select %p415, %s414, 15
      %s417 = smul.addr %s416, 8
      %s418 = scalar_lea.vmem %s2, %s417
      %p419 = scmp.lt.s32.totalorder %s15, 1
      %s420 = scalar_select %p419, %s15, 1
      %s421 = smul.addr %s420, 8
      %s422 = scalar_lea.vmem %s3, %s421
      // Predicated region
      $region29: #{cycle_generator_forward.43} parent=27 // pred_check
        %p423 = pneg %p80
      $region30: #{cycle_generator_forward.43} parent=27 // pred_check_branch
        %425 = sbr.rel (%p423) target = $region32
      $region31: #{cycle_generator_forward.43} parent=27 // pred_region
        %s426 = smul.u32 8, %s15
      $region32: #{cycle_generator_forward.43} parent=27 // pred_fallthru
        _
      // Predicated region
      $region33: #{cycle_generator_forward.43} parent=27 // pred_check
        %p427 = pneg %p106
      $region34: #{cycle_generator_forward.43} parent=27 // pred_check_branch
        %429 = sbr.rel (%p427) target = $region36
      $region35: #{cycle_generator_forward.43} parent=27 // pred_region
        _
      $region36: #{cycle_generator_forward.43} parent=27 // pred_fallthru
        _
    $region28: #{cycle_generator_forward.43} parent=5 // pred_fallthru
      _
    %p430 = scmp.le.s32.totalorder 2, %s10
    // Predicated region
    $region37: #{cycle_generator_forward.43} parent=5 // pred_check
      %p431 = pneg %p430
    $region38: #{cycle_generator_forward.43} parent=5 // pred_check_branch
      %433 = sbr.rel (%p431) target = $region40
    $region39: #{cycle_generator_forward.43} parent=5 // pred_region
      %s434 = ssub.s32 %s10, 2
      // Predicated region
      $region41: #{cycle_generator_forward.43} parent=39 // pred_check
        %p435 = pneg %p86
      $region42: #{cycle_generator_forward.43} parent=39 // pred_check_branch
        %437 = sbr.rel (%p435) target = $region44
      $region43: #{cycle_generator_forward.43} parent=39 // pred_region
        %s438 = smul.u32 8, %s16
        %p439 = scmp.lt.s32.totalorder %s438, 15
        %s440 = scalar_select %p439, %s438, 15
        %s441 = smul.addr %s440, 8
        %s442 = scalar_lea.vmem %s2, %s441
      $region44: #{cycle_generator_forward.43} parent=39 // pred_fallthru
        _
      // Predicated region
      $region45: #{cycle_generator_forward.43} parent=39 // pred_check
        %p443 = pneg %p112
      $region46: #{cycle_generator_forward.43} parent=39 // pred_check_branch
        %445 = sbr.rel (%p443) target = $region48
      $region47: #{cycle_generator_forward.43} parent=39 // pred_region
        %p446 = scmp.lt.s32.totalorder %s16, 1
        %s447 = scalar_select %p446, %s16, 1
        %s448 = smul.addr %s447, 8
        %s449 = scalar_lea.vmem %s3, %s448
      $region48: #{cycle_generator_forward.43} parent=39 // pred_fallthru
        _
    $region40: #{cycle_generator_forward.43} parent=5 // pred_fallthru
      _
  $region6: #{cycle_generator_forward.43} parent=0 // loop_footer
    %s14 = sadd.s32 1, %s10
  $region7: #{cycle_generator_forward.43} parent=0 // loop_footer_branch
    %9 = sbr.rel target = $region3
  $region8: #{cycle_generator_forward.43} parent=0 // loop_exit
    _

// kernel: cycle_generator_forward.45
$region0: #{cycle_generator_forward.45}
  #allocation0 [shape = 'u32[]', space=smem, size = 0x4, offset = 0x4, fixed_abs, tag = 'smem constant byte address 0x4 - core index']
  #allocation1 [shape = 'u32[144,128]{1,0:T(1,128)}', space=vmem, size = 0x12000, scoped, tag = 'internal scratch']
  %s0 = inlined_call_operand.vmem [shape: bf16[512,784], index: 0, kind: input, shape index: {}]
  %s1 = inlined_call_operand.vmem [shape: bf16[784,4], index: 1, kind: input, shape index: {}]
  %s2 = inlined_call_operand.vmem [shape: f32[1,4], index: 2, kind: input, shape index: {}]
  %s3 = inlined_call_operand.vmem [shape: f32[512,4], index: 3, kind: output, shape index: {}]
  %s4 = sld [smem:[#allocation0]]
  $region45: #{cycle_generator_forward.45} parent=0
    _
  %s6 = ssub.s32 1, %s4
  %s7 = scalar_select 0, %s6, %s4
  loop: start=0, step=1, limit=4
  $region2: #{cycle_generator_forward.45} parent=0 // loop_pre_header
    _
  $region3: #{cycle_generator_forward.45} parent=0 // loop_header
    %s9 = sphi 0, %s13
    %p10 = scmp.ge.s32.totalorder %s9, 4
    %s19 = sphi 0, %s21
    %s22 = sphi 0, %s19
    %s23 = sphi 0, %s22
    %s39 = sphi 0, %s23
    %s43 = sphi 0, %s43
    %s45 = sphi 0, %s43
    %s46 = sphi 0, %s45
    %s60 = sphi 0, %s46
    %s64 = sphi 0, %s64
    %s66 = sphi 0, %s64
    %s67 = sphi 0, %s66
    %s81 = sphi 0, %s67
    %s87 = sphi 0, %s89
    %s90 = sphi 0, %s87
    %s91 = sphi 0, %s90
    %s107 = sphi 0, %s91
  $region4: #{cycle_generator_forward.45} parent=0 // loop_header_branch
    %12 = sbr.rel (%p10) target = $region8
  $region5: #{cycle_generator_forward.45} parent=0 // loop_body
    %s14 = ssub.s32 %s9, 1
    %s15 = ssub.s32 %s9, 2
    %s16 = sadd.s32 %s9, 1
    %s17 = ssub.s32 %s9, %s16
    %p18 = scmp.eq.s32.totalorder %s17, 0
    %s20 = sadd.s32 %s19, 1
    %s21 = scalar_select %p18, %s19, %s20
    %p24 = pneg %p18
    %p25 = scmp.eq.s32.totalorder %s9, 1
    %p26 = por %p24, %p25
    %p27 = scmp.ne.s32.totalorder %s19, %s22
    %p28 = scmp.eq.s32.totalorder %s9, 0
    %p29 = por %p27, %p28
    %p30 = scmp.ne.s32.totalorder %s19, %s22
    %p31 = scmp.eq.s32.totalorder %s14, 1
    %p32 = por %p30, %p31
    %p33 = scmp.ne.s32.totalorder %s22, %s23
    %p34 = scmp.eq.s32.totalorder %s14, 0
    %p35 = por %p33, %p34
    %p36 = scmp.ne.s32.totalorder %s22, %s23
    %p37 = scmp.eq.s32.totalorder %s15, 1
    %p38 = por %p36, %p37
    %p40 = scmp.ne.s32.totalorder %s23, %s39
    %p41 = scmp.eq.s32.totalorder %s15, 0
    %p42 = por %p40, %p41
    %s44 = sadd.s32 %s43, 1
    %p47 = scmp.eq.s32.totalorder %s9, 1
    %p48 = scmp.ne.s32.totalorder %s43, %s45
    %p49 = scmp.eq.s32.totalorder %s9, 0
    %p50 = por %p48, %p49
    %p51 = scmp.ne.s32.totalorder %s43, %s45
    %p52 = scmp.eq.s32.totalorder %s14, 1
    %p53 = por %p51, %p52
    %p54 = scmp.ne.s32.totalorder %s45, %s46
    %p55 = scmp.eq.s32.totalorder %s14, 0
    %p56 = por %p54, %p55
    %p57 = scmp.ne.s32.totalorder %s45, %s46
    %p58 = scmp.eq.s32.totalorder %s15, 1
    %p59 = por %p57, %p58
    %p61 = scmp.ne.s32.totalorder %s46, %s60
    %p62 = scmp.eq.s32.totalorder %s15, 0
    %p63 = por %p61, %p62
    %s65 = sadd.s32 %s64, 1
    %p68 = scmp.eq.s32.totalorder %s9, 1
    %p69 = scmp.ne.s32.totalorder %s64, %s66
    %p70 = scmp.eq.s32.totalorder %s9, 0
    %p71 = por %p69, %p70
    %p72 = scmp.ne.s32.totalorder %s64, %s66
    %p73 = scmp.eq.s32.totalorder %s14, 1
    %p74 = por %p72, %p73
    %p75 = scmp.ne.s32.totalorder %s66, %s67
    %p76 = scmp.eq.s32.totalorder %s14, 0
    %p77 = por %p75, %p76
    %p78 = scmp.ne.s32.totalorder %s66, %s67
    %p79 = scmp.eq.s32.totalorder %s15, 1
    %p80 = por %p78, %p79
    %p82 = scmp.ne.s32.totalorder %s67, %s81
    %p83 = scmp.eq.s32.totalorder %s15, 0
    %p84 = por %p82, %p83
    %s85 = ssub.s32 %s9, %s16
    %p86 = scmp.eq.s32.totalorder %s85, 0
    %s88 = sadd.s32 %s87, 1
    %s89 = scalar_select %p86, %s87, %s88
    %p92 = pneg %p86
    %p93 = scmp.eq.s32.totalorder %s9, 1
    %p94 = por %p92, %p93
    %p95 = scmp.ne.s32.totalorder %s87, %s90
    %p96 = scmp.eq.s32.totalorder %s9, 0
    %p97 = por %p95, %p96
    %p98 = scmp.ne.s32.totalorder %s87, %s90
    %p99 = scmp.eq.s32.totalorder %s14, 1
    %p100 = por %p98, %p99
    %p101 = scmp.ne.s32.totalorder %s90, %s91
    %p102 = scmp.eq.s32.totalorder %s14, 0
    %p103 = por %p101, %p102
    %p104 = scmp.ne.s32.totalorder %s90, %s91
    %p105 = scmp.eq.s32.totalorder %s15, 1
    %p106 = por %p104, %p105
    %p108 = scmp.ne.s32.totalorder %s91, %s107
    %p109 = scmp.eq.s32.totalorder %s15, 0
    %p110 = por %p108, %p109
    %p111 = scmp.le.s32.totalorder 1, %s9
    %p112 = scmp.lt.s32.totalorder %s9, 3
    %p113 = pnand %p111, %p112
    %p114 = pneg %p113
    // Predicated region
    $region9: #{cycle_generator_forward.45} parent=5 // pred_check
      _
    $region10: #{cycle_generator_forward.45} parent=5 // pred_check_branch
      %116 = sbr.rel (%p113) target = $region12
    $region11: #{cycle_generator_forward.45} parent=5 // pred_region
      %s117 = ssub.s32 %s9, 1
      // Predicated region
      $region13: #{cycle_generator_forward.45} parent=11 // pred_check
        %p118 = pneg %p56
      $region14: #{cycle_generator_forward.45} parent=11 // pred_check_branch
        %120 = sbr.rel (%p118) target = $region16
      $region15: #{cycle_generator_forward.45} parent=11 // pred_region
        _
      $region16: #{cycle_generator_forward.45} parent=11 // pred_fallthru
        _
      // Predicated region
      $region17: #{cycle_generator_forward.45} parent=11 // pred_check
        %p121 = pneg %p77
      $region18: #{cycle_generator_forward.45} parent=11 // pred_check_branch
        %123 = sbr.rel (%p121) target = $region20
      $region19: #{cycle_generator_forward.45} parent=11 // pred_region
        _
      $region20: #{cycle_generator_forward.45} parent=11 // pred_fallthru
        _
    $region12: #{cycle_generator_forward.45} parent=5 // pred_fallthru
      _
    %p124 = scmp.lt.s32.totalorder %s9, 2
    // Predicated region
    $region21: #{cycle_generator_forward.45} parent=5 // pred_check
      %p125 = pneg %p124
    $region22: #{cycle_generator_forward.45} parent=5 // pred_check_branch
      %127 = sbr.rel (%p125) target = $region24
    $region23: #{cycle_generator_forward.45} parent=5 // pred_region
      // Predicated region
      $region25: #{cycle_generator_forward.45} parent=23 // pred_check
        %p128 = pneg %p29
      $region26: #{cycle_generator_forward.45} parent=23 // pred_check_branch
        %130 = sbr.rel (%p128) target = $region28
      $region27: #{cycle_generator_forward.45} parent=23 // pred_region
        %s131 = smul.u32 32, %s9
        %p132 = scmp.lt.s32.totalorder %s131, 63
        %s133 = scalar_select %p132, %s131, 63
        %s134 = smul.addr %s133, 7
        %s135 = smul.addr %s134, 4
        %s136 = scalar_lea.vmem %s0, %s135
        %s137 = smul.u32 32, %s9
      $region28: #{cycle_generator_forward.45} parent=23 // pred_fallthru
        _
    $region24: #{cycle_generator_forward.45} parent=5 // pred_fallthru
      _
    %p138 = scmp.le.s32.totalorder 1, %s9
    %p139 = scmp.lt.s32.totalorder %s9, 3
    %p140 = pnand %p138, %p139
    %p141 = pneg %p140
    // Predicated region
    $region29: #{cycle_generator_forward.45} parent=5 // pred_check
      _
    $region30: #{cycle_generator_forward.45} parent=5 // pred_check_branch
      %143 = sbr.rel (%p140) target = $region32
    $region31: #{cycle_generator_forward.45} parent=5 // pred_region
      %s144 = ssub.s32 %s9, 1
      %s145 = smul.u32 32, %s14
      %p146 = scmp.lt.s32.totalorder %s145, 63
      %s147 = scalar_select %p146, %s145, 63
      %s148 = smul.addr %s147, 7
      %s149 = smul.addr %s148, 4
      %s150 = scalar_lea.vmem %s0, %s149
      %p151 = pneg %p35
      %p152 = pneg %p32
      %p153 = pneg %p56
      %p154 = pneg %p53
      %p155 = pneg %p77
      %p156 = pneg %p74
      %p157 = pneg %p103
      %p158 = pneg %p100
      %s159 = smul.u32 32, %s14
      %p160 = scmp.lt.s32.totalorder %s159, 63
      %s161 = scalar_select %p160, %s159, 63
      %s162 = smul.addr %s161, 8
      %s163 = scalar_lea.vmem %s3, %s162
      %s164 = smul.u32 32, %s14
      %p165 = scmp.lt.s32.totalorder %s164, 63
      %s166 = scalar_select %p165, %s164, 63
      %s167 = smul.addr %s166, 7
      %s168 = smul.addr %s167, 4
      %s169 = scalar_lea.vmem %s0, %s168
      %s170 = smul.u32 32, %s14
      %s171 = smul.u32 32, %s14
      %p172 = scmp.lt.s32.totalorder %s171, 63
      %s173 = scalar_select %p172, %s171, 63
      %s174 = smul.addr %s173, 8
      %s175 = scalar_lea.vmem %s3, %s174
      %s176 = smul.u32 32, %s14
      %v178 = vld [vmem:[%s169] sm:$0xff]
      %v179 = vld [vmem:[%s169 + $0x8] sm:$0xff]
      %v180 = vld [vmem:[%s169 + $0x10] sm:$0xff]
      %v181 = vld [vmem:[%s169 + $0x18] sm:$0xf]
      %v182 = vld [vmem:[%s169 + $0x1c] sm:$0xff]
      %v183 = vld [vmem:[%s169 + $0x24] sm:$0xff]
      %v184 = vld [vmem:[%s169 + $0x2c] sm:$0xff]
      %v185 = vld [vmem:[%s169 + $0x34] sm:$0xf]
      %v186 = vld [vmem:[%s169 + $0x38] sm:$0xff]
      %v187 = vld [vmem:[%s169 + $0x40] sm:$0xff]
      %v188 = vld [vmem:[%s169 + $0x48] sm:$0xff]
      %v189 = vld [vmem:[%s169 + $0x50] sm:$0xf]
      %v190 = vld [vmem:[%s169 + $0x54] sm:$0xff]
      %v191 = vld [vmem:[%s169 + $0x5c] sm:$0xff]
      %v192 = vld [vmem:[%s169 + $0x64] sm:$0xff]
      %v193 = vld [vmem:[%s169 + $0x6c] sm:$0xf]
      %v194 = vld [vmem:[%s169 + $0x70] sm:$0xff]
      %v195 = vld [vmem:[%s169 + $0x78] sm:$0xff]
      %v196 = vld [vmem:[%s169 + $0x80] sm:$0xff]
      %v197 = vld [vmem:[%s169 + $0x88] sm:$0xf]
      %v198 = vld [vmem:[%s169 + $0x8c] sm:$0xff]
      %v199 = vld [vmem:[%s169 + $0x94] sm:$0xff]
      %v200 = vld [vmem:[%s169 + $0x9c] sm:$0xff]
      %v201 = vld [vmem:[%s169 + $0xa4] sm:$0xf]
      %v202 = vld [vmem:[%s169 + $0xa8] sm:$0xff]
      %v203 = vld [vmem:[%s169 + $0xb0] sm:$0xff]
      %v204 = vld [vmem:[%s169 + $0xb8] sm:$0xff]
      %v205 = vld [vmem:[%s169 + $0xc0] sm:$0xf]
      %v206 = vld [vmem:[%s169 + $0xc4] sm:$0xff]
      %v207 = vld [vmem:[%s169 + $0xcc] sm:$0xff]
      %v208 = vld [vmem:[%s169 + $0xd4] sm:$0xff]
      %v209 = vld [vmem:[%s169 + $0xdc] sm:$0xf]
      %v210 = vld [vmem:[%s169 + $0xe0] sm:$0xff]
      %v211 = vld [vmem:[%s169 + $0xe8] sm:$0xff]
      %v212 = vld [vmem:[%s169 + $0xf0] sm:$0xff]
      %v213 = vld [vmem:[%s169 + $0xf8] sm:$0xf]
      %v214 = vld [vmem:[%s169 + $0xfc] sm:$0xff]
      %v215 = vld [vmem:[%s169 + $0x104] sm:$0xff]
      %v216 = vld [vmem:[%s169 + $0x10c] sm:$0xff]
      %v217 = vld [vmem:[%s169 + $0x114] sm:$0xf]
      %v218 = vld [vmem:[%s169 + $0x118] sm:$0xff]
      %v219 = vld [vmem:[%s169 + $0x120] sm:$0xff]
      %v220 = vld [vmem:[%s169 + $0x128] sm:$0xff]
      %v221 = vld [vmem:[%s169 + $0x130] sm:$0xf]
      %v222 = vld [vmem:[%s169 + $0x134] sm:$0xff]
      %v223 = vld [vmem:[%s169 + $0x13c] sm:$0xff]
      %v224 = vld [vmem:[%s169 + $0x144] sm:$0xff]
      %v225 = vld [vmem:[%s169 + $0x14c] sm:$0xf]
      %v226 = vld [vmem:[%s169 + $0x150] sm:$0xff]
      %v227 = vld [vmem:[%s169 + $0x158] sm:$0xff]
      %v228 = vld [vmem:[%s169 + $0x160] sm:$0xff]
      %v229 = vld [vmem:[%s169 + $0x168] sm:$0xf]
      %v230 = vld [vmem:[%s169 + $0x16c] sm:$0xff]
      %v231 = vld [vmem:[%s169 + $0x174] sm:$0xff]
      %v232 = vld [vmem:[%s169 + $0x17c] sm:$0xff]
      %v233 = vld [vmem:[%s169 + $0x184] sm:$0xf]
      %v234 = vld [vmem:[%s169 + $0x188] sm:$0xff]
      %v235 = vld [vmem:[%s169 + $0x190] sm:$0xff]
      %v236 = vld [vmem:[%s169 + $0x198] sm:$0xff]
      %v237 = vld [vmem:[%s169 + $0x1a0] sm:$0xf]
      %v238 = vld [vmem:[%s169 + $0x1a4] sm:$0xff]
      %v239 = vld [vmem:[%s169 + $0x1ac] sm:$0xff]
      %v240 = vld [vmem:[%s169 + $0x1b4] sm:$0xff]
      %v241 = vld [vmem:[%s169 + $0x1bc] sm:$0xf]
      %v242 = vld [vmem:[%s169 + $0x1c0] sm:$0xff]
      %v243 = vld [vmem:[%s169 + $0x1c8] sm:$0xff]
      %v244 = vld [vmem:[%s169 + $0x1d0] sm:$0xff]
      %v245 = vld [vmem:[%s169 + $0x1d8] sm:$0xf]
      %v246 = vld [vmem:[%s169 + $0x1dc] sm:$0xff]
      %v247 = vld [vmem:[%s169 + $0x1e4] sm:$0xff]
      %v248 = vld [vmem:[%s169 + $0x1ec] sm:$0xff]
      %v249 = vld [vmem:[%s169 + $0x1f4] sm:$0xf]
      %v250 = vld [vmem:[%s169 + $0x1f8] sm:$0xff]
      %v251 = vld [vmem:[%s169 + $0x200] sm:$0xff]
      %v252 = vld [vmem:[%s169 + $0x208] sm:$0xff]
      %v253 = vld [vmem:[%s169 + $0x210] sm:$0xf]
      %v254 = vld [vmem:[%s169 + $0x214] sm:$0xff]
      %v255 = vld [vmem:[%s169 + $0x21c] sm:$0xff]
      %v256 = vld [vmem:[%s169 + $0x224] sm:$0xff]
      %v257 = vld [vmem:[%s169 + $0x22c] sm:$0xf]
      %v258 = vld [vmem:[%s169 + $0x230] sm:$0xff]
      %v259 = vld [vmem:[%s169 + $0x238] sm:$0xff]
      %v260 = vld [vmem:[%s169 + $0x240] sm:$0xff]
      %v261 = vld [vmem:[%s169 + $0x248] sm:$0xf]
      %v262 = vld [vmem:[%s169 + $0x24c] sm:$0xff]
      %v263 = vld [vmem:[%s169 + $0x254] sm:$0xff]
      %v264 = vld [vmem:[%s169 + $0x25c] sm:$0xff]
      %v265 = vld [vmem:[%s169 + $0x264] sm:$0xf]
      %v266 = vld [vmem:[%s169 + $0x268] sm:$0xff]
      %v267 = vld [vmem:[%s169 + $0x270] sm:$0xff]
      %v268 = vld [vmem:[%s169 + $0x278] sm:$0xff]
      %v269 = vld [vmem:[%s169 + $0x280] sm:$0xf]
      %v270 = vld [vmem:[%s169 + $0x284] sm:$0xff]
      %v271 = vld [vmem:[%s169 + $0x28c] sm:$0xff]
      %v272 = vld [vmem:[%s169 + $0x294] sm:$0xff]
      %v273 = vld [vmem:[%s169 + $0x29c] sm:$0xf]
      %v274 = vld [vmem:[%s169 + $0x2a0] sm:$0xff]
      %v275 = vld [vmem:[%s169 + $0x2a8] sm:$0xff]
      %v276 = vld [vmem:[%s169 + $0x2b0] sm:$0xff]
      %v277 = vld [vmem:[%s169 + $0x2b8] sm:$0xf]
      %v278 = vld [vmem:[%s169 + $0x2bc] sm:$0xff]
      %v279 = vld [vmem:[%s169 + $0x2c4] sm:$0xff]
      %v280 = vld [vmem:[%s169 + $0x2cc] sm:$0xff]
      %v281 = vld [vmem:[%s169 + $0x2d4] sm:$0xf]
      %v282 = vld [vmem:[%s169 + $0x2d8] sm:$0xff]
      %v283 = vld [vmem:[%s169 + $0x2e0] sm:$0xff]
      %v284 = vld [vmem:[%s169 + $0x2e8] sm:$0xff]
      %v285 = vld [vmem:[%s169 + $0x2f0] sm:$0xf]
      %v286 = vld [vmem:[%s169 + $0x2f4] sm:$0xff]
      %v287 = vld [vmem:[%s169 + $0x2fc] sm:$0xff]
      %v288 = vld [vmem:[%s169 + $0x304] sm:$0xff]
      %v289 = vld [vmem:[%s169 + $0x30c] sm:$0xf]
      %v290 = vld [vmem:[%s169 + $0x310] sm:$0xff]
      %v291 = vld [vmem:[%s169 + $0x318] sm:$0xff]
      %v292 = vld [vmem:[%s169 + $0x320] sm:$0xff]
      %v293 = vld [vmem:[%s169 + $0x328] sm:$0xf]
      %v294 = vld [vmem:[%s169 + $0x32c] sm:$0xff]
      %v295 = vld [vmem:[%s169 + $0x334] sm:$0xff]
      %v296 = vld [vmem:[%s169 + $0x33c] sm:$0xff]
      %v297 = vld [vmem:[%s169 + $0x344] sm:$0xf]
      %v298 = vld [vmem:[%s169 + $0x348] sm:$0xff]
      %v299 = vld [vmem:[%s169 + $0x350] sm:$0xff]
      %v300 = vld [vmem:[%s169 + $0x358] sm:$0xff]
      %v301 = vld [vmem:[%s169 + $0x360] sm:$0xf]
      %v302 = vld [vmem:[%s169 + $0x364] sm:$0xff]
      %v303 = vld [vmem:[%s169 + $0x36c] sm:$0xff]
      %v304 = vld [vmem:[%s169 + $0x374] sm:$0xff]
      %v305 = vld [vmem:[%s169 + $0x37c] sm:$0xf]
      %v306 = vld [vmem:[%s1] sm:$0xf]
      %v307 = vld [vmem:[%s1 + $0x4] sm:$0xf]
      %v308 = vld [vmem:[%s1 + $0x8] sm:$0xf]
      %v309 = vld [vmem:[%s1 + $0xc] sm:$0xf]
      %v310 = vld [vmem:[%s1 + $0x10] sm:$0xf]
      %v311 = vld [vmem:[%s1 + $0x14] sm:$0xf]
      %v312 = vld [vmem:[%s1 + $0x18] sm:$0xf]
      %v313 = vld [vmem:[%s1 + $0x1c] sm:$0xf]
      %v314 = vld [vmem:[%s1 + $0x20] sm:$0xf]
      %v315 = vld [vmem:[%s1 + $0x24] sm:$0xf]
      %v316 = vld [vmem:[%s1 + $0x28] sm:$0xf]
      %v317 = vld [vmem:[%s1 + $0x2c] sm:$0xf]
      %v318 = vld [vmem:[%s1 + $0x30] sm:$0xf]
      %v319 = vld [vmem:[%s1 + $0x34] sm:$0xf]
      %v320 = vld [vmem:[%s1 + $0x38] sm:$0xf]
      %v321 = vld [vmem:[%s1 + $0x3c] sm:$0xf]
      %v322 = vld [vmem:[%s1 + $0x40] sm:$0xf]
      %v323 = vld [vmem:[%s1 + $0x44] sm:$0xf]
      %v324 = vld [vmem:[%s1 + $0x48] sm:$0xf]
      %v325 = vld [vmem:[%s1 + $0x4c] sm:$0xf]
      %v326 = vld [vmem:[%s1 + $0x50] sm:$0xf]
      %v327 = vld [vmem:[%s1 + $0x54] sm:$0xf]
      %v328 = vld [vmem:[%s1 + $0x58] sm:$0xf]
      %v329 = vld [vmem:[%s1 + $0x5c] sm:$0xf]
      %v330 = vld [vmem:[%s1 + $0x60] sm:$0xf]
      %v331 = vld [vmem:[%s1 + $0x64] sm:$0xf]
      %v332 = vld [vmem:[%s1 + $0x68] sm:$0xf]
      %v333 = vld [vmem:[%s1 + $0x6c] sm:$0xf]
      %v334 = vld [vmem:[%s1 + $0x70] sm:$0xf]
      %v335 = vld [vmem:[%s1 + $0x74] sm:$0xf]
      %v336 = vld [vmem:[%s1 + $0x78] sm:$0xf]
      %v337 = vld [vmem:[%s1 + $0x7c] sm:$0xf]
      %v338 = vld [vmem:[%s1 + $0x80] sm:$0xf]
      %v339 = vld [vmem:[%s1 + $0x84] sm:$0xf]
      %v340 = vld [vmem:[%s1 + $0x88] sm:$0xf]
      %v341 = vld [vmem:[%s1 + $0x8c] sm:$0xf]
      %v342 = vld [vmem:[%s1 + $0x90] sm:$0xf]
      %v343 = vld [vmem:[%s1 + $0x94] sm:$0xf]
      %v344 = vld [vmem:[%s1 + $0x98] sm:$0xf]
      %v345 = vld [vmem:[%s1 + $0x9c] sm:$0xf]
      %v346 = vld [vmem:[%s1 + $0xa0] sm:$0xf]
      %v347 = vld [vmem:[%s1 + $0xa4] sm:$0xf]
      %v348 = vld [vmem:[%s1 + $0xa8] sm:$0xf]
      %v349 = vld [vmem:[%s1 + $0xac] sm:$0xf]
      %v350 = vld [vmem:[%s1 + $0xb0] sm:$0xf]
      %v351 = vld [vmem:[%s1 + $0xb4] sm:$0xf]
      %v352 = vld [vmem:[%s1 + $0xb8] sm:$0xf]
      %v353 = vld [vmem:[%s1 + $0xbc] sm:$0xf]
      %v354 = vld [vmem:[%s1 + $0xc0] sm:$0xf]
      %v355 = vld [vmem:[%s1 + $0xc4] sm:$0xf]
      %v356 = vld [vmem:[%s1 + $0xc8] sm:$0xf]
      %v357 = vld [vmem:[%s1 + $0xcc] sm:$0xf]
      %v358 = vld [vmem:[%s1 + $0xd0] sm:$0xf]
      %v359 = vld [vmem:[%s1 + $0xd4] sm:$0xf]
      %v360 = vld [vmem:[%s1 + $0xd8] sm:$0xf]
      %v361 = vld [vmem:[%s1 + $0xdc] sm:$0xf]
      %v362 = vld [vmem:[%s1 + $0xe0] sm:$0xf]
      %v363 = vld [vmem:[%s1 + $0xe4] sm:$0xf]
      %v364 = vld [vmem:[%s1 + $0xe8] sm:$0xf]
      %v365 = vld [vmem:[%s1 + $0xec] sm:$0xf]
      %v366 = vld [vmem:[%s1 + $0xf0] sm:$0xf]
      %v367 = vld [vmem:[%s1 + $0xf4] sm:$0xf]
      %v368 = vld [vmem:[%s1 + $0xf8] sm:$0xf]
      %v369 = vld [vmem:[%s1 + $0xfc] sm:$0xf]
      %v370 = vld [vmem:[%s1 + $0x100] sm:$0xf]
      %v371 = vld [vmem:[%s1 + $0x104] sm:$0xf]
      %v372 = vld [vmem:[%s1 + $0x108] sm:$0xf]
      %v373 = vld [vmem:[%s1 + $0x10c] sm:$0xf]
      %v374 = vld [vmem:[%s1 + $0x110] sm:$0xf]
      %v375 = vld [vmem:[%s1 + $0x114] sm:$0xf]
      %v376 = vld [vmem:[%s1 + $0x118] sm:$0xf]
      %v377 = vld [vmem:[%s1 + $0x11c] sm:$0xf]
      %v378 = vld [vmem:[%s1 + $0x120] sm:$0xf]
      %v379 = vld [vmem:[%s1 + $0x124] sm:$0xf]
      %v380 = vld [vmem:[%s1 + $0x128] sm:$0xf]
      %v381 = vld [vmem:[%s1 + $0x12c] sm:$0xf]
      %v382 = vld [vmem:[%s1 + $0x130] sm:$0xf]
      %v383 = vld [vmem:[%s1 + $0x134] sm:$0xf]
      %v384 = vld [vmem:[%s1 + $0x138] sm:$0xf]
      %v385 = vld [vmem:[%s1 + $0x13c] sm:$0xf]
      %v386 = vld [vmem:[%s1 + $0x140] sm:$0xf]
      %v387 = vld [vmem:[%s1 + $0x144] sm:$0xf]
      %v388 = vld [vmem:[%s1 + $0x148] sm:$0xf]
      %v389 = vld [vmem:[%s1 + $0x14c] sm:$0xf]
      %v390 = vld [vmem:[%s1 + $0x150] sm:$0xf]
      %v391 = vld [vmem:[%s1 + $0x154] sm:$0xf]
      %v392 = vld [vmem:[%s1 + $0x158] sm:$0xf]
      %v393 = vld [vmem:[%s1 + $0x15c] sm:$0xf]
      %v394 = vld [vmem:[%s1 + $0x160] sm:$0xf]
      %v395 = vld [vmem:[%s1 + $0x164] sm:$0xf]
      %v396 = vld [vmem:[%s1 + $0x168] sm:$0xf]
      %v397 = vld [vmem:[%s1 + $0x16c] sm:$0xf]
      %v398 = vld [vmem:[%s1 + $0x170] sm:$0xf]
      %v399 = vld [vmem:[%s1 + $0x174] sm:$0xf]
      %v400 = vld [vmem:[%s1 + $0x178] sm:$0xf]
      %v401 = vld [vmem:[%s1 + $0x17c] sm:$0xf]
      %v402 = vld [vmem:[%s1 + $0x180] sm:$0xf]
      %v403 = vld [vmem:[%s1 + $0x184] sm:$0xf]
      %v404 = vld [vmem:[%s2] sm:$0x1]
      %v406 = vlaneseq
      %v407 = vshrl.u32 %v406, 7
      %v408 = vsub.s32 0, %v407
      %v409 = vrot.slane %v404, %v408
      %v539 = vunpack.c.l.b16 %v178
      %v540 = vunpack.c.h.b16 %v178
      %v541 = vunpack.c.l.b16 %v179
      %v542 = vunpack.c.h.b16 %v179
      %v543 = vunpack.c.l.b16 %v180
      %v544 = vunpack.c.h.b16 %v180
      %v545 = vunpack.c.l.b16 %v181
      %v546 = vunpack.c.l.b16 %v182
      %v547 = vunpack.c.h.b16 %v182
      %v548 = vunpack.c.l.b16 %v183
      %v549 = vunpack.c.h.b16 %v183
      %v550 = vunpack.c.l.b16 %v184
      %v551 = vunpack.c.h.b16 %v184
      %v552 = vunpack.c.l.b16 %v185
      %v553 = vunpack.c.l.b16 %v186
      %v554 = vunpack.c.h.b16 %v186
      %v555 = vunpack.c.l.b16 %v187
      %v556 = vunpack.c.h.b16 %v187
      %v557 = vunpack.c.l.b16 %v188
      %v558 = vunpack.c.h.b16 %v188
      %v559 = vunpack.c.l.b16 %v189
      %v560 = vunpack.c.l.b16 %v190
      %v561 = vunpack.c.h.b16 %v190
      %v562 = vunpack.c.l.b16 %v191
      %v563 = vunpack.c.h.b16 %v191
      %v564 = vunpack.c.l.b16 %v192
      %v565 = vunpack.c.h.b16 %v192
      %v566 = vunpack.c.l.b16 %v193
      %v567 = vunpack.c.l.b16 %v194
      %v568 = vunpack.c.h.b16 %v194
      %v569 = vunpack.c.l.b16 %v195
      %v570 = vunpack.c.h.b16 %v195
      %v571 = vunpack.c.l.b16 %v196
      %v572 = vunpack.c.h.b16 %v196
      %v573 = vunpack.c.l.b16 %v197
      %v574 = vunpack.c.l.b16 %v198
      %v575 = vunpack.c.h.b16 %v198
      %v576 = vunpack.c.l.b16 %v199
      %v577 = vunpack.c.h.b16 %v199
      %v578 = vunpack.c.l.b16 %v200
      %v579 = vunpack.c.h.b16 %v200
      %v580 = vunpack.c.l.b16 %v201
      %v581 = vunpack.c.l.b16 %v202
      %v582 = vunpack.c.h.b16 %v202
      %v583 = vunpack.c.l.b16 %v203
      %v584 = vunpack.c.h.b16 %v203
      %v585 = vunpack.c.l.b16 %v204
      %v586 = vunpack.c.h.b16 %v204
      %v587 = vunpack.c.l.b16 %v205
      %v588 = vunpack.c.l.b16 %v206
      %v589 = vunpack.c.h.b16 %v206
      %v590 = vunpack.c.l.b16 %v207
      %v591 = vunpack.c.h.b16 %v207
      %v592 = vunpack.c.l.b16 %v208
      %v593 = vunpack.c.h.b16 %v208
      %v594 = vunpack.c.l.b16 %v209
      %v595 = vunpack.c.l.b16 %v210
      %v596 = vunpack.c.h.b16 %v210
      %v597 = vunpack.c.l.b16 %v211
      %v598 = vunpack.c.h.b16 %v211
      %v599 = vunpack.c.l.b16 %v212
      %v600 = vunpack.c.h.b16 %v212
      %v601 = vunpack.c.l.b16 %v213
      %v602 = vunpack.c.l.b16 %v214
      %v603 = vunpack.c.h.b16 %v214
      %v604 = vunpack.c.l.b16 %v215
      %v605 = vunpack.c.h.b16 %v215
      %v606 = vunpack.c.l.b16 %v216
      %v607 = vunpack.c.h.b16 %v216
      %v608 = vunpack.c.l.b16 %v217
      %v609 = vunpack.c.l.b16 %v218
      %v610 = vunpack.c.h.b16 %v218
      %v611 = vunpack.c.l.b16 %v219
      %v612 = vunpack.c.h.b16 %v219
      %v613 = vunpack.c.l.b16 %v220
      %v614 = vunpack.c.h.b16 %v220
      %v615 = vunpack.c.l.b16 %v221
      %v616 = vunpack.c.l.b16 %v222
      %v617 = vunpack.c.h.b16 %v222
      %v618 = vunpack.c.l.b16 %v223
      %v619 = vunpack.c.h.b16 %v223
      %v620 = vunpack.c.l.b16 %v224
      %v621 = vunpack.c.h.b16 %v224
      %v622 = vunpack.c.l.b16 %v225
      %v623 = vunpack.c.l.b16 %v226
      %v624 = vunpack.c.h.b16 %v226
      %v625 = vunpack.c.l.b16 %v227
      %v626 = vunpack.c.h.b16 %v227
      %v627 = vunpack.c.l.b16 %v228
      %v628 = vunpack.c.h.b16 %v228
      %v629 = vunpack.c.l.b16 %v229
      %v630 = vunpack.c.l.b16 %v230
      %v631 = vunpack.c.h.b16 %v230
      %v632 = vunpack.c.l.b16 %v231
      %v633 = vunpack.c.h.b16 %v231
      %v634 = vunpack.c.l.b16 %v232
      %v635 = vunpack.c.h.b16 %v232
      %v636 = vunpack.c.l.b16 %v233
      %v637 = vunpack.c.l.b16 %v234
      %v638 = vunpack.c.h.b16 %v234
      %v639 = vunpack.c.l.b16 %v235
      %v640 = vunpack.c.h.b16 %v235
      %v641 = vunpack.c.l.b16 %v236
      %v642 = vunpack.c.h.b16 %v236
      %v643 = vunpack.c.l.b16 %v237
      %v644 = vunpack.c.l.b16 %v238
      %v645 = vunpack.c.h.b16 %v238
      %v646 = vunpack.c.l.b16 %v239
      %v647 = vunpack.c.h.b16 %v239
      %v648 = vunpack.c.l.b16 %v240
      %v649 = vunpack.c.h.b16 %v240
      %v650 = vunpack.c.l.b16 %v241
      %v651 = vunpack.c.l.b16 %v242
      %v652 = vunpack.c.h.b16 %v242
      %v653 = vunpack.c.l.b16 %v243
      %v654 = vunpack.c.h.b16 %v243
      %v655 = vunpack.c.l.b16 %v244
      %v656 = vunpack.c.h.b16 %v244
      %v657 = vunpack.c.l.b16 %v245
      %v658 = vunpack.c.l.b16 %v246
      %v659 = vunpack.c.h.b16 %v246
      %v660 = vunpack.c.l.b16 %v247
      %v661 = vunpack.c.h.b16 %v247
      %v662 = vunpack.c.l.b16 %v248
      %v663 = vunpack.c.h.b16 %v248
      %v664 = vunpack.c.l.b16 %v249
      %v665 = vunpack.c.l.b16 %v250
      %v666 = vunpack.c.h.b16 %v250
      %v667 = vunpack.c.l.b16 %v251
      %v668 = vunpack.c.h.b16 %v251
      %v669 = vunpack.c.l.b16 %v252
      %v670 = vunpack.c.h.b16 %v252
      %v671 = vunpack.c.l.b16 %v253
      %v672 = vunpack.c.l.b16 %v254
      %v673 = vunpack.c.h.b16 %v254
      %v674 = vunpack.c.l.b16 %v255
      %v675 = vunpack.c.h.b16 %v255
      %v676 = vunpack.c.l.b16 %v256
      %v677 = vunpack.c.h.b16 %v256
      %v678 = vunpack.c.l.b16 %v257
      %v679 = vunpack.c.l.b16 %v258
      %v680 = vunpack.c.h.b16 %v258
      %v681 = vunpack.c.l.b16 %v259
      %v682 = vunpack.c.h.b16 %v259
      %v683 = vunpack.c.l.b16 %v260
      %v684 = vunpack.c.h.b16 %v260
      %v685 = vunpack.c.l.b16 %v261
      %v686 = vunpack.c.l.b16 %v262
      %v687 = vunpack.c.h.b16 %v262
      %v688 = vunpack.c.l.b16 %v263
      %v689 = vunpack.c.h.b16 %v263
      %v690 = vunpack.c.l.b16 %v264
      %v691 = vunpack.c.h.b16 %v264
      %v692 = vunpack.c.l.b16 %v265
      %v693 = vunpack.c.l.b16 %v266
      %v694 = vunpack.c.h.b16 %v266
      %v695 = vunpack.c.l.b16 %v267
      %v696 = vunpack.c.h.b16 %v267
      %v697 = vunpack.c.l.b16 %v268
      %v698 = vunpack.c.h.b16 %v268
      %v699 = vunpack.c.l.b16 %v269
      %v700 = vunpack.c.l.b16 %v270
      %v701 = vunpack.c.h.b16 %v270
      %v702 = vunpack.c.l.b16 %v271
      %v703 = vunpack.c.h.b16 %v271
      %v704 = vunpack.c.l.b16 %v272
      %v705 = vunpack.c.h.b16 %v272
      %v706 = vunpack.c.l.b16 %v273
      %v707 = vunpack.c.l.b16 %v274
      %v708 = vunpack.c.h.b16 %v274
      %v709 = vunpack.c.l.b16 %v275
      %v710 = vunpack.c.h.b16 %v275
      %v711 = vunpack.c.l.b16 %v276
      %v712 = vunpack.c.h.b16 %v276
      %v713 = vunpack.c.l.b16 %v277
      %v714 = vunpack.c.l.b16 %v278
      %v715 = vunpack.c.h.b16 %v278
      %v716 = vunpack.c.l.b16 %v279
      %v717 = vunpack.c.h.b16 %v279
      %v718 = vunpack.c.l.b16 %v280
      %v719 = vunpack.c.h.b16 %v280
      %v720 = vunpack.c.l.b16 %v281
      %v721 = vunpack.c.l.b16 %v282
      %v722 = vunpack.c.h.b16 %v282
      %v723 = vunpack.c.l.b16 %v283
      %v724 = vunpack.c.h.b16 %v283
      %v725 = vunpack.c.l.b16 %v284
      %v726 = vunpack.c.h.b16 %v284
      %v727 = vunpack.c.l.b16 %v285
      %v728 = vunpack.c.l.b16 %v286
      %v729 = vunpack.c.h.b16 %v286
      %v730 = vunpack.c.l.b16 %v287
      %v731 = vunpack.c.h.b16 %v287
      %v732 = vunpack.c.l.b16 %v288
      %v733 = vunpack.c.h.b16 %v288
      %v734 = vunpack.c.l.b16 %v289
      %v735 = vunpack.c.l.b16 %v290
      %v736 = vunpack.c.h.b16 %v290
      %v737 = vunpack.c.l.b16 %v291
      %v738 = vunpack.c.h.b16 %v291
      %v739 = vunpack.c.l.b16 %v292
      %v740 = vunpack.c.h.b16 %v292
      %v741 = vunpack.c.l.b16 %v293
      %v742 = vunpack.c.l.b16 %v294
      %v743 = vunpack.c.h.b16 %v294
      %v744 = vunpack.c.l.b16 %v295
      %v745 = vunpack.c.h.b16 %v295
      %v746 = vunpack.c.l.b16 %v296
      %v747 = vunpack.c.h.b16 %v296
      %v748 = vunpack.c.l.b16 %v297
      %v749 = vunpack.c.l.b16 %v298
      %v750 = vunpack.c.h.b16 %v298
      %v751 = vunpack.c.l.b16 %v299
      %v752 = vunpack.c.h.b16 %v299
      %v753 = vunpack.c.l.b16 %v300
      %v754 = vunpack.c.h.b16 %v300
      %v755 = vunpack.c.l.b16 %v301
      %v756 = vunpack.c.l.b16 %v302
      %v757 = vunpack.c.h.b16 %v302
      %v758 = vunpack.c.l.b16 %v303
      %v759 = vunpack.c.h.b16 %v303
      %v760 = vunpack.c.l.b16 %v304
      %v761 = vunpack.c.h.b16 %v304
      %v762 = vunpack.c.l.b16 %v305
      %v763 = vpack.c.b16 %v546, %v539
      %v764 = vpack.c.b16 %v547, %v540
      %v765 = vpack.c.b16 %v548, %v541
      %v766 = vpack.c.b16 %v549, %v542
      %v767 = vpack.c.b16 %v550, %v543
      %v768 = vpack.c.b16 %v551, %v544
      %v769 = vpack.c.b16 %v552, %v545
      %v770 = vpack.c.b16 %v560, %v553
      %v771 = vpack.c.b16 %v561, %v554
      %v772 = vpack.c.b16 %v562, %v555
      %v773 = vpack.c.b16 %v563, %v556
      %v774 = vpack.c.b16 %v564, %v557
      %v775 = vpack.c.b16 %v565, %v558
      %v776 = vpack.c.b16 %v566, %v559
      %v777 = vpack.c.b16 %v574, %v567
      %v778 = vpack.c.b16 %v575, %v568
      %v779 = vpack.c.b16 %v576, %v569
      %v780 = vpack.c.b16 %v577, %v570
      %v781 = vpack.c.b16 %v578, %v571
      %v782 = vpack.c.b16 %v579, %v572
      %v783 = vpack.c.b16 %v580, %v573
      %v784 = vpack.c.b16 %v588, %v581
      %v785 = vpack.c.b16 %v589, %v582
      %v786 = vpack.c.b16 %v590, %v583
      %v787 = vpack.c.b16 %v591, %v584
      %v788 = vpack.c.b16 %v592, %v585
      %v789 = vpack.c.b16 %v593, %v586
      %v790 = vpack.c.b16 %v594, %v587
      %v791 = vpack.c.b16 %v602, %v595
      %v792 = vpack.c.b16 %v603, %v596
      %v793 = vpack.c.b16 %v604, %v597
      %v794 = vpack.c.b16 %v605, %v598
      %v795 = vpack.c.b16 %v606, %v599
      %v796 = vpack.c.b16 %v607, %v600
      %v797 = vpack.c.b16 %v608, %v601
      %v798 = vpack.c.b16 %v616, %v609
      %v799 = vpack.c.b16 %v617, %v610
      %v800 = vpack.c.b16 %v618, %v611
      %v801 = vpack.c.b16 %v619, %v612
      %v802 = vpack.c.b16 %v620, %v613
      %v803 = vpack.c.b16 %v621, %v614
      %v804 = vpack.c.b16 %v622, %v615
      %v805 = vpack.c.b16 %v630, %v623
      %v806 = vpack.c.b16 %v631, %v624
      %v807 = vpack.c.b16 %v632, %v625
      %v808 = vpack.c.b16 %v633, %v626
      %v809 = vpack.c.b16 %v634, %v627
      %v810 = vpack.c.b16 %v635, %v628
      %v811 = vpack.c.b16 %v636, %v629
      %v812 = vpack.c.b16 %v644, %v637
      %v813 = vpack.c.b16 %v645, %v638
      %v814 = vpack.c.b16 %v646, %v639
      %v815 = vpack.c.b16 %v647, %v640
      %v816 = vpack.c.b16 %v648, %v641
      %v817 = vpack.c.b16 %v649, %v642
      %v818 = vpack.c.b16 %v650, %v643
      %v819 = vpack.c.b16 %v658, %v651
      %v820 = vpack.c.b16 %v659, %v652
      %v821 = vpack.c.b16 %v660, %v653
      %v822 = vpack.c.b16 %v661, %v654
      %v823 = vpack.c.b16 %v662, %v655
      %v824 = vpack.c.b16 %v663, %v656
      %v825 = vpack.c.b16 %v664, %v657
      %v826 = vpack.c.b16 %v672, %v665
      %v827 = vpack.c.b16 %v673, %v666
      %v828 = vpack.c.b16 %v674, %v667
      %v829 = vpack.c.b16 %v675, %v668
      %v830 = vpack.c.b16 %v676, %v669
      %v831 = vpack.c.b16 %v677, %v670
      %v832 = vpack.c.b16 %v678, %v671
      %v833 = vpack.c.b16 %v686, %v679
      %v834 = vpack.c.b16 %v687, %v680
      %v835 = vpack.c.b16 %v688, %v681
      %v836 = vpack.c.b16 %v689, %v682
      %v837 = vpack.c.b16 %v690, %v683
      %v838 = vpack.c.b16 %v691, %v684
      %v839 = vpack.c.b16 %v692, %v685
      %v840 = vpack.c.b16 %v700, %v693
      %v841 = vpack.c.b16 %v701, %v694
      %v842 = vpack.c.b16 %v702, %v695
      %v843 = vpack.c.b16 %v703, %v696
      %v844 = vpack.c.b16 %v704, %v697
      %v845 = vpack.c.b16 %v705, %v698
      %v846 = vpack.c.b16 %v706, %v699
      %v847 = vpack.c.b16 %v714, %v707
      %v848 = vpack.c.b16 %v715, %v708
      %v849 = vpack.c.b16 %v716, %v709
      %v850 = vpack.c.b16 %v717, %v710
      %v851 = vpack.c.b16 %v718, %v711
      %v852 = vpack.c.b16 %v719, %v712
      %v853 = vpack.c.b16 %v720, %v713
      %v854 = vpack.c.b16 %v728, %v721
      %v855 = vpack.c.b16 %v729, %v722
      %v856 = vpack.c.b16 %v730, %v723
      %v857 = vpack.c.b16 %v731, %v724
      %v858 = vpack.c.b16 %v732, %v725
      %v859 = vpack.c.b16 %v733, %v726
      %v860 = vpack.c.b16 %v734, %v727
      %v861 = vpack.c.b16 %v742, %v735
      %v862 = vpack.c.b16 %v743, %v736
      %v863 = vpack.c.b16 %v744, %v737
      %v864 = vpack.c.b16 %v745, %v738
      %v865 = vpack.c.b16 %v746, %v739
      %v866 = vpack.c.b16 %v747, %v740
      %v867 = vpack.c.b16 %v748, %v741
      %v868 = vpack.c.b16 %v756, %v749
      %v869 = vpack.c.b16 %v757, %v750
      %v870 = vpack.c.b16 %v758, %v751
      %v871 = vpack.c.b16 %v759, %v752
      %v872 = vpack.c.b16 %v760, %v753
      %v873 = vpack.c.b16 %v761, %v754
      %v874 = vpack.c.b16 %v762, %v755
      %v1069 = vunpack.c.l.b16 %v306
      %v1070 = vunpack.c.l.b16 %v307
      %v1071 = vunpack.c.l.b16 %v308
      %v1072 = vunpack.c.l.b16 %v309
      %v1073 = vunpack.c.l.b16 %v310
      %v1074 = vunpack.c.l.b16 %v311
      %v1075 = vunpack.c.l.b16 %v312
      %v1076 = vunpack.c.l.b16 %v313
      %v1077 = vunpack.c.l.b16 %v314
      %v1078 = vunpack.c.l.b16 %v315
      %v1079 = vunpack.c.l.b16 %v316
      %v1080 = vunpack.c.l.b16 %v317
      %v1081 = vunpack.c.l.b16 %v318
      %v1082 = vunpack.c.l.b16 %v319
      %v1083 = vunpack.c.l.b16 %v320
      %v1084 = vunpack.c.l.b16 %v321
      %v1085 = vunpack.c.l.b16 %v322
      %v1086 = vunpack.c.l.b16 %v323
      %v1087 = vunpack.c.l.b16 %v324
      %v1088 = vunpack.c.l.b16 %v325
      %v1089 = vunpack.c.l.b16 %v326
      %v1090 = vunpack.c.l.b16 %v327
      %v1091 = vunpack.c.l.b16 %v328
      %v1092 = vunpack.c.l.b16 %v329
      %v1093 = vunpack.c.l.b16 %v330
      %v1094 = vunpack.c.l.b16 %v331
      %v1095 = vunpack.c.l.b16 %v332
      %v1096 = vunpack.c.l.b16 %v333
      %v1097 = vunpack.c.l.b16 %v334
      %v1098 = vunpack.c.l.b16 %v335
      %v1099 = vunpack.c.l.b16 %v336
      %v1100 = vunpack.c.l.b16 %v337
      %v1101 = vunpack.c.l.b16 %v338
      %v1102 = vunpack.c.l.b16 %v339
      %v1103 = vunpack.c.l.b16 %v340
      %v1104 = vunpack.c.l.b16 %v341
      %v1105 = vunpack.c.l.b16 %v342
      %v1106 = vunpack.c.l.b16 %v343
      %v1107 = vunpack.c.l.b16 %v344
      %v1108 = vunpack.c.l.b16 %v345
      %v1109 = vunpack.c.l.b16 %v346
      %v1110 = vunpack.c.l.b16 %v347
      %v1111 = vunpack.c.l.b16 %v348
      %v1112 = vunpack.c.l.b16 %v349
      %v1113 = vunpack.c.l.b16 %v350
      %v1114 = vunpack.c.l.b16 %v351
      %v1115 = vunpack.c.l.b16 %v352
      %v1116 = vunpack.c.l.b16 %v353
      %v1117 = vunpack.c.l.b16 %v354
      %v1118 = vunpack.c.l.b16 %v355
      %v1119 = vunpack.c.l.b16 %v356
      %v1120 = vunpack.c.l.b16 %v357
      %v1121 = vunpack.c.l.b16 %v358
      %v1122 = vunpack.c.l.b16 %v359
      %v1123 = vunpack.c.l.b16 %v360
      %v1124 = vunpack.c.l.b16 %v361
      %v1125 = vunpack.c.l.b16 %v362
      %v1126 = vunpack.c.l.b16 %v363
      %v1127 = vunpack.c.l.b16 %v364
      %v1128 = vunpack.c.l.b16 %v365
      %v1129 = vunpack.c.l.b16 %v366
      %v1130 = vunpack.c.l.b16 %v367
      %v1131 = vunpack.c.l.b16 %v368
      %v1132 = vunpack.c.l.b16 %v369
      %v1133 = vunpack.c.l.b16 %v370
      %v1134 = vunpack.c.l.b16 %v371
      %v1135 = vunpack.c.l.b16 %v372
      %v1136 = vunpack.c.l.b16 %v373
      %v1137 = vunpack.c.l.b16 %v374
      %v1138 = vunpack.c.l.b16 %v375
      %v1139 = vunpack.c.l.b16 %v376
      %v1140 = vunpack.c.l.b16 %v377
      %v1141 = vunpack.c.l.b16 %v378
      %v1142 = vunpack.c.l.b16 %v379
      %v1143 = vunpack.c.l.b16 %v380
      %v1144 = vunpack.c.l.b16 %v381
      %v1145 = vunpack.c.l.b16 %v382
      %v1146 = vunpack.c.l.b16 %v383
      %v1147 = vunpack.c.l.b16 %v384
      %v1148 = vunpack.c.l.b16 %v385
      %v1149 = vunpack.c.l.b16 %v386
      %v1150 = vunpack.c.l.b16 %v387
      %v1151 = vunpack.c.l.b16 %v388
      %v1152 = vunpack.c.l.b16 %v389
      %v1153 = vunpack.c.l.b16 %v390
      %v1154 = vunpack.c.l.b16 %v391
      %v1155 = vunpack.c.l.b16 %v392
      %v1156 = vunpack.c.l.b16 %v393
      %v1157 = vunpack.c.l.b16 %v394
      %v1158 = vunpack.c.l.b16 %v395
      %v1159 = vunpack.c.l.b16 %v396
      %v1160 = vunpack.c.l.b16 %v397
      %v1161 = vunpack.c.l.b16 %v398
      %v1162 = vunpack.c.l.b16 %v399
      %v1163 = vunpack.c.l.b16 %v400
      %v1164 = vunpack.c.l.b16 %v401
      %v1165 = vunpack.c.l.b16 %v402
      %v1166 = vunpack.c.l.b16 %v403
      %v1167 = vpack.c.b16 %v1070, %v1069
      %v1168 = vpack.c.b16 %v1072, %v1071
      %v1169 = vpack.c.b16 %v1074, %v1073
      %v1170 = vpack.c.b16 %v1076, %v1075
      %v1171 = vpack.c.b16 %v1078, %v1077
      %v1172 = vpack.c.b16 %v1080, %v1079
      %v1173 = vpack.c.b16 %v1082, %v1081
      %v1174 = vpack.c.b16 %v1084, %v1083
      %v1175 = vpack.c.b16 %v1086, %v1085
      %v1176 = vpack.c.b16 %v1088, %v1087
      %v1177 = vpack.c.b16 %v1090, %v1089
      %v1178 = vpack.c.b16 %v1092, %v1091
      %v1179 = vpack.c.b16 %v1094, %v1093
      %v1180 = vpack.c.b16 %v1096, %v1095
      %v1181 = vpack.c.b16 %v1098, %v1097
      %v1182 = vpack.c.b16 %v1100, %v1099
      %v1183 = vpack.c.b16 %v1102, %v1101
      %v1184 = vpack.c.b16 %v1104, %v1103
      %v1185 = vpack.c.b16 %v1106, %v1105
      %v1186 = vpack.c.b16 %v1108, %v1107
      %v1187 = vpack.c.b16 %v1110, %v1109
      %v1188 = vpack.c.b16 %v1112, %v1111
      %v1189 = vpack.c.b16 %v1114, %v1113
      %v1190 = vpack.c.b16 %v1116, %v1115
      %v1191 = vpack.c.b16 %v1118, %v1117
      %v1192 = vpack.c.b16 %v1120, %v1119
      %v1193 = vpack.c.b16 %v1122, %v1121
      %v1194 = vpack.c.b16 %v1124, %v1123
      %v1195 = vpack.c.b16 %v1126, %v1125
      %v1196 = vpack.c.b16 %v1128, %v1127
      %v1197 = vpack.c.b16 %v1130, %v1129
      %v1198 = vpack.c.b16 %v1132, %v1131
      %v1199 = vpack.c.b16 %v1134, %v1133
      %v1200 = vpack.c.b16 %v1136, %v1135
      %v1201 = vpack.c.b16 %v1138, %v1137
      %v1202 = vpack.c.b16 %v1140, %v1139
      %v1203 = vpack.c.b16 %v1142, %v1141
      %v1204 = vpack.c.b16 %v1144, %v1143
      %v1205 = vpack.c.b16 %v1146, %v1145
      %v1206 = vpack.c.b16 %v1148, %v1147
      %v1207 = vpack.c.b16 %v1150, %v1149
      %v1208 = vpack.c.b16 %v1152, %v1151
      %v1209 = vpack.c.b16 %v1154, %v1153
      %v1210 = vpack.c.b16 %v1156, %v1155
      %v1211 = vpack.c.b16 %v1158, %v1157
      %v1212 = vpack.c.b16 %v1160, %v1159
      %v1213 = vpack.c.b16 %v1162, %v1161
      %v1214 = vpack.c.b16 %v1164, %v1163
      %v1215 = vpack.c.b16 %v1166, %v1165
      %vm1265 = vcmask 130048
      %v1267 = vsel %vm1265, %v769, 0
      %v1270 = vsel %vm1265, %v776, 0
      %v1273 = vsel %vm1265, %v783, 0
      %v1276 = vsel %vm1265, %v790, 0
      %v1279 = vsel %vm1265, %v797, 0
      %v1282 = vsel %vm1265, %v804, 0
      %v1285 = vsel %vm1265, %v811, 0
      %v1288 = vsel %vm1265, %v818, 0
      %v1291 = vsel %vm1265, %v825, 0
      %v1294 = vsel %vm1265, %v832, 0
      %v1297 = vsel %vm1265, %v839, 0
      %v1300 = vsel %vm1265, %v846, 0
      %v1303 = vsel %vm1265, %v853, 0
      %v1306 = vsel %vm1265, %v860, 0
      %v1309 = vsel %vm1265, %v867, 0
      %v1312 = vsel %vm1265, %v874, 0
      %1314 = vmatprep.subr.bf16.mxu0 0
      %1315 = vmatpush1.bf16.msra.mxu0 %v1174
      %1316 = vmatprep.subr.bf16.mxu0 0
      %1317 = vmatpush1.bf16.msra.mxu0 %v1173
      %1318 = vmatprep.subr.bf16.mxu0 0
      %1319 = vmatpush1.bf16.msra.mxu0 %v1172
      %1320 = vmatprep.subr.bf16.mxu0 0
      %1321 = vmatpush1.bf16.msra.mxu0 %v1171
      %1322 = vmatprep.subr.bf16.mxu0 0
      %1323 = vmatpush1.bf16.msra.mxu0 %v1170
      %1324 = vmatprep.subr.bf16.mxu0 0
      %1325 = vmatpush1.bf16.msra.mxu0 %v1169
      %1326 = vmatprep.subr.bf16.mxu0 0
      %1327 = vmatpush1.bf16.msra.mxu0 %v1168
      %1328 = vmatprep.subr.bf16.mxu0 0
      %1329 = vmatpush1.bf16.msra.mxu0 %v1167
      %1330 = vmatprep.subr.bf16.mxu0 0
      %1331 = vmatpush2.bf16.msra.mxu0 %v1182
      %1332 = vmatprep.subr.bf16.mxu0 0
      %1333 = vmatpush2.bf16.msra.mxu0 %v1181
      %1334 = vmatprep.subr.bf16.mxu0 0
      %1335 = vmatpush2.bf16.msra.mxu0 %v1180
      %1336 = vmatprep.subr.bf16.mxu0 0
      %1337 = vmatpush2.bf16.msra.mxu0 %v1179
      %1338 = vmatprep.subr.bf16.mxu0 0
      %1339 = vmatpush2.bf16.msra.mxu0 %v1178
      %1340 = vmatprep.subr.bf16.mxu0 0
      %1341 = vmatpush2.bf16.msra.mxu0 %v1177
      %1342 = vmatprep.subr.bf16.mxu0 0
      %1343 = vmatpush2.bf16.msra.mxu0 %v1176
      %1344 = vmatprep.subr.bf16.mxu0 0
      %1345 = vmatpush2.bf16.msra.mxu0 %v1175
      %1346 = vmatprep.mubr.bf16.mxu0 %v764
      %1347 = vmatmul.mubr.bf16.gmra.mxu0 %v763
      %v1348 = vpop.f32.mrf.mxu0
      %v1349 = vadd.f32 %v409, %v1348
      %v1350 = vpop.f32.mrf.mxu0
      %v1351 = vpop.f32.mrf.mxu0
      %v1352 = vadd.f32 %v409, %v1351
      %v1353 = vpop.f32.mrf.mxu0
      %1354 = vmatprep.mubr.bf16.mxu0 %v771
      %1355 = vmatmul.mubr.bf16.gmra.mxu0 %v770
      %v1356 = vpop.f32.mrf.mxu0
      %v1357 = vadd.f32 %v409, %v1356
      %v1358 = vpop.f32.mrf.mxu0
      %v1359 = vpop.f32.mrf.mxu0
      %v1360 = vadd.f32 %v409, %v1359
      %v1361 = vpop.f32.mrf.mxu0
      %1362 = vmatprep.mubr.bf16.mxu0 %v778
      %1363 = vmatmul.mubr.bf16.gmra.mxu0 %v777
      %v1364 = vpop.f32.mrf.mxu0
      %v1365 = vadd.f32 %v409, %v1364
      %v1366 = vpop.f32.mrf.mxu0
      %v1367 = vpop.f32.mrf.mxu0
      %v1368 = vadd.f32 %v409, %v1367
      %v1369 = vpop.f32.mrf.mxu0
      %1370 = vmatprep.mubr.bf16.mxu0 %v785
      %1371 = vmatmul.mubr.bf16.gmra.mxu0 %v784
      %v1372 = vpop.f32.mrf.mxu0
      %v1373 = vadd.f32 %v409, %v1372
      %v1374 = vpop.f32.mrf.mxu0
      %v1375 = vpop.f32.mrf.mxu0
      %v1376 = vadd.f32 %v409, %v1375
      %v1377 = vpop.f32.mrf.mxu0
      %1378 = vmatprep.mubr.bf16.mxu0 %v792
      %1379 = vmatmul.mubr.bf16.gmra.mxu0 %v791
      %v1380 = vpop.f32.mrf.mxu0
      %v1381 = vadd.f32 %v409, %v1380
      %v1382 = vpop.f32.mrf.mxu0
      %v1383 = vpop.f32.mrf.mxu0
      %v1384 = vadd.f32 %v409, %v1383
      %v1385 = vpop.f32.mrf.mxu0
      %1386 = vmatprep.mubr.bf16.mxu0 %v799
      %1387 = vmatmul.mubr.bf16.gmra.mxu0 %v798
      %v1388 = vpop.f32.mrf.mxu0
      %v1389 = vadd.f32 %v409, %v1388
      %v1390 = vpop.f32.mrf.mxu0
      %v1391 = vpop.f32.mrf.mxu0
      %v1392 = vadd.f32 %v409, %v1391
      %v1393 = vpop.f32.mrf.mxu0
      %1394 = vmatprep.mubr.bf16.mxu0 %v806
      %1395 = vmatmul.mubr.bf16.gmra.mxu0 %v805
      %v1396 = vpop.f32.mrf.mxu0
      %v1397 = vadd.f32 %v409, %v1396
      %v1398 = vpop.f32.mrf.mxu0
      %v1399 = vpop.f32.mrf.mxu0
      %v1400 = vadd.f32 %v409, %v1399
      %v1401 = vpop.f32.mrf.mxu0
      %1402 = vmatprep.mubr.bf16.mxu0 %v813
      %1403 = vmatmul.mubr.bf16.gmra.mxu0 %v812
      %v1404 = vpop.f32.mrf.mxu0
      %v1405 = vadd.f32 %v409, %v1404
      %v1406 = vpop.f32.mrf.mxu0
      %v1407 = vpop.f32.mrf.mxu0
      %v1408 = vadd.f32 %v409, %v1407
      %v1409 = vpop.f32.mrf.mxu0
      %1410 = vmatprep.mubr.bf16.mxu0 %v820
      %1411 = vmatmul.mubr.bf16.gmra.mxu0 %v819
      %v1412 = vpop.f32.mrf.mxu0
      %v1413 = vadd.f32 %v409, %v1412
      %v1414 = vpop.f32.mrf.mxu0
      %v1415 = vpop.f32.mrf.mxu0
      %v1416 = vadd.f32 %v409, %v1415
      %v1417 = vpop.f32.mrf.mxu0
      %1418 = vmatprep.mubr.bf16.mxu0 %v827
      %1419 = vmatmul.mubr.bf16.gmra.mxu0 %v826
      %v1420 = vpop.f32.mrf.mxu0
      %v1421 = vadd.f32 %v409, %v1420
      %v1422 = vpop.f32.mrf.mxu0
      %v1423 = vpop.f32.mrf.mxu0
      %v1424 = vadd.f32 %v409, %v1423
      %v1425 = vpop.f32.mrf.mxu0
      %1426 = vmatprep.mubr.bf16.mxu0 %v834
      %1427 = vmatmul.mubr.bf16.gmra.mxu0 %v833
      %v1428 = vpop.f32.mrf.mxu0
      %v1429 = vadd.f32 %v409, %v1428
      %v1430 = vpop.f32.mrf.mxu0
      %v1431 = vpop.f32.mrf.mxu0
      %v1432 = vadd.f32 %v409, %v1431
      %v1433 = vpop.f32.mrf.mxu0
      %1434 = vmatprep.mubr.bf16.mxu0 %v841
      %1435 = vmatmul.mubr.bf16.gmra.mxu0 %v840
      %v1436 = vpop.f32.mrf.mxu0
      %v1437 = vadd.f32 %v409, %v1436
      %v1438 = vpop.f32.mrf.mxu0
      %v1439 = vpop.f32.mrf.mxu0
      %v1440 = vadd.f32 %v409, %v1439
      %v1441 = vpop.f32.mrf.mxu0
      %1442 = vmatprep.mubr.bf16.mxu0 %v848
      %1443 = vmatmul.mubr.bf16.gmra.mxu0 %v847
      %v1444 = vpop.f32.mrf.mxu0
      %v1445 = vadd.f32 %v409, %v1444
      %v1446 = vpop.f32.mrf.mxu0
      %v1447 = vpop.f32.mrf.mxu0
      %v1448 = vadd.f32 %v409, %v1447
      %v1449 = vpop.f32.mrf.mxu0
      %1450 = vmatprep.mubr.bf16.mxu0 %v855
      %1451 = vmatmul.mubr.bf16.gmra.mxu0 %v854
      %v1452 = vpop.f32.mrf.mxu0
      %v1453 = vadd.f32 %v409, %v1452
      %v1454 = vpop.f32.mrf.mxu0
      %v1455 = vpop.f32.mrf.mxu0
      %v1456 = vadd.f32 %v409, %v1455
      %v1457 = vpop.f32.mrf.mxu0
      %1458 = vmatprep.mubr.bf16.mxu0 %v862
      %1459 = vmatmul.mubr.bf16.gmra.mxu0 %v861
      %v1460 = vpop.f32.mrf.mxu0
      %v1461 = vadd.f32 %v409, %v1460
      %v1462 = vpop.f32.mrf.mxu0
      %v1463 = vpop.f32.mrf.mxu0
      %v1464 = vadd.f32 %v409, %v1463
      %v1465 = vpop.f32.mrf.mxu0
      %1466 = vmatprep.mubr.bf16.mxu0 %v869
      %1467 = vmatmul.mubr.bf16.gmra.mxu0 %v868
      %v1468 = vpop.f32.mrf.mxu0
      %v1469 = vadd.f32 %v409, %v1468
      %v1470 = vpop.f32.mrf.mxu0
      %v1471 = vpop.f32.mrf.mxu0
      %v1472 = vadd.f32 %v409, %v1471
      %v1473 = vpop.f32.mrf.mxu0
      %1474 = vdwg.mxu0
      %1475 = vmatprep.subr.bf16.mxu0 0
      %1476 = vmatpush1.bf16.msra.mxu0 %v1190
      %1477 = vmatprep.subr.bf16.mxu0 0
      %1478 = vmatpush1.bf16.msra.mxu0 %v1189
      %1479 = vmatprep.subr.bf16.mxu0 0
      %1480 = vmatpush1.bf16.msra.mxu0 %v1188
      %1481 = vmatprep.subr.bf16.mxu0 0
      %1482 = vmatpush1.bf16.msra.mxu0 %v1187
      %1483 = vmatprep.subr.bf16.mxu0 0
      %1484 = vmatpush1.bf16.msra.mxu0 %v1186
      %1485 = vmatprep.subr.bf16.mxu0 0
      %1486 = vmatpush1.bf16.msra.mxu0 %v1185
      %1487 = vmatprep.subr.bf16.mxu0 0
      %1488 = vmatpush1.bf16.msra.mxu0 %v1184
      %1489 = vmatprep.subr.bf16.mxu0 0
      %1490 = vmatpush1.bf16.msra.mxu0 %v1183
      %1491 = vmatprep.subr.bf16.mxu0 0
      %1492 = vmatpush2.bf16.msra.mxu0 %v1198
      %1493 = vmatprep.subr.bf16.mxu0 0
      %1494 = vmatpush2.bf16.msra.mxu0 %v1197
      %1495 = vmatprep.subr.bf16.mxu0 0
      %1496 = vmatpush2.bf16.msra.mxu0 %v1196
      %1497 = vmatprep.subr.bf16.mxu0 0
      %1498 = vmatpush2.bf16.msra.mxu0 %v1195
      %1499 = vmatprep.subr.bf16.mxu0 0
      %1500 = vmatpush2.bf16.msra.mxu0 %v1194
      %1501 = vmatprep.subr.bf16.mxu0 0
      %1502 = vmatpush2.bf16.msra.mxu0 %v1193
      %1503 = vmatprep.subr.bf16.mxu0 0
      %1504 = vmatpush2.bf16.msra.mxu0 %v1192
      %1505 = vmatprep.subr.bf16.mxu0 0
      %1506 = vmatpush2.bf16.msra.mxu0 %v1191
      %1507 = vmatprep.mubr.bf16.mxu0 %v766
      %1508 = vmatmul.mubr.bf16.gmra.mxu0 %v765
      %v1509 = vpop.f32.mrf.mxu0
      %v1510 = vadd.f32 %v1349, %v1509
      %v1511 = vpop.f32.mrf.mxu0
      %v1512 = vpop.f32.mrf.mxu0
      %v1513 = vadd.f32 %v1352, %v1512
      %v1514 = vpop.f32.mrf.mxu0
      %1515 = vmatprep.mubr.bf16.mxu0 %v773
      %1516 = vmatmul.mubr.bf16.gmra.mxu0 %v772
      %v1517 = vpop.f32.mrf.mxu0
      %v1518 = vadd.f32 %v1357, %v1517
      %v1519 = vpop.f32.mrf.mxu0
      %v1520 = vpop.f32.mrf.mxu0
      %v1521 = vadd.f32 %v1360, %v1520
      %v1522 = vpop.f32.mrf.mxu0
      %1523 = vmatprep.mubr.bf16.mxu0 %v780
      %1524 = vmatmul.mubr.bf16.gmra.mxu0 %v779
      %v1525 = vpop.f32.mrf.mxu0
      %v1526 = vadd.f32 %v1365, %v1525
      %v1527 = vpop.f32.mrf.mxu0
      %v1528 = vpop.f32.mrf.mxu0
      %v1529 = vadd.f32 %v1368, %v1528
      %v1530 = vpop.f32.mrf.mxu0
      %1531 = vmatprep.mubr.bf16.mxu0 %v787
      %1532 = vmatmul.mubr.bf16.gmra.mxu0 %v786
      %v1533 = vpop.f32.mrf.mxu0
      %v1534 = vadd.f32 %v1373, %v1533
      %v1535 = vpop.f32.mrf.mxu0
      %v1536 = vpop.f32.mrf.mxu0
      %v1537 = vadd.f32 %v1376, %v1536
      %v1538 = vpop.f32.mrf.mxu0
      %1539 = vmatprep.mubr.bf16.mxu0 %v794
      %1540 = vmatmul.mubr.bf16.gmra.mxu0 %v793
      %v1541 = vpop.f32.mrf.mxu0
      %v1542 = vadd.f32 %v1381, %v1541
      %v1543 = vpop.f32.mrf.mxu0
      %v1544 = vpop.f32.mrf.mxu0
      %v1545 = vadd.f32 %v1384, %v1544
      %v1546 = vpop.f32.mrf.mxu0
      %1547 = vmatprep.mubr.bf16.mxu0 %v801
      %1548 = vmatmul.mubr.bf16.gmra.mxu0 %v800
      %v1549 = vpop.f32.mrf.mxu0
      %v1550 = vadd.f32 %v1389, %v1549
      %v1551 = vpop.f32.mrf.mxu0
      %v1552 = vpop.f32.mrf.mxu0
      %v1553 = vadd.f32 %v1392, %v1552
      %v1554 = vpop.f32.mrf.mxu0
      %1555 = vmatprep.mubr.bf16.mxu0 %v808
      %1556 = vmatmul.mubr.bf16.gmra.mxu0 %v807
      %v1557 = vpop.f32.mrf.mxu0
      %v1558 = vadd.f32 %v1397, %v1557
      %v1559 = vpop.f32.mrf.mxu0
      %v1560 = vpop.f32.mrf.mxu0
      %v1561 = vadd.f32 %v1400, %v1560
      %v1562 = vpop.f32.mrf.mxu0
      %1563 = vmatprep.mubr.bf16.mxu0 %v815
      %1564 = vmatmul.mubr.bf16.gmra.mxu0 %v814
      %v1565 = vpop.f32.mrf.mxu0
      %v1566 = vadd.f32 %v1405, %v1565
      %v1567 = vpop.f32.mrf.mxu0
      %v1568 = vpop.f32.mrf.mxu0
      %v1569 = vadd.f32 %v1408, %v1568
      %v1570 = vpop.f32.mrf.mxu0
      %1571 = vmatprep.mubr.bf16.mxu0 %v822
      %1572 = vmatmul.mubr.bf16.gmra.mxu0 %v821
      %v1573 = vpop.f32.mrf.mxu0
      %v1574 = vadd.f32 %v1413, %v1573
      %v1575 = vpop.f32.mrf.mxu0
      %v1576 = vpop.f32.mrf.mxu0
      %v1577 = vadd.f32 %v1416, %v1576
      %v1578 = vpop.f32.mrf.mxu0
      %1579 = vmatprep.mubr.bf16.mxu0 %v829
      %1580 = vmatmul.mubr.bf16.gmra.mxu0 %v828
      %v1581 = vpop.f32.mrf.mxu0
      %v1582 = vadd.f32 %v1421, %v1581
      %v1583 = vpop.f32.mrf.mxu0
      %v1584 = vpop.f32.mrf.mxu0
      %v1585 = vadd.f32 %v1424, %v1584
      %v1586 = vpop.f32.mrf.mxu0
      %1587 = vmatprep.mubr.bf16.mxu0 %v836
      %1588 = vmatmul.mubr.bf16.gmra.mxu0 %v835
      %v1589 = vpop.f32.mrf.mxu0
      %v1590 = vadd.f32 %v1429, %v1589
      %v1591 = vpop.f32.mrf.mxu0
      %v1592 = vpop.f32.mrf.mxu0
      %v1593 = vadd.f32 %v1432, %v1592
      %v1594 = vpop.f32.mrf.mxu0
      %1595 = vmatprep.mubr.bf16.mxu0 %v843
      %1596 = vmatmul.mubr.bf16.gmra.mxu0 %v842
      %v1597 = vpop.f32.mrf.mxu0
      %v1598 = vadd.f32 %v1437, %v1597
      %v1599 = vpop.f32.mrf.mxu0
      %v1600 = vpop.f32.mrf.mxu0
      %v1601 = vadd.f32 %v1440, %v1600
      %v1602 = vpop.f32.mrf.mxu0
      %1603 = vmatprep.mubr.bf16.mxu0 %v850
      %1604 = vmatmul.mubr.bf16.gmra.mxu0 %v849
      %v1605 = vpop.f32.mrf.mxu0
      %v1606 = vadd.f32 %v1445, %v1605
      %v1607 = vpop.f32.mrf.mxu0
      %v1608 = vpop.f32.mrf.mxu0
      %v1609 = vadd.f32 %v1448, %v1608
      %v1610 = vpop.f32.mrf.mxu0
      %1611 = vmatprep.mubr.bf16.mxu0 %v857
      %1612 = vmatmul.mubr.bf16.gmra.mxu0 %v856
      %v1613 = vpop.f32.mrf.mxu0
      %v1614 = vadd.f32 %v1453, %v1613
      %v1615 = vpop.f32.mrf.mxu0
      %v1616 = vpop.f32.mrf.mxu0
      %v1617 = vadd.f32 %v1456, %v1616
      %v1618 = vpop.f32.mrf.mxu0
      %1619 = vmatprep.mubr.bf16.mxu0 %v864
      %1620 = vmatmul.mubr.bf16.gmra.mxu0 %v863
      %v1621 = vpop.f32.mrf.mxu0
      %v1622 = vadd.f32 %v1461, %v1621
      %v1623 = vpop.f32.mrf.mxu0
      %v1624 = vpop.f32.mrf.mxu0
      %v1625 = vadd.f32 %v1464, %v1624
      %v1626 = vpop.f32.mrf.mxu0
      %1627 = vmatprep.mubr.bf16.mxu0 %v871
      %1628 = vmatmul.mubr.bf16.gmra.mxu0 %v870
      %v1629 = vpop.f32.mrf.mxu0
      %v1630 = vadd.f32 %v1469, %v1629
      %v1631 = vpop.f32.mrf.mxu0
      %v1632 = vpop.f32.mrf.mxu0
      %v1633 = vadd.f32 %v1472, %v1632
      %v1634 = vpop.f32.mrf.mxu0
      %1635 = vdwg.mxu0
      %1636 = vmatprep.subr.bf16.mxu0 0
      %1637 = vmatpush1.bf16.msra.mxu0 %v1206
      %1638 = vmatprep.subr.bf16.mxu0 0
      %1639 = vmatpush1.bf16.msra.mxu0 %v1205
      %1640 = vmatprep.subr.bf16.mxu0 0
      %1641 = vmatpush1.bf16.msra.mxu0 %v1204
      %1642 = vmatprep.subr.bf16.mxu0 0
      %1643 = vmatpush1.bf16.msra.mxu0 %v1203
      %1644 = vmatprep.subr.bf16.mxu0 0
      %1645 = vmatpush1.bf16.msra.mxu0 %v1202
      %1646 = vmatprep.subr.bf16.mxu0 0
      %1647 = vmatpush1.bf16.msra.mxu0 %v1201
      %1648 = vmatprep.subr.bf16.mxu0 0
      %1649 = vmatpush1.bf16.msra.mxu0 %v1200
      %1650 = vmatprep.subr.bf16.mxu0 0
      %1651 = vmatpush1.bf16.msra.mxu0 %v1199
      %1652 = vmatprep.subr.bf16.mxu0 0
      %1653 = vmatpush2.bf16.msra.mxu0 %v1214
      %1654 = vmatprep.subr.bf16.mxu0 0
      %1655 = vmatpush2.bf16.msra.mxu0 %v1213
      %1656 = vmatprep.subr.bf16.mxu0 0
      %1657 = vmatpush2.bf16.msra.mxu0 %v1212
      %1658 = vmatprep.subr.bf16.mxu0 0
      %1659 = vmatpush2.bf16.msra.mxu0 %v1211
      %1660 = vmatprep.subr.bf16.mxu0 0
      %1661 = vmatpush2.bf16.msra.mxu0 %v1210
      %1662 = vmatprep.subr.bf16.mxu0 0
      %1663 = vmatpush2.bf16.msra.mxu0 %v1209
      %1664 = vmatprep.subr.bf16.mxu0 0
      %1665 = vmatpush2.bf16.msra.mxu0 %v1208
      %1666 = vmatprep.subr.bf16.mxu0 0
      %1667 = vmatpush2.bf16.msra.mxu0 %v1207
      %1668 = vmatprep.mubr.bf16.mxu0 %v768
      %1669 = vmatmul.mubr.bf16.gmra.mxu0 %v767
      %v1670 = vpop.f32.mrf.mxu0
      %v1671 = vadd.f32 %v1510, %v1670
      %v1672 = vpop.f32.mrf.mxu0
      %v1673 = vpop.f32.mrf.mxu0
      %v1674 = vadd.f32 %v1513, %v1673
      %v1675 = vpop.f32.mrf.mxu0
      %1676 = vmatprep.mubr.bf16.mxu0 %v775
      %1677 = vmatmul.mubr.bf16.gmra.mxu0 %v774
      %v1678 = vpop.f32.mrf.mxu0
      %v1679 = vadd.f32 %v1518, %v1678
      %v1680 = vpop.f32.mrf.mxu0
      %v1681 = vpop.f32.mrf.mxu0
      %v1682 = vadd.f32 %v1521, %v1681
      %v1683 = vpop.f32.mrf.mxu0
      %1684 = vmatprep.mubr.bf16.mxu0 %v782
      %1685 = vmatmul.mubr.bf16.gmra.mxu0 %v781
      %v1686 = vpop.f32.mrf.mxu0
      %v1687 = vadd.f32 %v1526, %v1686
      %v1688 = vpop.f32.mrf.mxu0
      %v1689 = vpop.f32.mrf.mxu0
      %v1690 = vadd.f32 %v1529, %v1689
      %v1691 = vpop.f32.mrf.mxu0
      %1692 = vmatprep.mubr.bf16.mxu0 %v789
      %1693 = vmatmul.mubr.bf16.gmra.mxu0 %v788
      %v1694 = vpop.f32.mrf.mxu0
      %v1695 = vadd.f32 %v1534, %v1694
      %v1696 = vpop.f32.mrf.mxu0
      %v1697 = vpop.f32.mrf.mxu0
      %v1698 = vadd.f32 %v1537, %v1697
      %v1699 = vpop.f32.mrf.mxu0
      %1700 = vmatprep.mubr.bf16.mxu0 %v796
      %1701 = vmatmul.mubr.bf16.gmra.mxu0 %v795
      %v1702 = vpop.f32.mrf.mxu0
      %v1703 = vadd.f32 %v1542, %v1702
      %v1704 = vpop.f32.mrf.mxu0
      %v1705 = vpop.f32.mrf.mxu0
      %v1706 = vadd.f32 %v1545, %v1705
      %v1707 = vpop.f32.mrf.mxu0
      %1708 = vmatprep.mubr.bf16.mxu0 %v803
      %1709 = vmatmul.mubr.bf16.gmra.mxu0 %v802
      %v1710 = vpop.f32.mrf.mxu0
      %v1711 = vadd.f32 %v1550, %v1710
      %v1712 = vpop.f32.mrf.mxu0
      %v1713 = vpop.f32.mrf.mxu0
      %v1714 = vadd.f32 %v1553, %v1713
      %v1715 = vpop.f32.mrf.mxu0
      %1716 = vmatprep.mubr.bf16.mxu0 %v810
      %1717 = vmatmul.mubr.bf16.gmra.mxu0 %v809
      %v1718 = vpop.f32.mrf.mxu0
      %v1719 = vadd.f32 %v1558, %v1718
      %v1720 = vpop.f32.mrf.mxu0
      %v1721 = vpop.f32.mrf.mxu0
      %v1722 = vadd.f32 %v1561, %v1721
      %v1723 = vpop.f32.mrf.mxu0
      %1724 = vmatprep.mubr.bf16.mxu0 %v817
      %1725 = vmatmul.mubr.bf16.gmra.mxu0 %v816
      %v1726 = vpop.f32.mrf.mxu0
      %v1727 = vadd.f32 %v1566, %v1726
      %v1728 = vpop.f32.mrf.mxu0
      %v1729 = vpop.f32.mrf.mxu0
      %v1730 = vadd.f32 %v1569, %v1729
      %v1731 = vpop.f32.mrf.mxu0
      %1732 = vmatprep.mubr.bf16.mxu0 %v824
      %1733 = vmatmul.mubr.bf16.gmra.mxu0 %v823
      %v1734 = vpop.f32.mrf.mxu0
      %v1735 = vadd.f32 %v1574, %v1734
      %v1736 = vpop.f32.mrf.mxu0
      %v1737 = vpop.f32.mrf.mxu0
      %v1738 = vadd.f32 %v1577, %v1737
      %v1739 = vpop.f32.mrf.mxu0
      %1740 = vmatprep.mubr.bf16.mxu0 %v831
      %1741 = vmatmul.mubr.bf16.gmra.mxu0 %v830
      %v1742 = vpop.f32.mrf.mxu0
      %v1743 = vadd.f32 %v1582, %v1742
      %v1744 = vpop.f32.mrf.mxu0
      %v1745 = vpop.f32.mrf.mxu0
      %v1746 = vadd.f32 %v1585, %v1745
      %v1747 = vpop.f32.mrf.mxu0
      %1748 = vmatprep.mubr.bf16.mxu0 %v838
      %1749 = vmatmul.mubr.bf16.gmra.mxu0 %v837
      %v1750 = vpop.f32.mrf.mxu0
      %v1751 = vadd.f32 %v1590, %v1750
      %v1752 = vpop.f32.mrf.mxu0
      %v1753 = vpop.f32.mrf.mxu0
      %v1754 = vadd.f32 %v1593, %v1753
      %v1755 = vpop.f32.mrf.mxu0
      %1756 = vmatprep.mubr.bf16.mxu0 %v845
      %1757 = vmatmul.mubr.bf16.gmra.mxu0 %v844
      %v1758 = vpop.f32.mrf.mxu0
      %v1759 = vadd.f32 %v1598, %v1758
      %v1760 = vpop.f32.mrf.mxu0
      %v1761 = vpop.f32.mrf.mxu0
      %v1762 = vadd.f32 %v1601, %v1761
      %v1763 = vpop.f32.mrf.mxu0
      %1764 = vmatprep.mubr.bf16.mxu0 %v852
      %1765 = vmatmul.mubr.bf16.gmra.mxu0 %v851
      %v1766 = vpop.f32.mrf.mxu0
      %v1767 = vadd.f32 %v1606, %v1766
      %v1768 = vpop.f32.mrf.mxu0
      %v1769 = vpop.f32.mrf.mxu0
      %v1770 = vadd.f32 %v1609, %v1769
      %v1771 = vpop.f32.mrf.mxu0
      %1772 = vmatprep.mubr.bf16.mxu0 %v859
      %1773 = vmatmul.mubr.bf16.gmra.mxu0 %v858
      %v1774 = vpop.f32.mrf.mxu0
      %v1775 = vadd.f32 %v1614, %v1774
      %v1776 = vpop.f32.mrf.mxu0
      %v1777 = vpop.f32.mrf.mxu0
      %v1778 = vadd.f32 %v1617, %v1777
      %v1779 = vpop.f32.mrf.mxu0
      %1780 = vmatprep.mubr.bf16.mxu0 %v866
      %1781 = vmatmul.mubr.bf16.gmra.mxu0 %v865
      %v1782 = vpop.f32.mrf.mxu0
      %v1783 = vadd.f32 %v1622, %v1782
      %v1784 = vpop.f32.mrf.mxu0
      %v1785 = vpop.f32.mrf.mxu0
      %v1786 = vadd.f32 %v1625, %v1785
      %v1787 = vpop.f32.mrf.mxu0
      %1788 = vmatprep.mubr.bf16.mxu0 %v873
      %1789 = vmatmul.mubr.bf16.gmra.mxu0 %v872
      %v1790 = vpop.f32.mrf.mxu0
      %v1791 = vadd.f32 %v1630, %v1790
      %v1792 = vpop.f32.mrf.mxu0
      %v1793 = vpop.f32.mrf.mxu0
      %v1794 = vadd.f32 %v1633, %v1793
      %v1795 = vpop.f32.mrf.mxu0
      %1796 = vdwg.mxu0
      %1797 = vmatprep.subr.bf16.mxu0 0
      %1798 = vmatpush1.bf16.msra.mxu0 0
      %1799 = vmatprep.subr.bf16.mxu0 0
      %1800 = vmatpush1.bf16.msra.mxu0 0
      %1801 = vmatprep.subr.bf16.mxu0 0
      %1802 = vmatpush1.bf16.msra.mxu0 0
      %1803 = vmatprep.subr.bf16.mxu0 0
      %1804 = vmatpush1.bf16.msra.mxu0 0
      %1805 = vmatprep.subr.bf16.mxu0 0
      %1806 = vmatpush1.bf16.msra.mxu0 0
      %1807 = vmatprep.subr.bf16.mxu0 0
      %1808 = vmatpush1.bf16.msra.mxu0 0
      %1809 = vmatprep.subr.bf16.mxu0 0
      %1810 = vmatpush1.bf16.msra.mxu0 0
      %1811 = vmatprep.subr.bf16.mxu0 0
      %1812 = vmatpush1.bf16.msra.mxu0 %v1215
      %1813 = vmatprep.subr.bf16.mxu0 0
      %1814 = vmatpush2.bf16.msra.mxu0 0
      %1815 = vmatprep.subr.bf16.mxu0 0
      %1816 = vmatpush2.bf16.msra.mxu0 0
      %1817 = vmatprep.subr.bf16.mxu0 0
      %1818 = vmatpush2.bf16.msra.mxu0 0
      %1819 = vmatprep.subr.bf16.mxu0 0
      %1820 = vmatpush2.bf16.msra.mxu0 0
      %1821 = vmatprep.subr.bf16.mxu0 0
      %1822 = vmatpush2.bf16.msra.mxu0 0
      %1823 = vmatprep.subr.bf16.mxu0 0
      %1824 = vmatpush2.bf16.msra.mxu0 0
      %1825 = vmatprep.subr.bf16.mxu0 0
      %1826 = vmatpush2.bf16.msra.mxu0 0
      %1827 = vmatprep.subr.bf16.mxu0 0
      %1828 = vmatpush2.bf16.msra.mxu0 0
      %1829 = vmatprep.mubr.bf16.mxu0 0
      %1830 = vmatmul.mubr.bf16.gmra.mxu0 %v1267
      %v1831 = vpop.f32.mrf.mxu0
      %v1832 = vadd.f32 %v1671, %v1831
      %v1833 = vpop.f32.mrf.mxu0
      %v1834 = vpop.f32.mrf.mxu0
      %v1835 = vadd.f32 %v1674, %v1834
      %v1836 = vpop.f32.mrf.mxu0
      %1837 = vmatprep.mubr.bf16.mxu0 0
      %1838 = vmatmul.mubr.bf16.gmra.mxu0 %v1270
      %v1839 = vpop.f32.mrf.mxu0
      %v1840 = vadd.f32 %v1679, %v1839
      %v1841 = vpop.f32.mrf.mxu0
      %v1842 = vpop.f32.mrf.mxu0
      %v1843 = vadd.f32 %v1682, %v1842
      %v1844 = vpop.f32.mrf.mxu0
      %1845 = vmatprep.mubr.bf16.mxu0 0
      %1846 = vmatmul.mubr.bf16.gmra.mxu0 %v1273
      %v1847 = vpop.f32.mrf.mxu0
      %v1848 = vadd.f32 %v1687, %v1847
      %v1849 = vpop.f32.mrf.mxu0
      %v1850 = vpop.f32.mrf.mxu0
      %v1851 = vadd.f32 %v1690, %v1850
      %v1852 = vpop.f32.mrf.mxu0
      %1853 = vmatprep.mubr.bf16.mxu0 0
      %1854 = vmatmul.mubr.bf16.gmra.mxu0 %v1276
      %v1855 = vpop.f32.mrf.mxu0
      %v1856 = vadd.f32 %v1695, %v1855
      %v1857 = vpop.f32.mrf.mxu0
      %v1858 = vpop.f32.mrf.mxu0
      %v1859 = vadd.f32 %v1698, %v1858
      %v1860 = vpop.f32.mrf.mxu0
      %1861 = vmatprep.mubr.bf16.mxu0 0
      %1862 = vmatmul.mubr.bf16.gmra.mxu0 %v1279
      %v1863 = vpop.f32.mrf.mxu0
      %v1864 = vadd.f32 %v1703, %v1863
      %v1865 = vpop.f32.mrf.mxu0
      %v1866 = vpop.f32.mrf.mxu0
      %v1867 = vadd.f32 %v1706, %v1866
      %v1868 = vpop.f32.mrf.mxu0
      %1869 = vmatprep.mubr.bf16.mxu0 0
      %1870 = vmatmul.mubr.bf16.gmra.mxu0 %v1282
      %v1871 = vpop.f32.mrf.mxu0
      %v1872 = vadd.f32 %v1711, %v1871
      %v1873 = vpop.f32.mrf.mxu0
      %v1874 = vpop.f32.mrf.mxu0
      %v1875 = vadd.f32 %v1714, %v1874
      %v1876 = vpop.f32.mrf.mxu0
      %1877 = vmatprep.mubr.bf16.mxu0 0
      %1878 = vmatmul.mubr.bf16.gmra.mxu0 %v1285
      %v1879 = vpop.f32.mrf.mxu0
      %v1880 = vadd.f32 %v1719, %v1879
      %v1881 = vpop.f32.mrf.mxu0
      %v1882 = vpop.f32.mrf.mxu0
      %v1883 = vadd.f32 %v1722, %v1882
      %v1884 = vpop.f32.mrf.mxu0
      %1885 = vmatprep.mubr.bf16.mxu0 0
      %1886 = vmatmul.mubr.bf16.gmra.mxu0 %v1288
      %v1887 = vpop.f32.mrf.mxu0
      %v1888 = vadd.f32 %v1727, %v1887
      %v1889 = vpop.f32.mrf.mxu0
      %v1890 = vpop.f32.mrf.mxu0
      %v1891 = vadd.f32 %v1730, %v1890
      %v1892 = vpop.f32.mrf.mxu0
      %1893 = vmatprep.mubr.bf16.mxu0 0
      %1894 = vmatmul.mubr.bf16.gmra.mxu0 %v1291
      %v1895 = vpop.f32.mrf.mxu0
      %v1896 = vadd.f32 %v1735, %v1895
      %v1897 = vpop.f32.mrf.mxu0
      %v1898 = vpop.f32.mrf.mxu0
      %v1899 = vadd.f32 %v1738, %v1898
      %v1900 = vpop.f32.mrf.mxu0
      %1901 = vmatprep.mubr.bf16.mxu0 0
      %1902 = vmatmul.mubr.bf16.gmra.mxu0 %v1294
      %v1903 = vpop.f32.mrf.mxu0
      %v1904 = vadd.f32 %v1743, %v1903
      %v1905 = vpop.f32.mrf.mxu0
      %v1906 = vpop.f32.mrf.mxu0
      %v1907 = vadd.f32 %v1746, %v1906
      %v1908 = vpop.f32.mrf.mxu0
      %1909 = vmatprep.mubr.bf16.mxu0 0
      %1910 = vmatmul.mubr.bf16.gmra.mxu0 %v1297
      %v1911 = vpop.f32.mrf.mxu0
      %v1912 = vadd.f32 %v1751, %v1911
      %v1913 = vpop.f32.mrf.mxu0
      %v1914 = vpop.f32.mrf.mxu0
      %v1915 = vadd.f32 %v1754, %v1914
      %v1916 = vpop.f32.mrf.mxu0
      %1917 = vmatprep.mubr.bf16.mxu0 0
      %1918 = vmatmul.mubr.bf16.gmra.mxu0 %v1300
      %v1919 = vpop.f32.mrf.mxu0
      %v1920 = vadd.f32 %v1759, %v1919
      %v1921 = vpop.f32.mrf.mxu0
      %v1922 = vpop.f32.mrf.mxu0
      %v1923 = vadd.f32 %v1762, %v1922
      %v1924 = vpop.f32.mrf.mxu0
      %1925 = vmatprep.mubr.bf16.mxu0 0
      %1926 = vmatmul.mubr.bf16.gmra.mxu0 %v1303
      %v1927 = vpop.f32.mrf.mxu0
      %v1928 = vadd.f32 %v1767, %v1927
      %v1929 = vpop.f32.mrf.mxu0
      %v1930 = vpop.f32.mrf.mxu0
      %v1931 = vadd.f32 %v1770, %v1930
      %v1932 = vpop.f32.mrf.mxu0
      %1933 = vmatprep.mubr.bf16.mxu0 0
      %1934 = vmatmul.mubr.bf16.gmra.mxu0 %v1306
      %v1935 = vpop.f32.mrf.mxu0
      %v1936 = vadd.f32 %v1775, %v1935
      %v1937 = vpop.f32.mrf.mxu0
      %v1938 = vpop.f32.mrf.mxu0
      %v1939 = vadd.f32 %v1778, %v1938
      %v1940 = vpop.f32.mrf.mxu0
      %1941 = vmatprep.mubr.bf16.mxu0 0
      %1942 = vmatmul.mubr.bf16.gmra.mxu0 %v1309
      %v1943 = vpop.f32.mrf.mxu0
      %v1944 = vadd.f32 %v1783, %v1943
      %v1945 = vpop.f32.mrf.mxu0
      %v1946 = vpop.f32.mrf.mxu0
      %v1947 = vadd.f32 %v1786, %v1946
      %v1948 = vpop.f32.mrf.mxu0
      %1949 = vmatprep.mubr.bf16.mxu0 0
      %1950 = vmatmul.mubr.bf16.gmra.mxu0 %v1312
      %v1951 = vpop.f32.mrf.mxu0
      %v1952 = vadd.f32 %v1791, %v1951
      %v1953 = vpop.f32.mrf.mxu0
      %v1954 = vpop.f32.mrf.mxu0
      %v1955 = vadd.f32 %v1794, %v1954
      %v1956 = vpop.f32.mrf.mxu0
      %1957 = vdwg.mxu0
      %v1958 = vtanh.pop %v1832
      %v1959 = vtanh.pop %v1835
      %v1960 = vtanh.pop %v1840
      %v1961 = vtanh.pop %v1843
      %v1962 = vtanh.pop %v1848
      %v1963 = vtanh.pop %v1851
      %v1964 = vtanh.pop %v1856
      %v1965 = vtanh.pop %v1859
      %v1966 = vtanh.pop %v1864
      %v1967 = vtanh.pop %v1867
      %v1968 = vtanh.pop %v1872
      %v1969 = vtanh.pop %v1875
      %v1970 = vtanh.pop %v1880
      %v1971 = vtanh.pop %v1883
      %v1972 = vtanh.pop %v1888
      %v1973 = vtanh.pop %v1891
      %v1974 = vtanh.pop %v1896
      %v1975 = vtanh.pop %v1899
      %v1976 = vtanh.pop %v1904
      %v1977 = vtanh.pop %v1907
      %v1978 = vtanh.pop %v1912
      %v1979 = vtanh.pop %v1915
      %v1980 = vtanh.pop %v1920
      %v1981 = vtanh.pop %v1923
      %v1982 = vtanh.pop %v1928
      %v1983 = vtanh.pop %v1931
      %v1984 = vtanh.pop %v1936
      %v1985 = vtanh.pop %v1939
      %v1986 = vtanh.pop %v1944
      %v1987 = vtanh.pop %v1947
      %v1988 = vtanh.pop %v1952
      %v1989 = vtanh.pop %v1955
      %vm1990 = vcmask 31744
      %1991 = vst.msk [vmem:[%s175] sm:$0xff] %vm1990, %v1958
      %1992 = vst.msk [vmem:[%s175 + $0x8] sm:$0xff] %vm1990, %v1959
      %1993 = vst.msk [vmem:[%s175 + $0x10] sm:$0xff] %vm1990, %v1960
      %1994 = vst.msk [vmem:[%s175 + $0x18] sm:$0xff] %vm1990, %v1961
      %1995 = vst.msk [vmem:[%s175 + $0x20] sm:$0xff] %vm1990, %v1962
      %1996 = vst.msk [vmem:[%s175 + $0x28] sm:$0xff] %vm1990, %v1963
      %1997 = vst.msk [vmem:[%s175 + $0x30] sm:$0xff] %vm1990, %v1964
      %1998 = vst.msk [vmem:[%s175 + $0x38] sm:$0xff] %vm1990, %v1965
      %1999 = vst.msk [vmem:[%s175 + $0x40] sm:$0xff] %vm1990, %v1966
      %2000 = vst.msk [vmem:[%s175 + $0x48] sm:$0xff] %vm1990, %v1967
      %2001 = vst.msk [vmem:[%s175 + $0x50] sm:$0xff] %vm1990, %v1968
      %2002 = vst.msk [vmem:[%s175 + $0x58] sm:$0xff] %vm1990, %v1969
      %2003 = vst.msk [vmem:[%s175 + $0x60] sm:$0xff] %vm1990, %v1970
      %2004 = vst.msk [vmem:[%s175 + $0x68] sm:$0xff] %vm1990, %v1971
      %2005 = vst.msk [vmem:[%s175 + $0x70] sm:$0xff] %vm1990, %v1972
      %2006 = vst.msk [vmem:[%s175 + $0x78] sm:$0xff] %vm1990, %v1973
      %2007 = vst.msk [vmem:[%s175 + $0x80] sm:$0xff] %vm1990, %v1974
      %2008 = vst.msk [vmem:[%s175 + $0x88] sm:$0xff] %vm1990, %v1975
      %2009 = vst.msk [vmem:[%s175 + $0x90] sm:$0xff] %vm1990, %v1976
      %2010 = vst.msk [vmem:[%s175 + $0x98] sm:$0xff] %vm1990, %v1977
      %2011 = vst.msk [vmem:[%s175 + $0xa0] sm:$0xff] %vm1990, %v1978
      %2012 = vst.msk [vmem:[%s175 + $0xa8] sm:$0xff] %vm1990, %v1979
      %2013 = vst.msk [vmem:[%s175 + $0xb0] sm:$0xff] %vm1990, %v1980
      %2014 = vst.msk [vmem:[%s175 + $0xb8] sm:$0xff] %vm1990, %v1981
      %2015 = vst.msk [vmem:[%s175 + $0xc0] sm:$0xff] %vm1990, %v1982
      %2016 = vst.msk [vmem:[%s175 + $0xc8] sm:$0xff] %vm1990, %v1983
      %2017 = vst.msk [vmem:[%s175 + $0xd0] sm:$0xff] %vm1990, %v1984
      %2018 = vst.msk [vmem:[%s175 + $0xd8] sm:$0xff] %vm1990, %v1985
      %2019 = vst.msk [vmem:[%s175 + $0xe0] sm:$0xff] %vm1990, %v1986
      %2020 = vst.msk [vmem:[%s175 + $0xe8] sm:$0xff] %vm1990, %v1987
      %2021 = vst.msk [vmem:[%s175 + $0xf0] sm:$0xff] %vm1990, %v1988
      %2022 = vst.msk [vmem:[%s175 + $0xf8] sm:$0xff] %vm1990, %v1989
      %s2023 = smul.u32 32, %s14
      %p2024 = scmp.lt.s32.totalorder %s2023, 63
      %s2025 = scalar_select %p2024, %s2023, 63
      %s2026 = smul.addr %s2025, 8
      %s2027 = scalar_lea.vmem %s3, %s2026
      // Predicated region
      $region33: #{cycle_generator_forward.45} parent=31 // pred_check
        %p2028 = pneg %p100
      $region34: #{cycle_generator_forward.45} parent=31 // pred_check_branch
        %2030 = sbr.rel (%p2028) target = $region36
      $region35: #{cycle_generator_forward.45} parent=31 // pred_region
        %s2031 = smul.u32 32, %s14
      $region36: #{cycle_generator_forward.45} parent=31 // pred_fallthru
        _
    $region32: #{cycle_generator_forward.45} parent=5 // pred_fallthru
      _
    %p2032 = scmp.le.s32.totalorder 2, %s9
    // Predicated region
    $region37: #{cycle_generator_forward.45} parent=5 // pred_check
      %p2033 = pneg %p2032
    $region38: #{cycle_generator_forward.45} parent=5 // pred_check_branch
      %2035 = sbr.rel (%p2033) target = $region40
    $region39: #{cycle_generator_forward.45} parent=5 // pred_region
      %s2036 = ssub.s32 %s9, 2
      // Predicated region
      $region41: #{cycle_generator_forward.45} parent=39 // pred_check
        %p2037 = pneg %p106
      $region42: #{cycle_generator_forward.45} parent=39 // pred_check_branch
        %2039 = sbr.rel (%p2037) target = $region44
      $region43: #{cycle_generator_forward.45} parent=39 // pred_region
        %s2040 = smul.u32 32, %s15
        %p2041 = scmp.lt.s32.totalorder %s2040, 63
        %s2042 = scalar_select %p2041, %s2040, 63
        %s2043 = smul.addr %s2042, 8
        %s2044 = scalar_lea.vmem %s3, %s2043
      $region44: #{cycle_generator_forward.45} parent=39 // pred_fallthru
        _
    $region40: #{cycle_generator_forward.45} parent=5 // pred_fallthru
      _
  $region6: #{cycle_generator_forward.45} parent=0 // loop_footer
    %s13 = sadd.s32 1, %s9
  $region7: #{cycle_generator_forward.45} parent=0 // loop_footer_branch
    %8 = sbr.rel target = $region3
  $region8: #{cycle_generator_forward.45} parent=0 // loop_exit
    _

</llo_original>
